<compile_context>
chip_gen: v7x
topology: tpu7x:2x2x1
jax: 0.10.0
libtpu: 0.0.40
codegen_flags: <defaults>
</compile_context>

<pallas_src>
import jax
import jax.numpy as jnp
from jax import lax
from jax.experimental import pallas as pl
from jax.experimental.pallas import tpu as pltpu

PLANE1, PLANE2, PLANE3, PLANE4 = 32, 64, 128, 256
INPUT_CHANNEL = 16          # spatial H of the NCHW input
WINDOW_SIZE = 16            # spatial W of the NCHW input
NUM_CLASSES = 8
BATCH = 2

# Static layer geometry (all loops in the kernel are unrolled over these).
H0, W0 = INPUT_CHANNEL, WINDOW_SIZE    # 16 x 16 input
H1, W1 = H0, W0                        # cnn1 out (stride 1): 16 x 16 x 32
H2, W2 = H1 // 2, W1 // 2              # cnn2 out (stride 2):  8 x  8 x 64
H3, W3 = H2, W2                        # cnn3 out (stride 1):  8 x  8 x 128
H4, W4 = H3 // 2, W3 // 2              # cnn4 out (stride 2):  4 x  4 x 256
WP0 = W0 + 2                           # 18: padded row width of 16-wide maps
WP2 = W2 + 2                           # 10: padded row width of  8-wide maps


def _round_up(x, m):
    return ((x + m - 1) // m) * m


def _buf_rows(hp, wp):
    # Zero-padded, row-major-flattened activation buffer.  +8 extra zero rows
    # so the shifted tap reads (max start offset 2*wp + 2) never run past the
    # end of the buffer; rounded to a multiple of 8 sublanes.
    return _round_up(hp * wp + 8, 8)


R_IN = _buf_rows(H0 + 2, WP0)   # 336 rows x   1 lane  (network input)
R_B1 = _buf_rows(H1 + 2, WP0)   # 336 rows x  32 lanes (after cnn1)
R_B2 = _buf_rows(H2 + 2, WP2)   # 112 rows x  64 lanes (after cnn2)
R_B3 = _buf_rows(H3 + 2, WP2)   # 112 rows x 128 lanes (after cnn3)


# ----------------------------------------------------------------------------
# The single fused kernel: one grid step == one sample, everything in VMEM.
# ----------------------------------------------------------------------------
def _cnn_nomam_kernel(x_ref,
                      w1_ref, b1_ref, a1_ref,
                      w2_ref, b2_ref, a2_ref,
                      w3_ref, b3_ref, a3_ref,
                      w4_ref, b4_ref, a4_ref,
                      wfc_ref, bfc_ref,
                      out_ref,
                      buf1, buf2, buf3):

    def conv_taps(src_ref, w_ref, wp, ho, stride, cin_is_one=False):
        # src_ref: (rows, Cin) zero-padded activation, flattened row-major with
        # row-chunk width `wp`.  Accumulate the 9 taps in the *padded* output
        # domain (chunk width wp); columns >= Wo of each chunk are garbage and
        # are dropped later by store_padded / the fc gather.
        rows = ho * wp
        acc = None
        for kh in range(3):
            for kw in range(3):
                off = kh * wp + kw
                if stride == 1:
                    xv = src_ref[pl.ds(off, rows), :]
                else:  # strided-load pattern: ref[pl.ds(start, size, stride)]
                    xv = src_ref[pl.ds(off, rows, stride=stride), :]
                wt = w_ref[kh * 3 + kw]                    # (Cin, Cout)
                if cin_is_one:
                    tap = xv * wt                          # VPU broadcast FMA
                else:
                    tap = jnp.dot(xv, wt,
                                  preferred_element_type=jnp.float32)
                acc = tap if acc is None else acc + tap
        return acc                                         # (ho*wp, Cout)

    def bias_prelu(acc, b_ref, a_ref):
        y = acc + b_ref[...]
        return jnp.where(y > 0, y, a_ref[...] * y)

    def store_padded(dst_ref, act, ho, wo, w_acc, wp_out):
        # Repack the valid columns of `act` (chunk width w_acc) into dst's
        # zero-padded flat layout (chunk width wp_out, 1-pixel border).
        dst_ref[...] = jnp.zeros_like(dst_ref)
        for i in range(ho):
            dst_ref[pl.ds((i + 1) * wp_out + 1, wo), :] = (
                act[i * w_acc:i * w_acc + wo, :])

    # cnn1: Cin=1 -> pure VPU stencil (keep the K=9 / Cin=1 conv off the MXU).
    act = bias_prelu(conv_taps(x_ref, w1_ref, WP0, H1, 1, cin_is_one=True),
                     b1_ref, a1_ref)
    store_padded(buf1, act, H1, W1, WP0, WP0)

    # cnn2: stride 2.
    act = bias_prelu(conv_taps(buf1, w2_ref, WP0, H2, 2), b2_ref, a2_ref)
    store_padded(buf2, act, H2, W2, WP0, WP2)

    # cnn3: stride 1.
    act = bias_prelu(conv_taps(buf2, w3_ref, WP2, H3, 1), b3_ref, a3_ref)
    store_padded(buf3, act, H3, W3, WP2, WP2)

    # cnn4: stride 2; feeds the fc directly (no re-padding needed).
    act = bias_prelu(conv_taps(buf3, w4_ref, WP2, H4, 2), b4_ref, a4_ref)
    # act: (H4 * WP2, PLANE4); valid rows are i*WP2 + j with j < W4.

    # fc: one lane-dense GEMM (40, 256) x (256, 16*NUM_CLASSES), then gather
    # the 16 (valid row, column block) pairs matching PyTorch's NCHW flatten.
    prod = jnp.dot(act, wfc_ref[...], preferred_element_type=jnp.float32)
    logits = bfc_ref[...]                                  # (1, NUM_CLASSES)
    for i in range(H4):
        for j in range(W4):
            p = i * W4 + j
            r = i * WP2 + j
            logits = logits + prod[r:r + 1,
                                   p * NUM_CLASSES:(p + 1) * NUM_CLASSES]
    out_ref[...] = logits


def _cost_estimate(n):
    conv = 0
    for rows, cin, cout in ((H1 * WP0, 1, PLANE1),
                            (H2 * WP0, PLANE1, PLANE2),
                            (H3 * WP2, PLANE2, PLANE3),
                            (H4 * WP2, PLANE3, PLANE4)):
        conv += 2 * rows * 9 * cin * cout
    fc = 2 * (H4 * WP2) * PLANE4 * (H4 * W4 * NUM_CLASSES)
    param_bytes = 4 * (9 * (1 * PLANE1 + PLANE1 * PLANE2 + PLANE2 * PLANE3
                            + PLANE3 * PLANE4)
                       + 2 * (PLANE1 + PLANE2 + PLANE3 + PLANE4)
                       + PLANE4 * H4 * W4 * NUM_CLASSES + NUM_CLASSES)
    io_bytes = n * 4 * (R_IN + NUM_CLASSES)
    return pl.CostEstimate(flops=n * (conv + fc), transcendentals=0,
                           bytes_accessed=param_bytes + io_bytes)


# ----------------------------------------------------------------------------
# Forward pass (mirrors CNNNOMAM.forward)
# ----------------------------------------------------------------------------
@jax.jit
def cnn_nomam_forward(x_nchw, params):
    n = x_nchw.shape[0]
    # Only XLA-side prep: NCHW (N,1,H,W) -> zero-padded flattened (N, R_IN, 1).
    x = x_nchw[:, 0, :, :].astype(jnp.float32)
    xp = jnp.pad(x, ((0, 0), (1, 1), (1, 1)))
    xf = xp.reshape(n, (H0 + 2) * WP0, 1)
    xf = jnp.pad(xf, ((0, 0), (0, R_IN - (H0 + 2) * WP0), (0, 0)))

    w1, b1, a1 = params["cnn1"]
    w2, b2, a2 = params["cnn2"]
    w3, b3, a3 = params["cnn3"]
    w4, b4, a4 = params["cnn4"]
    wfc, bfc = params["fc"]

    out = pl.pallas_call(
        _cnn_nomam_kernel,
        out_shape=jax.ShapeDtypeStruct((n, 1, NUM_CLASSES), jnp.float32),
        grid=(n,),
        in_specs=[
            pl.BlockSpec((None, R_IN, 1), lambda b: (b, 0, 0)),
            pl.BlockSpec((9, 1, PLANE1), lambda b: (0, 0, 0)),
            pl.BlockSpec((1, PLANE1), lambda b: (0, 0)),
            pl.BlockSpec((1, PLANE1), lambda b: (0, 0)),
            pl.BlockSpec((9, PLANE1, PLANE2), lambda b: (0, 0, 0)),
            pl.BlockSpec((1, PLANE2), lambda b: (0, 0)),
            pl.BlockSpec((1, PLANE2), lambda b: (0, 0)),
            pl.BlockSpec((9, PLANE2, PLANE3), lambda b: (0, 0, 0)),
            pl.BlockSpec((1, PLANE3), lambda b: (0, 0)),
            pl.BlockSpec((1, PLANE3), lambda b: (0, 0)),
            pl.BlockSpec((9, PLANE3, PLANE4), lambda b: (0, 0, 0)),
            pl.BlockSpec((1, PLANE4), lambda b: (0, 0)),
            pl.BlockSpec((1, PLANE4), lambda b: (0, 0)),
            pl.BlockSpec((PLANE4, H4 * W4 * NUM_CLASSES), lambda b: (0, 0)),
            pl.BlockSpec((1, NUM_CLASSES), lambda b: (0, 0)),
        ],
        out_specs=pl.BlockSpec((None, 1, NUM_CLASSES), lambda b: (b, 0, 0)),
        scratch_shapes=[
            pltpu.VMEM((R_B1, PLANE1), jnp.float32),
            pltpu.VMEM((R_B2, PLANE2), jnp.float32),
            pltpu.VMEM((R_B3, PLANE3), jnp.float32),
        ],
        compiler_params=pltpu.CompilerParams(
            dimension_semantics=("parallel",)),
        cost_estimate=_cost_estimate(n),
    )(xf, w1, b1, a1, w2, b2, a2, w3, b3, a3, w4, b4, a4, wfc, bfc)
    return out.reshape(n, NUM_CLASSES)


# ----------------------------------------------------------------------------
# Deterministic, PyTorch-shaped synthetic parameters (BN folded, inference).
# ----------------------------------------------------------------------------
def make_conv_block_params(key, cin, cout):
    kw_, kcb, kg, kb, km, kv = jax.random.split(key, 6)
    w = 0.1 * jax.random.normal(kw_, (cout, cin, 3, 3), jnp.float32)  # OIHW
    conv_b = 0.05 * jax.random.normal(kcb, (cout,), jnp.float32)
    gamma = 1.0 + 0.1 * jax.random.normal(kg, (cout,), jnp.float32)
    beta = 0.1 * jax.random.normal(kb, (cout,), jnp.float32)
    rmean = 0.1 * jax.random.normal(km, (cout,), jnp.float32)
    rvar = 1.0 + 0.1 * jax.random.uniform(kv, (cout,), jnp.float32)
    s = gamma / jnp.sqrt(rvar + 1e-5)
    # Fold BN (inference) into the conv:  y = conv_{w*s}(x) + (beta + s*(b-mu))
    w_folded = w * s[:, None, None, None]
    bias = beta + s * (conv_b - rmean)
    # (O, I, kh, kw) -> (kh, kw, I, O) -> (9, I, O); tap index = kh*3 + kw.
    w_taps = jnp.transpose(w_folded, (2, 3, 1, 0)).reshape(9, cin, cout)
    alpha = jnp.full((1, cout), 0.25, jnp.float32)   # torch PReLU default init
    return w_taps, bias.reshape(1, cout), alpha


def make_fc_params(key, out_dim, c, hs, ws):
    kw_, kb = jax.random.split(key)
    in_dim = c * hs * ws
    w = 0.01 * jax.random.normal(kw_, (out_dim, in_dim), jnp.float32)  # (out,in)
    b = 0.01 * jax.random.normal(kb, (out_dim,), jnp.float32)
    # torch flattens NCHW features: column = ch*hs*ws + i*ws + j.
    # Kernel layout (lane-dense): wr[ch, (i*ws + j)*out_dim + k] = w[k, col].
    w_r = w.reshape(out_dim, c, hs, ws)              # [k, ch, i, j]
    w_r = jnp.transpose(w_r, (1, 2, 3, 0))           # [ch, i, j, k]
    w_r = w_r.reshape(c, hs * ws * out_dim)
    return w_r, b.reshape(1, out_dim)


def make_params(key):
    k1, k2, k3, k4, k5 = jax.random.split(key, 5)
    return {
        "cnn1": make_conv_block_params(k1, 1, PLANE1),
        "cnn2": make_conv_block_params(k2, PLANE1, PLANE2),
        "cnn3": make_conv_block_params(k3, PLANE2, PLANE3),
        "cnn4": make_conv_block_params(k4, PLANE3, PLANE4),
        "fc": make_fc_params(k5, NUM_CLASSES, PLANE4, H4, W4),
    }


# ----------------------------------------------------------------------------
# Plain-XLA reference (same folded params) used to validate the fused kernel.
# ----------------------------------------------------------------------------
def reference_forward(x_nchw, params):
    x = jnp.transpose(x_nchw, (0, 2, 3, 1)).astype(jnp.float32)  # NHWC
    for name, stride in (("cnn1", 1), ("cnn2", 2), ("cnn3", 1), ("cnn4", 2)):
        w_taps, bias, alpha = params[name]
        cin, cout = w_taps.shape[1], w_taps.shape[2]
        w_hwio = w_taps.reshape(3, 3, cin, cout)
        y = lax.conv_general_dilated(
            x, w_hwio, window_strides=(stride, stride),
            padding=((1, 1), (1, 1)),
            dimension_numbers=("NHWC", "HWIO", "NHWC"),
            precision=lax.Precision.HIGHEST)
        y = y + bias.reshape(1, 1, 1, cout)
        x = jnp.where(y > 0, y, alpha.reshape(1, 1, 1, cout) * y)
    wfc, bfc = params["fc"]
    wfc4 = wfc.reshape(PLANE4, H4, W4, NUM_CLASSES)
    logits = jnp.einsum("nijc,cijk->nk", x, wfc4,
                        precision=lax.Precision.HIGHEST) + bfc
    return logits


if __name__ == "__main__":
    key = jax.random.PRNGKey(0)
    kx, kp = jax.random.split(key)
    x = jax.random.normal(kx, (BATCH, 1, INPUT_CHANNEL, WINDOW_SIZE),
                          jnp.float32)
    params = make_params(kp)

    out = cnn_nomam_forward(x, params)
    out = jax.block_until_ready(out)
    assert out.shape == (BATCH, NUM_CLASSES), out.shape
    assert bool(jnp.all(jnp.isfinite(out)))

    # Validate the fused kernel against the plain-XLA reference.
    ref = reference_forward(x, params)
    scale = max(float(jnp.max(jnp.abs(ref))), 1.0)
    err = float(jnp.max(jnp.abs(out - ref)))
    assert err <= 2e-2 * scale, (err, scale)

    print("KERNEL_OK")
</pallas_src>

<mosaic_0001>
module attributes {stable_mosaic.version = 11 : i64} {
  func.func @_cnn_nomam_kernel(%arg0: i32, %arg1: memref<1x336x1xf32, #tpu.memory_space<vmem>>, %arg2: memref<9x1x32xf32, #tpu.memory_space<vmem>>, %arg3: memref<1x32xf32, #tpu.memory_space<vmem>>, %arg4: memref<1x32xf32, #tpu.memory_space<vmem>>, %arg5: memref<9x32x64xf32, #tpu.memory_space<vmem>>, %arg6: memref<1x64xf32, #tpu.memory_space<vmem>>, %arg7: memref<1x64xf32, #tpu.memory_space<vmem>>, %arg8: memref<9x64x128xf32, #tpu.memory_space<vmem>>, %arg9: memref<1x128xf32, #tpu.memory_space<vmem>>, %arg10: memref<1x128xf32, #tpu.memory_space<vmem>>, %arg11: memref<9x128x256xf32, #tpu.memory_space<vmem>>, %arg12: memref<1x256xf32, #tpu.memory_space<vmem>>, %arg13: memref<1x256xf32, #tpu.memory_space<vmem>>, %arg14: memref<256x128xf32, #tpu.memory_space<vmem>>, %arg15: memref<1x8xf32, #tpu.memory_space<vmem>>, %arg16: memref<1x1x8xf32, #tpu.memory_space<vmem>>, %arg17: memref<336x32xf32, #tpu.memory_space<vmem>>, %arg18: memref<112x64xf32, #tpu.memory_space<vmem>>, %arg19: memref<112x128xf32, #tpu.memory_space<vmem>>) attributes {dimension_semantics = [#tpu.dimension_semantics<parallel>], iteration_bounds = array<i64: 2>, scalar_prefetch = 0 : i64, scratch_operands = 3 : i64, tpu.core_type = #tpu.core_type<tc>, window_params = [{transform_indices = @transform_0, window_bounds = array<i64: 1, 336, 1>}, {pipeline_mode = #tpu.pipeline_mode<synchronous>, transform_indices = @transform_1, window_bounds = array<i64: 9, 1, 32>}, {pipeline_mode = #tpu.pipeline_mode<synchronous>, transform_indices = @transform_2, window_bounds = array<i64: 1, 32>}, {pipeline_mode = #tpu.pipeline_mode<synchronous>, transform_indices = @transform_3, window_bounds = array<i64: 1, 32>}, {pipeline_mode = #tpu.pipeline_mode<synchronous>, transform_indices = @transform_4, window_bounds = array<i64: 9, 32, 64>}, {pipeline_mode = #tpu.pipeline_mode<synchronous>, transform_indices = @transform_5, window_bounds = array<i64: 1, 64>}, {pipeline_mode = #tpu.pipeline_mode<synchronous>, transform_indices = @transform_6, window_bounds = array<i64: 1, 64>}, {pipeline_mode = #tpu.pipeline_mode<synchronous>, transform_indices = @transform_7, window_bounds = array<i64: 9, 64, 128>}, {pipeline_mode = #tpu.pipeline_mode<synchronous>, transform_indices = @transform_8, window_bounds = array<i64: 1, 128>}, {pipeline_mode = #tpu.pipeline_mode<synchronous>, transform_indices = @transform_9, window_bounds = array<i64: 1, 128>}, {pipeline_mode = #tpu.pipeline_mode<synchronous>, transform_indices = @transform_10, window_bounds = array<i64: 9, 128, 256>}, {pipeline_mode = #tpu.pipeline_mode<synchronous>, transform_indices = @transform_11, window_bounds = array<i64: 1, 256>}, {pipeline_mode = #tpu.pipeline_mode<synchronous>, transform_indices = @transform_12, window_bounds = array<i64: 1, 256>}, {pipeline_mode = #tpu.pipeline_mode<synchronous>, transform_indices = @transform_13, window_bounds = array<i64: 256, 128>}, {pipeline_mode = #tpu.pipeline_mode<synchronous>, transform_indices = @transform_14, window_bounds = array<i64: 1, 8>}, {transform_indices = @transform_15, window_bounds = array<i64: 1, 1, 8>}]} {
    %c0 = arith.constant 0 : index
    %c0_0 = arith.constant 0 : index
    %c0_1 = arith.constant 0 : index
    %0 = vector.load %arg1[%c0, %c0_0, %c0_1] : memref<1x336x1xf32, #tpu.memory_space<vmem>>, vector<1x288x1xf32>
    %1 = vector.shape_cast %0 : vector<1x288x1xf32> to vector<288x1xf32>
    %c0_2 = arith.constant 0 : index
    %c0_3 = arith.constant 0 : index
    %c0_4 = arith.constant 0 : index
    %2 = vector.load %arg2[%c0_2, %c0_3, %c0_4] : memref<9x1x32xf32, #tpu.memory_space<vmem>>, vector<1x1x32xf32>
    %3 = vector.shape_cast %2 : vector<1x1x32xf32> to vector<1x32xf32>
    %4 = vector.broadcast %1 : vector<288x1xf32> to vector<288x32xf32>
    %5 = vector.broadcast %3 : vector<1x32xf32> to vector<288x32xf32>
    %6 = arith.mulf %4, %5 : vector<288x32xf32>
    %c0_5 = arith.constant 0 : index
    %c1 = arith.constant 1 : index
    %c0_6 = arith.constant 0 : index
    %7 = vector.load %arg1[%c0_5, %c1, %c0_6] : memref<1x336x1xf32, #tpu.memory_space<vmem>>, vector<1x288x1xf32>
    %8 = vector.shape_cast %7 : vector<1x288x1xf32> to vector<288x1xf32>
    %c1_7 = arith.constant 1 : index
    %c0_8 = arith.constant 0 : index
    %c0_9 = arith.constant 0 : index
    %9 = vector.load %arg2[%c1_7, %c0_8, %c0_9] : memref<9x1x32xf32, #tpu.memory_space<vmem>>, vector<1x1x32xf32>
    %10 = vector.shape_cast %9 : vector<1x1x32xf32> to vector<1x32xf32>
    %11 = vector.broadcast %8 : vector<288x1xf32> to vector<288x32xf32>
    %12 = vector.broadcast %10 : vector<1x32xf32> to vector<288x32xf32>
    %13 = arith.mulf %11, %12 : vector<288x32xf32>
    %14 = arith.addf %6, %13 : vector<288x32xf32>
    %c0_10 = arith.constant 0 : index
    %c2 = arith.constant 2 : index
    %c0_11 = arith.constant 0 : index
    %15 = vector.load %arg1[%c0_10, %c2, %c0_11] : memref<1x336x1xf32, #tpu.memory_space<vmem>>, vector<1x288x1xf32>
    %16 = vector.shape_cast %15 : vector<1x288x1xf32> to vector<288x1xf32>
    %c2_12 = arith.constant 2 : index
    %c0_13 = arith.constant 0 : index
    %c0_14 = arith.constant 0 : index
    %17 = vector.load %arg2[%c2_12, %c0_13, %c0_14] : memref<9x1x32xf32, #tpu.memory_space<vmem>>, vector<1x1x32xf32>
    %18 = vector.shape_cast %17 : vector<1x1x32xf32> to vector<1x32xf32>
    %19 = vector.broadcast %16 : vector<288x1xf32> to vector<288x32xf32>
    %20 = vector.broadcast %18 : vector<1x32xf32> to vector<288x32xf32>
    %21 = arith.mulf %19, %20 : vector<288x32xf32>
    %22 = arith.addf %14, %21 : vector<288x32xf32>
    %c0_15 = arith.constant 0 : index
    %c18 = arith.constant 18 : index
    %c0_16 = arith.constant 0 : index
    %23 = vector.load %arg1[%c0_15, %c18, %c0_16] : memref<1x336x1xf32, #tpu.memory_space<vmem>>, vector<1x288x1xf32>
    %24 = vector.shape_cast %23 : vector<1x288x1xf32> to vector<288x1xf32>
    %c3 = arith.constant 3 : index
    %c0_17 = arith.constant 0 : index
    %c0_18 = arith.constant 0 : index
    %25 = vector.load %arg2[%c3, %c0_17, %c0_18] : memref<9x1x32xf32, #tpu.memory_space<vmem>>, vector<1x1x32xf32>
    %26 = vector.shape_cast %25 : vector<1x1x32xf32> to vector<1x32xf32>
    %27 = vector.broadcast %24 : vector<288x1xf32> to vector<288x32xf32>
    %28 = vector.broadcast %26 : vector<1x32xf32> to vector<288x32xf32>
    %29 = arith.mulf %27, %28 : vector<288x32xf32>
    %30 = arith.addf %22, %29 : vector<288x32xf32>
    %c0_19 = arith.constant 0 : index
    %c19 = arith.constant 19 : index
    %c0_20 = arith.constant 0 : index
    %31 = vector.load %arg1[%c0_19, %c19, %c0_20] : memref<1x336x1xf32, #tpu.memory_space<vmem>>, vector<1x288x1xf32>
    %32 = vector.shape_cast %31 : vector<1x288x1xf32> to vector<288x1xf32>
    %c4 = arith.constant 4 : index
    %c0_21 = arith.constant 0 : index
    %c0_22 = arith.constant 0 : index
    %33 = vector.load %arg2[%c4, %c0_21, %c0_22] : memref<9x1x32xf32, #tpu.memory_space<vmem>>, vector<1x1x32xf32>
    %34 = vector.shape_cast %33 : vector<1x1x32xf32> to vector<1x32xf32>
    %35 = vector.broadcast %32 : vector<288x1xf32> to vector<288x32xf32>
    %36 = vector.broadcast %34 : vector<1x32xf32> to vector<288x32xf32>
    %37 = arith.mulf %35, %36 : vector<288x32xf32>
    %38 = arith.addf %30, %37 : vector<288x32xf32>
    %c0_23 = arith.constant 0 : index
    %c20 = arith.constant 20 : index
    %c0_24 = arith.constant 0 : index
    %39 = vector.load %arg1[%c0_23, %c20, %c0_24] : memref<1x336x1xf32, #tpu.memory_space<vmem>>, vector<1x288x1xf32>
    %40 = vector.shape_cast %39 : vector<1x288x1xf32> to vector<288x1xf32>
    %c5 = arith.constant 5 : index
    %c0_25 = arith.constant 0 : index
    %c0_26 = arith.constant 0 : index
    %41 = vector.load %arg2[%c5, %c0_25, %c0_26] : memref<9x1x32xf32, #tpu.memory_space<vmem>>, vector<1x1x32xf32>
    %42 = vector.shape_cast %41 : vector<1x1x32xf32> to vector<1x32xf32>
    %43 = vector.broadcast %40 : vector<288x1xf32> to vector<288x32xf32>
    %44 = vector.broadcast %42 : vector<1x32xf32> to vector<288x32xf32>
    %45 = arith.mulf %43, %44 : vector<288x32xf32>
    %46 = arith.addf %38, %45 : vector<288x32xf32>
    %c0_27 = arith.constant 0 : index
    %c36 = arith.constant 36 : index
    %c0_28 = arith.constant 0 : index
    %47 = vector.load %arg1[%c0_27, %c36, %c0_28] : memref<1x336x1xf32, #tpu.memory_space<vmem>>, vector<1x288x1xf32>
    %48 = vector.shape_cast %47 : vector<1x288x1xf32> to vector<288x1xf32>
    %c6 = arith.constant 6 : index
    %c0_29 = arith.constant 0 : index
    %c0_30 = arith.constant 0 : index
    %49 = vector.load %arg2[%c6, %c0_29, %c0_30] : memref<9x1x32xf32, #tpu.memory_space<vmem>>, vector<1x1x32xf32>
    %50 = vector.shape_cast %49 : vector<1x1x32xf32> to vector<1x32xf32>
    %51 = vector.broadcast %48 : vector<288x1xf32> to vector<288x32xf32>
    %52 = vector.broadcast %50 : vector<1x32xf32> to vector<288x32xf32>
    %53 = arith.mulf %51, %52 : vector<288x32xf32>
    %54 = arith.addf %46, %53 : vector<288x32xf32>
    %c0_31 = arith.constant 0 : index
    %c37 = arith.constant 37 : index
    %c0_32 = arith.constant 0 : index
    %55 = vector.load %arg1[%c0_31, %c37, %c0_32] : memref<1x336x1xf32, #tpu.memory_space<vmem>>, vector<1x288x1xf32>
    %56 = vector.shape_cast %55 : vector<1x288x1xf32> to vector<288x1xf32>
    %c7 = arith.constant 7 : index
    %c0_33 = arith.constant 0 : index
    %c0_34 = arith.constant 0 : index
    %57 = vector.load %arg2[%c7, %c0_33, %c0_34] : memref<9x1x32xf32, #tpu.memory_space<vmem>>, vector<1x1x32xf32>
    %58 = vector.shape_cast %57 : vector<1x1x32xf32> to vector<1x32xf32>
    %59 = vector.broadcast %56 : vector<288x1xf32> to vector<288x32xf32>
    %60 = vector.broadcast %58 : vector<1x32xf32> to vector<288x32xf32>
    %61 = arith.mulf %59, %60 : vector<288x32xf32>
    %62 = arith.addf %54, %61 : vector<288x32xf32>
    %c0_35 = arith.constant 0 : index
    %c38 = arith.constant 38 : index
    %c0_36 = arith.constant 0 : index
    %63 = vector.load %arg1[%c0_35, %c38, %c0_36] : memref<1x336x1xf32, #tpu.memory_space<vmem>>, vector<1x288x1xf32>
    %64 = vector.shape_cast %63 : vector<1x288x1xf32> to vector<288x1xf32>
    %c8 = arith.constant 8 : index
    %c0_37 = arith.constant 0 : index
    %c0_38 = arith.constant 0 : index
    %65 = vector.load %arg2[%c8, %c0_37, %c0_38] : memref<9x1x32xf32, #tpu.memory_space<vmem>>, vector<1x1x32xf32>
    %66 = vector.shape_cast %65 : vector<1x1x32xf32> to vector<1x32xf32>
    %67 = vector.broadcast %64 : vector<288x1xf32> to vector<288x32xf32>
    %68 = vector.broadcast %66 : vector<1x32xf32> to vector<288x32xf32>
    %69 = arith.mulf %67, %68 : vector<288x32xf32>
    %70 = arith.addf %62, %69 : vector<288x32xf32>
    %c0_39 = arith.constant 0 : index
    %c0_40 = arith.constant 0 : index
    %71 = vector.load %arg3[%c0_39, %c0_40] : memref<1x32xf32, #tpu.memory_space<vmem>>, vector<1x32xf32>
    %72 = vector.broadcast %71 : vector<1x32xf32> to vector<288x32xf32>
    %73 = arith.addf %70, %72 : vector<288x32xf32>
    %cst = arith.constant 0.000000e+00 : f32
    %74 = vector.broadcast %cst : f32 to vector<288x32xf32>
    %75 = arith.cmpf ogt, %73, %74 : vector<288x32xf32>
    %c0_41 = arith.constant 0 : index
    %c0_42 = arith.constant 0 : index
    %76 = vector.load %arg4[%c0_41, %c0_42] : memref<1x32xf32, #tpu.memory_space<vmem>>, vector<1x32xf32>
    %77 = vector.broadcast %76 : vector<1x32xf32> to vector<288x32xf32>
    %78 = arith.mulf %77, %73 : vector<288x32xf32>
    %79 = arith.select %75, %73, %78 : vector<288x32xi1>, vector<288x32xf32>
    %cst_43 = arith.constant 0.000000e+00 : f32
    %80 = vector.broadcast %cst_43 : f32 to vector<336x32xf32>
    %c0_44 = arith.constant 0 : index
    %c0_45 = arith.constant 0 : index
    %81 = vector.load %arg17[%c0_44, %c0_45] : memref<336x32xf32, #tpu.memory_space<vmem>>, vector<336x32xf32>
    tpu.vector_store %arg17[%c0_44, %c0_45], %80 {strides = array<i32>} : memref<336x32xf32, #tpu.memory_space<vmem>>, vector<336x32xf32>,
    %82 = vector.extract_strided_slice %79 {offsets = [0, 0], sizes = [16, 32], strides = [1, 1]} : vector<288x32xf32> to vector<16x32xf32>
    %c19_46 = arith.constant 19 : index
    %c0_47 = arith.constant 0 : index
    %83 = vector.load %arg17[%c19_46, %c0_47] : memref<336x32xf32, #tpu.memory_space<vmem>>, vector<16x32xf32>
    tpu.vector_store %arg17[%c19_46, %c0_47], %82 {strides = array<i32>} : memref<336x32xf32, #tpu.memory_space<vmem>>, vector<16x32xf32>,
    %84 = vector.extract_strided_slice %79 {offsets = [18, 0], sizes = [16, 32], strides = [1, 1]} : vector<288x32xf32> to vector<16x32xf32>
    %c37_48 = arith.constant 37 : index
    %c0_49 = arith.constant 0 : index
    %85 = vector.load %arg17[%c37_48, %c0_49] : memref<336x32xf32, #tpu.memory_space<vmem>>, vector<16x32xf32>
    tpu.vector_store %arg17[%c37_48, %c0_49], %84 {strides = array<i32>} : memref<336x32xf32, #tpu.memory_space<vmem>>, vector<16x32xf32>,
    %86 = vector.extract_strided_slice %79 {offsets = [36, 0], sizes = [16, 32], strides = [1, 1]} : vector<288x32xf32> to vector<16x32xf32>
    %c55 = arith.constant 55 : index
    %c0_50 = arith.constant 0 : index
    %87 = vector.load %arg17[%c55, %c0_50] : memref<336x32xf32, #tpu.memory_space<vmem>>, vector<16x32xf32>
    tpu.vector_store %arg17[%c55, %c0_50], %86 {strides = array<i32>} : memref<336x32xf32, #tpu.memory_space<vmem>>, vector<16x32xf32>,
    %88 = vector.extract_strided_slice %79 {offsets = [54, 0], sizes = [16, 32], strides = [1, 1]} : vector<288x32xf32> to vector<16x32xf32>
    %c73 = arith.constant 73 : index
    %c0_51 = arith.constant 0 : index
    %89 = vector.load %arg17[%c73, %c0_51] : memref<336x32xf32, #tpu.memory_space<vmem>>, vector<16x32xf32>
    tpu.vector_store %arg17[%c73, %c0_51], %88 {strides = array<i32>} : memref<336x32xf32, #tpu.memory_space<vmem>>, vector<16x32xf32>,
    %90 = vector.extract_strided_slice %79 {offsets = [72, 0], sizes = [16, 32], strides = [1, 1]} : vector<288x32xf32> to vector<16x32xf32>
    %c91 = arith.constant 91 : index
    %c0_52 = arith.constant 0 : index
    %91 = vector.load %arg17[%c91, %c0_52] : memref<336x32xf32, #tpu.memory_space<vmem>>, vector<16x32xf32>
    tpu.vector_store %arg17[%c91, %c0_52], %90 {strides = array<i32>} : memref<336x32xf32, #tpu.memory_space<vmem>>, vector<16x32xf32>,
    %92 = vector.extract_strided_slice %79 {offsets = [90, 0], sizes = [16, 32], strides = [1, 1]} : vector<288x32xf32> to vector<16x32xf32>
    %c109 = arith.constant 109 : index
    %c0_53 = arith.constant 0 : index
    %93 = vector.load %arg17[%c109, %c0_53] : memref<336x32xf32, #tpu.memory_space<vmem>>, vector<16x32xf32>
    tpu.vector_store %arg17[%c109, %c0_53], %92 {strides = array<i32>} : memref<336x32xf32, #tpu.memory_space<vmem>>, vector<16x32xf32>,
    %94 = vector.extract_strided_slice %79 {offsets = [108, 0], sizes = [16, 32], strides = [1, 1]} : vector<288x32xf32> to vector<16x32xf32>
    %c127 = arith.constant 127 : index
    %c0_54 = arith.constant 0 : index
    %95 = vector.load %arg17[%c127, %c0_54] : memref<336x32xf32, #tpu.memory_space<vmem>>, vector<16x32xf32>
    tpu.vector_store %arg17[%c127, %c0_54], %94 {strides = array<i32>} : memref<336x32xf32, #tpu.memory_space<vmem>>, vector<16x32xf32>,
    %96 = vector.extract_strided_slice %79 {offsets = [126, 0], sizes = [16, 32], strides = [1, 1]} : vector<288x32xf32> to vector<16x32xf32>
    %c145 = arith.constant 145 : index
    %c0_55 = arith.constant 0 : index
    %97 = vector.load %arg17[%c145, %c0_55] : memref<336x32xf32, #tpu.memory_space<vmem>>, vector<16x32xf32>
    tpu.vector_store %arg17[%c145, %c0_55], %96 {strides = array<i32>} : memref<336x32xf32, #tpu.memory_space<vmem>>, vector<16x32xf32>,
    %98 = vector.extract_strided_slice %79 {offsets = [144, 0], sizes = [16, 32], strides = [1, 1]} : vector<288x32xf32> to vector<16x32xf32>
    %c163 = arith.constant 163 : index
    %c0_56 = arith.constant 0 : index
    %99 = vector.load %arg17[%c163, %c0_56] : memref<336x32xf32, #tpu.memory_space<vmem>>, vector<16x32xf32>
    tpu.vector_store %arg17[%c163, %c0_56], %98 {strides = array<i32>} : memref<336x32xf32, #tpu.memory_space<vmem>>, vector<16x32xf32>,
    %100 = vector.extract_strided_slice %79 {offsets = [162, 0], sizes = [16, 32], strides = [1, 1]} : vector<288x32xf32> to vector<16x32xf32>
    %c181 = arith.constant 181 : index
    %c0_57 = arith.constant 0 : index
    %101 = vector.load %arg17[%c181, %c0_57] : memref<336x32xf32, #tpu.memory_space<vmem>>, vector<16x32xf32>
    tpu.vector_store %arg17[%c181, %c0_57], %100 {strides = array<i32>} : memref<336x32xf32, #tpu.memory_space<vmem>>, vector<16x32xf32>,
    %102 = vector.extract_strided_slice %79 {offsets = [180, 0], sizes = [16, 32], strides = [1, 1]} : vector<288x32xf32> to vector<16x32xf32>
    %c199 = arith.constant 199 : index
    %c0_58 = arith.constant 0 : index
    %103 = vector.load %arg17[%c199, %c0_58] : memref<336x32xf32, #tpu.memory_space<vmem>>, vector<16x32xf32>
    tpu.vector_store %arg17[%c199, %c0_58], %102 {strides = array<i32>} : memref<336x32xf32, #tpu.memory_space<vmem>>, vector<16x32xf32>,
    %104 = vector.extract_strided_slice %79 {offsets = [198, 0], sizes = [16, 32], strides = [1, 1]} : vector<288x32xf32> to vector<16x32xf32>
    %c217 = arith.constant 217 : index
    %c0_59 = arith.constant 0 : index
    %105 = vector.load %arg17[%c217, %c0_59] : memref<336x32xf32, #tpu.memory_space<vmem>>, vector<16x32xf32>
    tpu.vector_store %arg17[%c217, %c0_59], %104 {strides = array<i32>} : memref<336x32xf32, #tpu.memory_space<vmem>>, vector<16x32xf32>,
    %106 = vector.extract_strided_slice %79 {offsets = [216, 0], sizes = [16, 32], strides = [1, 1]} : vector<288x32xf32> to vector<16x32xf32>
    %c235 = arith.constant 235 : index
    %c0_60 = arith.constant 0 : index
    %107 = vector.load %arg17[%c235, %c0_60] : memref<336x32xf32, #tpu.memory_space<vmem>>, vector<16x32xf32>
    tpu.vector_store %arg17[%c235, %c0_60], %106 {strides = array<i32>} : memref<336x32xf32, #tpu.memory_space<vmem>>, vector<16x32xf32>,
    %108 = vector.extract_strided_slice %79 {offsets = [234, 0], sizes = [16, 32], strides = [1, 1]} : vector<288x32xf32> to vector<16x32xf32>
    %c253 = arith.constant 253 : index
    %c0_61 = arith.constant 0 : index
    %109 = vector.load %arg17[%c253, %c0_61] : memref<336x32xf32, #tpu.memory_space<vmem>>, vector<16x32xf32>
    tpu.vector_store %arg17[%c253, %c0_61], %108 {strides = array<i32>} : memref<336x32xf32, #tpu.memory_space<vmem>>, vector<16x32xf32>,
    %110 = vector.extract_strided_slice %79 {offsets = [252, 0], sizes = [16, 32], strides = [1, 1]} : vector<288x32xf32> to vector<16x32xf32>
    %c271 = arith.constant 271 : index
    %c0_62 = arith.constant 0 : index
    %111 = vector.load %arg17[%c271, %c0_62] : memref<336x32xf32, #tpu.memory_space<vmem>>, vector<16x32xf32>
    tpu.vector_store %arg17[%c271, %c0_62], %110 {strides = array<i32>} : memref<336x32xf32, #tpu.memory_space<vmem>>, vector<16x32xf32>,
    %112 = vector.extract_strided_slice %79 {offsets = [270, 0], sizes = [16, 32], strides = [1, 1]} : vector<288x32xf32> to vector<16x32xf32>
    %c289 = arith.constant 289 : index
    %c0_63 = arith.constant 0 : index
    %113 = vector.load %arg17[%c289, %c0_63] : memref<336x32xf32, #tpu.memory_space<vmem>>, vector<16x32xf32>
    tpu.vector_store %arg17[%c289, %c0_63], %112 {strides = array<i32>} : memref<336x32xf32, #tpu.memory_space<vmem>>, vector<16x32xf32>,
    %c0_64 = arith.constant 0 : index
    %c0_65 = arith.constant 0 : index
    %114 = tpu.strided_load %arg17[%c0_64, %c0_65] {strides = array<i32: 2, 1>} : memref<336x32xf32, #tpu.memory_space<vmem>>, vector<144x32xf32>
    %c0_66 = arith.constant 0 : index
    %c0_67 = arith.constant 0 : index
    %c0_68 = arith.constant 0 : index
    %115 = vector.load %arg5[%c0_66, %c0_67, %c0_68] : memref<9x32x64xf32, #tpu.memory_space<vmem>>, vector<1x32x64xf32>
    %116 = vector.shape_cast %115 : vector<1x32x64xf32> to vector<32x64xf32>
    %cst_69 = arith.constant dense<0.000000e+00> : vector<144x64xf32>
    %117 = tpu.matmul %114, %116, %cst_69 {dimension_numbers = #tpu.dot_dimension_numbers<[1], [0], [0], [1], [0, 0, 1, 1], [], []>} : vector<144x32xf32>, vector<32x64xf32>, vector<144x64xf32> -> vector<144x64xf32>
    %c1_70 = arith.constant 1 : index
    %c0_71 = arith.constant 0 : index
    %118 = tpu.strided_load %arg17[%c1_70, %c0_71] {strides = array<i32: 2, 1>} : memref<336x32xf32, #tpu.memory_space<vmem>>, vector<144x32xf32>
    %c1_72 = arith.constant 1 : index
    %c0_73 = arith.constant 0 : index
    %c0_74 = arith.constant 0 : index
    %119 = vector.load %arg5[%c1_72, %c0_73, %c0_74] : memref<9x32x64xf32, #tpu.memory_space<vmem>>, vector<1x32x64xf32>
    %120 = vector.shape_cast %119 : vector<1x32x64xf32> to vector<32x64xf32>
    %cst_75 = arith.constant dense<0.000000e+00> : vector<144x64xf32>
    %121 = tpu.matmul %118, %120, %cst_75 {dimension_numbers = #tpu.dot_dimension_numbers<[1], [0], [0], [1], [0, 0, 1, 1], [], []>} : vector<144x32xf32>, vector<32x64xf32>, vector<144x64xf32> -> vector<144x64xf32>
    %122 = arith.addf %117, %121 : vector<144x64xf32>
    %c2_76 = arith.constant 2 : index
    %c0_77 = arith.constant 0 : index
    %123 = tpu.strided_load %arg17[%c2_76, %c0_77] {strides = array<i32: 2, 1>} : memref<336x32xf32, #tpu.memory_space<vmem>>, vector<144x32xf32>
    %c2_78 = arith.constant 2 : index
    %c0_79 = arith.constant 0 : index
    %c0_80 = arith.constant 0 : index
    %124 = vector.load %arg5[%c2_78, %c0_79, %c0_80] : memref<9x32x64xf32, #tpu.memory_space<vmem>>, vector<1x32x64xf32>
    %125 = vector.shape_cast %124 : vector<1x32x64xf32> to vector<32x64xf32>
    %cst_81 = arith.constant dense<0.000000e+00> : vector<144x64xf32>
    %126 = tpu.matmul %123, %125, %cst_81 {dimension_numbers = #tpu.dot_dimension_numbers<[1], [0], [0], [1], [0, 0, 1, 1], [], []>} : vector<144x32xf32>, vector<32x64xf32>, vector<144x64xf32> -> vector<144x64xf32>
    %127 = arith.addf %122, %126 : vector<144x64xf32>
    %c18_82 = arith.constant 18 : index
    %c0_83 = arith.constant 0 : index
    %128 = tpu.strided_load %arg17[%c18_82, %c0_83] {strides = array<i32: 2, 1>} : memref<336x32xf32, #tpu.memory_space<vmem>>, vector<144x32xf32>
    %c3_84 = arith.constant 3 : index
    %c0_85 = arith.constant 0 : index
    %c0_86 = arith.constant 0 : index
    %129 = vector.load %arg5[%c3_84, %c0_85, %c0_86] : memref<9x32x64xf32, #tpu.memory_space<vmem>>, vector<1x32x64xf32>
    %130 = vector.shape_cast %129 : vector<1x32x64xf32> to vector<32x64xf32>
    %cst_87 = arith.constant dense<0.000000e+00> : vector<144x64xf32>
    %131 = tpu.matmul %128, %130, %cst_87 {dimension_numbers = #tpu.dot_dimension_numbers<[1], [0], [0], [1], [0, 0, 1, 1], [], []>} : vector<144x32xf32>, vector<32x64xf32>, vector<144x64xf32> -> vector<144x64xf32>
    %132 = arith.addf %127, %131 : vector<144x64xf32>
    %c19_88 = arith.constant 19 : index
    %c0_89 = arith.constant 0 : index
    %133 = tpu.strided_load %arg17[%c19_88, %c0_89] {strides = array<i32: 2, 1>} : memref<336x32xf32, #tpu.memory_space<vmem>>, vector<144x32xf32>
    %c4_90 = arith.constant 4 : index
    %c0_91 = arith.constant 0 : index
    %c0_92 = arith.constant 0 : index
    %134 = vector.load %arg5[%c4_90, %c0_91, %c0_92] : memref<9x32x64xf32, #tpu.memory_space<vmem>>, vector<1x32x64xf32>
    %135 = vector.shape_cast %134 : vector<1x32x64xf32> to vector<32x64xf32>
    %cst_93 = arith.constant dense<0.000000e+00> : vector<144x64xf32>
    %136 = tpu.matmul %133, %135, %cst_93 {dimension_numbers = #tpu.dot_dimension_numbers<[1], [0], [0], [1], [0, 0, 1, 1], [], []>} : vector<144x32xf32>, vector<32x64xf32>, vector<144x64xf32> -> vector<144x64xf32>
    %137 = arith.addf %132, %136 : vector<144x64xf32>
    %c20_94 = arith.constant 20 : index
    %c0_95 = arith.constant 0 : index
    %138 = tpu.strided_load %arg17[%c20_94, %c0_95] {strides = array<i32: 2, 1>} : memref<336x32xf32, #tpu.memory_space<vmem>>, vector<144x32xf32>
    %c5_96 = arith.constant 5 : index
    %c0_97 = arith.constant 0 : index
    %c0_98 = arith.constant 0 : index
    %139 = vector.load %arg5[%c5_96, %c0_97, %c0_98] : memref<9x32x64xf32, #tpu.memory_space<vmem>>, vector<1x32x64xf32>
    %140 = vector.shape_cast %139 : vector<1x32x64xf32> to vector<32x64xf32>
    %cst_99 = arith.constant dense<0.000000e+00> : vector<144x64xf32>
    %141 = tpu.matmul %138, %140, %cst_99 {dimension_numbers = #tpu.dot_dimension_numbers<[1], [0], [0], [1], [0, 0, 1, 1], [], []>} : vector<144x32xf32>, vector<32x64xf32>, vector<144x64xf32> -> vector<144x64xf32>
    %142 = arith.addf %137, %141 : vector<144x64xf32>
    %c36_100 = arith.constant 36 : index
    %c0_101 = arith.constant 0 : index
    %143 = tpu.strided_load %arg17[%c36_100, %c0_101] {strides = array<i32: 2, 1>} : memref<336x32xf32, #tpu.memory_space<vmem>>, vector<144x32xf32>
    %c6_102 = arith.constant 6 : index
    %c0_103 = arith.constant 0 : index
    %c0_104 = arith.constant 0 : index
    %144 = vector.load %arg5[%c6_102, %c0_103, %c0_104] : memref<9x32x64xf32, #tpu.memory_space<vmem>>, vector<1x32x64xf32>
    %145 = vector.shape_cast %144 : vector<1x32x64xf32> to vector<32x64xf32>
    %cst_105 = arith.constant dense<0.000000e+00> : vector<144x64xf32>
    %146 = tpu.matmul %143, %145, %cst_105 {dimension_numbers = #tpu.dot_dimension_numbers<[1], [0], [0], [1], [0, 0, 1, 1], [], []>} : vector<144x32xf32>, vector<32x64xf32>, vector<144x64xf32> -> vector<144x64xf32>
    %147 = arith.addf %142, %146 : vector<144x64xf32>
    %c37_106 = arith.constant 37 : index
    %c0_107 = arith.constant 0 : index
    %148 = tpu.strided_load %arg17[%c37_106, %c0_107] {strides = array<i32: 2, 1>} : memref<336x32xf32, #tpu.memory_space<vmem>>, vector<144x32xf32>
    %c7_108 = arith.constant 7 : index
    %c0_109 = arith.constant 0 : index
    %c0_110 = arith.constant 0 : index
    %149 = vector.load %arg5[%c7_108, %c0_109, %c0_110] : memref<9x32x64xf32, #tpu.memory_space<vmem>>, vector<1x32x64xf32>
    %150 = vector.shape_cast %149 : vector<1x32x64xf32> to vector<32x64xf32>
    %cst_111 = arith.constant dense<0.000000e+00> : vector<144x64xf32>
    %151 = tpu.matmul %148, %150, %cst_111 {dimension_numbers = #tpu.dot_dimension_numbers<[1], [0], [0], [1], [0, 0, 1, 1], [], []>} : vector<144x32xf32>, vector<32x64xf32>, vector<144x64xf32> -> vector<144x64xf32>
    %152 = arith.addf %147, %151 : vector<144x64xf32>
    %c38_112 = arith.constant 38 : index
    %c0_113 = arith.constant 0 : index
    %153 = tpu.strided_load %arg17[%c38_112, %c0_113] {strides = array<i32: 2, 1>} : memref<336x32xf32, #tpu.memory_space<vmem>>, vector<144x32xf32>
    %c8_114 = arith.constant 8 : index
    %c0_115 = arith.constant 0 : index
    %c0_116 = arith.constant 0 : index
    %154 = vector.load %arg5[%c8_114, %c0_115, %c0_116] : memref<9x32x64xf32, #tpu.memory_space<vmem>>, vector<1x32x64xf32>
    %155 = vector.shape_cast %154 : vector<1x32x64xf32> to vector<32x64xf32>
    %cst_117 = arith.constant dense<0.000000e+00> : vector<144x64xf32>
    %156 = tpu.matmul %153, %155, %cst_117 {dimension_numbers = #tpu.dot_dimension_numbers<[1], [0], [0], [1], [0, 0, 1, 1], [], []>} : vector<144x32xf32>, vector<32x64xf32>, vector<144x64xf32> -> vector<144x64xf32>
    %157 = arith.addf %152, %156 : vector<144x64xf32>
    %c0_118 = arith.constant 0 : index
    %c0_119 = arith.constant 0 : index
    %158 = vector.load %arg6[%c0_118, %c0_119] : memref<1x64xf32, #tpu.memory_space<vmem>>, vector<1x64xf32>
    %159 = vector.broadcast %158 : vector<1x64xf32> to vector<144x64xf32>
    %160 = arith.addf %157, %159 : vector<144x64xf32>
    %cst_120 = arith.constant 0.000000e+00 : f32
    %161 = vector.broadcast %cst_120 : f32 to vector<144x64xf32>
    %162 = arith.cmpf ogt, %160, %161 : vector<144x64xf32>
    %c0_121 = arith.constant 0 : index
    %c0_122 = arith.constant 0 : index
    %163 = vector.load %arg7[%c0_121, %c0_122] : memref<1x64xf32, #tpu.memory_space<vmem>>, vector<1x64xf32>
    %164 = vector.broadcast %163 : vector<1x64xf32> to vector<144x64xf32>
    %165 = arith.mulf %164, %160 : vector<144x64xf32>
    %166 = arith.select %162, %160, %165 : vector<144x64xi1>, vector<144x64xf32>
    %cst_123 = arith.constant 0.000000e+00 : f32
    %167 = vector.broadcast %cst_123 : f32 to vector<112x64xf32>
    %c0_124 = arith.constant 0 : index
    %c0_125 = arith.constant 0 : index
    %168 = vector.load %arg18[%c0_124, %c0_125] : memref<112x64xf32, #tpu.memory_space<vmem>>, vector<112x64xf32>
    tpu.vector_store %arg18[%c0_124, %c0_125], %167 {strides = array<i32>} : memref<112x64xf32, #tpu.memory_space<vmem>>, vector<112x64xf32>,
    %169 = vector.extract_strided_slice %166 {offsets = [0, 0], sizes = [8, 64], strides = [1, 1]} : vector<144x64xf32> to vector<8x64xf32>
    %c11 = arith.constant 11 : index
    %c0_126 = arith.constant 0 : index
    %170 = vector.load %arg18[%c11, %c0_126] : memref<112x64xf32, #tpu.memory_space<vmem>>, vector<8x64xf32>
    tpu.vector_store %arg18[%c11, %c0_126], %169 {strides = array<i32>} : memref<112x64xf32, #tpu.memory_space<vmem>>, vector<8x64xf32>,
    %171 = vector.extract_strided_slice %166 {offsets = [18, 0], sizes = [8, 64], strides = [1, 1]} : vector<144x64xf32> to vector<8x64xf32>
    %c21 = arith.constant 21 : index
    %c0_127 = arith.constant 0 : index
    %172 = vector.load %arg18[%c21, %c0_127] : memref<112x64xf32, #tpu.memory_space<vmem>>, vector<8x64xf32>
    tpu.vector_store %arg18[%c21, %c0_127], %171 {strides = array<i32>} : memref<112x64xf32, #tpu.memory_space<vmem>>, vector<8x64xf32>,
    %173 = vector.extract_strided_slice %166 {offsets = [36, 0], sizes = [8, 64], strides = [1, 1]} : vector<144x64xf32> to vector<8x64xf32>
    %c31 = arith.constant 31 : index
    %c0_128 = arith.constant 0 : index
    %174 = vector.load %arg18[%c31, %c0_128] : memref<112x64xf32, #tpu.memory_space<vmem>>, vector<8x64xf32>
    tpu.vector_store %arg18[%c31, %c0_128], %173 {strides = array<i32>} : memref<112x64xf32, #tpu.memory_space<vmem>>, vector<8x64xf32>,
    %175 = vector.extract_strided_slice %166 {offsets = [54, 0], sizes = [8, 64], strides = [1, 1]} : vector<144x64xf32> to vector<8x64xf32>
    %c41 = arith.constant 41 : index
    %c0_129 = arith.constant 0 : index
    %176 = vector.load %arg18[%c41, %c0_129] : memref<112x64xf32, #tpu.memory_space<vmem>>, vector<8x64xf32>
    tpu.vector_store %arg18[%c41, %c0_129], %175 {strides = array<i32>} : memref<112x64xf32, #tpu.memory_space<vmem>>, vector<8x64xf32>,
    %177 = vector.extract_strided_slice %166 {offsets = [72, 0], sizes = [8, 64], strides = [1, 1]} : vector<144x64xf32> to vector<8x64xf32>
    %c51 = arith.constant 51 : index
    %c0_130 = arith.constant 0 : index
    %178 = vector.load %arg18[%c51, %c0_130] : memref<112x64xf32, #tpu.memory_space<vmem>>, vector<8x64xf32>
    tpu.vector_store %arg18[%c51, %c0_130], %177 {strides = array<i32>} : memref<112x64xf32, #tpu.memory_space<vmem>>, vector<8x64xf32>,
    %179 = vector.extract_strided_slice %166 {offsets = [90, 0], sizes = [8, 64], strides = [1, 1]} : vector<144x64xf32> to vector<8x64xf32>
    %c61 = arith.constant 61 : index
    %c0_131 = arith.constant 0 : index
    %180 = vector.load %arg18[%c61, %c0_131] : memref<112x64xf32, #tpu.memory_space<vmem>>, vector<8x64xf32>
    tpu.vector_store %arg18[%c61, %c0_131], %179 {strides = array<i32>} : memref<112x64xf32, #tpu.memory_space<vmem>>, vector<8x64xf32>,
    %181 = vector.extract_strided_slice %166 {offsets = [108, 0], sizes = [8, 64], strides = [1, 1]} : vector<144x64xf32> to vector<8x64xf32>
    %c71 = arith.constant 71 : index
    %c0_132 = arith.constant 0 : index
    %182 = vector.load %arg18[%c71, %c0_132] : memref<112x64xf32, #tpu.memory_space<vmem>>, vector<8x64xf32>
    tpu.vector_store %arg18[%c71, %c0_132], %181 {strides = array<i32>} : memref<112x64xf32, #tpu.memory_space<vmem>>, vector<8x64xf32>,
    %183 = vector.extract_strided_slice %166 {offsets = [126, 0], sizes = [8, 64], strides = [1, 1]} : vector<144x64xf32> to vector<8x64xf32>
    %c81 = arith.constant 81 : index
    %c0_133 = arith.constant 0 : index
    %184 = vector.load %arg18[%c81, %c0_133] : memref<112x64xf32, #tpu.memory_space<vmem>>, vector<8x64xf32>
    tpu.vector_store %arg18[%c81, %c0_133], %183 {strides = array<i32>} : memref<112x64xf32, #tpu.memory_space<vmem>>, vector<8x64xf32>,
    %c0_134 = arith.constant 0 : index
    %c0_135 = arith.constant 0 : index
    %185 = vector.load %arg18[%c0_134, %c0_135] : memref<112x64xf32, #tpu.memory_space<vmem>>, vector<80x64xf32>
    %c0_136 = arith.constant 0 : index
    %c0_137 = arith.constant 0 : index
    %c0_138 = arith.constant 0 : index
    %186 = vector.load %arg8[%c0_136, %c0_137, %c0_138] : memref<9x64x128xf32, #tpu.memory_space<vmem>>, vector<1x64x128xf32>
    %187 = vector.shape_cast %186 : vector<1x64x128xf32> to vector<64x128xf32>
    %cst_139 = arith.constant dense<0.000000e+00> : vector<80x128xf32>
    %188 = tpu.matmul %185, %187, %cst_139 {dimension_numbers = #tpu.dot_dimension_numbers<[1], [0], [0], [1], [0, 0, 1, 1], [], []>} : vector<80x64xf32>, vector<64x128xf32>, vector<80x128xf32> -> vector<80x128xf32>
    %c1_140 = arith.constant 1 : index
    %c0_141 = arith.constant 0 : index
    %189 = vector.load %arg18[%c1_140, %c0_141] : memref<112x64xf32, #tpu.memory_space<vmem>>, vector<80x64xf32>
    %c1_142 = arith.constant 1 : index
    %c0_143 = arith.constant 0 : index
    %c0_144 = arith.constant 0 : index
    %190 = vector.load %arg8[%c1_142, %c0_143, %c0_144] : memref<9x64x128xf32, #tpu.memory_space<vmem>>, vector<1x64x128xf32>
    %191 = vector.shape_cast %190 : vector<1x64x128xf32> to vector<64x128xf32>
    %cst_145 = arith.constant dense<0.000000e+00> : vector<80x128xf32>
    %192 = tpu.matmul %189, %191, %cst_145 {dimension_numbers = #tpu.dot_dimension_numbers<[1], [0], [0], [1], [0, 0, 1, 1], [], []>} : vector<80x64xf32>, vector<64x128xf32>, vector<80x128xf32> -> vector<80x128xf32>
    %193 = arith.addf %188, %192 : vector<80x128xf32>
    %c2_146 = arith.constant 2 : index
    %c0_147 = arith.constant 0 : index
    %194 = vector.load %arg18[%c2_146, %c0_147] : memref<112x64xf32, #tpu.memory_space<vmem>>, vector<80x64xf32>
    %c2_148 = arith.constant 2 : index
    %c0_149 = arith.constant 0 : index
    %c0_150 = arith.constant 0 : index
    %195 = vector.load %arg8[%c2_148, %c0_149, %c0_150] : memref<9x64x128xf32, #tpu.memory_space<vmem>>, vector<1x64x128xf32>
    %196 = vector.shape_cast %195 : vector<1x64x128xf32> to vector<64x128xf32>
    %cst_151 = arith.constant dense<0.000000e+00> : vector<80x128xf32>
    %197 = tpu.matmul %194, %196, %cst_151 {dimension_numbers = #tpu.dot_dimension_numbers<[1], [0], [0], [1], [0, 0, 1, 1], [], []>} : vector<80x64xf32>, vector<64x128xf32>, vector<80x128xf32> -> vector<80x128xf32>
    %198 = arith.addf %193, %197 : vector<80x128xf32>
    %c10 = arith.constant 10 : index
    %c0_152 = arith.constant 0 : index
    %199 = vector.load %arg18[%c10, %c0_152] : memref<112x64xf32, #tpu.memory_space<vmem>>, vector<80x64xf32>
    %c3_153 = arith.constant 3 : index
    %c0_154 = arith.constant 0 : index
    %c0_155 = arith.constant 0 : index
    %200 = vector.load %arg8[%c3_153, %c0_154, %c0_155] : memref<9x64x128xf32, #tpu.memory_space<vmem>>, vector<1x64x128xf32>
    %201 = vector.shape_cast %200 : vector<1x64x128xf32> to vector<64x128xf32>
    %cst_156 = arith.constant dense<0.000000e+00> : vector<80x128xf32>
    %202 = tpu.matmul %199, %201, %cst_156 {dimension_numbers = #tpu.dot_dimension_numbers<[1], [0], [0], [1], [0, 0, 1, 1], [], []>} : vector<80x64xf32>, vector<64x128xf32>, vector<80x128xf32> -> vector<80x128xf32>
    %203 = arith.addf %198, %202 : vector<80x128xf32>
    %c11_157 = arith.constant 11 : index
    %c0_158 = arith.constant 0 : index
    %204 = vector.load %arg18[%c11_157, %c0_158] : memref<112x64xf32, #tpu.memory_space<vmem>>, vector<80x64xf32>
    %c4_159 = arith.constant 4 : index
    %c0_160 = arith.constant 0 : index
    %c0_161 = arith.constant 0 : index
    %205 = vector.load %arg8[%c4_159, %c0_160, %c0_161] : memref<9x64x128xf32, #tpu.memory_space<vmem>>, vector<1x64x128xf32>
    %206 = vector.shape_cast %205 : vector<1x64x128xf32> to vector<64x128xf32>
    %cst_162 = arith.constant dense<0.000000e+00> : vector<80x128xf32>
    %207 = tpu.matmul %204, %206, %cst_162 {dimension_numbers = #tpu.dot_dimension_numbers<[1], [0], [0], [1], [0, 0, 1, 1], [], []>} : vector<80x64xf32>, vector<64x128xf32>, vector<80x128xf32> -> vector<80x128xf32>
    %208 = arith.addf %203, %207 : vector<80x128xf32>
    %c12 = arith.constant 12 : index
    %c0_163 = arith.constant 0 : index
    %209 = vector.load %arg18[%c12, %c0_163] : memref<112x64xf32, #tpu.memory_space<vmem>>, vector<80x64xf32>
    %c5_164 = arith.constant 5 : index
    %c0_165 = arith.constant 0 : index
    %c0_166 = arith.constant 0 : index
    %210 = vector.load %arg8[%c5_164, %c0_165, %c0_166] : memref<9x64x128xf32, #tpu.memory_space<vmem>>, vector<1x64x128xf32>
    %211 = vector.shape_cast %210 : vector<1x64x128xf32> to vector<64x128xf32>
    %cst_167 = arith.constant dense<0.000000e+00> : vector<80x128xf32>
    %212 = tpu.matmul %209, %211, %cst_167 {dimension_numbers = #tpu.dot_dimension_numbers<[1], [0], [0], [1], [0, 0, 1, 1], [], []>} : vector<80x64xf32>, vector<64x128xf32>, vector<80x128xf32> -> vector<80x128xf32>
    %213 = arith.addf %208, %212 : vector<80x128xf32>
    %c20_168 = arith.constant 20 : index
    %c0_169 = arith.constant 0 : index
    %214 = vector.load %arg18[%c20_168, %c0_169] : memref<112x64xf32, #tpu.memory_space<vmem>>, vector<80x64xf32>
    %c6_170 = arith.constant 6 : index
    %c0_171 = arith.constant 0 : index
    %c0_172 = arith.constant 0 : index
    %215 = vector.load %arg8[%c6_170, %c0_171, %c0_172] : memref<9x64x128xf32, #tpu.memory_space<vmem>>, vector<1x64x128xf32>
    %216 = vector.shape_cast %215 : vector<1x64x128xf32> to vector<64x128xf32>
    %cst_173 = arith.constant dense<0.000000e+00> : vector<80x128xf32>
    %217 = tpu.matmul %214, %216, %cst_173 {dimension_numbers = #tpu.dot_dimension_numbers<[1], [0], [0], [1], [0, 0, 1, 1], [], []>} : vector<80x64xf32>, vector<64x128xf32>, vector<80x128xf32> -> vector<80x128xf32>
    %218 = arith.addf %213, %217 : vector<80x128xf32>
    %c21_174 = arith.constant 21 : index
    %c0_175 = arith.constant 0 : index
    %219 = vector.load %arg18[%c21_174, %c0_175] : memref<112x64xf32, #tpu.memory_space<vmem>>, vector<80x64xf32>
    %c7_176 = arith.constant 7 : index
    %c0_177 = arith.constant 0 : index
    %c0_178 = arith.constant 0 : index
    %220 = vector.load %arg8[%c7_176, %c0_177, %c0_178] : memref<9x64x128xf32, #tpu.memory_space<vmem>>, vector<1x64x128xf32>
    %221 = vector.shape_cast %220 : vector<1x64x128xf32> to vector<64x128xf32>
    %cst_179 = arith.constant dense<0.000000e+00> : vector<80x128xf32>
    %222 = tpu.matmul %219, %221, %cst_179 {dimension_numbers = #tpu.dot_dimension_numbers<[1], [0], [0], [1], [0, 0, 1, 1], [], []>} : vector<80x64xf32>, vector<64x128xf32>, vector<80x128xf32> -> vector<80x128xf32>
    %223 = arith.addf %218, %222 : vector<80x128xf32>
    %c22 = arith.constant 22 : index
    %c0_180 = arith.constant 0 : index
    %224 = vector.load %arg18[%c22, %c0_180] : memref<112x64xf32, #tpu.memory_space<vmem>>, vector<80x64xf32>
    %c8_181 = arith.constant 8 : index
    %c0_182 = arith.constant 0 : index
    %c0_183 = arith.constant 0 : index
    %225 = vector.load %arg8[%c8_181, %c0_182, %c0_183] : memref<9x64x128xf32, #tpu.memory_space<vmem>>, vector<1x64x128xf32>
    %226 = vector.shape_cast %225 : vector<1x64x128xf32> to vector<64x128xf32>
    %cst_184 = arith.constant dense<0.000000e+00> : vector<80x128xf32>
    %227 = tpu.matmul %224, %226, %cst_184 {dimension_numbers = #tpu.dot_dimension_numbers<[1], [0], [0], [1], [0, 0, 1, 1], [], []>} : vector<80x64xf32>, vector<64x128xf32>, vector<80x128xf32> -> vector<80x128xf32>
    %228 = arith.addf %223, %227 : vector<80x128xf32>
    %c0_185 = arith.constant 0 : index
    %c0_186 = arith.constant 0 : index
    %229 = vector.load %arg9[%c0_185, %c0_186] : memref<1x128xf32, #tpu.memory_space<vmem>>, vector<1x128xf32>
    %230 = vector.broadcast %229 : vector<1x128xf32> to vector<80x128xf32>
    %231 = arith.addf %228, %230 : vector<80x128xf32>
    %cst_187 = arith.constant 0.000000e+00 : f32
    %232 = vector.broadcast %cst_187 : f32 to vector<80x128xf32>
    %233 = arith.cmpf ogt, %231, %232 : vector<80x128xf32>
    %c0_188 = arith.constant 0 : index
    %c0_189 = arith.constant 0 : index
    %234 = vector.load %arg10[%c0_188, %c0_189] : memref<1x128xf32, #tpu.memory_space<vmem>>, vector<1x128xf32>
    %235 = vector.broadcast %234 : vector<1x128xf32> to vector<80x128xf32>
    %236 = arith.mulf %235, %231 : vector<80x128xf32>
    %237 = arith.select %233, %231, %236 : vector<80x128xi1>, vector<80x128xf32>
    %cst_190 = arith.constant 0.000000e+00 : f32
    %238 = vector.broadcast %cst_190 : f32 to vector<112x128xf32>
    %c0_191 = arith.constant 0 : index
    %c0_192 = arith.constant 0 : index
    %239 = vector.load %arg19[%c0_191, %c0_192] : memref<112x128xf32, #tpu.memory_space<vmem>>, vector<112x128xf32>
    tpu.vector_store %arg19[%c0_191, %c0_192], %238 {strides = array<i32>} : memref<112x128xf32, #tpu.memory_space<vmem>>, vector<112x128xf32>,
    %240 = vector.extract_strided_slice %237 {offsets = [0, 0], sizes = [8, 128], strides = [1, 1]} : vector<80x128xf32> to vector<8x128xf32>
    %c11_193 = arith.constant 11 : index
    %c0_194 = arith.constant 0 : index
    %241 = vector.load %arg19[%c11_193, %c0_194] : memref<112x128xf32, #tpu.memory_space<vmem>>, vector<8x128xf32>
    tpu.vector_store %arg19[%c11_193, %c0_194], %240 {strides = array<i32>} : memref<112x128xf32, #tpu.memory_space<vmem>>, vector<8x128xf32>,
    %242 = vector.extract_strided_slice %237 {offsets = [10, 0], sizes = [8, 128], strides = [1, 1]} : vector<80x128xf32> to vector<8x128xf32>
    %c21_195 = arith.constant 21 : index
    %c0_196 = arith.constant 0 : index
    %243 = vector.load %arg19[%c21_195, %c0_196] : memref<112x128xf32, #tpu.memory_space<vmem>>, vector<8x128xf32>
    tpu.vector_store %arg19[%c21_195, %c0_196], %242 {strides = array<i32>} : memref<112x128xf32, #tpu.memory_space<vmem>>, vector<8x128xf32>,
    %244 = vector.extract_strided_slice %237 {offsets = [20, 0], sizes = [8, 128], strides = [1, 1]} : vector<80x128xf32> to vector<8x128xf32>
    %c31_197 = arith.constant 31 : index
    %c0_198 = arith.constant 0 : index
    %245 = vector.load %arg19[%c31_197, %c0_198] : memref<112x128xf32, #tpu.memory_space<vmem>>, vector<8x128xf32>
    tpu.vector_store %arg19[%c31_197, %c0_198], %244 {strides = array<i32>} : memref<112x128xf32, #tpu.memory_space<vmem>>, vector<8x128xf32>,
    %246 = vector.extract_strided_slice %237 {offsets = [30, 0], sizes = [8, 128], strides = [1, 1]} : vector<80x128xf32> to vector<8x128xf32>
    %c41_199 = arith.constant 41 : index
    %c0_200 = arith.constant 0 : index
    %247 = vector.load %arg19[%c41_199, %c0_200] : memref<112x128xf32, #tpu.memory_space<vmem>>, vector<8x128xf32>
    tpu.vector_store %arg19[%c41_199, %c0_200], %246 {strides = array<i32>} : memref<112x128xf32, #tpu.memory_space<vmem>>, vector<8x128xf32>,
    %248 = vector.extract_strided_slice %237 {offsets = [40, 0], sizes = [8, 128], strides = [1, 1]} : vector<80x128xf32> to vector<8x128xf32>
    %c51_201 = arith.constant 51 : index
    %c0_202 = arith.constant 0 : index
    %249 = vector.load %arg19[%c51_201, %c0_202] : memref<112x128xf32, #tpu.memory_space<vmem>>, vector<8x128xf32>
    tpu.vector_store %arg19[%c51_201, %c0_202], %248 {strides = array<i32>} : memref<112x128xf32, #tpu.memory_space<vmem>>, vector<8x128xf32>,
    %250 = vector.extract_strided_slice %237 {offsets = [50, 0], sizes = [8, 128], strides = [1, 1]} : vector<80x128xf32> to vector<8x128xf32>
    %c61_203 = arith.constant 61 : index
    %c0_204 = arith.constant 0 : index
    %251 = vector.load %arg19[%c61_203, %c0_204] : memref<112x128xf32, #tpu.memory_space<vmem>>, vector<8x128xf32>
    tpu.vector_store %arg19[%c61_203, %c0_204], %250 {strides = array<i32>} : memref<112x128xf32, #tpu.memory_space<vmem>>, vector<8x128xf32>,
    %252 = vector.extract_strided_slice %237 {offsets = [60, 0], sizes = [8, 128], strides = [1, 1]} : vector<80x128xf32> to vector<8x128xf32>
    %c71_205 = arith.constant 71 : index
    %c0_206 = arith.constant 0 : index
    %253 = vector.load %arg19[%c71_205, %c0_206] : memref<112x128xf32, #tpu.memory_space<vmem>>, vector<8x128xf32>
    tpu.vector_store %arg19[%c71_205, %c0_206], %252 {strides = array<i32>} : memref<112x128xf32, #tpu.memory_space<vmem>>, vector<8x128xf32>,
    %254 = vector.extract_strided_slice %237 {offsets = [70, 0], sizes = [8, 128], strides = [1, 1]} : vector<80x128xf32> to vector<8x128xf32>
    %c81_207 = arith.constant 81 : index
    %c0_208 = arith.constant 0 : index
    %255 = vector.load %arg19[%c81_207, %c0_208] : memref<112x128xf32, #tpu.memory_space<vmem>>, vector<8x128xf32>
    tpu.vector_store %arg19[%c81_207, %c0_208], %254 {strides = array<i32>} : memref<112x128xf32, #tpu.memory_space<vmem>>, vector<8x128xf32>,
    %c0_209 = arith.constant 0 : index
    %c0_210 = arith.constant 0 : index
    %256 = tpu.strided_load %arg19[%c0_209, %c0_210] {strides = array<i32: 2, 1>} : memref<112x128xf32, #tpu.memory_space<vmem>>, vector<40x128xf32>
    %c0_211 = arith.constant 0 : index
    %c0_212 = arith.constant 0 : index
    %c0_213 = arith.constant 0 : index
    %257 = vector.load %arg11[%c0_211, %c0_212, %c0_213] : memref<9x128x256xf32, #tpu.memory_space<vmem>>, vector<1x128x256xf32>
    %258 = vector.shape_cast %257 : vector<1x128x256xf32> to vector<128x256xf32>
    %cst_214 = arith.constant dense<0.000000e+00> : vector<40x256xf32>
    %259 = tpu.matmul %256, %258, %cst_214 {dimension_numbers = #tpu.dot_dimension_numbers<[1], [0], [0], [1], [0, 0, 1, 1], [], []>} : vector<40x128xf32>, vector<128x256xf32>, vector<40x256xf32> -> vector<40x256xf32>
    %c1_215 = arith.constant 1 : index
    %c0_216 = arith.constant 0 : index
    %260 = tpu.strided_load %arg19[%c1_215, %c0_216] {strides = array<i32: 2, 1>} : memref<112x128xf32, #tpu.memory_space<vmem>>, vector<40x128xf32>
    %c1_217 = arith.constant 1 : index
    %c0_218 = arith.constant 0 : index
    %c0_219 = arith.constant 0 : index
    %261 = vector.load %arg11[%c1_217, %c0_218, %c0_219] : memref<9x128x256xf32, #tpu.memory_space<vmem>>, vector<1x128x256xf32>
    %262 = vector.shape_cast %261 : vector<1x128x256xf32> to vector<128x256xf32>
    %cst_220 = arith.constant dense<0.000000e+00> : vector<40x256xf32>
    %263 = tpu.matmul %260, %262, %cst_220 {dimension_numbers = #tpu.dot_dimension_numbers<[1], [0], [0], [1], [0, 0, 1, 1], [], []>} : vector<40x128xf32>, vector<128x256xf32>, vector<40x256xf32> -> vector<40x256xf32>
    %264 = arith.addf %259, %263 : vector<40x256xf32>
    %c2_221 = arith.constant 2 : index
    %c0_222 = arith.constant 0 : index
    %265 = tpu.strided_load %arg19[%c2_221, %c0_222] {strides = array<i32: 2, 1>} : memref<112x128xf32, #tpu.memory_space<vmem>>, vector<40x128xf32>
    %c2_223 = arith.constant 2 : index
    %c0_224 = arith.constant 0 : index
    %c0_225 = arith.constant 0 : index
    %266 = vector.load %arg11[%c2_223, %c0_224, %c0_225] : memref<9x128x256xf32, #tpu.memory_space<vmem>>, vector<1x128x256xf32>
    %267 = vector.shape_cast %266 : vector<1x128x256xf32> to vector<128x256xf32>
    %cst_226 = arith.constant dense<0.000000e+00> : vector<40x256xf32>
    %268 = tpu.matmul %265, %267, %cst_226 {dimension_numbers = #tpu.dot_dimension_numbers<[1], [0], [0], [1], [0, 0, 1, 1], [], []>} : vector<40x128xf32>, vector<128x256xf32>, vector<40x256xf32> -> vector<40x256xf32>
    %269 = arith.addf %264, %268 : vector<40x256xf32>
    %c10_227 = arith.constant 10 : index
    %c0_228 = arith.constant 0 : index
    %270 = tpu.strided_load %arg19[%c10_227, %c0_228] {strides = array<i32: 2, 1>} : memref<112x128xf32, #tpu.memory_space<vmem>>, vector<40x128xf32>
    %c3_229 = arith.constant 3 : index
    %c0_230 = arith.constant 0 : index
    %c0_231 = arith.constant 0 : index
    %271 = vector.load %arg11[%c3_229, %c0_230, %c0_231] : memref<9x128x256xf32, #tpu.memory_space<vmem>>, vector<1x128x256xf32>
    %272 = vector.shape_cast %271 : vector<1x128x256xf32> to vector<128x256xf32>
    %cst_232 = arith.constant dense<0.000000e+00> : vector<40x256xf32>
    %273 = tpu.matmul %270, %272, %cst_232 {dimension_numbers = #tpu.dot_dimension_numbers<[1], [0], [0], [1], [0, 0, 1, 1], [], []>} : vector<40x128xf32>, vector<128x256xf32>, vector<40x256xf32> -> vector<40x256xf32>
    %274 = arith.addf %269, %273 : vector<40x256xf32>
    %c11_233 = arith.constant 11 : index
    %c0_234 = arith.constant 0 : index
    %275 = tpu.strided_load %arg19[%c11_233, %c0_234] {strides = array<i32: 2, 1>} : memref<112x128xf32, #tpu.memory_space<vmem>>, vector<40x128xf32>
    %c4_235 = arith.constant 4 : index
    %c0_236 = arith.constant 0 : index
    %c0_237 = arith.constant 0 : index
    %276 = vector.load %arg11[%c4_235, %c0_236, %c0_237] : memref<9x128x256xf32, #tpu.memory_space<vmem>>, vector<1x128x256xf32>
    %277 = vector.shape_cast %276 : vector<1x128x256xf32> to vector<128x256xf32>
    %cst_238 = arith.constant dense<0.000000e+00> : vector<40x256xf32>
    %278 = tpu.matmul %275, %277, %cst_238 {dimension_numbers = #tpu.dot_dimension_numbers<[1], [0], [0], [1], [0, 0, 1, 1], [], []>} : vector<40x128xf32>, vector<128x256xf32>, vector<40x256xf32> -> vector<40x256xf32>
    %279 = arith.addf %274, %278 : vector<40x256xf32>
    %c12_239 = arith.constant 12 : index
    %c0_240 = arith.constant 0 : index
    %280 = tpu.strided_load %arg19[%c12_239, %c0_240] {strides = array<i32: 2, 1>} : memref<112x128xf32, #tpu.memory_space<vmem>>, vector<40x128xf32>
    %c5_241 = arith.constant 5 : index
    %c0_242 = arith.constant 0 : index
    %c0_243 = arith.constant 0 : index
    %281 = vector.load %arg11[%c5_241, %c0_242, %c0_243] : memref<9x128x256xf32, #tpu.memory_space<vmem>>, vector<1x128x256xf32>
    %282 = vector.shape_cast %281 : vector<1x128x256xf32> to vector<128x256xf32>
    %cst_244 = arith.constant dense<0.000000e+00> : vector<40x256xf32>
    %283 = tpu.matmul %280, %282, %cst_244 {dimension_numbers = #tpu.dot_dimension_numbers<[1], [0], [0], [1], [0, 0, 1, 1], [], []>} : vector<40x128xf32>, vector<128x256xf32>, vector<40x256xf32> -> vector<40x256xf32>
    %284 = arith.addf %279, %283 : vector<40x256xf32>
    %c20_245 = arith.constant 20 : index
    %c0_246 = arith.constant 0 : index
    %285 = tpu.strided_load %arg19[%c20_245, %c0_246] {strides = array<i32: 2, 1>} : memref<112x128xf32, #tpu.memory_space<vmem>>, vector<40x128xf32>
    %c6_247 = arith.constant 6 : index
    %c0_248 = arith.constant 0 : index
    %c0_249 = arith.constant 0 : index
    %286 = vector.load %arg11[%c6_247, %c0_248, %c0_249] : memref<9x128x256xf32, #tpu.memory_space<vmem>>, vector<1x128x256xf32>
    %287 = vector.shape_cast %286 : vector<1x128x256xf32> to vector<128x256xf32>
    %cst_250 = arith.constant dense<0.000000e+00> : vector<40x256xf32>
    %288 = tpu.matmul %285, %287, %cst_250 {dimension_numbers = #tpu.dot_dimension_numbers<[1], [0], [0], [1], [0, 0, 1, 1], [], []>} : vector<40x128xf32>, vector<128x256xf32>, vector<40x256xf32> -> vector<40x256xf32>
    %289 = arith.addf %284, %288 : vector<40x256xf32>
    %c21_251 = arith.constant 21 : index
    %c0_252 = arith.constant 0 : index
    %290 = tpu.strided_load %arg19[%c21_251, %c0_252] {strides = array<i32: 2, 1>} : memref<112x128xf32, #tpu.memory_space<vmem>>, vector<40x128xf32>
    %c7_253 = arith.constant 7 : index
    %c0_254 = arith.constant 0 : index
    %c0_255 = arith.constant 0 : index
    %291 = vector.load %arg11[%c7_253, %c0_254, %c0_255] : memref<9x128x256xf32, #tpu.memory_space<vmem>>, vector<1x128x256xf32>
    %292 = vector.shape_cast %291 : vector<1x128x256xf32> to vector<128x256xf32>
    %cst_256 = arith.constant dense<0.000000e+00> : vector<40x256xf32>
    %293 = tpu.matmul %290, %292, %cst_256 {dimension_numbers = #tpu.dot_dimension_numbers<[1], [0], [0], [1], [0, 0, 1, 1], [], []>} : vector<40x128xf32>, vector<128x256xf32>, vector<40x256xf32> -> vector<40x256xf32>
    %294 = arith.addf %289, %293 : vector<40x256xf32>
    %c22_257 = arith.constant 22 : index
    %c0_258 = arith.constant 0 : index
    %295 = tpu.strided_load %arg19[%c22_257, %c0_258] {strides = array<i32: 2, 1>} : memref<112x128xf32, #tpu.memory_space<vmem>>, vector<40x128xf32>
    %c8_259 = arith.constant 8 : index
    %c0_260 = arith.constant 0 : index
    %c0_261 = arith.constant 0 : index
    %296 = vector.load %arg11[%c8_259, %c0_260, %c0_261] : memref<9x128x256xf32, #tpu.memory_space<vmem>>, vector<1x128x256xf32>
    %297 = vector.shape_cast %296 : vector<1x128x256xf32> to vector<128x256xf32>
    %cst_262 = arith.constant dense<0.000000e+00> : vector<40x256xf32>
    %298 = tpu.matmul %295, %297, %cst_262 {dimension_numbers = #tpu.dot_dimension_numbers<[1], [0], [0], [1], [0, 0, 1, 1], [], []>} : vector<40x128xf32>, vector<128x256xf32>, vector<40x256xf32> -> vector<40x256xf32>
    %299 = arith.addf %294, %298 : vector<40x256xf32>
    %c0_263 = arith.constant 0 : index
    %c0_264 = arith.constant 0 : index
    %300 = vector.load %arg12[%c0_263, %c0_264] : memref<1x256xf32, #tpu.memory_space<vmem>>, vector<1x256xf32>
    %301 = vector.broadcast %300 : vector<1x256xf32> to vector<40x256xf32>
    %302 = arith.addf %299, %301 : vector<40x256xf32>
    %cst_265 = arith.constant 0.000000e+00 : f32
    %303 = vector.broadcast %cst_265 : f32 to vector<40x256xf32>
    %304 = arith.cmpf ogt, %302, %303 : vector<40x256xf32>
    %c0_266 = arith.constant 0 : index
    %c0_267 = arith.constant 0 : index
    %305 = vector.load %arg13[%c0_266, %c0_267] : memref<1x256xf32, #tpu.memory_space<vmem>>, vector<1x256xf32>
    %306 = vector.broadcast %305 : vector<1x256xf32> to vector<40x256xf32>
    %307 = arith.mulf %306, %302 : vector<40x256xf32>
    %308 = arith.select %304, %302, %307 : vector<40x256xi1>, vector<40x256xf32>
    %c0_268 = arith.constant 0 : index
    %c0_269 = arith.constant 0 : index
    %309 = vector.load %arg14[%c0_268, %c0_269] : memref<256x128xf32, #tpu.memory_space<vmem>>, vector<256x128xf32>
    %cst_270 = arith.constant dense<0.000000e+00> : vector<40x128xf32>
    %310 = tpu.matmul %308, %309, %cst_270 {dimension_numbers = #tpu.dot_dimension_numbers<[1], [0], [0], [1], [0, 0, 1, 1], [], []>} : vector<40x256xf32>, vector<256x128xf32>, vector<40x128xf32> -> vector<40x128xf32>
    %c0_271 = arith.constant 0 : index
    %c0_272 = arith.constant 0 : index
    %311 = vector.load %arg15[%c0_271, %c0_272] : memref<1x8xf32, #tpu.memory_space<vmem>>, vector<1x8xf32>
    %312 = vector.extract_strided_slice %310 {offsets = [0, 0], sizes = [1, 8], strides = [1, 1]} : vector<40x128xf32> to vector<1x8xf32>
    %313 = arith.addf %311, %312 : vector<1x8xf32>
    %314 = vector.extract_strided_slice %310 {offsets = [1, 8], sizes = [1, 8], strides = [1, 1]} : vector<40x128xf32> to vector<1x8xf32>
    %315 = arith.addf %313, %314 : vector<1x8xf32>
    %316 = vector.extract_strided_slice %310 {offsets = [2, 16], sizes = [1, 8], strides = [1, 1]} : vector<40x128xf32> to vector<1x8xf32>
    %317 = arith.addf %315, %316 : vector<1x8xf32>
    %318 = vector.extract_strided_slice %310 {offsets = [3, 24], sizes = [1, 8], strides = [1, 1]} : vector<40x128xf32> to vector<1x8xf32>
    %319 = arith.addf %317, %318 : vector<1x8xf32>
    %320 = vector.extract_strided_slice %310 {offsets = [10, 32], sizes = [1, 8], strides = [1, 1]} : vector<40x128xf32> to vector<1x8xf32>
    %321 = arith.addf %319, %320 : vector<1x8xf32>
    %322 = vector.extract_strided_slice %310 {offsets = [11, 40], sizes = [1, 8], strides = [1, 1]} : vector<40x128xf32> to vector<1x8xf32>
    %323 = arith.addf %321, %322 : vector<1x8xf32>
    %324 = vector.extract_strided_slice %310 {offsets = [12, 48], sizes = [1, 8], strides = [1, 1]} : vector<40x128xf32> to vector<1x8xf32>
    %325 = arith.addf %323, %324 : vector<1x8xf32>
    %326 = vector.extract_strided_slice %310 {offsets = [13, 56], sizes = [1, 8], strides = [1, 1]} : vector<40x128xf32> to vector<1x8xf32>
    %327 = arith.addf %325, %326 : vector<1x8xf32>
    %328 = vector.extract_strided_slice %310 {offsets = [20, 64], sizes = [1, 8], strides = [1, 1]} : vector<40x128xf32> to vector<1x8xf32>
    %329 = arith.addf %327, %328 : vector<1x8xf32>
    %330 = vector.extract_strided_slice %310 {offsets = [21, 72], sizes = [1, 8], strides = [1, 1]} : vector<40x128xf32> to vector<1x8xf32>
    %331 = arith.addf %329, %330 : vector<1x8xf32>
    %332 = vector.extract_strided_slice %310 {offsets = [22, 80], sizes = [1, 8], strides = [1, 1]} : vector<40x128xf32> to vector<1x8xf32>
    %333 = arith.addf %331, %332 : vector<1x8xf32>
    %334 = vector.extract_strided_slice %310 {offsets = [23, 88], sizes = [1, 8], strides = [1, 1]} : vector<40x128xf32> to vector<1x8xf32>
    %335 = arith.addf %333, %334 : vector<1x8xf32>
    %336 = vector.extract_strided_slice %310 {offsets = [30, 96], sizes = [1, 8], strides = [1, 1]} : vector<40x128xf32> to vector<1x8xf32>
    %337 = arith.addf %335, %336 : vector<1x8xf32>
    %338 = vector.extract_strided_slice %310 {offsets = [31, 104], sizes = [1, 8], strides = [1, 1]} : vector<40x128xf32> to vector<1x8xf32>
    %339 = arith.addf %337, %338 : vector<1x8xf32>
    %340 = vector.extract_strided_slice %310 {offsets = [32, 112], sizes = [1, 8], strides = [1, 1]} : vector<40x128xf32> to vector<1x8xf32>
    %341 = arith.addf %339, %340 : vector<1x8xf32>
    %342 = vector.extract_strided_slice %310 {offsets = [33, 120], sizes = [1, 8], strides = [1, 1]} : vector<40x128xf32> to vector<1x8xf32>
    %343 = arith.addf %341, %342 : vector<1x8xf32>
    %c0_273 = arith.constant 0 : index
    %c0_274 = arith.constant 0 : index
    %c0_275 = arith.constant 0 : index
    %344 = vector.load %arg16[%c0_273, %c0_274, %c0_275] : memref<1x1x8xf32, #tpu.memory_space<vmem>>, vector<1x1x8xf32>
    %345 = vector.shape_cast %344 : vector<1x1x8xf32> to vector<1x8xf32>
    %346 = vector.shape_cast %343 : vector<1x8xf32> to vector<1x1x8xf32>
    tpu.vector_store %arg16[%c0_273, %c0_274, %c0_275], %346 {strides = array<i32>} : memref<1x1x8xf32, #tpu.memory_space<vmem>>, vector<1x1x8xf32>,
    return
  }
  func.func @transform_0(%arg0: i32) -> (i32, i32, i32) {
    %c0_i32 = arith.constant 0 : i32
    %c0_i32_0 = arith.constant 0 : i32
    %c0_i32_1 = arith.constant 0 : i32
    return %arg0, %c0_i32, %c0_i32_0 : i32, i32, i32
  }
  func.func @transform_1(%arg0: i32) -> (i32, i32, i32) {
    %c0_i32 = arith.constant 0 : i32
    %c0_i32_0 = arith.constant 0 : i32
    %c0_i32_1 = arith.constant 0 : i32
    %c0_i32_2 = arith.constant 0 : i32
    return %c0_i32, %c0_i32_0, %c0_i32_1 : i32, i32, i32
  }
  func.func @transform_2(%arg0: i32) -> (i32, i32) {
    %c0_i32 = arith.constant 0 : i32
    %c0_i32_0 = arith.constant 0 : i32
    %c0_i32_1 = arith.constant 0 : i32
    return %c0_i32, %c0_i32_0 : i32, i32
  }
  func.func @transform_3(%arg0: i32) -> (i32, i32) {
    %c0_i32 = arith.constant 0 : i32
    %c0_i32_0 = arith.constant 0 : i32
    %c0_i32_1 = arith.constant 0 : i32
    return %c0_i32, %c0_i32_0 : i32, i32
  }
  func.func @transform_4(%arg0: i32) -> (i32, i32, i32) {
    %c0_i32 = arith.constant 0 : i32
    %c0_i32_0 = arith.constant 0 : i32
    %c0_i32_1 = arith.constant 0 : i32
    %c0_i32_2 = arith.constant 0 : i32
    return %c0_i32, %c0_i32_0, %c0_i32_1 : i32, i32, i32
  }
  func.func @transform_5(%arg0: i32) -> (i32, i32) {
    %c0_i32 = arith.constant 0 : i32
    %c0_i32_0 = arith.constant 0 : i32
    %c0_i32_1 = arith.constant 0 : i32
    return %c0_i32, %c0_i32_0 : i32, i32
  }
  func.func @transform_6(%arg0: i32) -> (i32, i32) {
    %c0_i32 = arith.constant 0 : i32
    %c0_i32_0 = arith.constant 0 : i32
    %c0_i32_1 = arith.constant 0 : i32
    return %c0_i32, %c0_i32_0 : i32, i32
  }
  func.func @transform_7(%arg0: i32) -> (i32, i32, i32) {
    %c0_i32 = arith.constant 0 : i32
    %c0_i32_0 = arith.constant 0 : i32
    %c0_i32_1 = arith.constant 0 : i32
    %c0_i32_2 = arith.constant 0 : i32
    return %c0_i32, %c0_i32_0, %c0_i32_1 : i32, i32, i32
  }
  func.func @transform_8(%arg0: i32) -> (i32, i32) {
    %c0_i32 = arith.constant 0 : i32
    %c0_i32_0 = arith.constant 0 : i32
    %c0_i32_1 = arith.constant 0 : i32
    return %c0_i32, %c0_i32_0 : i32, i32
  }
  func.func @transform_9(%arg0: i32) -> (i32, i32) {
    %c0_i32 = arith.constant 0 : i32
    %c0_i32_0 = arith.constant 0 : i32
    %c0_i32_1 = arith.constant 0 : i32
    return %c0_i32, %c0_i32_0 : i32, i32
  }
  func.func @transform_10(%arg0: i32) -> (i32, i32, i32) {
    %c0_i32 = arith.constant 0 : i32
    %c0_i32_0 = arith.constant 0 : i32
    %c0_i32_1 = arith.constant 0 : i32
    %c0_i32_2 = arith.constant 0 : i32
    return %c0_i32, %c0_i32_0, %c0_i32_1 : i32, i32, i32
  }
  func.func @transform_11(%arg0: i32) -> (i32, i32) {
    %c0_i32 = arith.constant 0 : i32
    %c0_i32_0 = arith.constant 0 : i32
    %c0_i32_1 = arith.constant 0 : i32
    return %c0_i32, %c0_i32_0 : i32, i32
  }
  func.func @transform_12(%arg0: i32) -> (i32, i32) {
    %c0_i32 = arith.constant 0 : i32
    %c0_i32_0 = arith.constant 0 : i32
    %c0_i32_1 = arith.constant 0 : i32
    return %c0_i32, %c0_i32_0 : i32, i32
  }
  func.func @transform_13(%arg0: i32) -> (i32, i32) {
    %c0_i32 = arith.constant 0 : i32
    %c0_i32_0 = arith.constant 0 : i32
    %c0_i32_1 = arith.constant 0 : i32
    return %c0_i32, %c0_i32_0 : i32, i32
  }
  func.func @transform_14(%arg0: i32) -> (i32, i32) {
    %c0_i32 = arith.constant 0 : i32
    %c0_i32_0 = arith.constant 0 : i32
    %c0_i32_1 = arith.constant 0 : i32
    return %c0_i32, %c0_i32_0 : i32, i32
  }
  func.func @transform_15(%arg0: i32) -> (i32, i32, i32) {
    %c0_i32 = arith.constant 0 : i32
    %c0_i32_0 = arith.constant 0 : i32
    %c0_i32_1 = arith.constant 0 : i32
    return %arg0, %c0_i32, %c0_i32_0 : i32, i32, i32
  }
}

</mosaic_0001>

<llo_original>
// kernel: cnn_nomam_forward.1
$region0: #{cnn_nomam_forward.1}
  #allocation0 [shape = 'u32[]', space=smem, size = 0x4, offset = 0x4, fixed_abs, tag = 'smem constant byte address 0x4 - core index']
  #allocation1 [shape = 'u32[144,128]{1,0:T(1,128)}', space=vmem, size = 0x12000, scoped, tag = 'internal scratch']
  #allocation2 [shape = 'f32[336,32]{1,0:T(8,128)}', space=vmem, size = 0x2a000, scoped, tag = 'scratch operand']
  #allocation3 [shape = 'f32[112,64]{1,0:T(8,128)}', space=vmem, size = 0xe000, scoped, tag = 'scratch operand']
  #allocation4 [shape = 'f32[112,128]{1,0:T(8,128)}', space=vmem, size = 0xe000, scoped, tag = 'scratch operand']
  %s0 = inlined_call_operand.vmem [shape: f32[2,336,1], index: 0, kind: input, shape index: {}]
  %s1 = inlined_call_operand.hbm [shape: f32[9,1,32], index: 1, kind: input, shape index: {}]
  %s2 = inlined_call_operand.hbm [shape: f32[1,32], index: 2, kind: input, shape index: {}]
  %s3 = inlined_call_operand.hbm [shape: f32[1,32], index: 3, kind: input, shape index: {}]
  %s4 = inlined_call_operand.vmem [shape: f32[9,32,64], index: 4, kind: input, shape index: {}]
  %s5 = inlined_call_operand.hbm [shape: f32[1,64], index: 5, kind: input, shape index: {}]
  %s6 = inlined_call_operand.hbm [shape: f32[1,64], index: 6, kind: input, shape index: {}]
  %s7 = inlined_call_operand.vmem [shape: f32[9,64,128], index: 7, kind: input, shape index: {}]
  %s8 = inlined_call_operand.hbm [shape: f32[1,128], index: 8, kind: input, shape index: {}]
  %s9 = inlined_call_operand.hbm [shape: f32[1,128], index: 9, kind: input, shape index: {}]
  %s10 = inlined_call_operand.hbm [shape: f32[9,128,256], index: 10, kind: input, shape index: {}]
  %s11 = inlined_call_operand.hbm [shape: f32[1,256], index: 11, kind: input, shape index: {}]
  %s12 = inlined_call_operand.hbm [shape: f32[1,256], index: 12, kind: input, shape index: {}]
  %s13 = inlined_call_operand.vmem [shape: f32[256,128], index: 13, kind: input, shape index: {}]
  %s14 = inlined_call_operand.hbm [shape: f32[1,8], index: 14, kind: input, shape index: {}]
  %s15 = inlined_call_operand.hbm [shape: f32[2,1,8], index: 15, kind: output, shape index: {}]
  %s16 = sld [smem:[#allocation0]]
  $region137: #{cnn_nomam_forward.1} parent=0
    _
  %s18 = ssub.s32 1, %s16
  %s19 = scalar_select 0, %s18, %s16
  $region1: #{cnn_nomam_forward.1} parent=0
    #allocation5 [shape = 'u8[4608]{0}', space=vmem, size = 0x1400, scoped, tag = 'input window, operand 1, single buffered']
    #allocation6 [shape = 's32[2]{0}', space=sflag, size = 0x8, scoped, tag = 'scoped memory for cnn_nomam_forward.1']
    #allocation7 [shape = 's32[2]{0}', space=sflag, size = 0x8, scoped, tag = 'scoped memory for cnn_nomam_forward.1']
    #allocation8 [shape = 'u8[512]{0}', space=vmem, size = 0x400, scoped, tag = 'input window, operand 2, single buffered']
    #allocation9 [shape = 's32[1]{0}', space=sflag, size = 0x4, scoped, tag = 'scoped memory for cnn_nomam_forward.1']
    #allocation10 [shape = 'u8[512]{0}', space=vmem, size = 0x400, scoped, tag = 'input window, operand 3, single buffered']
    #allocation11 [shape = 'u8[512]{0}', space=vmem, size = 0x400, scoped, tag = 'input window, operand 5, single buffered']
    #allocation12 [shape = 's32[1]{0}', space=sflag, size = 0x4, scoped, tag = 'scoped memory for cnn_nomam_forward.1']
    #allocation13 [shape = 'u8[512]{0}', space=vmem, size = 0x400, scoped, tag = 'input window, operand 6, single buffered']
    #allocation14 [shape = 'u8[512]{0}', space=vmem, size = 0x400, scoped, tag = 'input window, operand 8, single buffered']
    #allocation15 [shape = 's32[1]{0}', space=sflag, size = 0x4, scoped, tag = 'scoped memory for cnn_nomam_forward.1']
    #allocation16 [shape = 'u8[512]{0}', space=vmem, size = 0x400, scoped, tag = 'input window, operand 9, single buffered']
    #allocation17 [shape = 'u8[1179648]{0}', space=vmem, size = 0x120000, scoped, tag = 'input window, operand 10, single buffered']
    #allocation18 [shape = 's32[1]{0}', space=sflag, size = 0x4, scoped, tag = 'scoped memory for cnn_nomam_forward.1']
    #allocation19 [shape = 'u8[1024]{0}', space=vmem, size = 0x400, scoped, tag = 'input window, operand 11, single buffered']
    #allocation20 [shape = 'u8[1024]{0}', space=vmem, size = 0x400, scoped, tag = 'input window, operand 12, single buffered']
    #allocation21 [shape = 's32[1]{0}', space=sflag, size = 0x4, scoped, tag = 'scoped memory for cnn_nomam_forward.1']
    #allocation22 [shape = 'u8[512]{0}', space=vmem, size = 0x400, scoped, tag = 'input window, operand 14, single buffered']
    #allocation23 [shape = 'u8[1024]{0}', space=vmem, size = 0x400, scoped, tag = 'output window, operand 0']
    %20 = vsyncpa [#allocation6], 0
    %21 = vsyncpa [#allocation9], 0
    %22 = vsyncpa [#allocation12], 0
    %23 = vsyncpa [#allocation15], 0
    %24 = vsyncpa [#allocation18], 0
    %25 = vsyncpa [#allocation21], 0
    %26 = vsyncpa [#allocation7], 0
    %s27 = scalar_lea.sflag [#allocation7], 1
    %28 = vsyncpa %s27, 0
    loop: start=0, step=1, limit=4
    $region2: #{cnn_nomam_forward.1} parent=1 // loop_pre_header
      _
    $region3: #{cnn_nomam_forward.1} parent=1 // loop_header
      %s30 = sphi 0, %s34
      %p31 = scmp.ge.s32.totalorder %s30, 4
      %s40 = sphi 0, %s42
      %s43 = sphi 0, %s40
      %s44 = sphi 0, %s43
      %s60 = sphi 0, %s44
      %s64 = sphi 0, %s64
      %s66 = sphi 0, %s64
      %s67 = sphi 0, %s66
      %s81 = sphi 0, %s67
      %s85 = sphi 0, %s85
      %s87 = sphi 0, %s85
      %s88 = sphi 0, %s87
      %s102 = sphi 0, %s88
      %s106 = sphi 0, %s106
      %s108 = sphi 0, %s106
      %s109 = sphi 0, %s108
      %s123 = sphi 0, %s109
      %s127 = sphi 0, %s127
      %s129 = sphi 0, %s127
      %s130 = sphi 0, %s129
      %s144 = sphi 0, %s130
      %s148 = sphi 0, %s148
      %s150 = sphi 0, %s148
      %s151 = sphi 0, %s150
      %s165 = sphi 0, %s151
      %s169 = sphi 0, %s169
      %s171 = sphi 0, %s169
      %s172 = sphi 0, %s171
      %s186 = sphi 0, %s172
      %s190 = sphi 0, %s190
      %s192 = sphi 0, %s190
      %s193 = sphi 0, %s192
      %s207 = sphi 0, %s193
      %s211 = sphi 0, %s211
      %s213 = sphi 0, %s211
      %s214 = sphi 0, %s213
      %s228 = sphi 0, %s214
      %s232 = sphi 0, %s232
      %s234 = sphi 0, %s232
      %s235 = sphi 0, %s234
      %s249 = sphi 0, %s235
      %s253 = sphi 0, %s253
      %s255 = sphi 0, %s253
      %s256 = sphi 0, %s255
      %s270 = sphi 0, %s256
      %s274 = sphi 0, %s274
      %s276 = sphi 0, %s274
      %s277 = sphi 0, %s276
      %s291 = sphi 0, %s277
      %s295 = sphi 0, %s295
      %s297 = sphi 0, %s295
      %s298 = sphi 0, %s297
      %s312 = sphi 0, %s298
      %s316 = sphi 0, %s316
      %s318 = sphi 0, %s316
      %s319 = sphi 0, %s318
      %s333 = sphi 0, %s319
      %s337 = sphi 0, %s337
      %s339 = sphi 0, %s337
      %s340 = sphi 0, %s339
      %s354 = sphi 0, %s340
      %s360 = sphi 0, %s362
      %s363 = sphi 0, %s360
      %s364 = sphi 0, %s363
      %s380 = sphi 0, %s364
    $region4: #{cnn_nomam_forward.1} parent=1 // loop_header_branch
      %33 = sbr.rel (%p31) target = $region8
    $region5: #{cnn_nomam_forward.1} parent=1 // loop_body
      %s35 = ssub.s32 %s30, 1
      %s36 = ssub.s32 %s30, 2
      %s37 = sadd.s32 %s30, 1
      %s38 = ssub.s32 %s30, %s37
      %p39 = scmp.eq.s32.totalorder %s38, 0
      %s41 = sadd.s32 %s40, 1
      %s42 = scalar_select %p39, %s40, %s41
      %p45 = pneg %p39
      %p46 = scmp.eq.s32.totalorder %s30, 1
      %p47 = por %p45, %p46
      %p48 = scmp.ne.s32.totalorder %s40, %s43
      %p49 = scmp.eq.s32.totalorder %s30, 0
      %p50 = por %p48, %p49
      %p51 = scmp.ne.s32.totalorder %s40, %s43
      %p52 = scmp.eq.s32.totalorder %s35, 1
      %p53 = por %p51, %p52
      %p54 = scmp.ne.s32.totalorder %s43, %s44
      %p55 = scmp.eq.s32.totalorder %s35, 0
      %p56 = por %p54, %p55
      %p57 = scmp.ne.s32.totalorder %s43, %s44
      %p58 = scmp.eq.s32.totalorder %s36, 1
      %p59 = por %p57, %p58
      %p61 = scmp.ne.s32.totalorder %s44, %s60
      %p62 = scmp.eq.s32.totalorder %s36, 0
      %p63 = por %p61, %p62
      %s65 = sadd.s32 %s64, 1
      %p68 = scmp.eq.s32.totalorder %s30, 1
      %p69 = scmp.ne.s32.totalorder %s64, %s66
      %p70 = scmp.eq.s32.totalorder %s30, 0
      %p71 = por %p69, %p70
      %p72 = scmp.ne.s32.totalorder %s64, %s66
      %p73 = scmp.eq.s32.totalorder %s35, 1
      %p74 = por %p72, %p73
      %p75 = scmp.ne.s32.totalorder %s66, %s67
      %p76 = scmp.eq.s32.totalorder %s35, 0
      %p77 = por %p75, %p76
      %p78 = scmp.ne.s32.totalorder %s66, %s67
      %p79 = scmp.eq.s32.totalorder %s36, 1
      %p80 = por %p78, %p79
      %p82 = scmp.ne.s32.totalorder %s67, %s81
      %p83 = scmp.eq.s32.totalorder %s36, 0
      %p84 = por %p82, %p83
      %s86 = sadd.s32 %s85, 1
      %p89 = scmp.eq.s32.totalorder %s30, 1
      %p90 = scmp.ne.s32.totalorder %s85, %s87
      %p91 = scmp.eq.s32.totalorder %s30, 0
      %p92 = por %p90, %p91
      %p93 = scmp.ne.s32.totalorder %s85, %s87
      %p94 = scmp.eq.s32.totalorder %s35, 1
      %p95 = por %p93, %p94
      %p96 = scmp.ne.s32.totalorder %s87, %s88
      %p97 = scmp.eq.s32.totalorder %s35, 0
      %p98 = por %p96, %p97
      %p99 = scmp.ne.s32.totalorder %s87, %s88
      %p100 = scmp.eq.s32.totalorder %s36, 1
      %p101 = por %p99, %p100
      %p103 = scmp.ne.s32.totalorder %s88, %s102
      %p104 = scmp.eq.s32.totalorder %s36, 0
      %p105 = por %p103, %p104
      %s107 = sadd.s32 %s106, 1
      %p110 = scmp.eq.s32.totalorder %s30, 1
      %p111 = scmp.ne.s32.totalorder %s106, %s108
      %p112 = scmp.eq.s32.totalorder %s30, 0
      %p113 = por %p111, %p112
      %p114 = scmp.ne.s32.totalorder %s106, %s108
      %p115 = scmp.eq.s32.totalorder %s35, 1
      %p116 = por %p114, %p115
      %p117 = scmp.ne.s32.totalorder %s108, %s109
      %p118 = scmp.eq.s32.totalorder %s35, 0
      %p119 = por %p117, %p118
      %p120 = scmp.ne.s32.totalorder %s108, %s109
      %p121 = scmp.eq.s32.totalorder %s36, 1
      %p122 = por %p120, %p121
      %p124 = scmp.ne.s32.totalorder %s109, %s123
      %p125 = scmp.eq.s32.totalorder %s36, 0
      %p126 = por %p124, %p125
      %s128 = sadd.s32 %s127, 1
      %p131 = scmp.eq.s32.totalorder %s30, 1
      %p132 = scmp.ne.s32.totalorder %s127, %s129
      %p133 = scmp.eq.s32.totalorder %s30, 0
      %p134 = por %p132, %p133
      %p135 = scmp.ne.s32.totalorder %s127, %s129
      %p136 = scmp.eq.s32.totalorder %s35, 1
      %p137 = por %p135, %p136
      %p138 = scmp.ne.s32.totalorder %s129, %s130
      %p139 = scmp.eq.s32.totalorder %s35, 0
      %p140 = por %p138, %p139
      %p141 = scmp.ne.s32.totalorder %s129, %s130
      %p142 = scmp.eq.s32.totalorder %s36, 1
      %p143 = por %p141, %p142
      %p145 = scmp.ne.s32.totalorder %s130, %s144
      %p146 = scmp.eq.s32.totalorder %s36, 0
      %p147 = por %p145, %p146
      %s149 = sadd.s32 %s148, 1
      %p152 = scmp.eq.s32.totalorder %s30, 1
      %p153 = scmp.ne.s32.totalorder %s148, %s150
      %p154 = scmp.eq.s32.totalorder %s30, 0
      %p155 = por %p153, %p154
      %p156 = scmp.ne.s32.totalorder %s148, %s150
      %p157 = scmp.eq.s32.totalorder %s35, 1
      %p158 = por %p156, %p157
      %p159 = scmp.ne.s32.totalorder %s150, %s151
      %p160 = scmp.eq.s32.totalorder %s35, 0
      %p161 = por %p159, %p160
      %p162 = scmp.ne.s32.totalorder %s150, %s151
      %p163 = scmp.eq.s32.totalorder %s36, 1
      %p164 = por %p162, %p163
      %p166 = scmp.ne.s32.totalorder %s151, %s165
      %p167 = scmp.eq.s32.totalorder %s36, 0
      %p168 = por %p166, %p167
      %s170 = sadd.s32 %s169, 1
      %p173 = scmp.eq.s32.totalorder %s30, 1
      %p174 = scmp.ne.s32.totalorder %s169, %s171
      %p175 = scmp.eq.s32.totalorder %s30, 0
      %p176 = por %p174, %p175
      %p177 = scmp.ne.s32.totalorder %s169, %s171
      %p178 = scmp.eq.s32.totalorder %s35, 1
      %p179 = por %p177, %p178
      %p180 = scmp.ne.s32.totalorder %s171, %s172
      %p181 = scmp.eq.s32.totalorder %s35, 0
      %p182 = por %p180, %p181
      %p183 = scmp.ne.s32.totalorder %s171, %s172
      %p184 = scmp.eq.s32.totalorder %s36, 1
      %p185 = por %p183, %p184
      %p187 = scmp.ne.s32.totalorder %s172, %s186
      %p188 = scmp.eq.s32.totalorder %s36, 0
      %p189 = por %p187, %p188
      %s191 = sadd.s32 %s190, 1
      %p194 = scmp.eq.s32.totalorder %s30, 1
      %p195 = scmp.ne.s32.totalorder %s190, %s192
      %p196 = scmp.eq.s32.totalorder %s30, 0
      %p197 = por %p195, %p196
      %p198 = scmp.ne.s32.totalorder %s190, %s192
      %p199 = scmp.eq.s32.totalorder %s35, 1
      %p200 = por %p198, %p199
      %p201 = scmp.ne.s32.totalorder %s192, %s193
      %p202 = scmp.eq.s32.totalorder %s35, 0
      %p203 = por %p201, %p202
      %p204 = scmp.ne.s32.totalorder %s192, %s193
      %p205 = scmp.eq.s32.totalorder %s36, 1
      %p206 = por %p204, %p205
      %p208 = scmp.ne.s32.totalorder %s193, %s207
      %p209 = scmp.eq.s32.totalorder %s36, 0
      %p210 = por %p208, %p209
      %s212 = sadd.s32 %s211, 1
      %p215 = scmp.eq.s32.totalorder %s30, 1
      %p216 = scmp.ne.s32.totalorder %s211, %s213
      %p217 = scmp.eq.s32.totalorder %s30, 0
      %p218 = por %p216, %p217
      %p219 = scmp.ne.s32.totalorder %s211, %s213
      %p220 = scmp.eq.s32.totalorder %s35, 1
      %p221 = por %p219, %p220
      %p222 = scmp.ne.s32.totalorder %s213, %s214
      %p223 = scmp.eq.s32.totalorder %s35, 0
      %p224 = por %p222, %p223
      %p225 = scmp.ne.s32.totalorder %s213, %s214
      %p226 = scmp.eq.s32.totalorder %s36, 1
      %p227 = por %p225, %p226
      %p229 = scmp.ne.s32.totalorder %s214, %s228
      %p230 = scmp.eq.s32.totalorder %s36, 0
      %p231 = por %p229, %p230
      %s233 = sadd.s32 %s232, 1
      %p236 = scmp.eq.s32.totalorder %s30, 1
      %p237 = scmp.ne.s32.totalorder %s232, %s234
      %p238 = scmp.eq.s32.totalorder %s30, 0
      %p239 = por %p237, %p238
      %p240 = scmp.ne.s32.totalorder %s232, %s234
      %p241 = scmp.eq.s32.totalorder %s35, 1
      %p242 = por %p240, %p241
      %p243 = scmp.ne.s32.totalorder %s234, %s235
      %p244 = scmp.eq.s32.totalorder %s35, 0
      %p245 = por %p243, %p244
      %p246 = scmp.ne.s32.totalorder %s234, %s235
      %p247 = scmp.eq.s32.totalorder %s36, 1
      %p248 = por %p246, %p247
      %p250 = scmp.ne.s32.totalorder %s235, %s249
      %p251 = scmp.eq.s32.totalorder %s36, 0
      %p252 = por %p250, %p251
      %s254 = sadd.s32 %s253, 1
      %p257 = scmp.eq.s32.totalorder %s30, 1
      %p258 = scmp.ne.s32.totalorder %s253, %s255
      %p259 = scmp.eq.s32.totalorder %s30, 0
      %p260 = por %p258, %p259
      %p261 = scmp.ne.s32.totalorder %s253, %s255
      %p262 = scmp.eq.s32.totalorder %s35, 1
      %p263 = por %p261, %p262
      %p264 = scmp.ne.s32.totalorder %s255, %s256
      %p265 = scmp.eq.s32.totalorder %s35, 0
      %p266 = por %p264, %p265
      %p267 = scmp.ne.s32.totalorder %s255, %s256
      %p268 = scmp.eq.s32.totalorder %s36, 1
      %p269 = por %p267, %p268
      %p271 = scmp.ne.s32.totalorder %s256, %s270
      %p272 = scmp.eq.s32.totalorder %s36, 0
      %p273 = por %p271, %p272
      %s275 = sadd.s32 %s274, 1
      %p278 = scmp.eq.s32.totalorder %s30, 1
      %p279 = scmp.ne.s32.totalorder %s274, %s276
      %p280 = scmp.eq.s32.totalorder %s30, 0
      %p281 = por %p279, %p280
      %p282 = scmp.ne.s32.totalorder %s274, %s276
      %p283 = scmp.eq.s32.totalorder %s35, 1
      %p284 = por %p282, %p283
      %p285 = scmp.ne.s32.totalorder %s276, %s277
      %p286 = scmp.eq.s32.totalorder %s35, 0
      %p287 = por %p285, %p286
      %p288 = scmp.ne.s32.totalorder %s276, %s277
      %p289 = scmp.eq.s32.totalorder %s36, 1
      %p290 = por %p288, %p289
      %p292 = scmp.ne.s32.totalorder %s277, %s291
      %p293 = scmp.eq.s32.totalorder %s36, 0
      %p294 = por %p292, %p293
      %s296 = sadd.s32 %s295, 1
      %p299 = scmp.eq.s32.totalorder %s30, 1
      %p300 = scmp.ne.s32.totalorder %s295, %s297
      %p301 = scmp.eq.s32.totalorder %s30, 0
      %p302 = por %p300, %p301
      %p303 = scmp.ne.s32.totalorder %s295, %s297
      %p304 = scmp.eq.s32.totalorder %s35, 1
      %p305 = por %p303, %p304
      %p306 = scmp.ne.s32.totalorder %s297, %s298
      %p307 = scmp.eq.s32.totalorder %s35, 0
      %p308 = por %p306, %p307
      %p309 = scmp.ne.s32.totalorder %s297, %s298
      %p310 = scmp.eq.s32.totalorder %s36, 1
      %p311 = por %p309, %p310
      %p313 = scmp.ne.s32.totalorder %s298, %s312
      %p314 = scmp.eq.s32.totalorder %s36, 0
      %p315 = por %p313, %p314
      %s317 = sadd.s32 %s316, 1
      %p320 = scmp.eq.s32.totalorder %s30, 1
      %p321 = scmp.ne.s32.totalorder %s316, %s318
      %p322 = scmp.eq.s32.totalorder %s30, 0
      %p323 = por %p321, %p322
      %p324 = scmp.ne.s32.totalorder %s316, %s318
      %p325 = scmp.eq.s32.totalorder %s35, 1
      %p326 = por %p324, %p325
      %p327 = scmp.ne.s32.totalorder %s318, %s319
      %p328 = scmp.eq.s32.totalorder %s35, 0
      %p329 = por %p327, %p328
      %p330 = scmp.ne.s32.totalorder %s318, %s319
      %p331 = scmp.eq.s32.totalorder %s36, 1
      %p332 = por %p330, %p331
      %p334 = scmp.ne.s32.totalorder %s319, %s333
      %p335 = scmp.eq.s32.totalorder %s36, 0
      %p336 = por %p334, %p335
      %s338 = sadd.s32 %s337, 1
      %p341 = scmp.eq.s32.totalorder %s30, 1
      %p342 = scmp.ne.s32.totalorder %s337, %s339
      %p343 = scmp.eq.s32.totalorder %s30, 0
      %p344 = por %p342, %p343
      %p345 = scmp.ne.s32.totalorder %s337, %s339
      %p346 = scmp.eq.s32.totalorder %s35, 1
      %p347 = por %p345, %p346
      %p348 = scmp.ne.s32.totalorder %s339, %s340
      %p349 = scmp.eq.s32.totalorder %s35, 0
      %p350 = por %p348, %p349
      %p351 = scmp.ne.s32.totalorder %s339, %s340
      %p352 = scmp.eq.s32.totalorder %s36, 1
      %p353 = por %p351, %p352
      %p355 = scmp.ne.s32.totalorder %s340, %s354
      %p356 = scmp.eq.s32.totalorder %s36, 0
      %p357 = por %p355, %p356
      %s358 = ssub.s32 %s30, %s37
      %p359 = scmp.eq.s32.totalorder %s358, 0
      %s361 = sadd.s32 %s360, 1
      %s362 = scalar_select %p359, %s360, %s361
      %p365 = pneg %p359
      %p366 = scmp.eq.s32.totalorder %s30, 1
      %p367 = por %p365, %p366
      %p368 = scmp.ne.s32.totalorder %s360, %s363
      %p369 = scmp.eq.s32.totalorder %s30, 0
      %p370 = por %p368, %p369
      %p371 = scmp.ne.s32.totalorder %s360, %s363
      %p372 = scmp.eq.s32.totalorder %s35, 1
      %p373 = por %p371, %p372
      %p374 = scmp.ne.s32.totalorder %s363, %s364
      %p375 = scmp.eq.s32.totalorder %s35, 0
      %p376 = por %p374, %p375
      %p377 = scmp.ne.s32.totalorder %s363, %s364
      %p378 = scmp.eq.s32.totalorder %s36, 1
      %p379 = por %p377, %p378
      %p381 = scmp.ne.s32.totalorder %s364, %s380
      %p382 = scmp.eq.s32.totalorder %s36, 0
      %p383 = por %p381, %p382
      %p384 = scmp.le.s32.totalorder 1, %s30
      %p385 = scmp.lt.s32.totalorder %s30, 3
      %p386 = pnand %p384, %p385
      %p387 = pneg %p386
      // Predicated region
      $region9: #{cnn_nomam_forward.1} parent=5 // pred_check
        _
      $region10: #{cnn_nomam_forward.1} parent=5 // pred_check_branch
        %389 = sbr.rel (%p386) target = $region12
      $region11: #{cnn_nomam_forward.1} parent=5 // pred_region
        %s390 = ssub.s32 %s30, 1
        // Predicated region
        $region13: #{cnn_nomam_forward.1} parent=11 // pred_check
          %p391 = pneg %p77
        $region14: #{cnn_nomam_forward.1} parent=11 // pred_check_branch
          %393 = sbr.rel (%p391) target = $region16
        $region15: #{cnn_nomam_forward.1} parent=11 // pred_region
          %s395 = ssub.s32 144, 144
          %396 = vsyncadd [#allocation6], %s395
          %s397 = sshll.u32 [#allocation5], 4
          %s398 = int_to_ptr.vmem [resolvable:$true] %s397
          %403 = dma.hbm_to_vmem [thread:$0]  %s1, 144, %s398, [#allocation6], 16, 16, 1
        $region16: #{cnn_nomam_forward.1} parent=11 // pred_fallthru
          _
        // Predicated region
        $region17: #{cnn_nomam_forward.1} parent=11 // pred_check
          %p404 = pneg %p98
        $region18: #{cnn_nomam_forward.1} parent=11 // pred_check_branch
          %406 = sbr.rel (%p404) target = $region20
        $region19: #{cnn_nomam_forward.1} parent=11 // pred_region
          %s408 = ssub.s32 16, 16
          %409 = vsyncadd [#allocation9], %s408
          %s411 = sshll.u32 [#allocation8], 4
          %s412 = int_to_ptr.vmem [resolvable:$true] %s411
          %414 = dma.hbm_to_vmem [thread:$0]  %s2, 16, %s412, [#allocation9]
        $region20: #{cnn_nomam_forward.1} parent=11 // pred_fallthru
          _
        // Predicated region
        $region21: #{cnn_nomam_forward.1} parent=11 // pred_check
          %p415 = pneg %p119
        $region22: #{cnn_nomam_forward.1} parent=11 // pred_check_branch
          %417 = sbr.rel (%p415) target = $region24
        $region23: #{cnn_nomam_forward.1} parent=11 // pred_region
          %s419 = ssub.s32 16, 16
          %420 = vsyncadd [#allocation9], %s419
          %s422 = sshll.u32 [#allocation10], 4
          %s423 = int_to_ptr.vmem [resolvable:$true] %s422
          %425 = dma.hbm_to_vmem [thread:$0]  %s3, 16, %s423, [#allocation9]
        $region24: #{cnn_nomam_forward.1} parent=11 // pred_fallthru
          _
        // Predicated region
        $region25: #{cnn_nomam_forward.1} parent=11 // pred_check
          %p426 = pneg %p140
        $region26: #{cnn_nomam_forward.1} parent=11 // pred_check_branch
          %428 = sbr.rel (%p426) target = $region28
        $region27: #{cnn_nomam_forward.1} parent=11 // pred_region
          _
        $region28: #{cnn_nomam_forward.1} parent=11 // pred_fallthru
          _
        // Predicated region
        $region29: #{cnn_nomam_forward.1} parent=11 // pred_check
          %p429 = pneg %p161
        $region30: #{cnn_nomam_forward.1} parent=11 // pred_check_branch
          %431 = sbr.rel (%p429) target = $region32
        $region31: #{cnn_nomam_forward.1} parent=11 // pred_region
          %s433 = ssub.s32 16, 16
          %434 = vsyncadd [#allocation12], %s433
          %s436 = sshll.u32 [#allocation11], 4
          %s437 = int_to_ptr.vmem [resolvable:$true] %s436
          %439 = dma.hbm_to_vmem [thread:$0]  %s5, 16, %s437, [#allocation12]
        $region32: #{cnn_nomam_forward.1} parent=11 // pred_fallthru
          _
        // Predicated region
        $region33: #{cnn_nomam_forward.1} parent=11 // pred_check
          %p440 = pneg %p182
        $region34: #{cnn_nomam_forward.1} parent=11 // pred_check_branch
          %442 = sbr.rel (%p440) target = $region36
        $region35: #{cnn_nomam_forward.1} parent=11 // pred_region
          %s444 = ssub.s32 16, 16
          %445 = vsyncadd [#allocation12], %s444
          %s447 = sshll.u32 [#allocation13], 4
          %s448 = int_to_ptr.vmem [resolvable:$true] %s447
          %450 = dma.hbm_to_vmem [thread:$0]  %s6, 16, %s448, [#allocation12]
        $region36: #{cnn_nomam_forward.1} parent=11 // pred_fallthru
          _
        // Predicated region
        $region37: #{cnn_nomam_forward.1} parent=11 // pred_check
          %p451 = pneg %p203
        $region38: #{cnn_nomam_forward.1} parent=11 // pred_check_branch
          %453 = sbr.rel (%p451) target = $region40
        $region39: #{cnn_nomam_forward.1} parent=11 // pred_region
          _
        $region40: #{cnn_nomam_forward.1} parent=11 // pred_fallthru
          _
        // Predicated region
        $region41: #{cnn_nomam_forward.1} parent=11 // pred_check
          %p454 = pneg %p224
        $region42: #{cnn_nomam_forward.1} parent=11 // pred_check_branch
          %456 = sbr.rel (%p454) target = $region44
        $region43: #{cnn_nomam_forward.1} parent=11 // pred_region
          %s458 = ssub.s32 16, 16
          %459 = vsyncadd [#allocation15], %s458
          %s461 = sshll.u32 [#allocation14], 4
          %s462 = int_to_ptr.vmem [resolvable:$true] %s461
          %464 = dma.hbm_to_vmem [thread:$0]  %s8, 16, %s462, [#allocation15]
        $region44: #{cnn_nomam_forward.1} parent=11 // pred_fallthru
          _
        // Predicated region
        $region45: #{cnn_nomam_forward.1} parent=11 // pred_check
          %p465 = pneg %p245
        $region46: #{cnn_nomam_forward.1} parent=11 // pred_check_branch
          %467 = sbr.rel (%p465) target = $region48
        $region47: #{cnn_nomam_forward.1} parent=11 // pred_region
          %s469 = ssub.s32 16, 16
          %470 = vsyncadd [#allocation15], %s469
          %s472 = sshll.u32 [#allocation16], 4
          %s473 = int_to_ptr.vmem [resolvable:$true] %s472
          %475 = dma.hbm_to_vmem [thread:$0]  %s9, 16, %s473, [#allocation15]
        $region48: #{cnn_nomam_forward.1} parent=11 // pred_fallthru
          _
        // Predicated region
        $region49: #{cnn_nomam_forward.1} parent=11 // pred_check
          %p476 = pneg %p266
        $region50: #{cnn_nomam_forward.1} parent=11 // pred_check_branch
          %478 = sbr.rel (%p476) target = $region52
        $region51: #{cnn_nomam_forward.1} parent=11 // pred_region
          %s480 = ssub.s32 36864, 36864
          %481 = vsyncadd [#allocation18], %s480
          %s482 = sshll.u32 [#allocation17], 4
          %s483 = int_to_ptr.vmem [resolvable:$true] %s482
          %488 = dma.hbm_to_vmem [thread:$0]  %s10, 36864, %s483, [#allocation18], 256, 256, 16
        $region52: #{cnn_nomam_forward.1} parent=11 // pred_fallthru
          _
        // Predicated region
        $region53: #{cnn_nomam_forward.1} parent=11 // pred_check
          %p489 = pneg %p287
        $region54: #{cnn_nomam_forward.1} parent=11 // pred_check_branch
          %491 = sbr.rel (%p489) target = $region56
        $region55: #{cnn_nomam_forward.1} parent=11 // pred_region
          %s493 = ssub.s32 32, 32
          %494 = vsyncadd [#allocation18], %s493
          %s496 = sshll.u32 [#allocation19], 4
          %s497 = int_to_ptr.vmem [resolvable:$true] %s496
          %499 = dma.hbm_to_vmem [thread:$0]  %s11, 32, %s497, [#allocation18]
        $region56: #{cnn_nomam_forward.1} parent=11 // pred_fallthru
          _
        // Predicated region
        $region57: #{cnn_nomam_forward.1} parent=11 // pred_check
          %p500 = pneg %p308
        $region58: #{cnn_nomam_forward.1} parent=11 // pred_check_branch
          %502 = sbr.rel (%p500) target = $region60
        $region59: #{cnn_nomam_forward.1} parent=11 // pred_region
          %s504 = ssub.s32 32, 32
          %505 = vsyncadd [#allocation21], %s504
          %s507 = sshll.u32 [#allocation20], 4
          %s508 = int_to_ptr.vmem [resolvable:$true] %s507
          %510 = dma.hbm_to_vmem [thread:$0]  %s12, 32, %s508, [#allocation21]
        $region60: #{cnn_nomam_forward.1} parent=11 // pred_fallthru
          _
        // Predicated region
        $region61: #{cnn_nomam_forward.1} parent=11 // pred_check
          %p511 = pneg %p329
        $region62: #{cnn_nomam_forward.1} parent=11 // pred_check_branch
          %513 = sbr.rel (%p511) target = $region64
        $region63: #{cnn_nomam_forward.1} parent=11 // pred_region
          _
        $region64: #{cnn_nomam_forward.1} parent=11 // pred_fallthru
          _
        // Predicated region
        $region65: #{cnn_nomam_forward.1} parent=11 // pred_check
          %p514 = pneg %p350
        $region66: #{cnn_nomam_forward.1} parent=11 // pred_check_branch
          %516 = sbr.rel (%p514) target = $region68
        $region67: #{cnn_nomam_forward.1} parent=11 // pred_region
          %s518 = ssub.s32 16, 16
          %519 = vsyncadd [#allocation21], %s518
          %s521 = sshll.u32 [#allocation22], 4
          %s522 = int_to_ptr.vmem [resolvable:$true] %s521
          %524 = dma.hbm_to_vmem [thread:$0]  %s14, 16, %s522, [#allocation21]
        $region68: #{cnn_nomam_forward.1} parent=11 // pred_fallthru
          _
      $region12: #{cnn_nomam_forward.1} parent=5 // pred_fallthru
        _
      %p525 = scmp.lt.s32.totalorder %s30, 2
      // Predicated region
      $region69: #{cnn_nomam_forward.1} parent=5 // pred_check
        %p526 = pneg %p525
      $region70: #{cnn_nomam_forward.1} parent=5 // pred_check_branch
        %528 = sbr.rel (%p526) target = $region72
      $region71: #{cnn_nomam_forward.1} parent=5 // pred_region
        // Predicated region
        $region73: #{cnn_nomam_forward.1} parent=71 // pred_check
          %p529 = pneg %p50
        $region74: #{cnn_nomam_forward.1} parent=71 // pred_check_branch
          %531 = sbr.rel (%p529) target = $region76
        $region75: #{cnn_nomam_forward.1} parent=71 // pred_region
          %p532 = scmp.lt.s32.totalorder %s30, 1
          %s533 = scalar_select %p532, %s30, 1
          %s534 = smul.addr %s533, 42
          %s535 = smul.addr %s534, 8
          %s536 = scalar_lea.vmem %s0, %s535
        $region76: #{cnn_nomam_forward.1} parent=71 // pred_fallthru
          _
      $region72: #{cnn_nomam_forward.1} parent=5 // pred_fallthru
        _
      %p537 = scmp.le.s32.totalorder 1, %s30
      %p538 = scmp.lt.s32.totalorder %s30, 3
      %p539 = pnand %p537, %p538
      %p540 = pneg %p539
      // Predicated region
      $region77: #{cnn_nomam_forward.1} parent=5 // pred_check
        _
      $region78: #{cnn_nomam_forward.1} parent=5 // pred_check_branch
        %542 = sbr.rel (%p539) target = $region80
      $region79: #{cnn_nomam_forward.1} parent=5 // pred_region
        %s543 = ssub.s32 %s30, 1
        // Predicated region
        $region81: #{cnn_nomam_forward.1} parent=79 // pred_check
          %p544 = pneg %p77
        $region82: #{cnn_nomam_forward.1} parent=79 // pred_check_branch
          %546 = sbr.rel (%p544) target = $region84
        $region83: #{cnn_nomam_forward.1} parent=79 // pred_region
          %547 = dma.done [#allocation6], 144
        $region84: #{cnn_nomam_forward.1} parent=79 // pred_fallthru
          _
        // Predicated region
        $region85: #{cnn_nomam_forward.1} parent=79 // pred_check
          %p548 = pneg %p98
        $region86: #{cnn_nomam_forward.1} parent=79 // pred_check_branch
          %550 = sbr.rel (%p548) target = $region88
        $region87: #{cnn_nomam_forward.1} parent=79 // pred_region
          %551 = dma.done [#allocation9], 16
        $region88: #{cnn_nomam_forward.1} parent=79 // pred_fallthru
          _
        // Predicated region
        $region89: #{cnn_nomam_forward.1} parent=79 // pred_check
          %p552 = pneg %p119
        $region90: #{cnn_nomam_forward.1} parent=79 // pred_check_branch
          %554 = sbr.rel (%p552) target = $region92
        $region91: #{cnn_nomam_forward.1} parent=79 // pred_region
          %555 = dma.done [#allocation9], 16
        $region92: #{cnn_nomam_forward.1} parent=79 // pred_fallthru
          _
        // Predicated region
        $region93: #{cnn_nomam_forward.1} parent=79 // pred_check
          %p556 = pneg %p161
        $region94: #{cnn_nomam_forward.1} parent=79 // pred_check_branch
          %558 = sbr.rel (%p556) target = $region96
        $region95: #{cnn_nomam_forward.1} parent=79 // pred_region
          %559 = dma.done [#allocation12], 16
        $region96: #{cnn_nomam_forward.1} parent=79 // pred_fallthru
          _
        // Predicated region
        $region97: #{cnn_nomam_forward.1} parent=79 // pred_check
          %p560 = pneg %p182
        $region98: #{cnn_nomam_forward.1} parent=79 // pred_check_branch
          %562 = sbr.rel (%p560) target = $region100
        $region99: #{cnn_nomam_forward.1} parent=79 // pred_region
          %563 = dma.done [#allocation12], 16
        $region100: #{cnn_nomam_forward.1} parent=79 // pred_fallthru
          _
        // Predicated region
        $region101: #{cnn_nomam_forward.1} parent=79 // pred_check
          %p564 = pneg %p224
        $region102: #{cnn_nomam_forward.1} parent=79 // pred_check_branch
          %566 = sbr.rel (%p564) target = $region104
        $region103: #{cnn_nomam_forward.1} parent=79 // pred_region
          %567 = dma.done [#allocation15], 16
        $region104: #{cnn_nomam_forward.1} parent=79 // pred_fallthru
          _
        // Predicated region
        $region105: #{cnn_nomam_forward.1} parent=79 // pred_check
          %p568 = pneg %p245
        $region106: #{cnn_nomam_forward.1} parent=79 // pred_check_branch
          %570 = sbr.rel (%p568) target = $region108
        $region107: #{cnn_nomam_forward.1} parent=79 // pred_region
          %571 = dma.done [#allocation15], 16
        $region108: #{cnn_nomam_forward.1} parent=79 // pred_fallthru
          _
        // Predicated region
        $region109: #{cnn_nomam_forward.1} parent=79 // pred_check
          %p572 = pneg %p266
        $region110: #{cnn_nomam_forward.1} parent=79 // pred_check_branch
          %574 = sbr.rel (%p572) target = $region112
        $region111: #{cnn_nomam_forward.1} parent=79 // pred_region
          %575 = dma.done [#allocation18], 36864
        $region112: #{cnn_nomam_forward.1} parent=79 // pred_fallthru
          _
        // Predicated region
        $region113: #{cnn_nomam_forward.1} parent=79 // pred_check
          %p576 = pneg %p287
        $region114: #{cnn_nomam_forward.1} parent=79 // pred_check_branch
          %578 = sbr.rel (%p576) target = $region116
        $region115: #{cnn_nomam_forward.1} parent=79 // pred_region
          %579 = dma.done [#allocation18], 32
        $region116: #{cnn_nomam_forward.1} parent=79 // pred_fallthru
          _
        // Predicated region
        $region117: #{cnn_nomam_forward.1} parent=79 // pred_check
          %p580 = pneg %p308
        $region118: #{cnn_nomam_forward.1} parent=79 // pred_check_branch
          %582 = sbr.rel (%p580) target = $region120
        $region119: #{cnn_nomam_forward.1} parent=79 // pred_region
          %583 = dma.done [#allocation21], 32
        $region120: #{cnn_nomam_forward.1} parent=79 // pred_fallthru
          _
        // Predicated region
        $region121: #{cnn_nomam_forward.1} parent=79 // pred_check
          %p584 = pneg %p350
        $region122: #{cnn_nomam_forward.1} parent=79 // pred_check_branch
          %586 = sbr.rel (%p584) target = $region124
        $region123: #{cnn_nomam_forward.1} parent=79 // pred_region
          %587 = dma.done [#allocation21], 16
        $region124: #{cnn_nomam_forward.1} parent=79 // pred_fallthru
          _
        %p588 = scmp.lt.s32.totalorder %s35, 1
        %s589 = scalar_select %p588, %s35, 1
        %s590 = smul.addr %s589, 42
        %s591 = smul.addr %s590, 8
        %s592 = scalar_lea.vmem %s0, %s591
        %p593 = pneg %p56
        %p594 = pneg %p53
        %p595 = pneg %p77
        %p596 = pneg %p74
        %p597 = pneg %p98
        %p598 = pneg %p95
        %p599 = pneg %p119
        %p600 = pneg %p116
        %p601 = pneg %p140
        %p602 = pneg %p137
        %p603 = pneg %p161
        %p604 = pneg %p158
        %p605 = pneg %p182
        %p606 = pneg %p179
        %p607 = pneg %p203
        %p608 = pneg %p200
        %p609 = pneg %p224
        %p610 = pneg %p221
        %p611 = pneg %p245
        %p612 = pneg %p242
        %p613 = pneg %p266
        %p614 = pneg %p263
        %p615 = pneg %p287
        %p616 = pneg %p284
        %p617 = pneg %p308
        %p618 = pneg %p305
        %p619 = pneg %p329
        %p620 = pneg %p326
        %p621 = pneg %p350
        %p622 = pneg %p347
        %p623 = pneg %p376
        %p624 = pneg %p373
        %s625 = sand.u32 %s363, 1
        %s626 = scalar_lea.sflag [#allocation7], %s625
        %s627 = sand.u32 %s363, 1
        %s628 = scalar_lea.vmem [#allocation23], %s627
        %p629 = scmp.lt.s32.totalorder %s35, 1
        %s630 = scalar_select %p629, %s35, 1
        %s631 = smul.addr %s630, 42
        %s632 = smul.addr %s631, 8
        %s633 = scalar_lea.vmem %s0, %s632
        %v634 = vld [vmem:[%s633] sm:$0xff]
        %v635 = vld [vmem:[%s633 + $0x8] sm:$0xff]
        %v636 = vld [vmem:[%s633 + $0x10] sm:$0xff]
        %v637 = vld [vmem:[%s633 + $0x18] sm:$0xff]
        %v638 = vld [vmem:[%s633 + $0x20] sm:$0xff]
        %v639 = vld [vmem:[%s633 + $0x28] sm:$0xff]
        %v640 = vld [vmem:[%s633 + $0x30] sm:$0xff]
        %v641 = vld [vmem:[%s633 + $0x38] sm:$0xff]
        %v642 = vld [vmem:[%s633 + $0x40] sm:$0xff]
        %v643 = vld [vmem:[%s633 + $0x48] sm:$0xff]
        %v644 = vld [vmem:[%s633 + $0x50] sm:$0xff]
        %v645 = vld [vmem:[%s633 + $0x58] sm:$0xff]
        %v646 = vld [vmem:[%s633 + $0x60] sm:$0xff]
        %v647 = vld [vmem:[%s633 + $0x68] sm:$0xff]
        %v648 = vld [vmem:[%s633 + $0x70] sm:$0xff]
        %v649 = vld [vmem:[%s633 + $0x78] sm:$0xff]
        %v650 = vld [vmem:[%s633 + $0x80] sm:$0xff]
        %v651 = vld [vmem:[%s633 + $0x88] sm:$0xff]
        %v652 = vld [vmem:[%s633 + $0x90] sm:$0xff]
        %v653 = vld [vmem:[%s633 + $0x98] sm:$0xff]
        %v654 = vld [vmem:[%s633 + $0xa0] sm:$0xff]
        %v655 = vld [vmem:[%s633 + $0xa8] sm:$0xff]
        %v656 = vld [vmem:[%s633 + $0xb0] sm:$0xff]
        %v657 = vld [vmem:[%s633 + $0xb8] sm:$0xff]
        %v658 = vld [vmem:[%s633 + $0xc0] sm:$0xff]
        %v659 = vld [vmem:[%s633 + $0xc8] sm:$0xff]
        %v660 = vld [vmem:[%s633 + $0xd0] sm:$0xff]
        %v661 = vld [vmem:[%s633 + $0xd8] sm:$0xff]
        %v662 = vld [vmem:[%s633 + $0xe0] sm:$0xff]
        %v663 = vld [vmem:[%s633 + $0xe8] sm:$0xff]
        %v664 = vld [vmem:[%s633 + $0xf0] sm:$0xff]
        %v665 = vld [vmem:[%s633 + $0xf8] sm:$0xff]
        %v666 = vld [vmem:[%s633 + $0x100] sm:$0xff]
        %v667 = vld [vmem:[%s633 + $0x108] sm:$0xff]
        %v668 = vld [vmem:[%s633 + $0x110] sm:$0xff]
        %v669 = vld [vmem:[%s633 + $0x118] sm:$0xff]
        %v670 = vld [vmem:[#allocation5] sm:$0x1]
        %672 = vset.pattern.permute.xlu0 0
        %673 = vperm.xlu0 %672, %v634
        %v674 = vpop.permute.xlu0 %673
        %677 = vset.pattern.permute.xlu0 0
        %678 = vperm.xlu0 %677, %v635
        %v679 = vpop.permute.xlu0 %678
        %682 = vset.pattern.permute.xlu0 0
        %683 = vperm.xlu0 %682, %v636
        %v684 = vpop.permute.xlu0 %683
        %687 = vset.pattern.permute.xlu0 0
        %688 = vperm.xlu0 %687, %v637
        %v689 = vpop.permute.xlu0 %688
        %692 = vset.pattern.permute.xlu0 0
        %693 = vperm.xlu0 %692, %v638
        %v694 = vpop.permute.xlu0 %693
        %697 = vset.pattern.permute.xlu0 0
        %698 = vperm.xlu0 %697, %v639
        %v699 = vpop.permute.xlu0 %698
        %702 = vset.pattern.permute.xlu0 0
        %703 = vperm.xlu0 %702, %v640
        %v704 = vpop.permute.xlu0 %703
        %707 = vset.pattern.permute.xlu0 0
        %708 = vperm.xlu0 %707, %v641
        %v709 = vpop.permute.xlu0 %708
        %712 = vset.pattern.permute.xlu0 0
        %713 = vperm.xlu0 %712, %v642
        %v714 = vpop.permute.xlu0 %713
        %717 = vset.pattern.permute.xlu0 0
        %718 = vperm.xlu0 %717, %v643
        %v719 = vpop.permute.xlu0 %718
        %722 = vset.pattern.permute.xlu0 0
        %723 = vperm.xlu0 %722, %v644
        %v724 = vpop.permute.xlu0 %723
        %727 = vset.pattern.permute.xlu0 0
        %728 = vperm.xlu0 %727, %v645
        %v729 = vpop.permute.xlu0 %728
        %732 = vset.pattern.permute.xlu0 0
        %733 = vperm.xlu0 %732, %v646
        %v734 = vpop.permute.xlu0 %733
        %737 = vset.pattern.permute.xlu0 0
        %738 = vperm.xlu0 %737, %v647
        %v739 = vpop.permute.xlu0 %738
        %742 = vset.pattern.permute.xlu0 0
        %743 = vperm.xlu0 %742, %v648
        %v744 = vpop.permute.xlu0 %743
        %747 = vset.pattern.permute.xlu0 0
        %748 = vperm.xlu0 %747, %v649
        %v749 = vpop.permute.xlu0 %748
        %752 = vset.pattern.permute.xlu0 0
        %753 = vperm.xlu0 %752, %v650
        %v754 = vpop.permute.xlu0 %753
        %757 = vset.pattern.permute.xlu0 0
        %758 = vperm.xlu0 %757, %v651
        %v759 = vpop.permute.xlu0 %758
        %762 = vset.pattern.permute.xlu0 0
        %763 = vperm.xlu0 %762, %v652
        %v764 = vpop.permute.xlu0 %763
        %767 = vset.pattern.permute.xlu0 0
        %768 = vperm.xlu0 %767, %v653
        %v769 = vpop.permute.xlu0 %768
        %772 = vset.pattern.permute.xlu0 0
        %773 = vperm.xlu0 %772, %v654
        %v774 = vpop.permute.xlu0 %773
        %777 = vset.pattern.permute.xlu0 0
        %778 = vperm.xlu0 %777, %v655
        %v779 = vpop.permute.xlu0 %778
        %782 = vset.pattern.permute.xlu0 0
        %783 = vperm.xlu0 %782, %v656
        %v784 = vpop.permute.xlu0 %783
        %787 = vset.pattern.permute.xlu0 0
        %788 = vperm.xlu0 %787, %v657
        %v789 = vpop.permute.xlu0 %788
        %792 = vset.pattern.permute.xlu0 0
        %793 = vperm.xlu0 %792, %v658
        %v794 = vpop.permute.xlu0 %793
        %797 = vset.pattern.permute.xlu0 0
        %798 = vperm.xlu0 %797, %v659
        %v799 = vpop.permute.xlu0 %798
        %802 = vset.pattern.permute.xlu0 0
        %803 = vperm.xlu0 %802, %v660
        %v804 = vpop.permute.xlu0 %803
        %807 = vset.pattern.permute.xlu0 0
        %808 = vperm.xlu0 %807, %v661
        %v809 = vpop.permute.xlu0 %808
        %812 = vset.pattern.permute.xlu0 0
        %813 = vperm.xlu0 %812, %v662
        %v814 = vpop.permute.xlu0 %813
        %817 = vset.pattern.permute.xlu0 0
        %818 = vperm.xlu0 %817, %v663
        %v819 = vpop.permute.xlu0 %818
        %822 = vset.pattern.permute.xlu0 0
        %823 = vperm.xlu0 %822, %v664
        %v824 = vpop.permute.xlu0 %823
        %827 = vset.pattern.permute.xlu0 0
        %828 = vperm.xlu0 %827, %v665
        %v829 = vpop.permute.xlu0 %828
        %832 = vset.pattern.permute.xlu0 0
        %833 = vperm.xlu0 %832, %v666
        %v834 = vpop.permute.xlu0 %833
        %837 = vset.pattern.permute.xlu0 0
        %838 = vperm.xlu0 %837, %v667
        %v839 = vpop.permute.xlu0 %838
        %842 = vset.pattern.permute.xlu0 0
        %843 = vperm.xlu0 %842, %v668
        %v844 = vpop.permute.xlu0 %843
        %847 = vset.pattern.permute.xlu0 0
        %848 = vperm.xlu0 %847, %v669
        %v849 = vpop.permute.xlu0 %848
        %v852 = vlaneseq
        %v853 = vshrl.u32 %v852, 7
        %v854 = vsub.s32 0, %v853
        %v855 = vrot.slane %v670, %v854
        %v857 = vmul.f32 %v674, %v855
        %v858 = vmul.f32 %v679, %v855
        %v859 = vmul.f32 %v684, %v855
        %v860 = vmul.f32 %v689, %v855
        %v861 = vmul.f32 %v694, %v855
        %v862 = vmul.f32 %v699, %v855
        %v863 = vmul.f32 %v704, %v855
        %v864 = vmul.f32 %v709, %v855
        %v865 = vmul.f32 %v714, %v855
        %v866 = vmul.f32 %v719, %v855
        %v867 = vmul.f32 %v724, %v855
        %v868 = vmul.f32 %v729, %v855
        %v869 = vmul.f32 %v734, %v855
        %v870 = vmul.f32 %v739, %v855
        %v871 = vmul.f32 %v744, %v855
        %v872 = vmul.f32 %v749, %v855
        %v873 = vmul.f32 %v754, %v855
        %v874 = vmul.f32 %v759, %v855
        %v875 = vmul.f32 %v764, %v855
        %v876 = vmul.f32 %v769, %v855
        %v877 = vmul.f32 %v774, %v855
        %v878 = vmul.f32 %v779, %v855
        %v879 = vmul.f32 %v784, %v855
        %v880 = vmul.f32 %v789, %v855
        %v881 = vmul.f32 %v794, %v855
        %v882 = vmul.f32 %v799, %v855
        %v883 = vmul.f32 %v804, %v855
        %v884 = vmul.f32 %v809, %v855
        %v885 = vmul.f32 %v814, %v855
        %v886 = vmul.f32 %v819, %v855
        %v887 = vmul.f32 %v824, %v855
        %v888 = vmul.f32 %v829, %v855
        %v889 = vmul.f32 %v834, %v855
        %v890 = vmul.f32 %v839, %v855
        %v891 = vmul.f32 %v844, %v855
        %v892 = vmul.f32 %v849, %v855
        %v893 = vld [vmem:[%s633 + $0x1] sm:$0xff]
        %v894 = vld [vmem:[%s633 + $0x9] sm:$0xff]
        %v895 = vld [vmem:[%s633 + $0x11] sm:$0xff]
        %v896 = vld [vmem:[%s633 + $0x19] sm:$0xff]
        %v897 = vld [vmem:[%s633 + $0x21] sm:$0xff]
        %v898 = vld [vmem:[%s633 + $0x29] sm:$0xff]
        %v899 = vld [vmem:[%s633 + $0x31] sm:$0xff]
        %v900 = vld [vmem:[%s633 + $0x39] sm:$0xff]
        %v901 = vld [vmem:[%s633 + $0x41] sm:$0xff]
        %v902 = vld [vmem:[%s633 + $0x49] sm:$0xff]
        %v903 = vld [vmem:[%s633 + $0x51] sm:$0xff]
        %v904 = vld [vmem:[%s633 + $0x59] sm:$0xff]
        %v905 = vld [vmem:[%s633 + $0x61] sm:$0xff]
        %v906 = vld [vmem:[%s633 + $0x69] sm:$0xff]
        %v907 = vld [vmem:[%s633 + $0x71] sm:$0xff]
        %v908 = vld [vmem:[%s633 + $0x79] sm:$0xff]
        %v909 = vld [vmem:[%s633 + $0x81] sm:$0xff]
        %v910 = vld [vmem:[%s633 + $0x89] sm:$0xff]
        %v911 = vld [vmem:[%s633 + $0x91] sm:$0xff]
        %v912 = vld [vmem:[%s633 + $0x99] sm:$0xff]
        %v913 = vld [vmem:[%s633 + $0xa1] sm:$0xff]
        %v914 = vld [vmem:[%s633 + $0xa9] sm:$0xff]
        %v915 = vld [vmem:[%s633 + $0xb1] sm:$0xff]
        %v916 = vld [vmem:[%s633 + $0xb9] sm:$0xff]
        %v917 = vld [vmem:[%s633 + $0xc1] sm:$0xff]
        %v918 = vld [vmem:[%s633 + $0xc9] sm:$0xff]
        %v919 = vld [vmem:[%s633 + $0xd1] sm:$0xff]
        %v920 = vld [vmem:[%s633 + $0xd9] sm:$0xff]
        %v921 = vld [vmem:[%s633 + $0xe1] sm:$0xff]
        %v922 = vld [vmem:[%s633 + $0xe9] sm:$0xff]
        %v923 = vld [vmem:[%s633 + $0xf1] sm:$0xff]
        %v924 = vld [vmem:[%s633 + $0xf9] sm:$0xff]
        %v925 = vld [vmem:[%s633 + $0x101] sm:$0xff]
        %v926 = vld [vmem:[%s633 + $0x109] sm:$0xff]
        %v927 = vld [vmem:[%s633 + $0x111] sm:$0xff]
        %v928 = vld [vmem:[%s633 + $0x119] sm:$0xff]
        %s929 = scalar_lea.vmem [#allocation5], 1
        %v930 = vld [vmem:[%s929] sm:$0x1]
        %932 = vset.pattern.permute.xlu0 0
        %933 = vperm.xlu0 %932, %v893
        %v934 = vpop.permute.xlu0 %933
        %937 = vset.pattern.permute.xlu0 0
        %938 = vperm.xlu0 %937, %v894
        %v939 = vpop.permute.xlu0 %938
        %942 = vset.pattern.permute.xlu0 0
        %943 = vperm.xlu0 %942, %v895
        %v944 = vpop.permute.xlu0 %943
        %947 = vset.pattern.permute.xlu0 0
        %948 = vperm.xlu0 %947, %v896
        %v949 = vpop.permute.xlu0 %948
        %952 = vset.pattern.permute.xlu0 0
        %953 = vperm.xlu0 %952, %v897
        %v954 = vpop.permute.xlu0 %953
        %957 = vset.pattern.permute.xlu0 0
        %958 = vperm.xlu0 %957, %v898
        %v959 = vpop.permute.xlu0 %958
        %962 = vset.pattern.permute.xlu0 0
        %963 = vperm.xlu0 %962, %v899
        %v964 = vpop.permute.xlu0 %963
        %967 = vset.pattern.permute.xlu0 0
        %968 = vperm.xlu0 %967, %v900
        %v969 = vpop.permute.xlu0 %968
        %972 = vset.pattern.permute.xlu0 0
        %973 = vperm.xlu0 %972, %v901
        %v974 = vpop.permute.xlu0 %973
        %977 = vset.pattern.permute.xlu0 0
        %978 = vperm.xlu0 %977, %v902
        %v979 = vpop.permute.xlu0 %978
        %982 = vset.pattern.permute.xlu0 0
        %983 = vperm.xlu0 %982, %v903
        %v984 = vpop.permute.xlu0 %983
        %987 = vset.pattern.permute.xlu0 0
        %988 = vperm.xlu0 %987, %v904
        %v989 = vpop.permute.xlu0 %988
        %992 = vset.pattern.permute.xlu0 0
        %993 = vperm.xlu0 %992, %v905
        %v994 = vpop.permute.xlu0 %993
        %997 = vset.pattern.permute.xlu0 0
        %998 = vperm.xlu0 %997, %v906
        %v999 = vpop.permute.xlu0 %998
        %1002 = vset.pattern.permute.xlu0 0
        %1003 = vperm.xlu0 %1002, %v907
        %v1004 = vpop.permute.xlu0 %1003
        %1007 = vset.pattern.permute.xlu0 0
        %1008 = vperm.xlu0 %1007, %v908
        %v1009 = vpop.permute.xlu0 %1008
        %1012 = vset.pattern.permute.xlu0 0
        %1013 = vperm.xlu0 %1012, %v909
        %v1014 = vpop.permute.xlu0 %1013
        %1017 = vset.pattern.permute.xlu0 0
        %1018 = vperm.xlu0 %1017, %v910
        %v1019 = vpop.permute.xlu0 %1018
        %1022 = vset.pattern.permute.xlu0 0
        %1023 = vperm.xlu0 %1022, %v911
        %v1024 = vpop.permute.xlu0 %1023
        %1027 = vset.pattern.permute.xlu0 0
        %1028 = vperm.xlu0 %1027, %v912
        %v1029 = vpop.permute.xlu0 %1028
        %1032 = vset.pattern.permute.xlu0 0
        %1033 = vperm.xlu0 %1032, %v913
        %v1034 = vpop.permute.xlu0 %1033
        %1037 = vset.pattern.permute.xlu0 0
        %1038 = vperm.xlu0 %1037, %v914
        %v1039 = vpop.permute.xlu0 %1038
        %1042 = vset.pattern.permute.xlu0 0
        %1043 = vperm.xlu0 %1042, %v915
        %v1044 = vpop.permute.xlu0 %1043
        %1047 = vset.pattern.permute.xlu0 0
        %1048 = vperm.xlu0 %1047, %v916
        %v1049 = vpop.permute.xlu0 %1048
        %1052 = vset.pattern.permute.xlu0 0
        %1053 = vperm.xlu0 %1052, %v917
        %v1054 = vpop.permute.xlu0 %1053
        %1057 = vset.pattern.permute.xlu0 0
        %1058 = vperm.xlu0 %1057, %v918
        %v1059 = vpop.permute.xlu0 %1058
        %1062 = vset.pattern.permute.xlu0 0
        %1063 = vperm.xlu0 %1062, %v919
        %v1064 = vpop.permute.xlu0 %1063
        %1067 = vset.pattern.permute.xlu0 0
        %1068 = vperm.xlu0 %1067, %v920
        %v1069 = vpop.permute.xlu0 %1068
        %1072 = vset.pattern.permute.xlu0 0
        %1073 = vperm.xlu0 %1072, %v921
        %v1074 = vpop.permute.xlu0 %1073
        %1077 = vset.pattern.permute.xlu0 0
        %1078 = vperm.xlu0 %1077, %v922
        %v1079 = vpop.permute.xlu0 %1078
        %1082 = vset.pattern.permute.xlu0 0
        %1083 = vperm.xlu0 %1082, %v923
        %v1084 = vpop.permute.xlu0 %1083
        %1087 = vset.pattern.permute.xlu0 0
        %1088 = vperm.xlu0 %1087, %v924
        %v1089 = vpop.permute.xlu0 %1088
        %1092 = vset.pattern.permute.xlu0 0
        %1093 = vperm.xlu0 %1092, %v925
        %v1094 = vpop.permute.xlu0 %1093
        %1097 = vset.pattern.permute.xlu0 0
        %1098 = vperm.xlu0 %1097, %v926
        %v1099 = vpop.permute.xlu0 %1098
        %1102 = vset.pattern.permute.xlu0 0
        %1103 = vperm.xlu0 %1102, %v927
        %v1104 = vpop.permute.xlu0 %1103
        %1107 = vset.pattern.permute.xlu0 0
        %1108 = vperm.xlu0 %1107, %v928
        %v1109 = vpop.permute.xlu0 %1108
        %v1112 = vlaneseq
        %v1113 = vshrl.u32 %v1112, 7
        %v1114 = vsub.s32 0, %v1113
        %v1115 = vrot.slane %v930, %v1114
        %v1117 = vmul.f32 %v934, %v1115
        %v1118 = vmul.f32 %v939, %v1115
        %v1119 = vmul.f32 %v944, %v1115
        %v1120 = vmul.f32 %v949, %v1115
        %v1121 = vmul.f32 %v954, %v1115
        %v1122 = vmul.f32 %v959, %v1115
        %v1123 = vmul.f32 %v964, %v1115
        %v1124 = vmul.f32 %v969, %v1115
        %v1125 = vmul.f32 %v974, %v1115
        %v1126 = vmul.f32 %v979, %v1115
        %v1127 = vmul.f32 %v984, %v1115
        %v1128 = vmul.f32 %v989, %v1115
        %v1129 = vmul.f32 %v994, %v1115
        %v1130 = vmul.f32 %v999, %v1115
        %v1131 = vmul.f32 %v1004, %v1115
        %v1132 = vmul.f32 %v1009, %v1115
        %v1133 = vmul.f32 %v1014, %v1115
        %v1134 = vmul.f32 %v1019, %v1115
        %v1135 = vmul.f32 %v1024, %v1115
        %v1136 = vmul.f32 %v1029, %v1115
        %v1137 = vmul.f32 %v1034, %v1115
        %v1138 = vmul.f32 %v1039, %v1115
        %v1139 = vmul.f32 %v1044, %v1115
        %v1140 = vmul.f32 %v1049, %v1115
        %v1141 = vmul.f32 %v1054, %v1115
        %v1142 = vmul.f32 %v1059, %v1115
        %v1143 = vmul.f32 %v1064, %v1115
        %v1144 = vmul.f32 %v1069, %v1115
        %v1145 = vmul.f32 %v1074, %v1115
        %v1146 = vmul.f32 %v1079, %v1115
        %v1147 = vmul.f32 %v1084, %v1115
        %v1148 = vmul.f32 %v1089, %v1115
        %v1149 = vmul.f32 %v1094, %v1115
        %v1150 = vmul.f32 %v1099, %v1115
        %v1151 = vmul.f32 %v1104, %v1115
        %v1152 = vmul.f32 %v1109, %v1115
        %v1153 = vadd.f32 %v857, %v1117
        %v1154 = vadd.f32 %v858, %v1118
        %v1155 = vadd.f32 %v859, %v1119
        %v1156 = vadd.f32 %v860, %v1120
        %v1157 = vadd.f32 %v861, %v1121
        %v1158 = vadd.f32 %v862, %v1122
        %v1159 = vadd.f32 %v863, %v1123
        %v1160 = vadd.f32 %v864, %v1124
        %v1161 = vadd.f32 %v865, %v1125
        %v1162 = vadd.f32 %v866, %v1126
        %v1163 = vadd.f32 %v867, %v1127
        %v1164 = vadd.f32 %v868, %v1128
        %v1165 = vadd.f32 %v869, %v1129
        %v1166 = vadd.f32 %v870, %v1130
        %v1167 = vadd.f32 %v871, %v1131
        %v1168 = vadd.f32 %v872, %v1132
        %v1169 = vadd.f32 %v873, %v1133
        %v1170 = vadd.f32 %v874, %v1134
        %v1171 = vadd.f32 %v875, %v1135
        %v1172 = vadd.f32 %v876, %v1136
        %v1173 = vadd.f32 %v877, %v1137
        %v1174 = vadd.f32 %v878, %v1138
        %v1175 = vadd.f32 %v879, %v1139
        %v1176 = vadd.f32 %v880, %v1140
        %v1177 = vadd.f32 %v881, %v1141
        %v1178 = vadd.f32 %v882, %v1142
        %v1179 = vadd.f32 %v883, %v1143
        %v1180 = vadd.f32 %v884, %v1144
        %v1181 = vadd.f32 %v885, %v1145
        %v1182 = vadd.f32 %v886, %v1146
        %v1183 = vadd.f32 %v887, %v1147
        %v1184 = vadd.f32 %v888, %v1148
        %v1185 = vadd.f32 %v889, %v1149
        %v1186 = vadd.f32 %v890, %v1150
        %v1187 = vadd.f32 %v891, %v1151
        %v1188 = vadd.f32 %v892, %v1152
        %v1189 = vld [vmem:[%s633 + $0x2] sm:$0xff]
        %v1190 = vld [vmem:[%s633 + $0xa] sm:$0xff]
        %v1191 = vld [vmem:[%s633 + $0x12] sm:$0xff]
        %v1192 = vld [vmem:[%s633 + $0x1a] sm:$0xff]
        %v1193 = vld [vmem:[%s633 + $0x22] sm:$0xff]
        %v1194 = vld [vmem:[%s633 + $0x2a] sm:$0xff]
        %v1195 = vld [vmem:[%s633 + $0x32] sm:$0xff]
        %v1196 = vld [vmem:[%s633 + $0x3a] sm:$0xff]
        %v1197 = vld [vmem:[%s633 + $0x42] sm:$0xff]
        %v1198 = vld [vmem:[%s633 + $0x4a] sm:$0xff]
        %v1199 = vld [vmem:[%s633 + $0x52] sm:$0xff]
        %v1200 = vld [vmem:[%s633 + $0x5a] sm:$0xff]
        %v1201 = vld [vmem:[%s633 + $0x62] sm:$0xff]
        %v1202 = vld [vmem:[%s633 + $0x6a] sm:$0xff]
        %v1203 = vld [vmem:[%s633 + $0x72] sm:$0xff]
        %v1204 = vld [vmem:[%s633 + $0x7a] sm:$0xff]
        %v1205 = vld [vmem:[%s633 + $0x82] sm:$0xff]
        %v1206 = vld [vmem:[%s633 + $0x8a] sm:$0xff]
        %v1207 = vld [vmem:[%s633 + $0x92] sm:$0xff]
        %v1208 = vld [vmem:[%s633 + $0x9a] sm:$0xff]
        %v1209 = vld [vmem:[%s633 + $0xa2] sm:$0xff]
        %v1210 = vld [vmem:[%s633 + $0xaa] sm:$0xff]
        %v1211 = vld [vmem:[%s633 + $0xb2] sm:$0xff]
        %v1212 = vld [vmem:[%s633 + $0xba] sm:$0xff]
        %v1213 = vld [vmem:[%s633 + $0xc2] sm:$0xff]
        %v1214 = vld [vmem:[%s633 + $0xca] sm:$0xff]
        %v1215 = vld [vmem:[%s633 + $0xd2] sm:$0xff]
        %v1216 = vld [vmem:[%s633 + $0xda] sm:$0xff]
        %v1217 = vld [vmem:[%s633 + $0xe2] sm:$0xff]
        %v1218 = vld [vmem:[%s633 + $0xea] sm:$0xff]
        %v1219 = vld [vmem:[%s633 + $0xf2] sm:$0xff]
        %v1220 = vld [vmem:[%s633 + $0xfa] sm:$0xff]
        %v1221 = vld [vmem:[%s633 + $0x102] sm:$0xff]
        %v1222 = vld [vmem:[%s633 + $0x10a] sm:$0xff]
        %v1223 = vld [vmem:[%s633 + $0x112] sm:$0xff]
        %v1224 = vld [vmem:[%s633 + $0x11a] sm:$0xff]
        %s1225 = scalar_lea.vmem [#allocation5], 2
        %v1226 = vld [vmem:[%s1225] sm:$0x1]
        %1228 = vset.pattern.permute.xlu0 0
        %1229 = vperm.xlu0 %1228, %v1189
        %v1230 = vpop.permute.xlu0 %1229
        %1233 = vset.pattern.permute.xlu0 0
        %1234 = vperm.xlu0 %1233, %v1190
        %v1235 = vpop.permute.xlu0 %1234
        %1238 = vset.pattern.permute.xlu0 0
        %1239 = vperm.xlu0 %1238, %v1191
        %v1240 = vpop.permute.xlu0 %1239
        %1243 = vset.pattern.permute.xlu0 0
        %1244 = vperm.xlu0 %1243, %v1192
        %v1245 = vpop.permute.xlu0 %1244
        %1248 = vset.pattern.permute.xlu0 0
        %1249 = vperm.xlu0 %1248, %v1193
        %v1250 = vpop.permute.xlu0 %1249
        %1253 = vset.pattern.permute.xlu0 0
        %1254 = vperm.xlu0 %1253, %v1194
        %v1255 = vpop.permute.xlu0 %1254
        %1258 = vset.pattern.permute.xlu0 0
        %1259 = vperm.xlu0 %1258, %v1195
        %v1260 = vpop.permute.xlu0 %1259
        %1263 = vset.pattern.permute.xlu0 0
        %1264 = vperm.xlu0 %1263, %v1196
        %v1265 = vpop.permute.xlu0 %1264
        %1268 = vset.pattern.permute.xlu0 0
        %1269 = vperm.xlu0 %1268, %v1197
        %v1270 = vpop.permute.xlu0 %1269
        %1273 = vset.pattern.permute.xlu0 0
        %1274 = vperm.xlu0 %1273, %v1198
        %v1275 = vpop.permute.xlu0 %1274
        %1278 = vset.pattern.permute.xlu0 0
        %1279 = vperm.xlu0 %1278, %v1199
        %v1280 = vpop.permute.xlu0 %1279
        %1283 = vset.pattern.permute.xlu0 0
        %1284 = vperm.xlu0 %1283, %v1200
        %v1285 = vpop.permute.xlu0 %1284
        %1288 = vset.pattern.permute.xlu0 0
        %1289 = vperm.xlu0 %1288, %v1201
        %v1290 = vpop.permute.xlu0 %1289
        %1293 = vset.pattern.permute.xlu0 0
        %1294 = vperm.xlu0 %1293, %v1202
        %v1295 = vpop.permute.xlu0 %1294
        %1298 = vset.pattern.permute.xlu0 0
        %1299 = vperm.xlu0 %1298, %v1203
        %v1300 = vpop.permute.xlu0 %1299
        %1303 = vset.pattern.permute.xlu0 0
        %1304 = vperm.xlu0 %1303, %v1204
        %v1305 = vpop.permute.xlu0 %1304
        %1308 = vset.pattern.permute.xlu0 0
        %1309 = vperm.xlu0 %1308, %v1205
        %v1310 = vpop.permute.xlu0 %1309
        %1313 = vset.pattern.permute.xlu0 0
        %1314 = vperm.xlu0 %1313, %v1206
        %v1315 = vpop.permute.xlu0 %1314
        %1318 = vset.pattern.permute.xlu0 0
        %1319 = vperm.xlu0 %1318, %v1207
        %v1320 = vpop.permute.xlu0 %1319
        %1323 = vset.pattern.permute.xlu0 0
        %1324 = vperm.xlu0 %1323, %v1208
        %v1325 = vpop.permute.xlu0 %1324
        %1328 = vset.pattern.permute.xlu0 0
        %1329 = vperm.xlu0 %1328, %v1209
        %v1330 = vpop.permute.xlu0 %1329
        %1333 = vset.pattern.permute.xlu0 0
        %1334 = vperm.xlu0 %1333, %v1210
        %v1335 = vpop.permute.xlu0 %1334
        %1338 = vset.pattern.permute.xlu0 0
        %1339 = vperm.xlu0 %1338, %v1211
        %v1340 = vpop.permute.xlu0 %1339
        %1343 = vset.pattern.permute.xlu0 0
        %1344 = vperm.xlu0 %1343, %v1212
        %v1345 = vpop.permute.xlu0 %1344
        %1348 = vset.pattern.permute.xlu0 0
        %1349 = vperm.xlu0 %1348, %v1213
        %v1350 = vpop.permute.xlu0 %1349
        %1353 = vset.pattern.permute.xlu0 0
        %1354 = vperm.xlu0 %1353, %v1214
        %v1355 = vpop.permute.xlu0 %1354
        %1358 = vset.pattern.permute.xlu0 0
        %1359 = vperm.xlu0 %1358, %v1215
        %v1360 = vpop.permute.xlu0 %1359
        %1363 = vset.pattern.permute.xlu0 0
        %1364 = vperm.xlu0 %1363, %v1216
        %v1365 = vpop.permute.xlu0 %1364
        %1368 = vset.pattern.permute.xlu0 0
        %1369 = vperm.xlu0 %1368, %v1217
        %v1370 = vpop.permute.xlu0 %1369
        %1373 = vset.pattern.permute.xlu0 0
        %1374 = vperm.xlu0 %1373, %v1218
        %v1375 = vpop.permute.xlu0 %1374
        %1378 = vset.pattern.permute.xlu0 0
        %1379 = vperm.xlu0 %1378, %v1219
        %v1380 = vpop.permute.xlu0 %1379
        %1383 = vset.pattern.permute.xlu0 0
        %1384 = vperm.xlu0 %1383, %v1220
        %v1385 = vpop.permute.xlu0 %1384
        %1388 = vset.pattern.permute.xlu0 0
        %1389 = vperm.xlu0 %1388, %v1221
        %v1390 = vpop.permute.xlu0 %1389
        %1393 = vset.pattern.permute.xlu0 0
        %1394 = vperm.xlu0 %1393, %v1222
        %v1395 = vpop.permute.xlu0 %1394
        %1398 = vset.pattern.permute.xlu0 0
        %1399 = vperm.xlu0 %1398, %v1223
        %v1400 = vpop.permute.xlu0 %1399
        %1403 = vset.pattern.permute.xlu0 0
        %1404 = vperm.xlu0 %1403, %v1224
        %v1405 = vpop.permute.xlu0 %1404
        %v1408 = vlaneseq
        %v1409 = vshrl.u32 %v1408, 7
        %v1410 = vsub.s32 0, %v1409
        %v1411 = vrot.slane %v1226, %v1410
        %v1413 = vmul.f32 %v1230, %v1411
        %v1414 = vmul.f32 %v1235, %v1411
        %v1415 = vmul.f32 %v1240, %v1411
        %v1416 = vmul.f32 %v1245, %v1411
        %v1417 = vmul.f32 %v1250, %v1411
        %v1418 = vmul.f32 %v1255, %v1411
        %v1419 = vmul.f32 %v1260, %v1411
        %v1420 = vmul.f32 %v1265, %v1411
        %v1421 = vmul.f32 %v1270, %v1411
        %v1422 = vmul.f32 %v1275, %v1411
        %v1423 = vmul.f32 %v1280, %v1411
        %v1424 = vmul.f32 %v1285, %v1411
        %v1425 = vmul.f32 %v1290, %v1411
        %v1426 = vmul.f32 %v1295, %v1411
        %v1427 = vmul.f32 %v1300, %v1411
        %v1428 = vmul.f32 %v1305, %v1411
        %v1429 = vmul.f32 %v1310, %v1411
        %v1430 = vmul.f32 %v1315, %v1411
        %v1431 = vmul.f32 %v1320, %v1411
        %v1432 = vmul.f32 %v1325, %v1411
        %v1433 = vmul.f32 %v1330, %v1411
        %v1434 = vmul.f32 %v1335, %v1411
        %v1435 = vmul.f32 %v1340, %v1411
        %v1436 = vmul.f32 %v1345, %v1411
        %v1437 = vmul.f32 %v1350, %v1411
        %v1438 = vmul.f32 %v1355, %v1411
        %v1439 = vmul.f32 %v1360, %v1411
        %v1440 = vmul.f32 %v1365, %v1411
        %v1441 = vmul.f32 %v1370, %v1411
        %v1442 = vmul.f32 %v1375, %v1411
        %v1443 = vmul.f32 %v1380, %v1411
        %v1444 = vmul.f32 %v1385, %v1411
        %v1445 = vmul.f32 %v1390, %v1411
        %v1446 = vmul.f32 %v1395, %v1411
        %v1447 = vmul.f32 %v1400, %v1411
        %v1448 = vmul.f32 %v1405, %v1411
        %v1449 = vadd.f32 %v1153, %v1413
        %v1450 = vadd.f32 %v1154, %v1414
        %v1451 = vadd.f32 %v1155, %v1415
        %v1452 = vadd.f32 %v1156, %v1416
        %v1453 = vadd.f32 %v1157, %v1417
        %v1454 = vadd.f32 %v1158, %v1418
        %v1455 = vadd.f32 %v1159, %v1419
        %v1456 = vadd.f32 %v1160, %v1420
        %v1457 = vadd.f32 %v1161, %v1421
        %v1458 = vadd.f32 %v1162, %v1422
        %v1459 = vadd.f32 %v1163, %v1423
        %v1460 = vadd.f32 %v1164, %v1424
        %v1461 = vadd.f32 %v1165, %v1425
        %v1462 = vadd.f32 %v1166, %v1426
        %v1463 = vadd.f32 %v1167, %v1427
        %v1464 = vadd.f32 %v1168, %v1428
        %v1465 = vadd.f32 %v1169, %v1429
        %v1466 = vadd.f32 %v1170, %v1430
        %v1467 = vadd.f32 %v1171, %v1431
        %v1468 = vadd.f32 %v1172, %v1432
        %v1469 = vadd.f32 %v1173, %v1433
        %v1470 = vadd.f32 %v1174, %v1434
        %v1471 = vadd.f32 %v1175, %v1435
        %v1472 = vadd.f32 %v1176, %v1436
        %v1473 = vadd.f32 %v1177, %v1437
        %v1474 = vadd.f32 %v1178, %v1438
        %v1475 = vadd.f32 %v1179, %v1439
        %v1476 = vadd.f32 %v1180, %v1440
        %v1477 = vadd.f32 %v1181, %v1441
        %v1478 = vadd.f32 %v1182, %v1442
        %v1479 = vadd.f32 %v1183, %v1443
        %v1480 = vadd.f32 %v1184, %v1444
        %v1481 = vadd.f32 %v1185, %v1445
        %v1482 = vadd.f32 %v1186, %v1446
        %v1483 = vadd.f32 %v1187, %v1447
        %v1484 = vadd.f32 %v1188, %v1448
        %v1485 = vld [vmem:[%s633 + $0x12] sm:$0xff]
        %v1486 = vld [vmem:[%s633 + $0x1a] sm:$0xff]
        %v1487 = vld [vmem:[%s633 + $0x22] sm:$0xff]
        %v1488 = vld [vmem:[%s633 + $0x2a] sm:$0xff]
        %v1489 = vld [vmem:[%s633 + $0x32] sm:$0xff]
        %v1490 = vld [vmem:[%s633 + $0x3a] sm:$0xff]
        %v1491 = vld [vmem:[%s633 + $0x42] sm:$0xff]
        %v1492 = vld [vmem:[%s633 + $0x4a] sm:$0xff]
        %v1493 = vld [vmem:[%s633 + $0x52] sm:$0xff]
        %v1494 = vld [vmem:[%s633 + $0x5a] sm:$0xff]
        %v1495 = vld [vmem:[%s633 + $0x62] sm:$0xff]
        %v1496 = vld [vmem:[%s633 + $0x6a] sm:$0xff]
        %v1497 = vld [vmem:[%s633 + $0x72] sm:$0xff]
        %v1498 = vld [vmem:[%s633 + $0x7a] sm:$0xff]
        %v1499 = vld [vmem:[%s633 + $0x82] sm:$0xff]
        %v1500 = vld [vmem:[%s633 + $0x8a] sm:$0xff]
        %v1501 = vld [vmem:[%s633 + $0x92] sm:$0xff]
        %v1502 = vld [vmem:[%s633 + $0x9a] sm:$0xff]
        %v1503 = vld [vmem:[%s633 + $0xa2] sm:$0xff]
        %v1504 = vld [vmem:[%s633 + $0xaa] sm:$0xff]
        %v1505 = vld [vmem:[%s633 + $0xb2] sm:$0xff]
        %v1506 = vld [vmem:[%s633 + $0xba] sm:$0xff]
        %v1507 = vld [vmem:[%s633 + $0xc2] sm:$0xff]
        %v1508 = vld [vmem:[%s633 + $0xca] sm:$0xff]
        %v1509 = vld [vmem:[%s633 + $0xd2] sm:$0xff]
        %v1510 = vld [vmem:[%s633 + $0xda] sm:$0xff]
        %v1511 = vld [vmem:[%s633 + $0xe2] sm:$0xff]
        %v1512 = vld [vmem:[%s633 + $0xea] sm:$0xff]
        %v1513 = vld [vmem:[%s633 + $0xf2] sm:$0xff]
        %v1514 = vld [vmem:[%s633 + $0xfa] sm:$0xff]
        %v1515 = vld [vmem:[%s633 + $0x102] sm:$0xff]
        %v1516 = vld [vmem:[%s633 + $0x10a] sm:$0xff]
        %v1517 = vld [vmem:[%s633 + $0x112] sm:$0xff]
        %v1518 = vld [vmem:[%s633 + $0x11a] sm:$0xff]
        %v1519 = vld [vmem:[%s633 + $0x122] sm:$0xff]
        %v1520 = vld [vmem:[%s633 + $0x12a] sm:$0xff]
        %s1521 = scalar_lea.vmem [#allocation5], 3
        %v1522 = vld [vmem:[%s1521] sm:$0x1]
        %1524 = vset.pattern.permute.xlu0 0
        %1525 = vperm.xlu0 %1524, %v1485
        %v1526 = vpop.permute.xlu0 %1525
        %1529 = vset.pattern.permute.xlu0 0
        %1530 = vperm.xlu0 %1529, %v1486
        %v1531 = vpop.permute.xlu0 %1530
        %1534 = vset.pattern.permute.xlu0 0
        %1535 = vperm.xlu0 %1534, %v1487
        %v1536 = vpop.permute.xlu0 %1535
        %1539 = vset.pattern.permute.xlu0 0
        %1540 = vperm.xlu0 %1539, %v1488
        %v1541 = vpop.permute.xlu0 %1540
        %1544 = vset.pattern.permute.xlu0 0
        %1545 = vperm.xlu0 %1544, %v1489
        %v1546 = vpop.permute.xlu0 %1545
        %1549 = vset.pattern.permute.xlu0 0
        %1550 = vperm.xlu0 %1549, %v1490
        %v1551 = vpop.permute.xlu0 %1550
        %1554 = vset.pattern.permute.xlu0 0
        %1555 = vperm.xlu0 %1554, %v1491
        %v1556 = vpop.permute.xlu0 %1555
        %1559 = vset.pattern.permute.xlu0 0
        %1560 = vperm.xlu0 %1559, %v1492
        %v1561 = vpop.permute.xlu0 %1560
        %1564 = vset.pattern.permute.xlu0 0
        %1565 = vperm.xlu0 %1564, %v1493
        %v1566 = vpop.permute.xlu0 %1565
        %1569 = vset.pattern.permute.xlu0 0
        %1570 = vperm.xlu0 %1569, %v1494
        %v1571 = vpop.permute.xlu0 %1570
        %1574 = vset.pattern.permute.xlu0 0
        %1575 = vperm.xlu0 %1574, %v1495
        %v1576 = vpop.permute.xlu0 %1575
        %1579 = vset.pattern.permute.xlu0 0
        %1580 = vperm.xlu0 %1579, %v1496
        %v1581 = vpop.permute.xlu0 %1580
        %1584 = vset.pattern.permute.xlu0 0
        %1585 = vperm.xlu0 %1584, %v1497
        %v1586 = vpop.permute.xlu0 %1585
        %1589 = vset.pattern.permute.xlu0 0
        %1590 = vperm.xlu0 %1589, %v1498
        %v1591 = vpop.permute.xlu0 %1590
        %1594 = vset.pattern.permute.xlu0 0
        %1595 = vperm.xlu0 %1594, %v1499
        %v1596 = vpop.permute.xlu0 %1595
        %1599 = vset.pattern.permute.xlu0 0
        %1600 = vperm.xlu0 %1599, %v1500
        %v1601 = vpop.permute.xlu0 %1600
        %1604 = vset.pattern.permute.xlu0 0
        %1605 = vperm.xlu0 %1604, %v1501
        %v1606 = vpop.permute.xlu0 %1605
        %1609 = vset.pattern.permute.xlu0 0
        %1610 = vperm.xlu0 %1609, %v1502
        %v1611 = vpop.permute.xlu0 %1610
        %1614 = vset.pattern.permute.xlu0 0
        %1615 = vperm.xlu0 %1614, %v1503
        %v1616 = vpop.permute.xlu0 %1615
        %1619 = vset.pattern.permute.xlu0 0
        %1620 = vperm.xlu0 %1619, %v1504
        %v1621 = vpop.permute.xlu0 %1620
        %1624 = vset.pattern.permute.xlu0 0
        %1625 = vperm.xlu0 %1624, %v1505
        %v1626 = vpop.permute.xlu0 %1625
        %1629 = vset.pattern.permute.xlu0 0
        %1630 = vperm.xlu0 %1629, %v1506
        %v1631 = vpop.permute.xlu0 %1630
        %1634 = vset.pattern.permute.xlu0 0
        %1635 = vperm.xlu0 %1634, %v1507
        %v1636 = vpop.permute.xlu0 %1635
        %1639 = vset.pattern.permute.xlu0 0
        %1640 = vperm.xlu0 %1639, %v1508
        %v1641 = vpop.permute.xlu0 %1640
        %1644 = vset.pattern.permute.xlu0 0
        %1645 = vperm.xlu0 %1644, %v1509
        %v1646 = vpop.permute.xlu0 %1645
        %1649 = vset.pattern.permute.xlu0 0
        %1650 = vperm.xlu0 %1649, %v1510
        %v1651 = vpop.permute.xlu0 %1650
        %1654 = vset.pattern.permute.xlu0 0
        %1655 = vperm.xlu0 %1654, %v1511
        %v1656 = vpop.permute.xlu0 %1655
        %1659 = vset.pattern.permute.xlu0 0
        %1660 = vperm.xlu0 %1659, %v1512
        %v1661 = vpop.permute.xlu0 %1660
        %1664 = vset.pattern.permute.xlu0 0
        %1665 = vperm.xlu0 %1664, %v1513
        %v1666 = vpop.permute.xlu0 %1665
        %1669 = vset.pattern.permute.xlu0 0
        %1670 = vperm.xlu0 %1669, %v1514
        %v1671 = vpop.permute.xlu0 %1670
        %1674 = vset.pattern.permute.xlu0 0
        %1675 = vperm.xlu0 %1674, %v1515
        %v1676 = vpop.permute.xlu0 %1675
        %1679 = vset.pattern.permute.xlu0 0
        %1680 = vperm.xlu0 %1679, %v1516
        %v1681 = vpop.permute.xlu0 %1680
        %1684 = vset.pattern.permute.xlu0 0
        %1685 = vperm.xlu0 %1684, %v1517
        %v1686 = vpop.permute.xlu0 %1685
        %1689 = vset.pattern.permute.xlu0 0
        %1690 = vperm.xlu0 %1689, %v1518
        %v1691 = vpop.permute.xlu0 %1690
        %1694 = vset.pattern.permute.xlu0 0
        %1695 = vperm.xlu0 %1694, %v1519
        %v1696 = vpop.permute.xlu0 %1695
        %1699 = vset.pattern.permute.xlu0 0
        %1700 = vperm.xlu0 %1699, %v1520
        %v1701 = vpop.permute.xlu0 %1700
        %v1704 = vlaneseq
        %v1705 = vshrl.u32 %v1704, 7
        %v1706 = vsub.s32 0, %v1705
        %v1707 = vrot.slane %v1522, %v1706
        %v1709 = vmul.f32 %v1526, %v1707
        %v1710 = vmul.f32 %v1531, %v1707
        %v1711 = vmul.f32 %v1536, %v1707
        %v1712 = vmul.f32 %v1541, %v1707
        %v1713 = vmul.f32 %v1546, %v1707
        %v1714 = vmul.f32 %v1551, %v1707
        %v1715 = vmul.f32 %v1556, %v1707
        %v1716 = vmul.f32 %v1561, %v1707
        %v1717 = vmul.f32 %v1566, %v1707
        %v1718 = vmul.f32 %v1571, %v1707
        %v1719 = vmul.f32 %v1576, %v1707
        %v1720 = vmul.f32 %v1581, %v1707
        %v1721 = vmul.f32 %v1586, %v1707
        %v1722 = vmul.f32 %v1591, %v1707
        %v1723 = vmul.f32 %v1596, %v1707
        %v1724 = vmul.f32 %v1601, %v1707
        %v1725 = vmul.f32 %v1606, %v1707
        %v1726 = vmul.f32 %v1611, %v1707
        %v1727 = vmul.f32 %v1616, %v1707
        %v1728 = vmul.f32 %v1621, %v1707
        %v1729 = vmul.f32 %v1626, %v1707
        %v1730 = vmul.f32 %v1631, %v1707
        %v1731 = vmul.f32 %v1636, %v1707
        %v1732 = vmul.f32 %v1641, %v1707
        %v1733 = vmul.f32 %v1646, %v1707
        %v1734 = vmul.f32 %v1651, %v1707
        %v1735 = vmul.f32 %v1656, %v1707
        %v1736 = vmul.f32 %v1661, %v1707
        %v1737 = vmul.f32 %v1666, %v1707
        %v1738 = vmul.f32 %v1671, %v1707
        %v1739 = vmul.f32 %v1676, %v1707
        %v1740 = vmul.f32 %v1681, %v1707
        %v1741 = vmul.f32 %v1686, %v1707
        %v1742 = vmul.f32 %v1691, %v1707
        %v1743 = vmul.f32 %v1696, %v1707
        %v1744 = vmul.f32 %v1701, %v1707
        %v1745 = vadd.f32 %v1449, %v1709
        %v1746 = vadd.f32 %v1450, %v1710
        %v1747 = vadd.f32 %v1451, %v1711
        %v1748 = vadd.f32 %v1452, %v1712
        %v1749 = vadd.f32 %v1453, %v1713
        %v1750 = vadd.f32 %v1454, %v1714
        %v1751 = vadd.f32 %v1455, %v1715
        %v1752 = vadd.f32 %v1456, %v1716
        %v1753 = vadd.f32 %v1457, %v1717
        %v1754 = vadd.f32 %v1458, %v1718
        %v1755 = vadd.f32 %v1459, %v1719
        %v1756 = vadd.f32 %v1460, %v1720
        %v1757 = vadd.f32 %v1461, %v1721
        %v1758 = vadd.f32 %v1462, %v1722
        %v1759 = vadd.f32 %v1463, %v1723
        %v1760 = vadd.f32 %v1464, %v1724
        %v1761 = vadd.f32 %v1465, %v1725
        %v1762 = vadd.f32 %v1466, %v1726
        %v1763 = vadd.f32 %v1467, %v1727
        %v1764 = vadd.f32 %v1468, %v1728
        %v1765 = vadd.f32 %v1469, %v1729
        %v1766 = vadd.f32 %v1470, %v1730
        %v1767 = vadd.f32 %v1471, %v1731
        %v1768 = vadd.f32 %v1472, %v1732
        %v1769 = vadd.f32 %v1473, %v1733
        %v1770 = vadd.f32 %v1474, %v1734
        %v1771 = vadd.f32 %v1475, %v1735
        %v1772 = vadd.f32 %v1476, %v1736
        %v1773 = vadd.f32 %v1477, %v1737
        %v1774 = vadd.f32 %v1478, %v1738
        %v1775 = vadd.f32 %v1479, %v1739
        %v1776 = vadd.f32 %v1480, %v1740
        %v1777 = vadd.f32 %v1481, %v1741
        %v1778 = vadd.f32 %v1482, %v1742
        %v1779 = vadd.f32 %v1483, %v1743
        %v1780 = vadd.f32 %v1484, %v1744
        %v1781 = vld [vmem:[%s633 + $0x13] sm:$0xff]
        %v1782 = vld [vmem:[%s633 + $0x1b] sm:$0xff]
        %v1783 = vld [vmem:[%s633 + $0x23] sm:$0xff]
        %v1784 = vld [vmem:[%s633 + $0x2b] sm:$0xff]
        %v1785 = vld [vmem:[%s633 + $0x33] sm:$0xff]
        %v1786 = vld [vmem:[%s633 + $0x3b] sm:$0xff]
        %v1787 = vld [vmem:[%s633 + $0x43] sm:$0xff]
        %v1788 = vld [vmem:[%s633 + $0x4b] sm:$0xff]
        %v1789 = vld [vmem:[%s633 + $0x53] sm:$0xff]
        %v1790 = vld [vmem:[%s633 + $0x5b] sm:$0xff]
        %v1791 = vld [vmem:[%s633 + $0x63] sm:$0xff]
        %v1792 = vld [vmem:[%s633 + $0x6b] sm:$0xff]
        %v1793 = vld [vmem:[%s633 + $0x73] sm:$0xff]
        %v1794 = vld [vmem:[%s633 + $0x7b] sm:$0xff]
        %v1795 = vld [vmem:[%s633 + $0x83] sm:$0xff]
        %v1796 = vld [vmem:[%s633 + $0x8b] sm:$0xff]
        %v1797 = vld [vmem:[%s633 + $0x93] sm:$0xff]
        %v1798 = vld [vmem:[%s633 + $0x9b] sm:$0xff]
        %v1799 = vld [vmem:[%s633 + $0xa3] sm:$0xff]
        %v1800 = vld [vmem:[%s633 + $0xab] sm:$0xff]
        %v1801 = vld [vmem:[%s633 + $0xb3] sm:$0xff]
        %v1802 = vld [vmem:[%s633 + $0xbb] sm:$0xff]
        %v1803 = vld [vmem:[%s633 + $0xc3] sm:$0xff]
        %v1804 = vld [vmem:[%s633 + $0xcb] sm:$0xff]
        %v1805 = vld [vmem:[%s633 + $0xd3] sm:$0xff]
        %v1806 = vld [vmem:[%s633 + $0xdb] sm:$0xff]
        %v1807 = vld [vmem:[%s633 + $0xe3] sm:$0xff]
        %v1808 = vld [vmem:[%s633 + $0xeb] sm:$0xff]
        %v1809 = vld [vmem:[%s633 + $0xf3] sm:$0xff]
        %v1810 = vld [vmem:[%s633 + $0xfb] sm:$0xff]
        %v1811 = vld [vmem:[%s633 + $0x103] sm:$0xff]
        %v1812 = vld [vmem:[%s633 + $0x10b] sm:$0xff]
        %v1813 = vld [vmem:[%s633 + $0x113] sm:$0xff]
        %v1814 = vld [vmem:[%s633 + $0x11b] sm:$0xff]
        %v1815 = vld [vmem:[%s633 + $0x123] sm:$0xff]
        %v1816 = vld [vmem:[%s633 + $0x12b] sm:$0xff]
        %s1817 = scalar_lea.vmem [#allocation5], 4
        %v1818 = vld [vmem:[%s1817] sm:$0x1]
        %1820 = vset.pattern.permute.xlu0 0
        %1821 = vperm.xlu0 %1820, %v1781
        %v1822 = vpop.permute.xlu0 %1821
        %1825 = vset.pattern.permute.xlu0 0
        %1826 = vperm.xlu0 %1825, %v1782
        %v1827 = vpop.permute.xlu0 %1826
        %1830 = vset.pattern.permute.xlu0 0
        %1831 = vperm.xlu0 %1830, %v1783
        %v1832 = vpop.permute.xlu0 %1831
        %1835 = vset.pattern.permute.xlu0 0
        %1836 = vperm.xlu0 %1835, %v1784
        %v1837 = vpop.permute.xlu0 %1836
        %1840 = vset.pattern.permute.xlu0 0
        %1841 = vperm.xlu0 %1840, %v1785
        %v1842 = vpop.permute.xlu0 %1841
        %1845 = vset.pattern.permute.xlu0 0
        %1846 = vperm.xlu0 %1845, %v1786
        %v1847 = vpop.permute.xlu0 %1846
        %1850 = vset.pattern.permute.xlu0 0
        %1851 = vperm.xlu0 %1850, %v1787
        %v1852 = vpop.permute.xlu0 %1851
        %1855 = vset.pattern.permute.xlu0 0
        %1856 = vperm.xlu0 %1855, %v1788
        %v1857 = vpop.permute.xlu0 %1856
        %1860 = vset.pattern.permute.xlu0 0
        %1861 = vperm.xlu0 %1860, %v1789
        %v1862 = vpop.permute.xlu0 %1861
        %1865 = vset.pattern.permute.xlu0 0
        %1866 = vperm.xlu0 %1865, %v1790
        %v1867 = vpop.permute.xlu0 %1866
        %1870 = vset.pattern.permute.xlu0 0
        %1871 = vperm.xlu0 %1870, %v1791
        %v1872 = vpop.permute.xlu0 %1871
        %1875 = vset.pattern.permute.xlu0 0
        %1876 = vperm.xlu0 %1875, %v1792
        %v1877 = vpop.permute.xlu0 %1876
        %1880 = vset.pattern.permute.xlu0 0
        %1881 = vperm.xlu0 %1880, %v1793
        %v1882 = vpop.permute.xlu0 %1881
        %1885 = vset.pattern.permute.xlu0 0
        %1886 = vperm.xlu0 %1885, %v1794
        %v1887 = vpop.permute.xlu0 %1886
        %1890 = vset.pattern.permute.xlu0 0
        %1891 = vperm.xlu0 %1890, %v1795
        %v1892 = vpop.permute.xlu0 %1891
        %1895 = vset.pattern.permute.xlu0 0
        %1896 = vperm.xlu0 %1895, %v1796
        %v1897 = vpop.permute.xlu0 %1896
        %1900 = vset.pattern.permute.xlu0 0
        %1901 = vperm.xlu0 %1900, %v1797
        %v1902 = vpop.permute.xlu0 %1901
        %1905 = vset.pattern.permute.xlu0 0
        %1906 = vperm.xlu0 %1905, %v1798
        %v1907 = vpop.permute.xlu0 %1906
        %1910 = vset.pattern.permute.xlu0 0
        %1911 = vperm.xlu0 %1910, %v1799
        %v1912 = vpop.permute.xlu0 %1911
        %1915 = vset.pattern.permute.xlu0 0
        %1916 = vperm.xlu0 %1915, %v1800
        %v1917 = vpop.permute.xlu0 %1916
        %1920 = vset.pattern.permute.xlu0 0
        %1921 = vperm.xlu0 %1920, %v1801
        %v1922 = vpop.permute.xlu0 %1921
        %1925 = vset.pattern.permute.xlu0 0
        %1926 = vperm.xlu0 %1925, %v1802
        %v1927 = vpop.permute.xlu0 %1926
        %1930 = vset.pattern.permute.xlu0 0
        %1931 = vperm.xlu0 %1930, %v1803
        %v1932 = vpop.permute.xlu0 %1931
        %1935 = vset.pattern.permute.xlu0 0
        %1936 = vperm.xlu0 %1935, %v1804
        %v1937 = vpop.permute.xlu0 %1936
        %1940 = vset.pattern.permute.xlu0 0
        %1941 = vperm.xlu0 %1940, %v1805
        %v1942 = vpop.permute.xlu0 %1941
        %1945 = vset.pattern.permute.xlu0 0
        %1946 = vperm.xlu0 %1945, %v1806
        %v1947 = vpop.permute.xlu0 %1946
        %1950 = vset.pattern.permute.xlu0 0
        %1951 = vperm.xlu0 %1950, %v1807
        %v1952 = vpop.permute.xlu0 %1951
        %1955 = vset.pattern.permute.xlu0 0
        %1956 = vperm.xlu0 %1955, %v1808
        %v1957 = vpop.permute.xlu0 %1956
        %1960 = vset.pattern.permute.xlu0 0
        %1961 = vperm.xlu0 %1960, %v1809
        %v1962 = vpop.permute.xlu0 %1961
        %1965 = vset.pattern.permute.xlu0 0
        %1966 = vperm.xlu0 %1965, %v1810
        %v1967 = vpop.permute.xlu0 %1966
        %1970 = vset.pattern.permute.xlu0 0
        %1971 = vperm.xlu0 %1970, %v1811
        %v1972 = vpop.permute.xlu0 %1971
        %1975 = vset.pattern.permute.xlu0 0
        %1976 = vperm.xlu0 %1975, %v1812
        %v1977 = vpop.permute.xlu0 %1976
        %1980 = vset.pattern.permute.xlu0 0
        %1981 = vperm.xlu0 %1980, %v1813
        %v1982 = vpop.permute.xlu0 %1981
        %1985 = vset.pattern.permute.xlu0 0
        %1986 = vperm.xlu0 %1985, %v1814
        %v1987 = vpop.permute.xlu0 %1986
        %1990 = vset.pattern.permute.xlu0 0
        %1991 = vperm.xlu0 %1990, %v1815
        %v1992 = vpop.permute.xlu0 %1991
        %1995 = vset.pattern.permute.xlu0 0
        %1996 = vperm.xlu0 %1995, %v1816
        %v1997 = vpop.permute.xlu0 %1996
        %v2000 = vlaneseq
        %v2001 = vshrl.u32 %v2000, 7
        %v2002 = vsub.s32 0, %v2001
        %v2003 = vrot.slane %v1818, %v2002
        %v2005 = vmul.f32 %v1822, %v2003
        %v2006 = vmul.f32 %v1827, %v2003
        %v2007 = vmul.f32 %v1832, %v2003
        %v2008 = vmul.f32 %v1837, %v2003
        %v2009 = vmul.f32 %v1842, %v2003
        %v2010 = vmul.f32 %v1847, %v2003
        %v2011 = vmul.f32 %v1852, %v2003
        %v2012 = vmul.f32 %v1857, %v2003
        %v2013 = vmul.f32 %v1862, %v2003
        %v2014 = vmul.f32 %v1867, %v2003
        %v2015 = vmul.f32 %v1872, %v2003
        %v2016 = vmul.f32 %v1877, %v2003
        %v2017 = vmul.f32 %v1882, %v2003
        %v2018 = vmul.f32 %v1887, %v2003
        %v2019 = vmul.f32 %v1892, %v2003
        %v2020 = vmul.f32 %v1897, %v2003
        %v2021 = vmul.f32 %v1902, %v2003
        %v2022 = vmul.f32 %v1907, %v2003
        %v2023 = vmul.f32 %v1912, %v2003
        %v2024 = vmul.f32 %v1917, %v2003
        %v2025 = vmul.f32 %v1922, %v2003
        %v2026 = vmul.f32 %v1927, %v2003
        %v2027 = vmul.f32 %v1932, %v2003
        %v2028 = vmul.f32 %v1937, %v2003
        %v2029 = vmul.f32 %v1942, %v2003
        %v2030 = vmul.f32 %v1947, %v2003
        %v2031 = vmul.f32 %v1952, %v2003
        %v2032 = vmul.f32 %v1957, %v2003
        %v2033 = vmul.f32 %v1962, %v2003
        %v2034 = vmul.f32 %v1967, %v2003
        %v2035 = vmul.f32 %v1972, %v2003
        %v2036 = vmul.f32 %v1977, %v2003
        %v2037 = vmul.f32 %v1982, %v2003
        %v2038 = vmul.f32 %v1987, %v2003
        %v2039 = vmul.f32 %v1992, %v2003
        %v2040 = vmul.f32 %v1997, %v2003
        %v2041 = vadd.f32 %v1745, %v2005
        %v2042 = vadd.f32 %v1746, %v2006
        %v2043 = vadd.f32 %v1747, %v2007
        %v2044 = vadd.f32 %v1748, %v2008
        %v2045 = vadd.f32 %v1749, %v2009
        %v2046 = vadd.f32 %v1750, %v2010
        %v2047 = vadd.f32 %v1751, %v2011
        %v2048 = vadd.f32 %v1752, %v2012
        %v2049 = vadd.f32 %v1753, %v2013
        %v2050 = vadd.f32 %v1754, %v2014
        %v2051 = vadd.f32 %v1755, %v2015
        %v2052 = vadd.f32 %v1756, %v2016
        %v2053 = vadd.f32 %v1757, %v2017
        %v2054 = vadd.f32 %v1758, %v2018
        %v2055 = vadd.f32 %v1759, %v2019
        %v2056 = vadd.f32 %v1760, %v2020
        %v2057 = vadd.f32 %v1761, %v2021
        %v2058 = vadd.f32 %v1762, %v2022
        %v2059 = vadd.f32 %v1763, %v2023
        %v2060 = vadd.f32 %v1764, %v2024
        %v2061 = vadd.f32 %v1765, %v2025
        %v2062 = vadd.f32 %v1766, %v2026
        %v2063 = vadd.f32 %v1767, %v2027
        %v2064 = vadd.f32 %v1768, %v2028
        %v2065 = vadd.f32 %v1769, %v2029
        %v2066 = vadd.f32 %v1770, %v2030
        %v2067 = vadd.f32 %v1771, %v2031
        %v2068 = vadd.f32 %v1772, %v2032
        %v2069 = vadd.f32 %v1773, %v2033
        %v2070 = vadd.f32 %v1774, %v2034
        %v2071 = vadd.f32 %v1775, %v2035
        %v2072 = vadd.f32 %v1776, %v2036
        %v2073 = vadd.f32 %v1777, %v2037
        %v2074 = vadd.f32 %v1778, %v2038
        %v2075 = vadd.f32 %v1779, %v2039
        %v2076 = vadd.f32 %v1780, %v2040
        %v2077 = vld [vmem:[%s633 + $0x14] sm:$0xff]
        %v2078 = vld [vmem:[%s633 + $0x1c] sm:$0xff]
        %v2079 = vld [vmem:[%s633 + $0x24] sm:$0xff]
        %v2080 = vld [vmem:[%s633 + $0x2c] sm:$0xff]
        %v2081 = vld [vmem:[%s633 + $0x34] sm:$0xff]
        %v2082 = vld [vmem:[%s633 + $0x3c] sm:$0xff]
        %v2083 = vld [vmem:[%s633 + $0x44] sm:$0xff]
        %v2084 = vld [vmem:[%s633 + $0x4c] sm:$0xff]
        %v2085 = vld [vmem:[%s633 + $0x54] sm:$0xff]
        %v2086 = vld [vmem:[%s633 + $0x5c] sm:$0xff]
        %v2087 = vld [vmem:[%s633 + $0x64] sm:$0xff]
        %v2088 = vld [vmem:[%s633 + $0x6c] sm:$0xff]
        %v2089 = vld [vmem:[%s633 + $0x74] sm:$0xff]
        %v2090 = vld [vmem:[%s633 + $0x7c] sm:$0xff]
        %v2091 = vld [vmem:[%s633 + $0x84] sm:$0xff]
        %v2092 = vld [vmem:[%s633 + $0x8c] sm:$0xff]
        %v2093 = vld [vmem:[%s633 + $0x94] sm:$0xff]
        %v2094 = vld [vmem:[%s633 + $0x9c] sm:$0xff]
        %v2095 = vld [vmem:[%s633 + $0xa4] sm:$0xff]
        %v2096 = vld [vmem:[%s633 + $0xac] sm:$0xff]
        %v2097 = vld [vmem:[%s633 + $0xb4] sm:$0xff]
        %v2098 = vld [vmem:[%s633 + $0xbc] sm:$0xff]
        %v2099 = vld [vmem:[%s633 + $0xc4] sm:$0xff]
        %v2100 = vld [vmem:[%s633 + $0xcc] sm:$0xff]
        %v2101 = vld [vmem:[%s633 + $0xd4] sm:$0xff]
        %v2102 = vld [vmem:[%s633 + $0xdc] sm:$0xff]
        %v2103 = vld [vmem:[%s633 + $0xe4] sm:$0xff]
        %v2104 = vld [vmem:[%s633 + $0xec] sm:$0xff]
        %v2105 = vld [vmem:[%s633 + $0xf4] sm:$0xff]
        %v2106 = vld [vmem:[%s633 + $0xfc] sm:$0xff]
        %v2107 = vld [vmem:[%s633 + $0x104] sm:$0xff]
        %v2108 = vld [vmem:[%s633 + $0x10c] sm:$0xff]
        %v2109 = vld [vmem:[%s633 + $0x114] sm:$0xff]
        %v2110 = vld [vmem:[%s633 + $0x11c] sm:$0xff]
        %v2111 = vld [vmem:[%s633 + $0x124] sm:$0xff]
        %v2112 = vld [vmem:[%s633 + $0x12c] sm:$0xff]
        %s2113 = scalar_lea.vmem [#allocation5], 5
        %v2114 = vld [vmem:[%s2113] sm:$0x1]
        %2116 = vset.pattern.permute.xlu0 0
        %2117 = vperm.xlu0 %2116, %v2077
        %v2118 = vpop.permute.xlu0 %2117
        %2121 = vset.pattern.permute.xlu0 0
        %2122 = vperm.xlu0 %2121, %v2078
        %v2123 = vpop.permute.xlu0 %2122
        %2126 = vset.pattern.permute.xlu0 0
        %2127 = vperm.xlu0 %2126, %v2079
        %v2128 = vpop.permute.xlu0 %2127
        %2131 = vset.pattern.permute.xlu0 0
        %2132 = vperm.xlu0 %2131, %v2080
        %v2133 = vpop.permute.xlu0 %2132
        %2136 = vset.pattern.permute.xlu0 0
        %2137 = vperm.xlu0 %2136, %v2081
        %v2138 = vpop.permute.xlu0 %2137
        %2141 = vset.pattern.permute.xlu0 0
        %2142 = vperm.xlu0 %2141, %v2082
        %v2143 = vpop.permute.xlu0 %2142
        %2146 = vset.pattern.permute.xlu0 0
        %2147 = vperm.xlu0 %2146, %v2083
        %v2148 = vpop.permute.xlu0 %2147
        %2151 = vset.pattern.permute.xlu0 0
        %2152 = vperm.xlu0 %2151, %v2084
        %v2153 = vpop.permute.xlu0 %2152
        %2156 = vset.pattern.permute.xlu0 0
        %2157 = vperm.xlu0 %2156, %v2085
        %v2158 = vpop.permute.xlu0 %2157
        %2161 = vset.pattern.permute.xlu0 0
        %2162 = vperm.xlu0 %2161, %v2086
        %v2163 = vpop.permute.xlu0 %2162
        %2166 = vset.pattern.permute.xlu0 0
        %2167 = vperm.xlu0 %2166, %v2087
        %v2168 = vpop.permute.xlu0 %2167
        %2171 = vset.pattern.permute.xlu0 0
        %2172 = vperm.xlu0 %2171, %v2088
        %v2173 = vpop.permute.xlu0 %2172
        %2176 = vset.pattern.permute.xlu0 0
        %2177 = vperm.xlu0 %2176, %v2089
        %v2178 = vpop.permute.xlu0 %2177
        %2181 = vset.pattern.permute.xlu0 0
        %2182 = vperm.xlu0 %2181, %v2090
        %v2183 = vpop.permute.xlu0 %2182
        %2186 = vset.pattern.permute.xlu0 0
        %2187 = vperm.xlu0 %2186, %v2091
        %v2188 = vpop.permute.xlu0 %2187
        %2191 = vset.pattern.permute.xlu0 0
        %2192 = vperm.xlu0 %2191, %v2092
        %v2193 = vpop.permute.xlu0 %2192
        %2196 = vset.pattern.permute.xlu0 0
        %2197 = vperm.xlu0 %2196, %v2093
        %v2198 = vpop.permute.xlu0 %2197
        %2201 = vset.pattern.permute.xlu0 0
        %2202 = vperm.xlu0 %2201, %v2094
        %v2203 = vpop.permute.xlu0 %2202
        %2206 = vset.pattern.permute.xlu0 0
        %2207 = vperm.xlu0 %2206, %v2095
        %v2208 = vpop.permute.xlu0 %2207
        %2211 = vset.pattern.permute.xlu0 0
        %2212 = vperm.xlu0 %2211, %v2096
        %v2213 = vpop.permute.xlu0 %2212
        %2216 = vset.pattern.permute.xlu0 0
        %2217 = vperm.xlu0 %2216, %v2097
        %v2218 = vpop.permute.xlu0 %2217
        %2221 = vset.pattern.permute.xlu0 0
        %2222 = vperm.xlu0 %2221, %v2098
        %v2223 = vpop.permute.xlu0 %2222
        %2226 = vset.pattern.permute.xlu0 0
        %2227 = vperm.xlu0 %2226, %v2099
        %v2228 = vpop.permute.xlu0 %2227
        %2231 = vset.pattern.permute.xlu0 0
        %2232 = vperm.xlu0 %2231, %v2100
        %v2233 = vpop.permute.xlu0 %2232
        %2236 = vset.pattern.permute.xlu0 0
        %2237 = vperm.xlu0 %2236, %v2101
        %v2238 = vpop.permute.xlu0 %2237
        %2241 = vset.pattern.permute.xlu0 0
        %2242 = vperm.xlu0 %2241, %v2102
        %v2243 = vpop.permute.xlu0 %2242
        %2246 = vset.pattern.permute.xlu0 0
        %2247 = vperm.xlu0 %2246, %v2103
        %v2248 = vpop.permute.xlu0 %2247
        %2251 = vset.pattern.permute.xlu0 0
        %2252 = vperm.xlu0 %2251, %v2104
        %v2253 = vpop.permute.xlu0 %2252
        %2256 = vset.pattern.permute.xlu0 0
        %2257 = vperm.xlu0 %2256, %v2105
        %v2258 = vpop.permute.xlu0 %2257
        %2261 = vset.pattern.permute.xlu0 0
        %2262 = vperm.xlu0 %2261, %v2106
        %v2263 = vpop.permute.xlu0 %2262
        %2266 = vset.pattern.permute.xlu0 0
        %2267 = vperm.xlu0 %2266, %v2107
        %v2268 = vpop.permute.xlu0 %2267
        %2271 = vset.pattern.permute.xlu0 0
        %2272 = vperm.xlu0 %2271, %v2108
        %v2273 = vpop.permute.xlu0 %2272
        %2276 = vset.pattern.permute.xlu0 0
        %2277 = vperm.xlu0 %2276, %v2109
        %v2278 = vpop.permute.xlu0 %2277
        %2281 = vset.pattern.permute.xlu0 0
        %2282 = vperm.xlu0 %2281, %v2110
        %v2283 = vpop.permute.xlu0 %2282
        %2286 = vset.pattern.permute.xlu0 0
        %2287 = vperm.xlu0 %2286, %v2111
        %v2288 = vpop.permute.xlu0 %2287
        %2291 = vset.pattern.permute.xlu0 0
        %2292 = vperm.xlu0 %2291, %v2112
        %v2293 = vpop.permute.xlu0 %2292
        %v2296 = vlaneseq
        %v2297 = vshrl.u32 %v2296, 7
        %v2298 = vsub.s32 0, %v2297
        %v2299 = vrot.slane %v2114, %v2298
        %v2301 = vmul.f32 %v2118, %v2299
        %v2302 = vmul.f32 %v2123, %v2299
        %v2303 = vmul.f32 %v2128, %v2299
        %v2304 = vmul.f32 %v2133, %v2299
        %v2305 = vmul.f32 %v2138, %v2299
        %v2306 = vmul.f32 %v2143, %v2299
        %v2307 = vmul.f32 %v2148, %v2299
        %v2308 = vmul.f32 %v2153, %v2299
        %v2309 = vmul.f32 %v2158, %v2299
        %v2310 = vmul.f32 %v2163, %v2299
        %v2311 = vmul.f32 %v2168, %v2299
        %v2312 = vmul.f32 %v2173, %v2299
        %v2313 = vmul.f32 %v2178, %v2299
        %v2314 = vmul.f32 %v2183, %v2299
        %v2315 = vmul.f32 %v2188, %v2299
        %v2316 = vmul.f32 %v2193, %v2299
        %v2317 = vmul.f32 %v2198, %v2299
        %v2318 = vmul.f32 %v2203, %v2299
        %v2319 = vmul.f32 %v2208, %v2299
        %v2320 = vmul.f32 %v2213, %v2299
        %v2321 = vmul.f32 %v2218, %v2299
        %v2322 = vmul.f32 %v2223, %v2299
        %v2323 = vmul.f32 %v2228, %v2299
        %v2324 = vmul.f32 %v2233, %v2299
        %v2325 = vmul.f32 %v2238, %v2299
        %v2326 = vmul.f32 %v2243, %v2299
        %v2327 = vmul.f32 %v2248, %v2299
        %v2328 = vmul.f32 %v2253, %v2299
        %v2329 = vmul.f32 %v2258, %v2299
        %v2330 = vmul.f32 %v2263, %v2299
        %v2331 = vmul.f32 %v2268, %v2299
        %v2332 = vmul.f32 %v2273, %v2299
        %v2333 = vmul.f32 %v2278, %v2299
        %v2334 = vmul.f32 %v2283, %v2299
        %v2335 = vmul.f32 %v2288, %v2299
        %v2336 = vmul.f32 %v2293, %v2299
        %v2337 = vadd.f32 %v2041, %v2301
        %v2338 = vadd.f32 %v2042, %v2302
        %v2339 = vadd.f32 %v2043, %v2303
        %v2340 = vadd.f32 %v2044, %v2304
        %v2341 = vadd.f32 %v2045, %v2305
        %v2342 = vadd.f32 %v2046, %v2306
        %v2343 = vadd.f32 %v2047, %v2307
        %v2344 = vadd.f32 %v2048, %v2308
        %v2345 = vadd.f32 %v2049, %v2309
        %v2346 = vadd.f32 %v2050, %v2310
        %v2347 = vadd.f32 %v2051, %v2311
        %v2348 = vadd.f32 %v2052, %v2312
        %v2349 = vadd.f32 %v2053, %v2313
        %v2350 = vadd.f32 %v2054, %v2314
        %v2351 = vadd.f32 %v2055, %v2315
        %v2352 = vadd.f32 %v2056, %v2316
        %v2353 = vadd.f32 %v2057, %v2317
        %v2354 = vadd.f32 %v2058, %v2318
        %v2355 = vadd.f32 %v2059, %v2319
        %v2356 = vadd.f32 %v2060, %v2320
        %v2357 = vadd.f32 %v2061, %v2321
        %v2358 = vadd.f32 %v2062, %v2322
        %v2359 = vadd.f32 %v2063, %v2323
        %v2360 = vadd.f32 %v2064, %v2324
        %v2361 = vadd.f32 %v2065, %v2325
        %v2362 = vadd.f32 %v2066, %v2326
        %v2363 = vadd.f32 %v2067, %v2327
        %v2364 = vadd.f32 %v2068, %v2328
        %v2365 = vadd.f32 %v2069, %v2329
        %v2366 = vadd.f32 %v2070, %v2330
        %v2367 = vadd.f32 %v2071, %v2331
        %v2368 = vadd.f32 %v2072, %v2332
        %v2369 = vadd.f32 %v2073, %v2333
        %v2370 = vadd.f32 %v2074, %v2334
        %v2371 = vadd.f32 %v2075, %v2335
        %v2372 = vadd.f32 %v2076, %v2336
        %v2373 = vld [vmem:[%s633 + $0x24] sm:$0xff]
        %v2374 = vld [vmem:[%s633 + $0x2c] sm:$0xff]
        %v2375 = vld [vmem:[%s633 + $0x34] sm:$0xff]
        %v2376 = vld [vmem:[%s633 + $0x3c] sm:$0xff]
        %v2377 = vld [vmem:[%s633 + $0x44] sm:$0xff]
        %v2378 = vld [vmem:[%s633 + $0x4c] sm:$0xff]
        %v2379 = vld [vmem:[%s633 + $0x54] sm:$0xff]
        %v2380 = vld [vmem:[%s633 + $0x5c] sm:$0xff]
        %v2381 = vld [vmem:[%s633 + $0x64] sm:$0xff]
        %v2382 = vld [vmem:[%s633 + $0x6c] sm:$0xff]
        %v2383 = vld [vmem:[%s633 + $0x74] sm:$0xff]
        %v2384 = vld [vmem:[%s633 + $0x7c] sm:$0xff]
        %v2385 = vld [vmem:[%s633 + $0x84] sm:$0xff]
        %v2386 = vld [vmem:[%s633 + $0x8c] sm:$0xff]
        %v2387 = vld [vmem:[%s633 + $0x94] sm:$0xff]
        %v2388 = vld [vmem:[%s633 + $0x9c] sm:$0xff]
        %v2389 = vld [vmem:[%s633 + $0xa4] sm:$0xff]
        %v2390 = vld [vmem:[%s633 + $0xac] sm:$0xff]
        %v2391 = vld [vmem:[%s633 + $0xb4] sm:$0xff]
        %v2392 = vld [vmem:[%s633 + $0xbc] sm:$0xff]
        %v2393 = vld [vmem:[%s633 + $0xc4] sm:$0xff]
        %v2394 = vld [vmem:[%s633 + $0xcc] sm:$0xff]
        %v2395 = vld [vmem:[%s633 + $0xd4] sm:$0xff]
        %v2396 = vld [vmem:[%s633 + $0xdc] sm:$0xff]
        %v2397 = vld [vmem:[%s633 + $0xe4] sm:$0xff]
        %v2398 = vld [vmem:[%s633 + $0xec] sm:$0xff]
        %v2399 = vld [vmem:[%s633 + $0xf4] sm:$0xff]
        %v2400 = vld [vmem:[%s633 + $0xfc] sm:$0xff]
        %v2401 = vld [vmem:[%s633 + $0x104] sm:$0xff]
        %v2402 = vld [vmem:[%s633 + $0x10c] sm:$0xff]
        %v2403 = vld [vmem:[%s633 + $0x114] sm:$0xff]
        %v2404 = vld [vmem:[%s633 + $0x11c] sm:$0xff]
        %v2405 = vld [vmem:[%s633 + $0x124] sm:$0xff]
        %v2406 = vld [vmem:[%s633 + $0x12c] sm:$0xff]
        %v2407 = vld [vmem:[%s633 + $0x134] sm:$0xff]
        %v2408 = vld [vmem:[%s633 + $0x13c] sm:$0xff]
        %s2409 = scalar_lea.vmem [#allocation5], 6
        %v2410 = vld [vmem:[%s2409] sm:$0x1]
        %2412 = vset.pattern.permute.xlu0 0
        %2413 = vperm.xlu0 %2412, %v2373
        %v2414 = vpop.permute.xlu0 %2413
        %2417 = vset.pattern.permute.xlu0 0
        %2418 = vperm.xlu0 %2417, %v2374
        %v2419 = vpop.permute.xlu0 %2418
        %2422 = vset.pattern.permute.xlu0 0
        %2423 = vperm.xlu0 %2422, %v2375
        %v2424 = vpop.permute.xlu0 %2423
        %2427 = vset.pattern.permute.xlu0 0
        %2428 = vperm.xlu0 %2427, %v2376
        %v2429 = vpop.permute.xlu0 %2428
        %2432 = vset.pattern.permute.xlu0 0
        %2433 = vperm.xlu0 %2432, %v2377
        %v2434 = vpop.permute.xlu0 %2433
        %2437 = vset.pattern.permute.xlu0 0
        %2438 = vperm.xlu0 %2437, %v2378
        %v2439 = vpop.permute.xlu0 %2438
        %2442 = vset.pattern.permute.xlu0 0
        %2443 = vperm.xlu0 %2442, %v2379
        %v2444 = vpop.permute.xlu0 %2443
        %2447 = vset.pattern.permute.xlu0 0
        %2448 = vperm.xlu0 %2447, %v2380
        %v2449 = vpop.permute.xlu0 %2448
        %2452 = vset.pattern.permute.xlu0 0
        %2453 = vperm.xlu0 %2452, %v2381
        %v2454 = vpop.permute.xlu0 %2453
        %2457 = vset.pattern.permute.xlu0 0
        %2458 = vperm.xlu0 %2457, %v2382
        %v2459 = vpop.permute.xlu0 %2458
        %2462 = vset.pattern.permute.xlu0 0
        %2463 = vperm.xlu0 %2462, %v2383
        %v2464 = vpop.permute.xlu0 %2463
        %2467 = vset.pattern.permute.xlu0 0
        %2468 = vperm.xlu0 %2467, %v2384
        %v2469 = vpop.permute.xlu0 %2468
        %2472 = vset.pattern.permute.xlu0 0
        %2473 = vperm.xlu0 %2472, %v2385
        %v2474 = vpop.permute.xlu0 %2473
        %2477 = vset.pattern.permute.xlu0 0
        %2478 = vperm.xlu0 %2477, %v2386
        %v2479 = vpop.permute.xlu0 %2478
        %2482 = vset.pattern.permute.xlu0 0
        %2483 = vperm.xlu0 %2482, %v2387
        %v2484 = vpop.permute.xlu0 %2483
        %2487 = vset.pattern.permute.xlu0 0
        %2488 = vperm.xlu0 %2487, %v2388
        %v2489 = vpop.permute.xlu0 %2488
        %2492 = vset.pattern.permute.xlu0 0
        %2493 = vperm.xlu0 %2492, %v2389
        %v2494 = vpop.permute.xlu0 %2493
        %2497 = vset.pattern.permute.xlu0 0
        %2498 = vperm.xlu0 %2497, %v2390
        %v2499 = vpop.permute.xlu0 %2498
        %2502 = vset.pattern.permute.xlu0 0
        %2503 = vperm.xlu0 %2502, %v2391
        %v2504 = vpop.permute.xlu0 %2503
        %2507 = vset.pattern.permute.xlu0 0
        %2508 = vperm.xlu0 %2507, %v2392
        %v2509 = vpop.permute.xlu0 %2508
        %2512 = vset.pattern.permute.xlu0 0
        %2513 = vperm.xlu0 %2512, %v2393
        %v2514 = vpop.permute.xlu0 %2513
        %2517 = vset.pattern.permute.xlu0 0
        %2518 = vperm.xlu0 %2517, %v2394
        %v2519 = vpop.permute.xlu0 %2518
        %2522 = vset.pattern.permute.xlu0 0
        %2523 = vperm.xlu0 %2522, %v2395
        %v2524 = vpop.permute.xlu0 %2523
        %2527 = vset.pattern.permute.xlu0 0
        %2528 = vperm.xlu0 %2527, %v2396
        %v2529 = vpop.permute.xlu0 %2528
        %2532 = vset.pattern.permute.xlu0 0
        %2533 = vperm.xlu0 %2532, %v2397
        %v2534 = vpop.permute.xlu0 %2533
        %2537 = vset.pattern.permute.xlu0 0
        %2538 = vperm.xlu0 %2537, %v2398
        %v2539 = vpop.permute.xlu0 %2538
        %2542 = vset.pattern.permute.xlu0 0
        %2543 = vperm.xlu0 %2542, %v2399
        %v2544 = vpop.permute.xlu0 %2543
        %2547 = vset.pattern.permute.xlu0 0
        %2548 = vperm.xlu0 %2547, %v2400
        %v2549 = vpop.permute.xlu0 %2548
        %2552 = vset.pattern.permute.xlu0 0
        %2553 = vperm.xlu0 %2552, %v2401
        %v2554 = vpop.permute.xlu0 %2553
        %2557 = vset.pattern.permute.xlu0 0
        %2558 = vperm.xlu0 %2557, %v2402
        %v2559 = vpop.permute.xlu0 %2558
        %2562 = vset.pattern.permute.xlu0 0
        %2563 = vperm.xlu0 %2562, %v2403
        %v2564 = vpop.permute.xlu0 %2563
        %2567 = vset.pattern.permute.xlu0 0
        %2568 = vperm.xlu0 %2567, %v2404
        %v2569 = vpop.permute.xlu0 %2568
        %2572 = vset.pattern.permute.xlu0 0
        %2573 = vperm.xlu0 %2572, %v2405
        %v2574 = vpop.permute.xlu0 %2573
        %2577 = vset.pattern.permute.xlu0 0
        %2578 = vperm.xlu0 %2577, %v2406
        %v2579 = vpop.permute.xlu0 %2578
        %2582 = vset.pattern.permute.xlu0 0
        %2583 = vperm.xlu0 %2582, %v2407
        %v2584 = vpop.permute.xlu0 %2583
        %2587 = vset.pattern.permute.xlu0 0
        %2588 = vperm.xlu0 %2587, %v2408
        %v2589 = vpop.permute.xlu0 %2588
        %v2592 = vlaneseq
        %v2593 = vshrl.u32 %v2592, 7
        %v2594 = vsub.s32 0, %v2593
        %v2595 = vrot.slane %v2410, %v2594
        %v2597 = vmul.f32 %v2414, %v2595
        %v2598 = vmul.f32 %v2419, %v2595
        %v2599 = vmul.f32 %v2424, %v2595
        %v2600 = vmul.f32 %v2429, %v2595
        %v2601 = vmul.f32 %v2434, %v2595
        %v2602 = vmul.f32 %v2439, %v2595
        %v2603 = vmul.f32 %v2444, %v2595
        %v2604 = vmul.f32 %v2449, %v2595
        %v2605 = vmul.f32 %v2454, %v2595
        %v2606 = vmul.f32 %v2459, %v2595
        %v2607 = vmul.f32 %v2464, %v2595
        %v2608 = vmul.f32 %v2469, %v2595
        %v2609 = vmul.f32 %v2474, %v2595
        %v2610 = vmul.f32 %v2479, %v2595
        %v2611 = vmul.f32 %v2484, %v2595
        %v2612 = vmul.f32 %v2489, %v2595
        %v2613 = vmul.f32 %v2494, %v2595
        %v2614 = vmul.f32 %v2499, %v2595
        %v2615 = vmul.f32 %v2504, %v2595
        %v2616 = vmul.f32 %v2509, %v2595
        %v2617 = vmul.f32 %v2514, %v2595
        %v2618 = vmul.f32 %v2519, %v2595
        %v2619 = vmul.f32 %v2524, %v2595
        %v2620 = vmul.f32 %v2529, %v2595
        %v2621 = vmul.f32 %v2534, %v2595
        %v2622 = vmul.f32 %v2539, %v2595
        %v2623 = vmul.f32 %v2544, %v2595
        %v2624 = vmul.f32 %v2549, %v2595
        %v2625 = vmul.f32 %v2554, %v2595
        %v2626 = vmul.f32 %v2559, %v2595
        %v2627 = vmul.f32 %v2564, %v2595
        %v2628 = vmul.f32 %v2569, %v2595
        %v2629 = vmul.f32 %v2574, %v2595
        %v2630 = vmul.f32 %v2579, %v2595
        %v2631 = vmul.f32 %v2584, %v2595
        %v2632 = vmul.f32 %v2589, %v2595
        %v2633 = vadd.f32 %v2337, %v2597
        %v2634 = vadd.f32 %v2338, %v2598
        %v2635 = vadd.f32 %v2339, %v2599
        %v2636 = vadd.f32 %v2340, %v2600
        %v2637 = vadd.f32 %v2341, %v2601
        %v2638 = vadd.f32 %v2342, %v2602
        %v2639 = vadd.f32 %v2343, %v2603
        %v2640 = vadd.f32 %v2344, %v2604
        %v2641 = vadd.f32 %v2345, %v2605
        %v2642 = vadd.f32 %v2346, %v2606
        %v2643 = vadd.f32 %v2347, %v2607
        %v2644 = vadd.f32 %v2348, %v2608
        %v2645 = vadd.f32 %v2349, %v2609
        %v2646 = vadd.f32 %v2350, %v2610
        %v2647 = vadd.f32 %v2351, %v2611
        %v2648 = vadd.f32 %v2352, %v2612
        %v2649 = vadd.f32 %v2353, %v2613
        %v2650 = vadd.f32 %v2354, %v2614
        %v2651 = vadd.f32 %v2355, %v2615
        %v2652 = vadd.f32 %v2356, %v2616
        %v2653 = vadd.f32 %v2357, %v2617
        %v2654 = vadd.f32 %v2358, %v2618
        %v2655 = vadd.f32 %v2359, %v2619
        %v2656 = vadd.f32 %v2360, %v2620
        %v2657 = vadd.f32 %v2361, %v2621
        %v2658 = vadd.f32 %v2362, %v2622
        %v2659 = vadd.f32 %v2363, %v2623
        %v2660 = vadd.f32 %v2364, %v2624
        %v2661 = vadd.f32 %v2365, %v2625
        %v2662 = vadd.f32 %v2366, %v2626
        %v2663 = vadd.f32 %v2367, %v2627
        %v2664 = vadd.f32 %v2368, %v2628
        %v2665 = vadd.f32 %v2369, %v2629
        %v2666 = vadd.f32 %v2370, %v2630
        %v2667 = vadd.f32 %v2371, %v2631
        %v2668 = vadd.f32 %v2372, %v2632
        %v2669 = vld [vmem:[%s633 + $0x25] sm:$0xff]
        %v2670 = vld [vmem:[%s633 + $0x2d] sm:$0xff]
        %v2671 = vld [vmem:[%s633 + $0x35] sm:$0xff]
        %v2672 = vld [vmem:[%s633 + $0x3d] sm:$0xff]
        %v2673 = vld [vmem:[%s633 + $0x45] sm:$0xff]
        %v2674 = vld [vmem:[%s633 + $0x4d] sm:$0xff]
        %v2675 = vld [vmem:[%s633 + $0x55] sm:$0xff]
        %v2676 = vld [vmem:[%s633 + $0x5d] sm:$0xff]
        %v2677 = vld [vmem:[%s633 + $0x65] sm:$0xff]
        %v2678 = vld [vmem:[%s633 + $0x6d] sm:$0xff]
        %v2679 = vld [vmem:[%s633 + $0x75] sm:$0xff]
        %v2680 = vld [vmem:[%s633 + $0x7d] sm:$0xff]
        %v2681 = vld [vmem:[%s633 + $0x85] sm:$0xff]
        %v2682 = vld [vmem:[%s633 + $0x8d] sm:$0xff]
        %v2683 = vld [vmem:[%s633 + $0x95] sm:$0xff]
        %v2684 = vld [vmem:[%s633 + $0x9d] sm:$0xff]
        %v2685 = vld [vmem:[%s633 + $0xa5] sm:$0xff]
        %v2686 = vld [vmem:[%s633 + $0xad] sm:$0xff]
        %v2687 = vld [vmem:[%s633 + $0xb5] sm:$0xff]
        %v2688 = vld [vmem:[%s633 + $0xbd] sm:$0xff]
        %v2689 = vld [vmem:[%s633 + $0xc5] sm:$0xff]
        %v2690 = vld [vmem:[%s633 + $0xcd] sm:$0xff]
        %v2691 = vld [vmem:[%s633 + $0xd5] sm:$0xff]
        %v2692 = vld [vmem:[%s633 + $0xdd] sm:$0xff]
        %v2693 = vld [vmem:[%s633 + $0xe5] sm:$0xff]
        %v2694 = vld [vmem:[%s633 + $0xed] sm:$0xff]
        %v2695 = vld [vmem:[%s633 + $0xf5] sm:$0xff]
        %v2696 = vld [vmem:[%s633 + $0xfd] sm:$0xff]
        %v2697 = vld [vmem:[%s633 + $0x105] sm:$0xff]
        %v2698 = vld [vmem:[%s633 + $0x10d] sm:$0xff]
        %v2699 = vld [vmem:[%s633 + $0x115] sm:$0xff]
        %v2700 = vld [vmem:[%s633 + $0x11d] sm:$0xff]
        %v2701 = vld [vmem:[%s633 + $0x125] sm:$0xff]
        %v2702 = vld [vmem:[%s633 + $0x12d] sm:$0xff]
        %v2703 = vld [vmem:[%s633 + $0x135] sm:$0xff]
        %v2704 = vld [vmem:[%s633 + $0x13d] sm:$0xff]
        %s2705 = scalar_lea.vmem [#allocation5], 7
        %v2706 = vld [vmem:[%s2705] sm:$0x1]
        %2708 = vset.pattern.permute.xlu0 0
        %2709 = vperm.xlu0 %2708, %v2669
        %v2710 = vpop.permute.xlu0 %2709
        %2713 = vset.pattern.permute.xlu0 0
        %2714 = vperm.xlu0 %2713, %v2670
        %v2715 = vpop.permute.xlu0 %2714
        %2718 = vset.pattern.permute.xlu0 0
        %2719 = vperm.xlu0 %2718, %v2671
        %v2720 = vpop.permute.xlu0 %2719
        %2723 = vset.pattern.permute.xlu0 0
        %2724 = vperm.xlu0 %2723, %v2672
        %v2725 = vpop.permute.xlu0 %2724
        %2728 = vset.pattern.permute.xlu0 0
        %2729 = vperm.xlu0 %2728, %v2673
        %v2730 = vpop.permute.xlu0 %2729
        %2733 = vset.pattern.permute.xlu0 0
        %2734 = vperm.xlu0 %2733, %v2674
        %v2735 = vpop.permute.xlu0 %2734
        %2738 = vset.pattern.permute.xlu0 0
        %2739 = vperm.xlu0 %2738, %v2675
        %v2740 = vpop.permute.xlu0 %2739
        %2743 = vset.pattern.permute.xlu0 0
        %2744 = vperm.xlu0 %2743, %v2676
        %v2745 = vpop.permute.xlu0 %2744
        %2748 = vset.pattern.permute.xlu0 0
        %2749 = vperm.xlu0 %2748, %v2677
        %v2750 = vpop.permute.xlu0 %2749
        %2753 = vset.pattern.permute.xlu0 0
        %2754 = vperm.xlu0 %2753, %v2678
        %v2755 = vpop.permute.xlu0 %2754
        %2758 = vset.pattern.permute.xlu0 0
        %2759 = vperm.xlu0 %2758, %v2679
        %v2760 = vpop.permute.xlu0 %2759
        %2763 = vset.pattern.permute.xlu0 0
        %2764 = vperm.xlu0 %2763, %v2680
        %v2765 = vpop.permute.xlu0 %2764
        %2768 = vset.pattern.permute.xlu0 0
        %2769 = vperm.xlu0 %2768, %v2681
        %v2770 = vpop.permute.xlu0 %2769
        %2773 = vset.pattern.permute.xlu0 0
        %2774 = vperm.xlu0 %2773, %v2682
        %v2775 = vpop.permute.xlu0 %2774
        %2778 = vset.pattern.permute.xlu0 0
        %2779 = vperm.xlu0 %2778, %v2683
        %v2780 = vpop.permute.xlu0 %2779
        %2783 = vset.pattern.permute.xlu0 0
        %2784 = vperm.xlu0 %2783, %v2684
        %v2785 = vpop.permute.xlu0 %2784
        %2788 = vset.pattern.permute.xlu0 0
        %2789 = vperm.xlu0 %2788, %v2685
        %v2790 = vpop.permute.xlu0 %2789
        %2793 = vset.pattern.permute.xlu0 0
        %2794 = vperm.xlu0 %2793, %v2686
        %v2795 = vpop.permute.xlu0 %2794
        %2798 = vset.pattern.permute.xlu0 0
        %2799 = vperm.xlu0 %2798, %v2687
        %v2800 = vpop.permute.xlu0 %2799
        %2803 = vset.pattern.permute.xlu0 0
        %2804 = vperm.xlu0 %2803, %v2688
        %v2805 = vpop.permute.xlu0 %2804
        %2808 = vset.pattern.permute.xlu0 0
        %2809 = vperm.xlu0 %2808, %v2689
        %v2810 = vpop.permute.xlu0 %2809
        %2813 = vset.pattern.permute.xlu0 0
        %2814 = vperm.xlu0 %2813, %v2690
        %v2815 = vpop.permute.xlu0 %2814
        %2818 = vset.pattern.permute.xlu0 0
        %2819 = vperm.xlu0 %2818, %v2691
        %v2820 = vpop.permute.xlu0 %2819
        %2823 = vset.pattern.permute.xlu0 0
        %2824 = vperm.xlu0 %2823, %v2692
        %v2825 = vpop.permute.xlu0 %2824
        %2828 = vset.pattern.permute.xlu0 0
        %2829 = vperm.xlu0 %2828, %v2693
        %v2830 = vpop.permute.xlu0 %2829
        %2833 = vset.pattern.permute.xlu0 0
        %2834 = vperm.xlu0 %2833, %v2694
        %v2835 = vpop.permute.xlu0 %2834
        %2838 = vset.pattern.permute.xlu0 0
        %2839 = vperm.xlu0 %2838, %v2695
        %v2840 = vpop.permute.xlu0 %2839
        %2843 = vset.pattern.permute.xlu0 0
        %2844 = vperm.xlu0 %2843, %v2696
        %v2845 = vpop.permute.xlu0 %2844
        %2848 = vset.pattern.permute.xlu0 0
        %2849 = vperm.xlu0 %2848, %v2697
        %v2850 = vpop.permute.xlu0 %2849
        %2853 = vset.pattern.permute.xlu0 0
        %2854 = vperm.xlu0 %2853, %v2698
        %v2855 = vpop.permute.xlu0 %2854
        %2858 = vset.pattern.permute.xlu0 0
        %2859 = vperm.xlu0 %2858, %v2699
        %v2860 = vpop.permute.xlu0 %2859
        %2863 = vset.pattern.permute.xlu0 0
        %2864 = vperm.xlu0 %2863, %v2700
        %v2865 = vpop.permute.xlu0 %2864
        %2868 = vset.pattern.permute.xlu0 0
        %2869 = vperm.xlu0 %2868, %v2701
        %v2870 = vpop.permute.xlu0 %2869
        %2873 = vset.pattern.permute.xlu0 0
        %2874 = vperm.xlu0 %2873, %v2702
        %v2875 = vpop.permute.xlu0 %2874
        %2878 = vset.pattern.permute.xlu0 0
        %2879 = vperm.xlu0 %2878, %v2703
        %v2880 = vpop.permute.xlu0 %2879
        %2883 = vset.pattern.permute.xlu0 0
        %2884 = vperm.xlu0 %2883, %v2704
        %v2885 = vpop.permute.xlu0 %2884
        %v2888 = vlaneseq
        %v2889 = vshrl.u32 %v2888, 7
        %v2890 = vsub.s32 0, %v2889
        %v2891 = vrot.slane %v2706, %v2890
        %v2893 = vmul.f32 %v2710, %v2891
        %v2894 = vmul.f32 %v2715, %v2891
        %v2895 = vmul.f32 %v2720, %v2891
        %v2896 = vmul.f32 %v2725, %v2891
        %v2897 = vmul.f32 %v2730, %v2891
        %v2898 = vmul.f32 %v2735, %v2891
        %v2899 = vmul.f32 %v2740, %v2891
        %v2900 = vmul.f32 %v2745, %v2891
        %v2901 = vmul.f32 %v2750, %v2891
        %v2902 = vmul.f32 %v2755, %v2891
        %v2903 = vmul.f32 %v2760, %v2891
        %v2904 = vmul.f32 %v2765, %v2891
        %v2905 = vmul.f32 %v2770, %v2891
        %v2906 = vmul.f32 %v2775, %v2891
        %v2907 = vmul.f32 %v2780, %v2891
        %v2908 = vmul.f32 %v2785, %v2891
        %v2909 = vmul.f32 %v2790, %v2891
        %v2910 = vmul.f32 %v2795, %v2891
        %v2911 = vmul.f32 %v2800, %v2891
        %v2912 = vmul.f32 %v2805, %v2891
        %v2913 = vmul.f32 %v2810, %v2891
        %v2914 = vmul.f32 %v2815, %v2891
        %v2915 = vmul.f32 %v2820, %v2891
        %v2916 = vmul.f32 %v2825, %v2891
        %v2917 = vmul.f32 %v2830, %v2891
        %v2918 = vmul.f32 %v2835, %v2891
        %v2919 = vmul.f32 %v2840, %v2891
        %v2920 = vmul.f32 %v2845, %v2891
        %v2921 = vmul.f32 %v2850, %v2891
        %v2922 = vmul.f32 %v2855, %v2891
        %v2923 = vmul.f32 %v2860, %v2891
        %v2924 = vmul.f32 %v2865, %v2891
        %v2925 = vmul.f32 %v2870, %v2891
        %v2926 = vmul.f32 %v2875, %v2891
        %v2927 = vmul.f32 %v2880, %v2891
        %v2928 = vmul.f32 %v2885, %v2891
        %v2929 = vadd.f32 %v2633, %v2893
        %v2930 = vadd.f32 %v2634, %v2894
        %v2931 = vadd.f32 %v2635, %v2895
        %v2932 = vadd.f32 %v2636, %v2896
        %v2933 = vadd.f32 %v2637, %v2897
        %v2934 = vadd.f32 %v2638, %v2898
        %v2935 = vadd.f32 %v2639, %v2899
        %v2936 = vadd.f32 %v2640, %v2900
        %v2937 = vadd.f32 %v2641, %v2901
        %v2938 = vadd.f32 %v2642, %v2902
        %v2939 = vadd.f32 %v2643, %v2903
        %v2940 = vadd.f32 %v2644, %v2904
        %v2941 = vadd.f32 %v2645, %v2905
        %v2942 = vadd.f32 %v2646, %v2906
        %v2943 = vadd.f32 %v2647, %v2907
        %v2944 = vadd.f32 %v2648, %v2908
        %v2945 = vadd.f32 %v2649, %v2909
        %v2946 = vadd.f32 %v2650, %v2910
        %v2947 = vadd.f32 %v2651, %v2911
        %v2948 = vadd.f32 %v2652, %v2912
        %v2949 = vadd.f32 %v2653, %v2913
        %v2950 = vadd.f32 %v2654, %v2914
        %v2951 = vadd.f32 %v2655, %v2915
        %v2952 = vadd.f32 %v2656, %v2916
        %v2953 = vadd.f32 %v2657, %v2917
        %v2954 = vadd.f32 %v2658, %v2918
        %v2955 = vadd.f32 %v2659, %v2919
        %v2956 = vadd.f32 %v2660, %v2920
        %v2957 = vadd.f32 %v2661, %v2921
        %v2958 = vadd.f32 %v2662, %v2922
        %v2959 = vadd.f32 %v2663, %v2923
        %v2960 = vadd.f32 %v2664, %v2924
        %v2961 = vadd.f32 %v2665, %v2925
        %v2962 = vadd.f32 %v2666, %v2926
        %v2963 = vadd.f32 %v2667, %v2927
        %v2964 = vadd.f32 %v2668, %v2928
        %v2965 = vld [vmem:[%s633 + $0x26] sm:$0xff]
        %v2966 = vld [vmem:[%s633 + $0x2e] sm:$0xff]
        %v2967 = vld [vmem:[%s633 + $0x36] sm:$0xff]
        %v2968 = vld [vmem:[%s633 + $0x3e] sm:$0xff]
        %v2969 = vld [vmem:[%s633 + $0x46] sm:$0xff]
        %v2970 = vld [vmem:[%s633 + $0x4e] sm:$0xff]
        %v2971 = vld [vmem:[%s633 + $0x56] sm:$0xff]
        %v2972 = vld [vmem:[%s633 + $0x5e] sm:$0xff]
        %v2973 = vld [vmem:[%s633 + $0x66] sm:$0xff]
        %v2974 = vld [vmem:[%s633 + $0x6e] sm:$0xff]
        %v2975 = vld [vmem:[%s633 + $0x76] sm:$0xff]
        %v2976 = vld [vmem:[%s633 + $0x7e] sm:$0xff]
        %v2977 = vld [vmem:[%s633 + $0x86] sm:$0xff]
        %v2978 = vld [vmem:[%s633 + $0x8e] sm:$0xff]
        %v2979 = vld [vmem:[%s633 + $0x96] sm:$0xff]
        %v2980 = vld [vmem:[%s633 + $0x9e] sm:$0xff]
        %v2981 = vld [vmem:[%s633 + $0xa6] sm:$0xff]
        %v2982 = vld [vmem:[%s633 + $0xae] sm:$0xff]
        %v2983 = vld [vmem:[%s633 + $0xb6] sm:$0xff]
        %v2984 = vld [vmem:[%s633 + $0xbe] sm:$0xff]
        %v2985 = vld [vmem:[%s633 + $0xc6] sm:$0xff]
        %v2986 = vld [vmem:[%s633 + $0xce] sm:$0xff]
        %v2987 = vld [vmem:[%s633 + $0xd6] sm:$0xff]
        %v2988 = vld [vmem:[%s633 + $0xde] sm:$0xff]
        %v2989 = vld [vmem:[%s633 + $0xe6] sm:$0xff]
        %v2990 = vld [vmem:[%s633 + $0xee] sm:$0xff]
        %v2991 = vld [vmem:[%s633 + $0xf6] sm:$0xff]
        %v2992 = vld [vmem:[%s633 + $0xfe] sm:$0xff]
        %v2993 = vld [vmem:[%s633 + $0x106] sm:$0xff]
        %v2994 = vld [vmem:[%s633 + $0x10e] sm:$0xff]
        %v2995 = vld [vmem:[%s633 + $0x116] sm:$0xff]
        %v2996 = vld [vmem:[%s633 + $0x11e] sm:$0xff]
        %v2997 = vld [vmem:[%s633 + $0x126] sm:$0xff]
        %v2998 = vld [vmem:[%s633 + $0x12e] sm:$0xff]
        %v2999 = vld [vmem:[%s633 + $0x136] sm:$0xff]
        %v3000 = vld [vmem:[%s633 + $0x13e] sm:$0xff]
        %s3001 = scalar_lea.vmem [#allocation5], 8
        %v3002 = vld [vmem:[%s3001] sm:$0x1]
        %3004 = vset.pattern.permute.xlu0 0
        %3005 = vperm.xlu0 %3004, %v2965
        %v3006 = vpop.permute.xlu0 %3005
        %3009 = vset.pattern.permute.xlu0 0
        %3010 = vperm.xlu0 %3009, %v2966
        %v3011 = vpop.permute.xlu0 %3010
        %3014 = vset.pattern.permute.xlu0 0
        %3015 = vperm.xlu0 %3014, %v2967
        %v3016 = vpop.permute.xlu0 %3015
        %3019 = vset.pattern.permute.xlu0 0
        %3020 = vperm.xlu0 %3019, %v2968
        %v3021 = vpop.permute.xlu0 %3020
        %3024 = vset.pattern.permute.xlu0 0
        %3025 = vperm.xlu0 %3024, %v2969
        %v3026 = vpop.permute.xlu0 %3025
        %3029 = vset.pattern.permute.xlu0 0
        %3030 = vperm.xlu0 %3029, %v2970
        %v3031 = vpop.permute.xlu0 %3030
        %3034 = vset.pattern.permute.xlu0 0
        %3035 = vperm.xlu0 %3034, %v2971
        %v3036 = vpop.permute.xlu0 %3035
        %3039 = vset.pattern.permute.xlu0 0
        %3040 = vperm.xlu0 %3039, %v2972
        %v3041 = vpop.permute.xlu0 %3040
        %3044 = vset.pattern.permute.xlu0 0
        %3045 = vperm.xlu0 %3044, %v2973
        %v3046 = vpop.permute.xlu0 %3045
        %3049 = vset.pattern.permute.xlu0 0
        %3050 = vperm.xlu0 %3049, %v2974
        %v3051 = vpop.permute.xlu0 %3050
        %3054 = vset.pattern.permute.xlu0 0
        %3055 = vperm.xlu0 %3054, %v2975
        %v3056 = vpop.permute.xlu0 %3055
        %3059 = vset.pattern.permute.xlu0 0
        %3060 = vperm.xlu0 %3059, %v2976
        %v3061 = vpop.permute.xlu0 %3060
        %3064 = vset.pattern.permute.xlu0 0
        %3065 = vperm.xlu0 %3064, %v2977
        %v3066 = vpop.permute.xlu0 %3065
        %3069 = vset.pattern.permute.xlu0 0
        %3070 = vperm.xlu0 %3069, %v2978
        %v3071 = vpop.permute.xlu0 %3070
        %3074 = vset.pattern.permute.xlu0 0
        %3075 = vperm.xlu0 %3074, %v2979
        %v3076 = vpop.permute.xlu0 %3075
        %3079 = vset.pattern.permute.xlu0 0
        %3080 = vperm.xlu0 %3079, %v2980
        %v3081 = vpop.permute.xlu0 %3080
        %3084 = vset.pattern.permute.xlu0 0
        %3085 = vperm.xlu0 %3084, %v2981
        %v3086 = vpop.permute.xlu0 %3085
        %3089 = vset.pattern.permute.xlu0 0
        %3090 = vperm.xlu0 %3089, %v2982
        %v3091 = vpop.permute.xlu0 %3090
        %3094 = vset.pattern.permute.xlu0 0
        %3095 = vperm.xlu0 %3094, %v2983
        %v3096 = vpop.permute.xlu0 %3095
        %3099 = vset.pattern.permute.xlu0 0
        %3100 = vperm.xlu0 %3099, %v2984
        %v3101 = vpop.permute.xlu0 %3100
        %3104 = vset.pattern.permute.xlu0 0
        %3105 = vperm.xlu0 %3104, %v2985
        %v3106 = vpop.permute.xlu0 %3105
        %3109 = vset.pattern.permute.xlu0 0
        %3110 = vperm.xlu0 %3109, %v2986
        %v3111 = vpop.permute.xlu0 %3110
        %3114 = vset.pattern.permute.xlu0 0
        %3115 = vperm.xlu0 %3114, %v2987
        %v3116 = vpop.permute.xlu0 %3115
        %3119 = vset.pattern.permute.xlu0 0
        %3120 = vperm.xlu0 %3119, %v2988
        %v3121 = vpop.permute.xlu0 %3120
        %3124 = vset.pattern.permute.xlu0 0
        %3125 = vperm.xlu0 %3124, %v2989
        %v3126 = vpop.permute.xlu0 %3125
        %3129 = vset.pattern.permute.xlu0 0
        %3130 = vperm.xlu0 %3129, %v2990
        %v3131 = vpop.permute.xlu0 %3130
        %3134 = vset.pattern.permute.xlu0 0
        %3135 = vperm.xlu0 %3134, %v2991
        %v3136 = vpop.permute.xlu0 %3135
        %3139 = vset.pattern.permute.xlu0 0
        %3140 = vperm.xlu0 %3139, %v2992
        %v3141 = vpop.permute.xlu0 %3140
        %3144 = vset.pattern.permute.xlu0 0
        %3145 = vperm.xlu0 %3144, %v2993
        %v3146 = vpop.permute.xlu0 %3145
        %3149 = vset.pattern.permute.xlu0 0
        %3150 = vperm.xlu0 %3149, %v2994
        %v3151 = vpop.permute.xlu0 %3150
        %3154 = vset.pattern.permute.xlu0 0
        %3155 = vperm.xlu0 %3154, %v2995
        %v3156 = vpop.permute.xlu0 %3155
        %3159 = vset.pattern.permute.xlu0 0
        %3160 = vperm.xlu0 %3159, %v2996
        %v3161 = vpop.permute.xlu0 %3160
        %3164 = vset.pattern.permute.xlu0 0
        %3165 = vperm.xlu0 %3164, %v2997
        %v3166 = vpop.permute.xlu0 %3165
        %3169 = vset.pattern.permute.xlu0 0
        %3170 = vperm.xlu0 %3169, %v2998
        %v3171 = vpop.permute.xlu0 %3170
        %3174 = vset.pattern.permute.xlu0 0
        %3175 = vperm.xlu0 %3174, %v2999
        %v3176 = vpop.permute.xlu0 %3175
        %3179 = vset.pattern.permute.xlu0 0
        %3180 = vperm.xlu0 %3179, %v3000
        %v3181 = vpop.permute.xlu0 %3180
        %v3184 = vlaneseq
        %v3185 = vshrl.u32 %v3184, 7
        %v3186 = vsub.s32 0, %v3185
        %v3187 = vrot.slane %v3002, %v3186
        %v3189 = vmul.f32 %v3006, %v3187
        %v3190 = vmul.f32 %v3011, %v3187
        %v3191 = vmul.f32 %v3016, %v3187
        %v3192 = vmul.f32 %v3021, %v3187
        %v3193 = vmul.f32 %v3026, %v3187
        %v3194 = vmul.f32 %v3031, %v3187
        %v3195 = vmul.f32 %v3036, %v3187
        %v3196 = vmul.f32 %v3041, %v3187
        %v3197 = vmul.f32 %v3046, %v3187
        %v3198 = vmul.f32 %v3051, %v3187
        %v3199 = vmul.f32 %v3056, %v3187
        %v3200 = vmul.f32 %v3061, %v3187
        %v3201 = vmul.f32 %v3066, %v3187
        %v3202 = vmul.f32 %v3071, %v3187
        %v3203 = vmul.f32 %v3076, %v3187
        %v3204 = vmul.f32 %v3081, %v3187
        %v3205 = vmul.f32 %v3086, %v3187
        %v3206 = vmul.f32 %v3091, %v3187
        %v3207 = vmul.f32 %v3096, %v3187
        %v3208 = vmul.f32 %v3101, %v3187
        %v3209 = vmul.f32 %v3106, %v3187
        %v3210 = vmul.f32 %v3111, %v3187
        %v3211 = vmul.f32 %v3116, %v3187
        %v3212 = vmul.f32 %v3121, %v3187
        %v3213 = vmul.f32 %v3126, %v3187
        %v3214 = vmul.f32 %v3131, %v3187
        %v3215 = vmul.f32 %v3136, %v3187
        %v3216 = vmul.f32 %v3141, %v3187
        %v3217 = vmul.f32 %v3146, %v3187
        %v3218 = vmul.f32 %v3151, %v3187
        %v3219 = vmul.f32 %v3156, %v3187
        %v3220 = vmul.f32 %v3161, %v3187
        %v3221 = vmul.f32 %v3166, %v3187
        %v3222 = vmul.f32 %v3171, %v3187
        %v3223 = vmul.f32 %v3176, %v3187
        %v3224 = vmul.f32 %v3181, %v3187
        %v3225 = vadd.f32 %v2929, %v3189
        %v3226 = vadd.f32 %v2930, %v3190
        %v3227 = vadd.f32 %v2931, %v3191
        %v3228 = vadd.f32 %v2932, %v3192
        %v3229 = vadd.f32 %v2933, %v3193
        %v3230 = vadd.f32 %v2934, %v3194
        %v3231 = vadd.f32 %v2935, %v3195
        %v3232 = vadd.f32 %v2936, %v3196
        %v3233 = vadd.f32 %v2937, %v3197
        %v3234 = vadd.f32 %v2938, %v3198
        %v3235 = vadd.f32 %v2939, %v3199
        %v3236 = vadd.f32 %v2940, %v3200
        %v3237 = vadd.f32 %v2941, %v3201
        %v3238 = vadd.f32 %v2942, %v3202
        %v3239 = vadd.f32 %v2943, %v3203
        %v3240 = vadd.f32 %v2944, %v3204
        %v3241 = vadd.f32 %v2945, %v3205
        %v3242 = vadd.f32 %v2946, %v3206
        %v3243 = vadd.f32 %v2947, %v3207
        %v3244 = vadd.f32 %v2948, %v3208
        %v3245 = vadd.f32 %v2949, %v3209
        %v3246 = vadd.f32 %v2950, %v3210
        %v3247 = vadd.f32 %v2951, %v3211
        %v3248 = vadd.f32 %v2952, %v3212
        %v3249 = vadd.f32 %v2953, %v3213
        %v3250 = vadd.f32 %v2954, %v3214
        %v3251 = vadd.f32 %v2955, %v3215
        %v3252 = vadd.f32 %v2956, %v3216
        %v3253 = vadd.f32 %v2957, %v3217
        %v3254 = vadd.f32 %v2958, %v3218
        %v3255 = vadd.f32 %v2959, %v3219
        %v3256 = vadd.f32 %v2960, %v3220
        %v3257 = vadd.f32 %v2961, %v3221
        %v3258 = vadd.f32 %v2962, %v3222
        %v3259 = vadd.f32 %v2963, %v3223
        %v3260 = vadd.f32 %v2964, %v3224
        %v3261 = vld [vmem:[#allocation8] sm:$0x1]
        %v3263 = vlaneseq
        %v3264 = vshrl.u32 %v3263, 7
        %v3265 = vsub.s32 0, %v3264
        %v3266 = vrot.slane %v3261, %v3265
        %v3268 = vadd.f32 %v3225, %v3266
        %v3269 = vadd.f32 %v3226, %v3266
        %v3270 = vadd.f32 %v3227, %v3266
        %v3271 = vadd.f32 %v3228, %v3266
        %v3272 = vadd.f32 %v3229, %v3266
        %v3273 = vadd.f32 %v3230, %v3266
        %v3274 = vadd.f32 %v3231, %v3266
        %v3275 = vadd.f32 %v3232, %v3266
        %v3276 = vadd.f32 %v3233, %v3266
        %v3277 = vadd.f32 %v3234, %v3266
        %v3278 = vadd.f32 %v3235, %v3266
        %v3279 = vadd.f32 %v3236, %v3266
        %v3280 = vadd.f32 %v3237, %v3266
        %v3281 = vadd.f32 %v3238, %v3266
        %v3282 = vadd.f32 %v3239, %v3266
        %v3283 = vadd.f32 %v3240, %v3266
        %v3284 = vadd.f32 %v3241, %v3266
        %v3285 = vadd.f32 %v3242, %v3266
        %v3286 = vadd.f32 %v3243, %v3266
        %v3287 = vadd.f32 %v3244, %v3266
        %v3288 = vadd.f32 %v3245, %v3266
        %v3289 = vadd.f32 %v3246, %v3266
        %v3290 = vadd.f32 %v3247, %v3266
        %v3291 = vadd.f32 %v3248, %v3266
        %v3292 = vadd.f32 %v3249, %v3266
        %v3293 = vadd.f32 %v3250, %v3266
        %v3294 = vadd.f32 %v3251, %v3266
        %v3295 = vadd.f32 %v3252, %v3266
        %v3296 = vadd.f32 %v3253, %v3266
        %v3297 = vadd.f32 %v3254, %v3266
        %v3298 = vadd.f32 %v3255, %v3266
        %v3299 = vadd.f32 %v3256, %v3266
        %v3300 = vadd.f32 %v3257, %v3266
        %v3301 = vadd.f32 %v3258, %v3266
        %v3302 = vadd.f32 %v3259, %v3266
        %v3303 = vadd.f32 %v3260, %v3266
        %vm3304 = vcmp.gt.f32.partialorder %v3268, 0.0
        %vm3305 = vcmp.gt.f32.partialorder %v3269, 0.0
        %vm3306 = vcmp.gt.f32.partialorder %v3270, 0.0
        %vm3307 = vcmp.gt.f32.partialorder %v3271, 0.0
        %vm3308 = vcmp.gt.f32.partialorder %v3272, 0.0
        %vm3309 = vcmp.gt.f32.partialorder %v3273, 0.0
        %vm3310 = vcmp.gt.f32.partialorder %v3274, 0.0
        %vm3311 = vcmp.gt.f32.partialorder %v3275, 0.0
        %vm3312 = vcmp.gt.f32.partialorder %v3276, 0.0
        %vm3313 = vcmp.gt.f32.partialorder %v3277, 0.0
        %vm3314 = vcmp.gt.f32.partialorder %v3278, 0.0
        %vm3315 = vcmp.gt.f32.partialorder %v3279, 0.0
        %vm3316 = vcmp.gt.f32.partialorder %v3280, 0.0
        %vm3317 = vcmp.gt.f32.partialorder %v3281, 0.0
        %vm3318 = vcmp.gt.f32.partialorder %v3282, 0.0
        %vm3319 = vcmp.gt.f32.partialorder %v3283, 0.0
        %vm3320 = vcmp.gt.f32.partialorder %v3284, 0.0
        %vm3321 = vcmp.gt.f32.partialorder %v3285, 0.0
        %vm3322 = vcmp.gt.f32.partialorder %v3286, 0.0
        %vm3323 = vcmp.gt.f32.partialorder %v3287, 0.0
        %vm3324 = vcmp.gt.f32.partialorder %v3288, 0.0
        %vm3325 = vcmp.gt.f32.partialorder %v3289, 0.0
        %vm3326 = vcmp.gt.f32.partialorder %v3290, 0.0
        %vm3327 = vcmp.gt.f32.partialorder %v3291, 0.0
        %vm3328 = vcmp.gt.f32.partialorder %v3292, 0.0
        %vm3329 = vcmp.gt.f32.partialorder %v3293, 0.0
        %vm3330 = vcmp.gt.f32.partialorder %v3294, 0.0
        %vm3331 = vcmp.gt.f32.partialorder %v3295, 0.0
        %vm3332 = vcmp.gt.f32.partialorder %v3296, 0.0
        %vm3333 = vcmp.gt.f32.partialorder %v3297, 0.0
        %vm3334 = vcmp.gt.f32.partialorder %v3298, 0.0
        %vm3335 = vcmp.gt.f32.partialorder %v3299, 0.0
        %vm3336 = vcmp.gt.f32.partialorder %v3300, 0.0
        %vm3337 = vcmp.gt.f32.partialorder %v3301, 0.0
        %vm3338 = vcmp.gt.f32.partialorder %v3302, 0.0
        %vm3339 = vcmp.gt.f32.partialorder %v3303, 0.0
        %v3340 = vld [vmem:[#allocation10] sm:$0x1]
        %v3342 = vlaneseq
        %v3343 = vshrl.u32 %v3342, 7
        %v3344 = vsub.s32 0, %v3343
        %v3345 = vrot.slane %v3340, %v3344
        %v3347 = vmul.f32 %v3345, %v3268
        %v3348 = vmul.f32 %v3345, %v3269
        %v3349 = vmul.f32 %v3345, %v3270
        %v3350 = vmul.f32 %v3345, %v3271
        %v3351 = vmul.f32 %v3345, %v3272
        %v3352 = vmul.f32 %v3345, %v3273
        %v3353 = vmul.f32 %v3345, %v3274
        %v3354 = vmul.f32 %v3345, %v3275
        %v3355 = vmul.f32 %v3345, %v3276
        %v3356 = vmul.f32 %v3345, %v3277
        %v3357 = vmul.f32 %v3345, %v3278
        %v3358 = vmul.f32 %v3345, %v3279
        %v3359 = vmul.f32 %v3345, %v3280
        %v3360 = vmul.f32 %v3345, %v3281
        %v3361 = vmul.f32 %v3345, %v3282
        %v3362 = vmul.f32 %v3345, %v3283
        %v3363 = vmul.f32 %v3345, %v3284
        %v3364 = vmul.f32 %v3345, %v3285
        %v3365 = vmul.f32 %v3345, %v3286
        %v3366 = vmul.f32 %v3345, %v3287
        %v3367 = vmul.f32 %v3345, %v3288
        %v3368 = vmul.f32 %v3345, %v3289
        %v3369 = vmul.f32 %v3345, %v3290
        %v3370 = vmul.f32 %v3345, %v3291
        %v3371 = vmul.f32 %v3345, %v3292
        %v3372 = vmul.f32 %v3345, %v3293
        %v3373 = vmul.f32 %v3345, %v3294
        %v3374 = vmul.f32 %v3345, %v3295
        %v3375 = vmul.f32 %v3345, %v3296
        %v3376 = vmul.f32 %v3345, %v3297
        %v3377 = vmul.f32 %v3345, %v3298
        %v3378 = vmul.f32 %v3345, %v3299
        %v3379 = vmul.f32 %v3345, %v3300
        %v3380 = vmul.f32 %v3345, %v3301
        %v3381 = vmul.f32 %v3345, %v3302
        %v3382 = vmul.f32 %v3345, %v3303
        %v3383 = vsel %vm3304, %v3268, %v3347
        %v3384 = vsel %vm3305, %v3269, %v3348
        %v3385 = vsel %vm3306, %v3270, %v3349
        %v3386 = vsel %vm3307, %v3271, %v3350
        %v3387 = vsel %vm3308, %v3272, %v3351
        %v3388 = vsel %vm3309, %v3273, %v3352
        %v3389 = vsel %vm3310, %v3274, %v3353
        %v3390 = vsel %vm3311, %v3275, %v3354
        %v3391 = vsel %vm3312, %v3276, %v3355
        %v3392 = vsel %vm3313, %v3277, %v3356
        %v3393 = vsel %vm3314, %v3278, %v3357
        %v3394 = vsel %vm3315, %v3279, %v3358
        %v3395 = vsel %vm3316, %v3280, %v3359
        %v3396 = vsel %vm3317, %v3281, %v3360
        %v3397 = vsel %vm3318, %v3282, %v3361
        %v3398 = vsel %vm3319, %v3283, %v3362
        %v3399 = vsel %vm3320, %v3284, %v3363
        %v3400 = vsel %vm3321, %v3285, %v3364
        %v3401 = vsel %vm3322, %v3286, %v3365
        %v3402 = vsel %vm3323, %v3287, %v3366
        %v3403 = vsel %vm3324, %v3288, %v3367
        %v3404 = vsel %vm3325, %v3289, %v3368
        %v3405 = vsel %vm3326, %v3290, %v3369
        %v3406 = vsel %vm3327, %v3291, %v3370
        %v3407 = vsel %vm3328, %v3292, %v3371
        %v3408 = vsel %vm3329, %v3293, %v3372
        %v3409 = vsel %vm3330, %v3294, %v3373
        %v3410 = vsel %vm3331, %v3295, %v3374
        %v3411 = vsel %vm3332, %v3296, %v3375
        %v3412 = vsel %vm3333, %v3297, %v3376
        %v3413 = vsel %vm3334, %v3298, %v3377
        %v3414 = vsel %vm3335, %v3299, %v3378
        %v3415 = vsel %vm3336, %v3300, %v3379
        %v3416 = vsel %vm3337, %v3301, %v3380
        %v3417 = vsel %vm3338, %v3302, %v3381
        %v3418 = vsel %vm3339, %v3303, %v3382
        %vm3419 = vcmask 261120
        %3420 = vst.msk [vmem:[#allocation2] sm:$0xff] %vm3419, 0.0
        %3421 = vst.msk [vmem:[#allocation2 + $0x8] sm:$0xff] %vm3419, 0.0
        %3422 = vst.msk [vmem:[#allocation2 + $0x10] sm:$0xff] %vm3419, 0.0
        %3423 = vst.msk [vmem:[#allocation2 + $0x18] sm:$0xff] %vm3419, 0.0
        %3424 = vst.msk [vmem:[#allocation2 + $0x20] sm:$0xff] %vm3419, 0.0
        %3425 = vst.msk [vmem:[#allocation2 + $0x28] sm:$0xff] %vm3419, 0.0
        %3426 = vst.msk [vmem:[#allocation2 + $0x30] sm:$0xff] %vm3419, 0.0
        %3427 = vst.msk [vmem:[#allocation2 + $0x38] sm:$0xff] %vm3419, 0.0
        %3428 = vst.msk [vmem:[#allocation2 + $0x40] sm:$0xff] %vm3419, 0.0
        %3429 = vst.msk [vmem:[#allocation2 + $0x48] sm:$0xff] %vm3419, 0.0
        %3430 = vst.msk [vmem:[#allocation2 + $0x50] sm:$0xff] %vm3419, 0.0
        %3431 = vst.msk [vmem:[#allocation2 + $0x58] sm:$0xff] %vm3419, 0.0
        %3432 = vst.msk [vmem:[#allocation2 + $0x60] sm:$0xff] %vm3419, 0.0
        %3433 = vst.msk [vmem:[#allocation2 + $0x68] sm:$0xff] %vm3419, 0.0
        %3434 = vst.msk [vmem:[#allocation2 + $0x70] sm:$0xff] %vm3419, 0.0
        %3435 = vst.msk [vmem:[#allocation2 + $0x78] sm:$0xff] %vm3419, 0.0
        %3436 = vst.msk [vmem:[#allocation2 + $0x80] sm:$0xff] %vm3419, 0.0
        %3437 = vst.msk [vmem:[#allocation2 + $0x88] sm:$0xff] %vm3419, 0.0
        %3438 = vst.msk [vmem:[#allocation2 + $0x90] sm:$0xff] %vm3419, 0.0
        %3439 = vst.msk [vmem:[#allocation2 + $0x98] sm:$0xff] %vm3419, 0.0
        %3440 = vst.msk [vmem:[#allocation2 + $0xa0] sm:$0xff] %vm3419, 0.0
        %3441 = vst.msk [vmem:[#allocation2 + $0xa8] sm:$0xff] %vm3419, 0.0
        %3442 = vst.msk [vmem:[#allocation2 + $0xb0] sm:$0xff] %vm3419, 0.0
        %3443 = vst.msk [vmem:[#allocation2 + $0xb8] sm:$0xff] %vm3419, 0.0
        %3444 = vst.msk [vmem:[#allocation2 + $0xc0] sm:$0xff] %vm3419, 0.0
        %3445 = vst.msk [vmem:[#allocation2 + $0xc8] sm:$0xff] %vm3419, 0.0
        %3446 = vst.msk [vmem:[#allocation2 + $0xd0] sm:$0xff] %vm3419, 0.0
        %3447 = vst.msk [vmem:[#allocation2 + $0xd8] sm:$0xff] %vm3419, 0.0
        %3448 = vst.msk [vmem:[#allocation2 + $0xe0] sm:$0xff] %vm3419, 0.0
        %3449 = vst.msk [vmem:[#allocation2 + $0xe8] sm:$0xff] %vm3419, 0.0
        %3450 = vst.msk [vmem:[#allocation2 + $0xf0] sm:$0xff] %vm3419, 0.0
        %3451 = vst.msk [vmem:[#allocation2 + $0xf8] sm:$0xff] %vm3419, 0.0
        %3452 = vst.msk [vmem:[#allocation2 + $0x100] sm:$0xff] %vm3419, 0.0
        %3453 = vst.msk [vmem:[#allocation2 + $0x108] sm:$0xff] %vm3419, 0.0
        %3454 = vst.msk [vmem:[#allocation2 + $0x110] sm:$0xff] %vm3419, 0.0
        %3455 = vst.msk [vmem:[#allocation2 + $0x118] sm:$0xff] %vm3419, 0.0
        %3456 = vst.msk [vmem:[#allocation2 + $0x120] sm:$0xff] %vm3419, 0.0
        %3457 = vst.msk [vmem:[#allocation2 + $0x128] sm:$0xff] %vm3419, 0.0
        %3458 = vst.msk [vmem:[#allocation2 + $0x130] sm:$0xff] %vm3419, 0.0
        %3459 = vst.msk [vmem:[#allocation2 + $0x138] sm:$0xff] %vm3419, 0.0
        %3460 = vst.msk [vmem:[#allocation2 + $0x140] sm:$0xff] %vm3419, 0.0
        %3461 = vst.msk [vmem:[#allocation2 + $0x148] sm:$0xff] %vm3419, 0.0
        %3462 = vst.msk [vmem:[#allocation2 + $0x13] sm:$0xff] %vm3419, %v3383
        %3463 = vst.msk [vmem:[#allocation2 + $0x1b] sm:$0xff] %vm3419, %v3384
        %vm3464 = vcmask 261122
        %3465 = vst.msk [vmem:[#allocation2 + $0x23] sm:$0xfc] %vm3464, %v3385
        %3466 = vst.msk [vmem:[#allocation2 + $0x2b] sm:$0xff] %vm3419, %v3386
        %vm3467 = vcmask 254976
        %3468 = vst.msk [vmem:[#allocation2 + $0x33] sm:$0x3] %vm3467, %v3387
        %vm3469 = vcmask 261124
        %3470 = vst.msk [vmem:[#allocation2 + $0x33] sm:$0xf0] %vm3469, %v3387
        %3471 = vst.msk [vmem:[#allocation2 + $0x3b] sm:$0xff] %vm3419, %v3388
        %vm3472 = vcmask 257024
        %3473 = vst.msk [vmem:[#allocation2 + $0x43] sm:$0xf] %vm3472, %v3389
        %vm3474 = vcmask 261126
        %3475 = vst.msk [vmem:[#allocation2 + $0x43] sm:$0xc0] %vm3474, %v3389
        %3476 = vst.msk [vmem:[#allocation2 + $0x4b] sm:$0xff] %vm3419, %v3390
        %vm3477 = vcmask 259072
        %3478 = vst.msk [vmem:[#allocation2 + $0x53] sm:$0x3f] %vm3477, %v3391
        %3479 = vst.msk [vmem:[#allocation2 + $0x5b] sm:$0xff] %vm3419, %v3392
        %3480 = vst.msk [vmem:[#allocation2 + $0x63] sm:$0xff] %vm3419, %v3393
        %3481 = vst.msk [vmem:[#allocation2 + $0x6b] sm:$0xfc] %vm3464, %v3394
        %3482 = vst.msk [vmem:[#allocation2 + $0x73] sm:$0xff] %vm3419, %v3395
        %3483 = vst.msk [vmem:[#allocation2 + $0x7b] sm:$0x3] %vm3467, %v3396
        %3484 = vst.msk [vmem:[#allocation2 + $0x7b] sm:$0xf0] %vm3469, %v3396
        %3485 = vst.msk [vmem:[#allocation2 + $0x83] sm:$0xff] %vm3419, %v3397
        %3486 = vst.msk [vmem:[#allocation2 + $0x8b] sm:$0xf] %vm3472, %v3398
        %3487 = vst.msk [vmem:[#allocation2 + $0x8b] sm:$0xc0] %vm3474, %v3398
        %3488 = vst.msk [vmem:[#allocation2 + $0x93] sm:$0xff] %vm3419, %v3399
        %3489 = vst.msk [vmem:[#allocation2 + $0x9b] sm:$0x3f] %vm3477, %v3400
        %3490 = vst.msk [vmem:[#allocation2 + $0xa3] sm:$0xff] %vm3419, %v3401
        %3491 = vst.msk [vmem:[#allocation2 + $0xab] sm:$0xff] %vm3419, %v3402
        %3492 = vst.msk [vmem:[#allocation2 + $0xb3] sm:$0xfc] %vm3464, %v3403
        %3493 = vst.msk [vmem:[#allocation2 + $0xbb] sm:$0xff] %vm3419, %v3404
        %3494 = vst.msk [vmem:[#allocation2 + $0xc3] sm:$0x3] %vm3467, %v3405
        %3495 = vst.msk [vmem:[#allocation2 + $0xc3] sm:$0xf0] %vm3469, %v3405
        %3496 = vst.msk [vmem:[#allocation2 + $0xcb] sm:$0xff] %vm3419, %v3406
        %3497 = vst.msk [vmem:[#allocation2 + $0xd3] sm:$0xf] %vm3472, %v3407
        %3498 = vst.msk [vmem:[#allocation2 + $0xd3] sm:$0xc0] %vm3474, %v3407
        %3499 = vst.msk [vmem:[#allocation2 + $0xdb] sm:$0xff] %vm3419, %v3408
        %3500 = vst.msk [vmem:[#allocation2 + $0xe3] sm:$0x3f] %vm3477, %v3409
        %3501 = vst.msk [vmem:[#allocation2 + $0xeb] sm:$0xff] %vm3419, %v3410
        %3502 = vst.msk [vmem:[#allocation2 + $0xf3] sm:$0xff] %vm3419, %v3411
        %3503 = vst.msk [vmem:[#allocation2 + $0xfb] sm:$0xfc] %vm3464, %v3412
        %3504 = vst.msk [vmem:[#allocation2 + $0x103] sm:$0xff] %vm3419, %v3413
        %3505 = vst.msk [vmem:[#allocation2 + $0x10b] sm:$0x3] %vm3467, %v3414
        %3506 = vst.msk [vmem:[#allocation2 + $0x10b] sm:$0xf0] %vm3469, %v3414
        %3507 = vst.msk [vmem:[#allocation2 + $0x113] sm:$0xff] %vm3419, %v3415
        %3508 = vst.msk [vmem:[#allocation2 + $0x11b] sm:$0xf] %vm3472, %v3416
        %3509 = vst.msk [vmem:[#allocation2 + $0x11b] sm:$0xc0] %vm3474, %v3416
        %3510 = vst.msk [vmem:[#allocation2 + $0x123] sm:$0xff] %vm3419, %v3417
        %3511 = vst.msk [vmem:[#allocation2 + $0x12b] sm:$0x3f] %vm3477, %v3418
        %v3512 = vld [vmem:[#allocation2] ss:$2 sm:$0xff]
        %s3513 = scalar_lea.vmem [#allocation2], 16
        %v3514 = vld [vmem:[%s3513] ss:$2 sm:$0xff]
        %s3515 = scalar_lea.vmem [#allocation2], 32
        %v3516 = vld [vmem:[%s3515] ss:$2 sm:$0xff]
        %s3517 = scalar_lea.vmem [#allocation2], 48
        %v3518 = vld [vmem:[%s3517] ss:$2 sm:$0xff]
        %s3519 = scalar_lea.vmem [#allocation2], 64
        %v3520 = vld [vmem:[%s3519] ss:$2 sm:$0xff]
        %s3521 = scalar_lea.vmem [#allocation2], 80
        %v3522 = vld [vmem:[%s3521] ss:$2 sm:$0xff]
        %s3523 = scalar_lea.vmem [#allocation2], 96
        %v3524 = vld [vmem:[%s3523] ss:$2 sm:$0xff]
        %s3525 = scalar_lea.vmem [#allocation2], 112
        %v3526 = vld [vmem:[%s3525] ss:$2 sm:$0xff]
        %s3527 = scalar_lea.vmem [#allocation2], 128
        %v3528 = vld [vmem:[%s3527] ss:$2 sm:$0xff]
        %s3529 = scalar_lea.vmem [#allocation2], 144
        %v3530 = vld [vmem:[%s3529] ss:$2 sm:$0xff]
        %s3531 = scalar_lea.vmem [#allocation2], 160
        %v3532 = vld [vmem:[%s3531] ss:$2 sm:$0xff]
        %s3533 = scalar_lea.vmem [#allocation2], 176
        %v3534 = vld [vmem:[%s3533] ss:$2 sm:$0xff]
        %s3535 = scalar_lea.vmem [#allocation2], 192
        %v3536 = vld [vmem:[%s3535] ss:$2 sm:$0xff]
        %s3537 = scalar_lea.vmem [#allocation2], 208
        %v3538 = vld [vmem:[%s3537] ss:$2 sm:$0xff]
        %s3539 = scalar_lea.vmem [#allocation2], 224
        %v3540 = vld [vmem:[%s3539] ss:$2 sm:$0xff]
        %s3541 = scalar_lea.vmem [#allocation2], 240
        %v3542 = vld [vmem:[%s3541] ss:$2 sm:$0xff]
        %s3543 = scalar_lea.vmem [#allocation2], 256
        %v3544 = vld [vmem:[%s3543] ss:$2 sm:$0xff]
        %s3545 = scalar_lea.vmem [#allocation2], 272
        %v3546 = vld [vmem:[%s3545] ss:$2 sm:$0xff]
        %v3547 = vld [vmem:[%s4] sm:$0xff]
        %v3548 = vld [vmem:[%s4 + $0x8] sm:$0xff]
        %v3549 = vld [vmem:[%s4 + $0x10] sm:$0xff]
        %v3550 = vld [vmem:[%s4 + $0x18] sm:$0xff]
        %s3551 = scalar_lea.vmem [#allocation2], 1
        %v3552 = vld [vmem:[%s3551] ss:$2 sm:$0xff]
        %s3553 = scalar_lea.vmem [#allocation2], 17
        %v3554 = vld [vmem:[%s3553] ss:$2 sm:$0xff]
        %s3555 = scalar_lea.vmem [#allocation2], 33
        %v3556 = vld [vmem:[%s3555] ss:$2 sm:$0xff]
        %s3557 = scalar_lea.vmem [#allocation2], 49
        %v3558 = vld [vmem:[%s3557] ss:$2 sm:$0xff]
        %s3559 = scalar_lea.vmem [#allocation2], 65
        %v3560 = vld [vmem:[%s3559] ss:$2 sm:$0xff]
        %s3561 = scalar_lea.vmem [#allocation2], 81
        %v3562 = vld [vmem:[%s3561] ss:$2 sm:$0xff]
        %s3563 = scalar_lea.vmem [#allocation2], 97
        %v3564 = vld [vmem:[%s3563] ss:$2 sm:$0xff]
        %s3565 = scalar_lea.vmem [#allocation2], 113
        %v3566 = vld [vmem:[%s3565] ss:$2 sm:$0xff]
        %s3567 = scalar_lea.vmem [#allocation2], 129
        %v3568 = vld [vmem:[%s3567] ss:$2 sm:$0xff]
        %s3569 = scalar_lea.vmem [#allocation2], 145
        %v3570 = vld [vmem:[%s3569] ss:$2 sm:$0xff]
        %s3571 = scalar_lea.vmem [#allocation2], 161
        %v3572 = vld [vmem:[%s3571] ss:$2 sm:$0xff]
        %s3573 = scalar_lea.vmem [#allocation2], 177
        %v3574 = vld [vmem:[%s3573] ss:$2 sm:$0xff]
        %s3575 = scalar_lea.vmem [#allocation2], 193
        %v3576 = vld [vmem:[%s3575] ss:$2 sm:$0xff]
        %s3577 = scalar_lea.vmem [#allocation2], 209
        %v3578 = vld [vmem:[%s3577] ss:$2 sm:$0xff]
        %s3579 = scalar_lea.vmem [#allocation2], 225
        %v3580 = vld [vmem:[%s3579] ss:$2 sm:$0xff]
        %s3581 = scalar_lea.vmem [#allocation2], 241
        %v3582 = vld [vmem:[%s3581] ss:$2 sm:$0xff]
        %s3583 = scalar_lea.vmem [#allocation2], 257
        %v3584 = vld [vmem:[%s3583] ss:$2 sm:$0xff]
        %s3585 = scalar_lea.vmem [#allocation2], 273
        %v3586 = vld [vmem:[%s3585] ss:$2 sm:$0xff]
        %s3587 = scalar_lea.vmem %s4, 32
        %v3588 = vld [vmem:[%s3587] sm:$0xff]
        %v3589 = vld [vmem:[%s3587 + $0x8] sm:$0xff]
        %v3590 = vld [vmem:[%s3587 + $0x10] sm:$0xff]
        %v3591 = vld [vmem:[%s3587 + $0x18] sm:$0xff]
        %v3593 = vsel %vm3419, %v3552, 0
        %v3596 = vsel %vm3419, %v3554, 0
        %v3599 = vsel %vm3419, %v3556, 0
        %v3602 = vsel %vm3419, %v3558, 0
        %v3605 = vsel %vm3419, %v3560, 0
        %v3608 = vsel %vm3419, %v3562, 0
        %v3611 = vsel %vm3419, %v3564, 0
        %v3614 = vsel %vm3419, %v3566, 0
        %v3617 = vsel %vm3419, %v3568, 0
        %v3620 = vsel %vm3419, %v3570, 0
        %v3623 = vsel %vm3419, %v3572, 0
        %v3626 = vsel %vm3419, %v3574, 0
        %v3629 = vsel %vm3419, %v3576, 0
        %v3632 = vsel %vm3419, %v3578, 0
        %v3635 = vsel %vm3419, %v3580, 0
        %v3638 = vsel %vm3419, %v3582, 0
        %v3641 = vsel %vm3419, %v3584, 0
        %v3644 = vsel %vm3419, %v3586, 0
        %3646 = vmatprep.subr.mxu0 0.0
        %3647 = vmatpush1.msra.mxu0 %v3588
        %3648 = vmatprep.subr.mxu0 0.0
        %3649 = vmatpush1.msra.mxu0 %v3589
        %3650 = vmatprep.subr.mxu0 0.0
        %3651 = vmatpush1.msra.mxu0 %v3590
        %3652 = vmatprep.subr.mxu0 0.0
        %3653 = vmatpush1.msra.mxu0 %v3591
        %3654 = vmatprep.subr.mxu0 0.0
        %3655 = vmatpush1.msra.mxu0 0.0
        %3656 = vmatprep.subr.mxu0 0.0
        %3657 = vmatpush1.msra.mxu0 0.0
        %3658 = vmatprep.subr.mxu0 0.0
        %3659 = vmatpush1.msra.mxu0 0.0
        %3660 = vmatprep.subr.mxu0 0.0
        %3661 = vmatpush1.msra.mxu0 0.0
        %3662 = vmatprep.subr.mxu0 0.0
        %3663 = vmatpush1.msra.mxu0 0.0
        %3664 = vmatprep.subr.mxu0 0.0
        %3665 = vmatpush1.msra.mxu0 0.0
        %3666 = vmatprep.subr.mxu0 0.0
        %3667 = vmatpush1.msra.mxu0 0.0
        %3668 = vmatprep.subr.mxu0 0.0
        %3669 = vmatpush1.msra.mxu0 0.0
        %3670 = vmatprep.subr.mxu0 0.0
        %3671 = vmatpush1.msra.mxu0 0.0
        %3672 = vmatprep.subr.mxu0 0.0
        %3673 = vmatpush1.msra.mxu0 0.0
        %3674 = vmatprep.subr.mxu0 0.0
        %3675 = vmatpush1.msra.mxu0 0.0
        %3676 = vmatprep.subr.mxu0 0.0
        %3677 = vmatpush1.msra.mxu0 0.0
        %3678 = vmatprep.subr.mxu0 0.0
        %3679 = vmatpush1.msra.mxu0 0.0
        %3680 = vmatprep.subr.mxu0 0.0
        %3681 = vmatpush1.msra.mxu0 0.0
        %3682 = vmatprep.subr.mxu0 0.0
        %3683 = vmatpush1.msra.mxu0 0.0
        %3684 = vmatprep.subr.mxu0 0.0
        %3685 = vmatpush1.msra.mxu0 0.0
        %3686 = vmatprep.subr.mxu0 0.0
        %3687 = vmatpush1.msra.mxu0 0.0
        %3688 = vmatprep.subr.mxu0 0.0
        %3689 = vmatpush1.msra.mxu0 0.0
        %3690 = vmatprep.subr.mxu0 0.0
        %3691 = vmatpush1.msra.mxu0 0.0
        %3692 = vmatprep.subr.mxu0 0.0
        %3693 = vmatpush1.msra.mxu0 0.0
        %3694 = vmatprep.subr.mxu0 0.0
        %3695 = vmatpush1.msra.mxu0 0.0
        %3696 = vmatprep.subr.mxu0 0.0
        %3697 = vmatpush1.msra.mxu0 0.0
        %3698 = vmatprep.subr.mxu0 0.0
        %3699 = vmatpush1.msra.mxu0 0.0
        %3700 = vmatprep.subr.mxu0 0.0
        %3701 = vmatpush1.msra.mxu0 0.0
        %3702 = vmatprep.subr.mxu0 0.0
        %3703 = vmatpush1.msra.mxu0 0.0
        %3704 = vmatprep.subr.mxu0 0.0
        %3705 = vmatpush1.msra.mxu0 0.0
        %3706 = vmatprep.subr.mxu0 0.0
        %3707 = vmatpush1.msra.mxu0 0.0
        %3708 = vmatprep.subr.mxu0 0.0
        %3709 = vmatpush1.msra.mxu0 0.0
        %3710 = vmatprep.mubr.f32.mxu0 0.0
        %3711 = vmatmul.mubr.f32.gmra.mrb[0].mxu0 %v3593
        %v3712 = vpop.f32.mrb[0].mxu0
        %v3713 = vadd.f32 0.0, %v3712
        %v3714 = vpop.f32.mrb[0].mxu0
        %3715 = vmatprep.mubr.f32.mxu0 0.0
        %3716 = vmatmul.mubr.f32.gmra.mrb[0].mxu0 %v3596
        %v3717 = vpop.f32.mrb[0].mxu0
        %v3718 = vpop.f32.mrb[0].mxu0
        %3719 = vmatprep.mubr.f32.mxu0 0.0
        %3720 = vmatmul.mubr.f32.gmra.mrb[0].mxu0 %v3599
        %v3721 = vpop.f32.mrb[0].mxu0
        %v3722 = vadd.f32 0.0, %v3721
        %v3723 = vpop.f32.mrb[0].mxu0
        %3724 = vmatprep.mubr.f32.mxu0 0.0
        %3725 = vmatmul.mubr.f32.gmra.mrb[0].mxu0 %v3602
        %v3726 = vpop.f32.mrb[0].mxu0
        %v3727 = vadd.f32 0.0, %v3726
        %v3728 = vpop.f32.mrb[0].mxu0
        %3729 = vmatprep.mubr.f32.mxu0 0.0
        %3730 = vmatmul.mubr.f32.gmra.mrb[0].mxu0 %v3605
        %v3731 = vpop.f32.mrb[0].mxu0
        %v3732 = vadd.f32 0.0, %v3731
        %v3733 = vpop.f32.mrb[0].mxu0
        %3734 = vmatprep.mubr.f32.mxu0 0.0
        %3735 = vmatmul.mubr.f32.gmra.mrb[0].mxu0 %v3608
        %v3736 = vpop.f32.mrb[0].mxu0
        %v3737 = vadd.f32 0.0, %v3736
        %v3738 = vpop.f32.mrb[0].mxu0
        %3739 = vmatprep.mubr.f32.mxu0 0.0
        %3740 = vmatmul.mubr.f32.gmra.mrb[0].mxu0 %v3611
        %v3741 = vpop.f32.mrb[0].mxu0
        %v3742 = vadd.f32 0.0, %v3741
        %v3743 = vpop.f32.mrb[0].mxu0
        %3744 = vmatprep.mubr.f32.mxu0 0.0
        %3745 = vmatmul.mubr.f32.gmra.mrb[0].mxu0 %v3614
        %v3746 = vpop.f32.mrb[0].mxu0
        %v3747 = vadd.f32 0.0, %v3746
        %v3748 = vpop.f32.mrb[0].mxu0
        %3749 = vmatprep.mubr.f32.mxu0 0.0
        %3750 = vmatmul.mubr.f32.gmra.mrb[0].mxu0 %v3617
        %v3751 = vpop.f32.mrb[0].mxu0
        %v3752 = vpop.f32.mrb[0].mxu0
        %3753 = vmatprep.mubr.f32.mxu0 0.0
        %3754 = vmatmul.mubr.f32.gmra.mrb[0].mxu0 %v3620
        %v3755 = vpop.f32.mrb[0].mxu0
        %v3756 = vadd.f32 0.0, %v3755
        %v3757 = vpop.f32.mrb[0].mxu0
        %3758 = vmatprep.mubr.f32.mxu0 0.0
        %3759 = vmatmul.mubr.f32.gmra.mrb[0].mxu0 %v3623
        %v3760 = vpop.f32.mrb[0].mxu0
        %v3761 = vpop.f32.mrb[0].mxu0
        %3762 = vmatprep.mubr.f32.mxu0 0.0
        %3763 = vmatmul.mubr.f32.gmra.mrb[0].mxu0 %v3626
        %v3764 = vpop.f32.mrb[0].mxu0
        %v3765 = vadd.f32 0.0, %v3764
        %v3766 = vpop.f32.mrb[0].mxu0
        %3767 = vmatprep.mubr.f32.mxu0 0.0
        %3768 = vmatmul.mubr.f32.gmra.mrb[0].mxu0 %v3629
        %v3769 = vpop.f32.mrb[0].mxu0
        %v3770 = vadd.f32 0.0, %v3769
        %v3771 = vpop.f32.mrb[0].mxu0
        %3772 = vmatprep.mubr.f32.mxu0 0.0
        %3773 = vmatmul.mubr.f32.gmra.mrb[0].mxu0 %v3632
        %v3774 = vpop.f32.mrb[0].mxu0
        %v3775 = vadd.f32 0.0, %v3774
        %v3776 = vpop.f32.mrb[0].mxu0
        %3777 = vmatprep.mubr.f32.mxu0 0.0
        %3778 = vmatmul.mubr.f32.gmra.mrb[0].mxu0 %v3635
        %v3779 = vpop.f32.mrb[0].mxu0
        %v3780 = vadd.f32 0.0, %v3779
        %v3781 = vpop.f32.mrb[0].mxu0
        %3782 = vmatprep.mubr.f32.mxu0 0.0
        %3783 = vmatmul.mubr.f32.gmra.mrb[0].mxu0 %v3638
        %v3784 = vpop.f32.mrb[0].mxu0
        %v3785 = vadd.f32 0.0, %v3784
        %v3786 = vpop.f32.mrb[0].mxu0
        %3787 = vmatprep.mubr.f32.mxu0 0.0
        %3788 = vmatmul.mubr.f32.gmra.mrb[0].mxu0 %v3641
        %v3789 = vpop.f32.mrb[0].mxu0
        %v3790 = vadd.f32 0.0, %v3789
        %v3791 = vpop.f32.mrb[0].mxu0
        %3792 = vmatprep.mubr.f32.mxu0 0.0
        %3793 = vmatmul.mubr.f32.gmra.mrb[0].mxu0 %v3644
        %v3794 = vpop.f32.mrb[0].mxu0
        %v3795 = vpop.f32.mrb[0].mxu0
        %3796 = vdwg.mxu0
        %v3798 = vsel %vm3419, %v3512, 0
        %v3801 = vsel %vm3419, %v3514, 0
        %v3804 = vsel %vm3419, %v3516, 0
        %v3807 = vsel %vm3419, %v3518, 0
        %v3810 = vsel %vm3419, %v3520, 0
        %v3813 = vsel %vm3419, %v3522, 0
        %v3816 = vsel %vm3419, %v3524, 0
        %v3819 = vsel %vm3419, %v3526, 0
        %v3822 = vsel %vm3419, %v3528, 0
        %v3825 = vsel %vm3419, %v3530, 0
        %v3828 = vsel %vm3419, %v3532, 0
        %v3831 = vsel %vm3419, %v3534, 0
        %v3834 = vsel %vm3419, %v3536, 0
        %v3837 = vsel %vm3419, %v3538, 0
        %v3840 = vsel %vm3419, %v3540, 0
        %v3843 = vsel %vm3419, %v3542, 0
        %v3846 = vsel %vm3419, %v3544, 0
        %v3849 = vsel %vm3419, %v3546, 0
        %3851 = vmatprep.subr.mxu0 0.0
        %3852 = vmatpush1.msra.mxu0 %v3547
        %3853 = vmatprep.subr.mxu0 0.0
        %3854 = vmatpush1.msra.mxu0 %v3548
        %3855 = vmatprep.subr.mxu0 0.0
        %3856 = vmatpush1.msra.mxu0 %v3549
        %3857 = vmatprep.subr.mxu0 0.0
        %3858 = vmatpush1.msra.mxu0 %v3550
        %3859 = vmatprep.subr.mxu0 0.0
        %3860 = vmatpush1.msra.mxu0 0.0
        %3861 = vmatprep.subr.mxu0 0.0
        %3862 = vmatpush1.msra.mxu0 0.0
        %3863 = vmatprep.subr.mxu0 0.0
        %3864 = vmatpush1.msra.mxu0 0.0
        %3865 = vmatprep.subr.mxu0 0.0
        %3866 = vmatpush1.msra.mxu0 0.0
        %3867 = vmatprep.subr.mxu0 0.0
        %3868 = vmatpush1.msra.mxu0 0.0
        %3869 = vmatprep.subr.mxu0 0.0
        %3870 = vmatpush1.msra.mxu0 0.0
        %3871 = vmatprep.subr.mxu0 0.0
        %3872 = vmatpush1.msra.mxu0 0.0
        %3873 = vmatprep.subr.mxu0 0.0
        %3874 = vmatpush1.msra.mxu0 0.0
        %3875 = vmatprep.subr.mxu0 0.0
        %3876 = vmatpush1.msra.mxu0 0.0
        %3877 = vmatprep.subr.mxu0 0.0
        %3878 = vmatpush1.msra.mxu0 0.0
        %3879 = vmatprep.subr.mxu0 0.0
        %3880 = vmatpush1.msra.mxu0 0.0
        %3881 = vmatprep.subr.mxu0 0.0
        %3882 = vmatpush1.msra.mxu0 0.0
        %3883 = vmatprep.subr.mxu0 0.0
        %3884 = vmatpush1.msra.mxu0 0.0
        %3885 = vmatprep.subr.mxu0 0.0
        %3886 = vmatpush1.msra.mxu0 0.0
        %3887 = vmatprep.subr.mxu0 0.0
        %3888 = vmatpush1.msra.mxu0 0.0
        %3889 = vmatprep.subr.mxu0 0.0
        %3890 = vmatpush1.msra.mxu0 0.0
        %3891 = vmatprep.subr.mxu0 0.0
        %3892 = vmatpush1.msra.mxu0 0.0
        %3893 = vmatprep.subr.mxu0 0.0
        %3894 = vmatpush1.msra.mxu0 0.0
        %3895 = vmatprep.subr.mxu0 0.0
        %3896 = vmatpush1.msra.mxu0 0.0
        %3897 = vmatprep.subr.mxu0 0.0
        %3898 = vmatpush1.msra.mxu0 0.0
        %3899 = vmatprep.subr.mxu0 0.0
        %3900 = vmatpush1.msra.mxu0 0.0
        %3901 = vmatprep.subr.mxu0 0.0
        %3902 = vmatpush1.msra.mxu0 0.0
        %3903 = vmatprep.subr.mxu0 0.0
        %3904 = vmatpush1.msra.mxu0 0.0
        %3905 = vmatprep.subr.mxu0 0.0
        %3906 = vmatpush1.msra.mxu0 0.0
        %3907 = vmatprep.subr.mxu0 0.0
        %3908 = vmatpush1.msra.mxu0 0.0
        %3909 = vmatprep.subr.mxu0 0.0
        %3910 = vmatpush1.msra.mxu0 0.0
        %3911 = vmatprep.subr.mxu0 0.0
        %3912 = vmatpush1.msra.mxu0 0.0
        %3913 = vmatprep.subr.mxu0 0.0
        %3914 = vmatpush1.msra.mxu0 0.0
        %3915 = vmatprep.mubr.f32.mxu0 0.0
        %3916 = vmatmul.mubr.f32.gmra.mrb[0].mxu0 %v3798
        %v3917 = vpop.f32.mrb[0].mxu0
        %v3918 = vadd.f32 %v3713, %v3917
        %v3919 = vpop.f32.mrb[0].mxu0
        %3920 = vmatprep.mubr.f32.mxu0 0.0
        %3921 = vmatmul.mubr.f32.gmra.mrb[0].mxu0 %v3801
        %v3922 = vpop.f32.mrb[0].mxu0
        %v3923 = vpop.f32.mrb[0].mxu0
        %3924 = vmatprep.mubr.f32.mxu0 0.0
        %3925 = vmatmul.mubr.f32.gmra.mrb[0].mxu0 %v3804
        %v3926 = vpop.f32.mrb[0].mxu0
        %v3927 = vadd.f32 %v3722, %v3926
        %v3928 = vpop.f32.mrb[0].mxu0
        %3929 = vmatprep.mubr.f32.mxu0 0.0
        %3930 = vmatmul.mubr.f32.gmra.mrb[0].mxu0 %v3807
        %v3931 = vpop.f32.mrb[0].mxu0
        %v3932 = vadd.f32 %v3727, %v3931
        %v3933 = vpop.f32.mrb[0].mxu0
        %3934 = vmatprep.mubr.f32.mxu0 0.0
        %3935 = vmatmul.mubr.f32.gmra.mrb[0].mxu0 %v3810
        %v3936 = vpop.f32.mrb[0].mxu0
        %v3937 = vadd.f32 %v3732, %v3936
        %v3938 = vpop.f32.mrb[0].mxu0
        %3939 = vmatprep.mubr.f32.mxu0 0.0
        %3940 = vmatmul.mubr.f32.gmra.mrb[0].mxu0 %v3813
        %v3941 = vpop.f32.mrb[0].mxu0
        %v3942 = vadd.f32 %v3737, %v3941
        %v3943 = vpop.f32.mrb[0].mxu0
        %3944 = vmatprep.mubr.f32.mxu0 0.0
        %3945 = vmatmul.mubr.f32.gmra.mrb[0].mxu0 %v3816
        %v3946 = vpop.f32.mrb[0].mxu0
        %v3947 = vadd.f32 %v3742, %v3946
        %v3948 = vpop.f32.mrb[0].mxu0
        %3949 = vmatprep.mubr.f32.mxu0 0.0
        %3950 = vmatmul.mubr.f32.gmra.mrb[0].mxu0 %v3819
        %v3951 = vpop.f32.mrb[0].mxu0
        %v3952 = vadd.f32 %v3747, %v3951
        %v3953 = vpop.f32.mrb[0].mxu0
        %3954 = vmatprep.mubr.f32.mxu0 0.0
        %3955 = vmatmul.mubr.f32.gmra.mrb[0].mxu0 %v3822
        %v3956 = vpop.f32.mrb[0].mxu0
        %v3957 = vpop.f32.mrb[0].mxu0
        %3958 = vmatprep.mubr.f32.mxu0 0.0
        %3959 = vmatmul.mubr.f32.gmra.mrb[0].mxu0 %v3825
        %v3960 = vpop.f32.mrb[0].mxu0
        %v3961 = vadd.f32 %v3756, %v3960
        %v3962 = vpop.f32.mrb[0].mxu0
        %3963 = vmatprep.mubr.f32.mxu0 0.0
        %3964 = vmatmul.mubr.f32.gmra.mrb[0].mxu0 %v3828
        %v3965 = vpop.f32.mrb[0].mxu0
        %v3966 = vpop.f32.mrb[0].mxu0
        %3967 = vmatprep.mubr.f32.mxu0 0.0
        %3968 = vmatmul.mubr.f32.gmra.mrb[0].mxu0 %v3831
        %v3969 = vpop.f32.mrb[0].mxu0
        %v3970 = vadd.f32 %v3765, %v3969
        %v3971 = vpop.f32.mrb[0].mxu0
        %3972 = vmatprep.mubr.f32.mxu0 0.0
        %3973 = vmatmul.mubr.f32.gmra.mrb[0].mxu0 %v3834
        %v3974 = vpop.f32.mrb[0].mxu0
        %v3975 = vadd.f32 %v3770, %v3974
        %v3976 = vpop.f32.mrb[0].mxu0
        %3977 = vmatprep.mubr.f32.mxu0 0.0
        %3978 = vmatmul.mubr.f32.gmra.mrb[0].mxu0 %v3837
        %v3979 = vpop.f32.mrb[0].mxu0
        %v3980 = vadd.f32 %v3775, %v3979
        %v3981 = vpop.f32.mrb[0].mxu0
        %3982 = vmatprep.mubr.f32.mxu0 0.0
        %3983 = vmatmul.mubr.f32.gmra.mrb[0].mxu0 %v3840
        %v3984 = vpop.f32.mrb[0].mxu0
        %v3985 = vadd.f32 %v3780, %v3984
        %v3986 = vpop.f32.mrb[0].mxu0
        %3987 = vmatprep.mubr.f32.mxu0 0.0
        %3988 = vmatmul.mubr.f32.gmra.mrb[0].mxu0 %v3843
        %v3989 = vpop.f32.mrb[0].mxu0
        %v3990 = vadd.f32 %v3785, %v3989
        %v3991 = vpop.f32.mrb[0].mxu0
        %3992 = vmatprep.mubr.f32.mxu0 0.0
        %3993 = vmatmul.mubr.f32.gmra.mrb[0].mxu0 %v3846
        %v3994 = vpop.f32.mrb[0].mxu0
        %v3995 = vadd.f32 %v3790, %v3994
        %v3996 = vpop.f32.mrb[0].mxu0
        %3997 = vmatprep.mubr.f32.mxu0 0.0
        %3998 = vmatmul.mubr.f32.gmra.mrb[0].mxu0 %v3849
        %v3999 = vpop.f32.mrb[0].mxu0
        %v4000 = vpop.f32.mrb[0].mxu0
        %4001 = vdwg.mxu0
        %s4002 = scalar_lea.vmem [#allocation2], 2
        %v4003 = vld [vmem:[%s4002] ss:$2 sm:$0xff]
        %s4004 = scalar_lea.vmem [#allocation2], 18
        %v4005 = vld [vmem:[%s4004] ss:$2 sm:$0xff]
        %s4006 = scalar_lea.vmem [#allocation2], 34
        %v4007 = vld [vmem:[%s4006] ss:$2 sm:$0xff]
        %s4008 = scalar_lea.vmem [#allocation2], 50
        %v4009 = vld [vmem:[%s4008] ss:$2 sm:$0xff]
        %s4010 = scalar_lea.vmem [#allocation2], 66
        %v4011 = vld [vmem:[%s4010] ss:$2 sm:$0xff]
        %s4012 = scalar_lea.vmem [#allocation2], 82
        %v4013 = vld [vmem:[%s4012] ss:$2 sm:$0xff]
        %s4014 = scalar_lea.vmem [#allocation2], 98
        %v4015 = vld [vmem:[%s4014] ss:$2 sm:$0xff]
        %s4016 = scalar_lea.vmem [#allocation2], 114
        %v4017 = vld [vmem:[%s4016] ss:$2 sm:$0xff]
        %s4018 = scalar_lea.vmem [#allocation2], 130
        %v4019 = vld [vmem:[%s4018] ss:$2 sm:$0xff]
        %s4020 = scalar_lea.vmem [#allocation2], 146
        %v4021 = vld [vmem:[%s4020] ss:$2 sm:$0xff]
        %s4022 = scalar_lea.vmem [#allocation2], 162
        %v4023 = vld [vmem:[%s4022] ss:$2 sm:$0xff]
        %s4024 = scalar_lea.vmem [#allocation2], 178
        %v4025 = vld [vmem:[%s4024] ss:$2 sm:$0xff]
        %s4026 = scalar_lea.vmem [#allocation2], 194
        %v4027 = vld [vmem:[%s4026] ss:$2 sm:$0xff]
        %s4028 = scalar_lea.vmem [#allocation2], 210
        %v4029 = vld [vmem:[%s4028] ss:$2 sm:$0xff]
        %s4030 = scalar_lea.vmem [#allocation2], 226
        %v4031 = vld [vmem:[%s4030] ss:$2 sm:$0xff]
        %s4032 = scalar_lea.vmem [#allocation2], 242
        %v4033 = vld [vmem:[%s4032] ss:$2 sm:$0xff]
        %s4034 = scalar_lea.vmem [#allocation2], 258
        %v4035 = vld [vmem:[%s4034] ss:$2 sm:$0xff]
        %s4036 = scalar_lea.vmem [#allocation2], 274
        %v4037 = vld [vmem:[%s4036] ss:$2 sm:$0xff]
        %s4038 = scalar_lea.vmem %s4, 64
        %v4039 = vld [vmem:[%s4038] sm:$0xff]
        %v4040 = vld [vmem:[%s4038 + $0x8] sm:$0xff]
        %v4041 = vld [vmem:[%s4038 + $0x10] sm:$0xff]
        %v4042 = vld [vmem:[%s4038 + $0x18] sm:$0xff]
        %v4044 = vsel %vm3419, %v4003, 0
        %v4047 = vsel %vm3419, %v4005, 0
        %v4050 = vsel %vm3419, %v4007, 0
        %v4053 = vsel %vm3419, %v4009, 0
        %v4056 = vsel %vm3419, %v4011, 0
        %v4059 = vsel %vm3419, %v4013, 0
        %v4062 = vsel %vm3419, %v4015, 0
        %v4065 = vsel %vm3419, %v4017, 0
        %v4068 = vsel %vm3419, %v4019, 0
        %v4071 = vsel %vm3419, %v4021, 0
        %v4074 = vsel %vm3419, %v4023, 0
        %v4077 = vsel %vm3419, %v4025, 0
        %v4080 = vsel %vm3419, %v4027, 0
        %v4083 = vsel %vm3419, %v4029, 0
        %v4086 = vsel %vm3419, %v4031, 0
        %v4089 = vsel %vm3419, %v4033, 0
        %v4092 = vsel %vm3419, %v4035, 0
        %v4095 = vsel %vm3419, %v4037, 0
        %4097 = vmatprep.subr.mxu0 0.0
        %4098 = vmatpush1.msra.mxu0 %v4039
        %4099 = vmatprep.subr.mxu0 0.0
        %4100 = vmatpush1.msra.mxu0 %v4040
        %4101 = vmatprep.subr.mxu0 0.0
        %4102 = vmatpush1.msra.mxu0 %v4041
        %4103 = vmatprep.subr.mxu0 0.0
        %4104 = vmatpush1.msra.mxu0 %v4042
        %4105 = vmatprep.subr.mxu0 0.0
        %4106 = vmatpush1.msra.mxu0 0.0
        %4107 = vmatprep.subr.mxu0 0.0
        %4108 = vmatpush1.msra.mxu0 0.0
        %4109 = vmatprep.subr.mxu0 0.0
        %4110 = vmatpush1.msra.mxu0 0.0
        %4111 = vmatprep.subr.mxu0 0.0
        %4112 = vmatpush1.msra.mxu0 0.0
        %4113 = vmatprep.subr.mxu0 0.0
        %4114 = vmatpush1.msra.mxu0 0.0
        %4115 = vmatprep.subr.mxu0 0.0
        %4116 = vmatpush1.msra.mxu0 0.0
        %4117 = vmatprep.subr.mxu0 0.0
        %4118 = vmatpush1.msra.mxu0 0.0
        %4119 = vmatprep.subr.mxu0 0.0
        %4120 = vmatpush1.msra.mxu0 0.0
        %4121 = vmatprep.subr.mxu0 0.0
        %4122 = vmatpush1.msra.mxu0 0.0
        %4123 = vmatprep.subr.mxu0 0.0
        %4124 = vmatpush1.msra.mxu0 0.0
        %4125 = vmatprep.subr.mxu0 0.0
        %4126 = vmatpush1.msra.mxu0 0.0
        %4127 = vmatprep.subr.mxu0 0.0
        %4128 = vmatpush1.msra.mxu0 0.0
        %4129 = vmatprep.subr.mxu0 0.0
        %4130 = vmatpush1.msra.mxu0 0.0
        %4131 = vmatprep.subr.mxu0 0.0
        %4132 = vmatpush1.msra.mxu0 0.0
        %4133 = vmatprep.subr.mxu0 0.0
        %4134 = vmatpush1.msra.mxu0 0.0
        %4135 = vmatprep.subr.mxu0 0.0
        %4136 = vmatpush1.msra.mxu0 0.0
        %4137 = vmatprep.subr.mxu0 0.0
        %4138 = vmatpush1.msra.mxu0 0.0
        %4139 = vmatprep.subr.mxu0 0.0
        %4140 = vmatpush1.msra.mxu0 0.0
        %4141 = vmatprep.subr.mxu0 0.0
        %4142 = vmatpush1.msra.mxu0 0.0
        %4143 = vmatprep.subr.mxu0 0.0
        %4144 = vmatpush1.msra.mxu0 0.0
        %4145 = vmatprep.subr.mxu0 0.0
        %4146 = vmatpush1.msra.mxu0 0.0
        %4147 = vmatprep.subr.mxu0 0.0
        %4148 = vmatpush1.msra.mxu0 0.0
        %4149 = vmatprep.subr.mxu0 0.0
        %4150 = vmatpush1.msra.mxu0 0.0
        %4151 = vmatprep.subr.mxu0 0.0
        %4152 = vmatpush1.msra.mxu0 0.0
        %4153 = vmatprep.subr.mxu0 0.0
        %4154 = vmatpush1.msra.mxu0 0.0
        %4155 = vmatprep.subr.mxu0 0.0
        %4156 = vmatpush1.msra.mxu0 0.0
        %4157 = vmatprep.subr.mxu0 0.0
        %4158 = vmatpush1.msra.mxu0 0.0
        %4159 = vmatprep.subr.mxu0 0.0
        %4160 = vmatpush1.msra.mxu0 0.0
        %4161 = vmatprep.mubr.f32.mxu0 0.0
        %4162 = vmatmul.mubr.f32.gmra.mrb[0].mxu0 %v4044
        %v4163 = vpop.f32.mrb[0].mxu0
        %v4164 = vadd.f32 0.0, %v4163
        %v4165 = vpop.f32.mrb[0].mxu0
        %4166 = vmatprep.mubr.f32.mxu0 0.0
        %4167 = vmatmul.mubr.f32.gmra.mrb[0].mxu0 %v4047
        %v4168 = vpop.f32.mrb[0].mxu0
        %v4169 = vpop.f32.mrb[0].mxu0
        %4170 = vmatprep.mubr.f32.mxu0 0.0
        %4171 = vmatmul.mubr.f32.gmra.mrb[0].mxu0 %v4050
        %v4172 = vpop.f32.mrb[0].mxu0
        %v4173 = vadd.f32 0.0, %v4172
        %v4174 = vpop.f32.mrb[0].mxu0
        %4175 = vmatprep.mubr.f32.mxu0 0.0
        %4176 = vmatmul.mubr.f32.gmra.mrb[0].mxu0 %v4053
        %v4177 = vpop.f32.mrb[0].mxu0
        %v4178 = vadd.f32 0.0, %v4177
        %v4179 = vpop.f32.mrb[0].mxu0
        %4180 = vmatprep.mubr.f32.mxu0 0.0
        %4181 = vmatmul.mubr.f32.gmra.mrb[0].mxu0 %v4056
        %v4182 = vpop.f32.mrb[0].mxu0
        %v4183 = vadd.f32 0.0, %v4182
        %v4184 = vpop.f32.mrb[0].mxu0
        %4185 = vmatprep.mubr.f32.mxu0 0.0
        %4186 = vmatmul.mubr.f32.gmra.mrb[0].mxu0 %v4059
        %v4187 = vpop.f32.mrb[0].mxu0
        %v4188 = vadd.f32 0.0, %v4187
        %v4189 = vpop.f32.mrb[0].mxu0
        %4190 = vmatprep.mubr.f32.mxu0 0.0
        %4191 = vmatmul.mubr.f32.gmra.mrb[0].mxu0 %v4062
        %v4192 = vpop.f32.mrb[0].mxu0
        %v4193 = vadd.f32 0.0, %v4192
        %v4194 = vpop.f32.mrb[0].mxu0
        %4195 = vmatprep.mubr.f32.mxu0 0.0
        %4196 = vmatmul.mubr.f32.gmra.mrb[0].mxu0 %v4065
        %v4197 = vpop.f32.mrb[0].mxu0
        %v4198 = vadd.f32 0.0, %v4197
        %v4199 = vpop.f32.mrb[0].mxu0
        %4200 = vmatprep.mubr.f32.mxu0 0.0
        %4201 = vmatmul.mubr.f32.gmra.mrb[0].mxu0 %v4068
        %v4202 = vpop.f32.mrb[0].mxu0
        %v4203 = vpop.f32.mrb[0].mxu0
        %4204 = vmatprep.mubr.f32.mxu0 0.0
        %4205 = vmatmul.mubr.f32.gmra.mrb[0].mxu0 %v4071
        %v4206 = vpop.f32.mrb[0].mxu0
        %v4207 = vadd.f32 0.0, %v4206
        %v4208 = vpop.f32.mrb[0].mxu0
        %4209 = vmatprep.mubr.f32.mxu0 0.0
        %4210 = vmatmul.mubr.f32.gmra.mrb[0].mxu0 %v4074
        %v4211 = vpop.f32.mrb[0].mxu0
        %v4212 = vpop.f32.mrb[0].mxu0
        %4213 = vmatprep.mubr.f32.mxu0 0.0
        %4214 = vmatmul.mubr.f32.gmra.mrb[0].mxu0 %v4077
        %v4215 = vpop.f32.mrb[0].mxu0
        %v4216 = vadd.f32 0.0, %v4215
        %v4217 = vpop.f32.mrb[0].mxu0
        %4218 = vmatprep.mubr.f32.mxu0 0.0
        %4219 = vmatmul.mubr.f32.gmra.mrb[0].mxu0 %v4080
        %v4220 = vpop.f32.mrb[0].mxu0
        %v4221 = vadd.f32 0.0, %v4220
        %v4222 = vpop.f32.mrb[0].mxu0
        %4223 = vmatprep.mubr.f32.mxu0 0.0
        %4224 = vmatmul.mubr.f32.gmra.mrb[0].mxu0 %v4083
        %v4225 = vpop.f32.mrb[0].mxu0
        %v4226 = vadd.f32 0.0, %v4225
        %v4227 = vpop.f32.mrb[0].mxu0
        %4228 = vmatprep.mubr.f32.mxu0 0.0
        %4229 = vmatmul.mubr.f32.gmra.mrb[0].mxu0 %v4086
        %v4230 = vpop.f32.mrb[0].mxu0
        %v4231 = vadd.f32 0.0, %v4230
        %v4232 = vpop.f32.mrb[0].mxu0
        %4233 = vmatprep.mubr.f32.mxu0 0.0
        %4234 = vmatmul.mubr.f32.gmra.mrb[0].mxu0 %v4089
        %v4235 = vpop.f32.mrb[0].mxu0
        %v4236 = vadd.f32 0.0, %v4235
        %v4237 = vpop.f32.mrb[0].mxu0
        %4238 = vmatprep.mubr.f32.mxu0 0.0
        %4239 = vmatmul.mubr.f32.gmra.mrb[0].mxu0 %v4092
        %v4240 = vpop.f32.mrb[0].mxu0
        %v4241 = vadd.f32 0.0, %v4240
        %v4242 = vpop.f32.mrb[0].mxu0
        %4243 = vmatprep.mubr.f32.mxu0 0.0
        %4244 = vmatmul.mubr.f32.gmra.mrb[0].mxu0 %v4095
        %v4245 = vpop.f32.mrb[0].mxu0
        %v4246 = vpop.f32.mrb[0].mxu0
        %4247 = vdwg.mxu0
        %v4248 = vadd.f32 %v3918, %v4164
        %v4249 = vadd.f32 %v3927, %v4173
        %v4250 = vadd.f32 %v3932, %v4178
        %v4251 = vadd.f32 %v3937, %v4183
        %v4252 = vadd.f32 %v3942, %v4188
        %v4253 = vadd.f32 %v3947, %v4193
        %v4254 = vadd.f32 %v3952, %v4198
        %v4255 = vadd.f32 %v3961, %v4207
        %v4256 = vadd.f32 %v3970, %v4216
        %v4257 = vadd.f32 %v3975, %v4221
        %v4258 = vadd.f32 %v3980, %v4226
        %v4259 = vadd.f32 %v3985, %v4231
        %v4260 = vadd.f32 %v3990, %v4236
        %v4261 = vadd.f32 %v3995, %v4241
        %v4262 = vld [vmem:[%s4004] ss:$2 sm:$0xff]
        %v4263 = vld [vmem:[%s4006] ss:$2 sm:$0xff]
        %v4264 = vld [vmem:[%s4008] ss:$2 sm:$0xff]
        %v4265 = vld [vmem:[%s4010] ss:$2 sm:$0xff]
        %v4266 = vld [vmem:[%s4012] ss:$2 sm:$0xff]
        %v4267 = vld [vmem:[%s4014] ss:$2 sm:$0xff]
        %v4268 = vld [vmem:[%s4016] ss:$2 sm:$0xff]
        %v4269 = vld [vmem:[%s4018] ss:$2 sm:$0xff]
        %v4270 = vld [vmem:[%s4020] ss:$2 sm:$0xff]
        %v4271 = vld [vmem:[%s4022] ss:$2 sm:$0xff]
        %v4272 = vld [vmem:[%s4024] ss:$2 sm:$0xff]
        %v4273 = vld [vmem:[%s4026] ss:$2 sm:$0xff]
        %v4274 = vld [vmem:[%s4028] ss:$2 sm:$0xff]
        %v4275 = vld [vmem:[%s4030] ss:$2 sm:$0xff]
        %v4276 = vld [vmem:[%s4032] ss:$2 sm:$0xff]
        %v4277 = vld [vmem:[%s4034] ss:$2 sm:$0xff]
        %v4278 = vld [vmem:[%s4036] ss:$2 sm:$0xff]
        %s4279 = scalar_lea.vmem [#allocation2], 290
        %v4280 = vld [vmem:[%s4279] ss:$2 sm:$0xff]
        %s4281 = scalar_lea.vmem %s4, 96
        %v4282 = vld [vmem:[%s4281] sm:$0xff]
        %v4283 = vld [vmem:[%s4281 + $0x8] sm:$0xff]
        %v4284 = vld [vmem:[%s4281 + $0x10] sm:$0xff]
        %v4285 = vld [vmem:[%s4281 + $0x18] sm:$0xff]
        %v4287 = vsel %vm3419, %v4262, 0
        %v4290 = vsel %vm3419, %v4263, 0
        %v4293 = vsel %vm3419, %v4264, 0
        %v4296 = vsel %vm3419, %v4265, 0
        %v4299 = vsel %vm3419, %v4266, 0
        %v4302 = vsel %vm3419, %v4267, 0
        %v4305 = vsel %vm3419, %v4268, 0
        %v4308 = vsel %vm3419, %v4269, 0
        %v4311 = vsel %vm3419, %v4270, 0
        %v4314 = vsel %vm3419, %v4271, 0
        %v4317 = vsel %vm3419, %v4272, 0
        %v4320 = vsel %vm3419, %v4273, 0
        %v4323 = vsel %vm3419, %v4274, 0
        %v4326 = vsel %vm3419, %v4275, 0
        %v4329 = vsel %vm3419, %v4276, 0
        %v4332 = vsel %vm3419, %v4277, 0
        %v4335 = vsel %vm3419, %v4278, 0
        %v4338 = vsel %vm3419, %v4280, 0
        %4340 = vmatprep.subr.mxu0 0.0
        %4341 = vmatpush1.msra.mxu0 %v4282
        %4342 = vmatprep.subr.mxu0 0.0
        %4343 = vmatpush1.msra.mxu0 %v4283
        %4344 = vmatprep.subr.mxu0 0.0
        %4345 = vmatpush1.msra.mxu0 %v4284
        %4346 = vmatprep.subr.mxu0 0.0
        %4347 = vmatpush1.msra.mxu0 %v4285
        %4348 = vmatprep.subr.mxu0 0.0
        %4349 = vmatpush1.msra.mxu0 0.0
        %4350 = vmatprep.subr.mxu0 0.0
        %4351 = vmatpush1.msra.mxu0 0.0
        %4352 = vmatprep.subr.mxu0 0.0
        %4353 = vmatpush1.msra.mxu0 0.0
        %4354 = vmatprep.subr.mxu0 0.0
        %4355 = vmatpush1.msra.mxu0 0.0
        %4356 = vmatprep.subr.mxu0 0.0
        %4357 = vmatpush1.msra.mxu0 0.0
        %4358 = vmatprep.subr.mxu0 0.0
        %4359 = vmatpush1.msra.mxu0 0.0
        %4360 = vmatprep.subr.mxu0 0.0
        %4361 = vmatpush1.msra.mxu0 0.0
        %4362 = vmatprep.subr.mxu0 0.0
        %4363 = vmatpush1.msra.mxu0 0.0
        %4364 = vmatprep.subr.mxu0 0.0
        %4365 = vmatpush1.msra.mxu0 0.0
        %4366 = vmatprep.subr.mxu0 0.0
        %4367 = vmatpush1.msra.mxu0 0.0
        %4368 = vmatprep.subr.mxu0 0.0
        %4369 = vmatpush1.msra.mxu0 0.0
        %4370 = vmatprep.subr.mxu0 0.0
        %4371 = vmatpush1.msra.mxu0 0.0
        %4372 = vmatprep.subr.mxu0 0.0
        %4373 = vmatpush1.msra.mxu0 0.0
        %4374 = vmatprep.subr.mxu0 0.0
        %4375 = vmatpush1.msra.mxu0 0.0
        %4376 = vmatprep.subr.mxu0 0.0
        %4377 = vmatpush1.msra.mxu0 0.0
        %4378 = vmatprep.subr.mxu0 0.0
        %4379 = vmatpush1.msra.mxu0 0.0
        %4380 = vmatprep.subr.mxu0 0.0
        %4381 = vmatpush1.msra.mxu0 0.0
        %4382 = vmatprep.subr.mxu0 0.0
        %4383 = vmatpush1.msra.mxu0 0.0
        %4384 = vmatprep.subr.mxu0 0.0
        %4385 = vmatpush1.msra.mxu0 0.0
        %4386 = vmatprep.subr.mxu0 0.0
        %4387 = vmatpush1.msra.mxu0 0.0
        %4388 = vmatprep.subr.mxu0 0.0
        %4389 = vmatpush1.msra.mxu0 0.0
        %4390 = vmatprep.subr.mxu0 0.0
        %4391 = vmatpush1.msra.mxu0 0.0
        %4392 = vmatprep.subr.mxu0 0.0
        %4393 = vmatpush1.msra.mxu0 0.0
        %4394 = vmatprep.subr.mxu0 0.0
        %4395 = vmatpush1.msra.mxu0 0.0
        %4396 = vmatprep.subr.mxu0 0.0
        %4397 = vmatpush1.msra.mxu0 0.0
        %4398 = vmatprep.subr.mxu0 0.0
        %4399 = vmatpush1.msra.mxu0 0.0
        %4400 = vmatprep.subr.mxu0 0.0
        %4401 = vmatpush1.msra.mxu0 0.0
        %4402 = vmatprep.subr.mxu0 0.0
        %4403 = vmatpush1.msra.mxu0 0.0
        %4404 = vmatprep.mubr.f32.mxu0 0.0
        %4405 = vmatmul.mubr.f32.gmra.mrb[0].mxu0 %v4287
        %v4406 = vpop.f32.mrb[0].mxu0
        %v4407 = vadd.f32 0.0, %v4406
        %v4408 = vpop.f32.mrb[0].mxu0
        %4409 = vmatprep.mubr.f32.mxu0 0.0
        %4410 = vmatmul.mubr.f32.gmra.mrb[0].mxu0 %v4290
        %v4411 = vpop.f32.mrb[0].mxu0
        %v4412 = vpop.f32.mrb[0].mxu0
        %4413 = vmatprep.mubr.f32.mxu0 0.0
        %4414 = vmatmul.mubr.f32.gmra.mrb[0].mxu0 %v4293
        %v4415 = vpop.f32.mrb[0].mxu0
        %v4416 = vadd.f32 0.0, %v4415
        %v4417 = vpop.f32.mrb[0].mxu0
        %4418 = vmatprep.mubr.f32.mxu0 0.0
        %4419 = vmatmul.mubr.f32.gmra.mrb[0].mxu0 %v4296
        %v4420 = vpop.f32.mrb[0].mxu0
        %v4421 = vadd.f32 0.0, %v4420
        %v4422 = vpop.f32.mrb[0].mxu0
        %4423 = vmatprep.mubr.f32.mxu0 0.0
        %4424 = vmatmul.mubr.f32.gmra.mrb[0].mxu0 %v4299
        %v4425 = vpop.f32.mrb[0].mxu0
        %v4426 = vadd.f32 0.0, %v4425
        %v4427 = vpop.f32.mrb[0].mxu0
        %4428 = vmatprep.mubr.f32.mxu0 0.0
        %4429 = vmatmul.mubr.f32.gmra.mrb[0].mxu0 %v4302
        %v4430 = vpop.f32.mrb[0].mxu0
        %v4431 = vadd.f32 0.0, %v4430
        %v4432 = vpop.f32.mrb[0].mxu0
        %4433 = vmatprep.mubr.f32.mxu0 0.0
        %4434 = vmatmul.mubr.f32.gmra.mrb[0].mxu0 %v4305
        %v4435 = vpop.f32.mrb[0].mxu0
        %v4436 = vadd.f32 0.0, %v4435
        %v4437 = vpop.f32.mrb[0].mxu0
        %4438 = vmatprep.mubr.f32.mxu0 0.0
        %4439 = vmatmul.mubr.f32.gmra.mrb[0].mxu0 %v4308
        %v4440 = vpop.f32.mrb[0].mxu0
        %v4441 = vadd.f32 0.0, %v4440
        %v4442 = vpop.f32.mrb[0].mxu0
        %4443 = vmatprep.mubr.f32.mxu0 0.0
        %4444 = vmatmul.mubr.f32.gmra.mrb[0].mxu0 %v4311
        %v4445 = vpop.f32.mrb[0].mxu0
        %v4446 = vpop.f32.mrb[0].mxu0
        %4447 = vmatprep.mubr.f32.mxu0 0.0
        %4448 = vmatmul.mubr.f32.gmra.mrb[0].mxu0 %v4314
        %v4449 = vpop.f32.mrb[0].mxu0
        %v4450 = vadd.f32 0.0, %v4449
        %v4451 = vpop.f32.mrb[0].mxu0
        %4452 = vmatprep.mubr.f32.mxu0 0.0
        %4453 = vmatmul.mubr.f32.gmra.mrb[0].mxu0 %v4317
        %v4454 = vpop.f32.mrb[0].mxu0
        %v4455 = vpop.f32.mrb[0].mxu0
        %4456 = vmatprep.mubr.f32.mxu0 0.0
        %4457 = vmatmul.mubr.f32.gmra.mrb[0].mxu0 %v4320
        %v4458 = vpop.f32.mrb[0].mxu0
        %v4459 = vadd.f32 0.0, %v4458
        %v4460 = vpop.f32.mrb[0].mxu0
        %4461 = vmatprep.mubr.f32.mxu0 0.0
        %4462 = vmatmul.mubr.f32.gmra.mrb[0].mxu0 %v4323
        %v4463 = vpop.f32.mrb[0].mxu0
        %v4464 = vadd.f32 0.0, %v4463
        %v4465 = vpop.f32.mrb[0].mxu0
        %4466 = vmatprep.mubr.f32.mxu0 0.0
        %4467 = vmatmul.mubr.f32.gmra.mrb[0].mxu0 %v4326
        %v4468 = vpop.f32.mrb[0].mxu0
        %v4469 = vadd.f32 0.0, %v4468
        %v4470 = vpop.f32.mrb[0].mxu0
        %4471 = vmatprep.mubr.f32.mxu0 0.0
        %4472 = vmatmul.mubr.f32.gmra.mrb[0].mxu0 %v4329
        %v4473 = vpop.f32.mrb[0].mxu0
        %v4474 = vadd.f32 0.0, %v4473
        %v4475 = vpop.f32.mrb[0].mxu0
        %4476 = vmatprep.mubr.f32.mxu0 0.0
        %4477 = vmatmul.mubr.f32.gmra.mrb[0].mxu0 %v4332
        %v4478 = vpop.f32.mrb[0].mxu0
        %v4479 = vadd.f32 0.0, %v4478
        %v4480 = vpop.f32.mrb[0].mxu0
        %4481 = vmatprep.mubr.f32.mxu0 0.0
        %4482 = vmatmul.mubr.f32.gmra.mrb[0].mxu0 %v4335
        %v4483 = vpop.f32.mrb[0].mxu0
        %v4484 = vadd.f32 0.0, %v4483
        %v4485 = vpop.f32.mrb[0].mxu0
        %4486 = vmatprep.mubr.f32.mxu0 0.0
        %4487 = vmatmul.mubr.f32.gmra.mrb[0].mxu0 %v4338
        %v4488 = vpop.f32.mrb[0].mxu0
        %v4489 = vpop.f32.mrb[0].mxu0
        %4490 = vdwg.mxu0
        %v4491 = vadd.f32 %v4248, %v4407
        %v4492 = vadd.f32 %v4249, %v4416
        %v4493 = vadd.f32 %v4250, %v4421
        %v4494 = vadd.f32 %v4251, %v4426
        %v4495 = vadd.f32 %v4252, %v4431
        %v4496 = vadd.f32 %v4253, %v4436
        %v4497 = vadd.f32 %v4254, %v4441
        %v4498 = vadd.f32 %v4255, %v4450
        %v4499 = vadd.f32 %v4256, %v4459
        %v4500 = vadd.f32 %v4257, %v4464
        %v4501 = vadd.f32 %v4258, %v4469
        %v4502 = vadd.f32 %v4259, %v4474
        %v4503 = vadd.f32 %v4260, %v4479
        %v4504 = vadd.f32 %v4261, %v4484
        %s4505 = scalar_lea.vmem [#allocation2], 19
        %v4506 = vld [vmem:[%s4505] ss:$2 sm:$0xff]
        %s4507 = scalar_lea.vmem [#allocation2], 35
        %v4508 = vld [vmem:[%s4507] ss:$2 sm:$0xff]
        %s4509 = scalar_lea.vmem [#allocation2], 51
        %v4510 = vld [vmem:[%s4509] ss:$2 sm:$0xff]
        %s4511 = scalar_lea.vmem [#allocation2], 67
        %v4512 = vld [vmem:[%s4511] ss:$2 sm:$0xff]
        %s4513 = scalar_lea.vmem [#allocation2], 83
        %v4514 = vld [vmem:[%s4513] ss:$2 sm:$0xff]
        %s4515 = scalar_lea.vmem [#allocation2], 99
        %v4516 = vld [vmem:[%s4515] ss:$2 sm:$0xff]
        %s4517 = scalar_lea.vmem [#allocation2], 115
        %v4518 = vld [vmem:[%s4517] ss:$2 sm:$0xff]
        %s4519 = scalar_lea.vmem [#allocation2], 131
        %v4520 = vld [vmem:[%s4519] ss:$2 sm:$0xff]
        %s4521 = scalar_lea.vmem [#allocation2], 147
        %v4522 = vld [vmem:[%s4521] ss:$2 sm:$0xff]
        %s4523 = scalar_lea.vmem [#allocation2], 163
        %v4524 = vld [vmem:[%s4523] ss:$2 sm:$0xff]
        %s4525 = scalar_lea.vmem [#allocation2], 179
        %v4526 = vld [vmem:[%s4525] ss:$2 sm:$0xff]
        %s4527 = scalar_lea.vmem [#allocation2], 195
        %v4528 = vld [vmem:[%s4527] ss:$2 sm:$0xff]
        %s4529 = scalar_lea.vmem [#allocation2], 211
        %v4530 = vld [vmem:[%s4529] ss:$2 sm:$0xff]
        %s4531 = scalar_lea.vmem [#allocation2], 227
        %v4532 = vld [vmem:[%s4531] ss:$2 sm:$0xff]
        %s4533 = scalar_lea.vmem [#allocation2], 243
        %v4534 = vld [vmem:[%s4533] ss:$2 sm:$0xff]
        %s4535 = scalar_lea.vmem [#allocation2], 259
        %v4536 = vld [vmem:[%s4535] ss:$2 sm:$0xff]
        %s4537 = scalar_lea.vmem [#allocation2], 275
        %v4538 = vld [vmem:[%s4537] ss:$2 sm:$0xff]
        %s4539 = scalar_lea.vmem [#allocation2], 291
        %v4540 = vld [vmem:[%s4539] ss:$2 sm:$0xff]
        %s4541 = scalar_lea.vmem %s4, 128
        %v4542 = vld [vmem:[%s4541] sm:$0xff]
        %v4543 = vld [vmem:[%s4541 + $0x8] sm:$0xff]
        %v4544 = vld [vmem:[%s4541 + $0x10] sm:$0xff]
        %v4545 = vld [vmem:[%s4541 + $0x18] sm:$0xff]
        %v4547 = vsel %vm3419, %v4506, 0
        %v4550 = vsel %vm3419, %v4508, 0
        %v4553 = vsel %vm3419, %v4510, 0
        %v4556 = vsel %vm3419, %v4512, 0
        %v4559 = vsel %vm3419, %v4514, 0
        %v4562 = vsel %vm3419, %v4516, 0
        %v4565 = vsel %vm3419, %v4518, 0
        %v4568 = vsel %vm3419, %v4520, 0
        %v4571 = vsel %vm3419, %v4522, 0
        %v4574 = vsel %vm3419, %v4524, 0
        %v4577 = vsel %vm3419, %v4526, 0
        %v4580 = vsel %vm3419, %v4528, 0
        %v4583 = vsel %vm3419, %v4530, 0
        %v4586 = vsel %vm3419, %v4532, 0
        %v4589 = vsel %vm3419, %v4534, 0
        %v4592 = vsel %vm3419, %v4536, 0
        %v4595 = vsel %vm3419, %v4538, 0
        %v4598 = vsel %vm3419, %v4540, 0
        %4600 = vmatprep.subr.mxu0 0.0
        %4601 = vmatpush1.msra.mxu0 %v4542
        %4602 = vmatprep.subr.mxu0 0.0
        %4603 = vmatpush1.msra.mxu0 %v4543
        %4604 = vmatprep.subr.mxu0 0.0
        %4605 = vmatpush1.msra.mxu0 %v4544
        %4606 = vmatprep.subr.mxu0 0.0
        %4607 = vmatpush1.msra.mxu0 %v4545
        %4608 = vmatprep.subr.mxu0 0.0
        %4609 = vmatpush1.msra.mxu0 0.0
        %4610 = vmatprep.subr.mxu0 0.0
        %4611 = vmatpush1.msra.mxu0 0.0
        %4612 = vmatprep.subr.mxu0 0.0
        %4613 = vmatpush1.msra.mxu0 0.0
        %4614 = vmatprep.subr.mxu0 0.0
        %4615 = vmatpush1.msra.mxu0 0.0
        %4616 = vmatprep.subr.mxu0 0.0
        %4617 = vmatpush1.msra.mxu0 0.0
        %4618 = vmatprep.subr.mxu0 0.0
        %4619 = vmatpush1.msra.mxu0 0.0
        %4620 = vmatprep.subr.mxu0 0.0
        %4621 = vmatpush1.msra.mxu0 0.0
        %4622 = vmatprep.subr.mxu0 0.0
        %4623 = vmatpush1.msra.mxu0 0.0
        %4624 = vmatprep.subr.mxu0 0.0
        %4625 = vmatpush1.msra.mxu0 0.0
        %4626 = vmatprep.subr.mxu0 0.0
        %4627 = vmatpush1.msra.mxu0 0.0
        %4628 = vmatprep.subr.mxu0 0.0
        %4629 = vmatpush1.msra.mxu0 0.0
        %4630 = vmatprep.subr.mxu0 0.0
        %4631 = vmatpush1.msra.mxu0 0.0
        %4632 = vmatprep.subr.mxu0 0.0
        %4633 = vmatpush1.msra.mxu0 0.0
        %4634 = vmatprep.subr.mxu0 0.0
        %4635 = vmatpush1.msra.mxu0 0.0
        %4636 = vmatprep.subr.mxu0 0.0
        %4637 = vmatpush1.msra.mxu0 0.0
        %4638 = vmatprep.subr.mxu0 0.0
        %4639 = vmatpush1.msra.mxu0 0.0
        %4640 = vmatprep.subr.mxu0 0.0
        %4641 = vmatpush1.msra.mxu0 0.0
        %4642 = vmatprep.subr.mxu0 0.0
        %4643 = vmatpush1.msra.mxu0 0.0
        %4644 = vmatprep.subr.mxu0 0.0
        %4645 = vmatpush1.msra.mxu0 0.0
        %4646 = vmatprep.subr.mxu0 0.0
        %4647 = vmatpush1.msra.mxu0 0.0
        %4648 = vmatprep.subr.mxu0 0.0
        %4649 = vmatpush1.msra.mxu0 0.0
        %4650 = vmatprep.subr.mxu0 0.0
        %4651 = vmatpush1.msra.mxu0 0.0
        %4652 = vmatprep.subr.mxu0 0.0
        %4653 = vmatpush1.msra.mxu0 0.0
        %4654 = vmatprep.subr.mxu0 0.0
        %4655 = vmatpush1.msra.mxu0 0.0
        %4656 = vmatprep.subr.mxu0 0.0
        %4657 = vmatpush1.msra.mxu0 0.0
        %4658 = vmatprep.subr.mxu0 0.0
        %4659 = vmatpush1.msra.mxu0 0.0
        %4660 = vmatprep.subr.mxu0 0.0
        %4661 = vmatpush1.msra.mxu0 0.0
        %4662 = vmatprep.subr.mxu0 0.0
        %4663 = vmatpush1.msra.mxu0 0.0
        %4664 = vmatprep.mubr.f32.mxu0 0.0
        %4665 = vmatmul.mubr.f32.gmra.mrb[0].mxu0 %v4547
        %v4666 = vpop.f32.mrb[0].mxu0
        %v4667 = vadd.f32 0.0, %v4666
        %v4668 = vpop.f32.mrb[0].mxu0
        %4669 = vmatprep.mubr.f32.mxu0 0.0
        %4670 = vmatmul.mubr.f32.gmra.mrb[0].mxu0 %v4550
        %v4671 = vpop.f32.mrb[0].mxu0
        %v4672 = vpop.f32.mrb[0].mxu0
        %4673 = vmatprep.mubr.f32.mxu0 0.0
        %4674 = vmatmul.mubr.f32.gmra.mrb[0].mxu0 %v4553
        %v4675 = vpop.f32.mrb[0].mxu0
        %v4676 = vadd.f32 0.0, %v4675
        %v4677 = vpop.f32.mrb[0].mxu0
        %4678 = vmatprep.mubr.f32.mxu0 0.0
        %4679 = vmatmul.mubr.f32.gmra.mrb[0].mxu0 %v4556
        %v4680 = vpop.f32.mrb[0].mxu0
        %v4681 = vadd.f32 0.0, %v4680
        %v4682 = vpop.f32.mrb[0].mxu0
        %4683 = vmatprep.mubr.f32.mxu0 0.0
        %4684 = vmatmul.mubr.f32.gmra.mrb[0].mxu0 %v4559
        %v4685 = vpop.f32.mrb[0].mxu0
        %v4686 = vadd.f32 0.0, %v4685
        %v4687 = vpop.f32.mrb[0].mxu0
        %4688 = vmatprep.mubr.f32.mxu0 0.0
        %4689 = vmatmul.mubr.f32.gmra.mrb[0].mxu0 %v4562
        %v4690 = vpop.f32.mrb[0].mxu0
        %v4691 = vadd.f32 0.0, %v4690
        %v4692 = vpop.f32.mrb[0].mxu0
        %4693 = vmatprep.mubr.f32.mxu0 0.0
        %4694 = vmatmul.mubr.f32.gmra.mrb[0].mxu0 %v4565
        %v4695 = vpop.f32.mrb[0].mxu0
        %v4696 = vadd.f32 0.0, %v4695
        %v4697 = vpop.f32.mrb[0].mxu0
        %4698 = vmatprep.mubr.f32.mxu0 0.0
        %4699 = vmatmul.mubr.f32.gmra.mrb[0].mxu0 %v4568
        %v4700 = vpop.f32.mrb[0].mxu0
        %v4701 = vadd.f32 0.0, %v4700
        %v4702 = vpop.f32.mrb[0].mxu0
        %4703 = vmatprep.mubr.f32.mxu0 0.0
        %4704 = vmatmul.mubr.f32.gmra.mrb[0].mxu0 %v4571
        %v4705 = vpop.f32.mrb[0].mxu0
        %v4706 = vpop.f32.mrb[0].mxu0
        %4707 = vmatprep.mubr.f32.mxu0 0.0
        %4708 = vmatmul.mubr.f32.gmra.mrb[0].mxu0 %v4574
        %v4709 = vpop.f32.mrb[0].mxu0
        %v4710 = vadd.f32 0.0, %v4709
        %v4711 = vpop.f32.mrb[0].mxu0
        %4712 = vmatprep.mubr.f32.mxu0 0.0
        %4713 = vmatmul.mubr.f32.gmra.mrb[0].mxu0 %v4577
        %v4714 = vpop.f32.mrb[0].mxu0
        %v4715 = vpop.f32.mrb[0].mxu0
        %4716 = vmatprep.mubr.f32.mxu0 0.0
        %4717 = vmatmul.mubr.f32.gmra.mrb[0].mxu0 %v4580
        %v4718 = vpop.f32.mrb[0].mxu0
        %v4719 = vadd.f32 0.0, %v4718
        %v4720 = vpop.f32.mrb[0].mxu0
        %4721 = vmatprep.mubr.f32.mxu0 0.0
        %4722 = vmatmul.mubr.f32.gmra.mrb[0].mxu0 %v4583
        %v4723 = vpop.f32.mrb[0].mxu0
        %v4724 = vadd.f32 0.0, %v4723
        %v4725 = vpop.f32.mrb[0].mxu0
        %4726 = vmatprep.mubr.f32.mxu0 0.0
        %4727 = vmatmul.mubr.f32.gmra.mrb[0].mxu0 %v4586
        %v4728 = vpop.f32.mrb[0].mxu0
        %v4729 = vadd.f32 0.0, %v4728
        %v4730 = vpop.f32.mrb[0].mxu0
        %4731 = vmatprep.mubr.f32.mxu0 0.0
        %4732 = vmatmul.mubr.f32.gmra.mrb[0].mxu0 %v4589
        %v4733 = vpop.f32.mrb[0].mxu0
        %v4734 = vadd.f32 0.0, %v4733
        %v4735 = vpop.f32.mrb[0].mxu0
        %4736 = vmatprep.mubr.f32.mxu0 0.0
        %4737 = vmatmul.mubr.f32.gmra.mrb[0].mxu0 %v4592
        %v4738 = vpop.f32.mrb[0].mxu0
        %v4739 = vadd.f32 0.0, %v4738
        %v4740 = vpop.f32.mrb[0].mxu0
        %4741 = vmatprep.mubr.f32.mxu0 0.0
        %4742 = vmatmul.mubr.f32.gmra.mrb[0].mxu0 %v4595
        %v4743 = vpop.f32.mrb[0].mxu0
        %v4744 = vadd.f32 0.0, %v4743
        %v4745 = vpop.f32.mrb[0].mxu0
        %4746 = vmatprep.mubr.f32.mxu0 0.0
        %4747 = vmatmul.mubr.f32.gmra.mrb[0].mxu0 %v4598
        %v4748 = vpop.f32.mrb[0].mxu0
        %v4749 = vpop.f32.mrb[0].mxu0
        %4750 = vdwg.mxu0
        %v4751 = vadd.f32 %v4491, %v4667
        %v4752 = vadd.f32 %v4492, %v4676
        %v4753 = vadd.f32 %v4493, %v4681
        %v4754 = vadd.f32 %v4494, %v4686
        %v4755 = vadd.f32 %v4495, %v4691
        %v4756 = vadd.f32 %v4496, %v4696
        %v4757 = vadd.f32 %v4497, %v4701
        %v4758 = vadd.f32 %v4498, %v4710
        %v4759 = vadd.f32 %v4499, %v4719
        %v4760 = vadd.f32 %v4500, %v4724
        %v4761 = vadd.f32 %v4501, %v4729
        %v4762 = vadd.f32 %v4502, %v4734
        %v4763 = vadd.f32 %v4503, %v4739
        %v4764 = vadd.f32 %v4504, %v4744
        %s4765 = scalar_lea.vmem [#allocation2], 20
        %v4766 = vld [vmem:[%s4765] ss:$2 sm:$0xff]
        %s4767 = scalar_lea.vmem [#allocation2], 36
        %v4768 = vld [vmem:[%s4767] ss:$2 sm:$0xff]
        %s4769 = scalar_lea.vmem [#allocation2], 52
        %v4770 = vld [vmem:[%s4769] ss:$2 sm:$0xff]
        %s4771 = scalar_lea.vmem [#allocation2], 68
        %v4772 = vld [vmem:[%s4771] ss:$2 sm:$0xff]
        %s4773 = scalar_lea.vmem [#allocation2], 84
        %v4774 = vld [vmem:[%s4773] ss:$2 sm:$0xff]
        %s4775 = scalar_lea.vmem [#allocation2], 100
        %v4776 = vld [vmem:[%s4775] ss:$2 sm:$0xff]
        %s4777 = scalar_lea.vmem [#allocation2], 116
        %v4778 = vld [vmem:[%s4777] ss:$2 sm:$0xff]
        %s4779 = scalar_lea.vmem [#allocation2], 132
        %v4780 = vld [vmem:[%s4779] ss:$2 sm:$0xff]
        %s4781 = scalar_lea.vmem [#allocation2], 148
        %v4782 = vld [vmem:[%s4781] ss:$2 sm:$0xff]
        %s4783 = scalar_lea.vmem [#allocation2], 164
        %v4784 = vld [vmem:[%s4783] ss:$2 sm:$0xff]
        %s4785 = scalar_lea.vmem [#allocation2], 180
        %v4786 = vld [vmem:[%s4785] ss:$2 sm:$0xff]
        %s4787 = scalar_lea.vmem [#allocation2], 196
        %v4788 = vld [vmem:[%s4787] ss:$2 sm:$0xff]
        %s4789 = scalar_lea.vmem [#allocation2], 212
        %v4790 = vld [vmem:[%s4789] ss:$2 sm:$0xff]
        %s4791 = scalar_lea.vmem [#allocation2], 228
        %v4792 = vld [vmem:[%s4791] ss:$2 sm:$0xff]
        %s4793 = scalar_lea.vmem [#allocation2], 244
        %v4794 = vld [vmem:[%s4793] ss:$2 sm:$0xff]
        %s4795 = scalar_lea.vmem [#allocation2], 260
        %v4796 = vld [vmem:[%s4795] ss:$2 sm:$0xff]
        %s4797 = scalar_lea.vmem [#allocation2], 276
        %v4798 = vld [vmem:[%s4797] ss:$2 sm:$0xff]
        %s4799 = scalar_lea.vmem [#allocation2], 292
        %v4800 = vld [vmem:[%s4799] ss:$2 sm:$0xff]
        %s4801 = scalar_lea.vmem %s4, 160
        %v4802 = vld [vmem:[%s4801] sm:$0xff]
        %v4803 = vld [vmem:[%s4801 + $0x8] sm:$0xff]
        %v4804 = vld [vmem:[%s4801 + $0x10] sm:$0xff]
        %v4805 = vld [vmem:[%s4801 + $0x18] sm:$0xff]
        %v4807 = vsel %vm3419, %v4766, 0
        %v4810 = vsel %vm3419, %v4768, 0
        %v4813 = vsel %vm3419, %v4770, 0
        %v4816 = vsel %vm3419, %v4772, 0
        %v4819 = vsel %vm3419, %v4774, 0
        %v4822 = vsel %vm3419, %v4776, 0
        %v4825 = vsel %vm3419, %v4778, 0
        %v4828 = vsel %vm3419, %v4780, 0
        %v4831 = vsel %vm3419, %v4782, 0
        %v4834 = vsel %vm3419, %v4784, 0
        %v4837 = vsel %vm3419, %v4786, 0
        %v4840 = vsel %vm3419, %v4788, 0
        %v4843 = vsel %vm3419, %v4790, 0
        %v4846 = vsel %vm3419, %v4792, 0
        %v4849 = vsel %vm3419, %v4794, 0
        %v4852 = vsel %vm3419, %v4796, 0
        %v4855 = vsel %vm3419, %v4798, 0
        %v4858 = vsel %vm3419, %v4800, 0
        %4860 = vmatprep.subr.mxu0 0.0
        %4861 = vmatpush1.msra.mxu0 %v4802
        %4862 = vmatprep.subr.mxu0 0.0
        %4863 = vmatpush1.msra.mxu0 %v4803
        %4864 = vmatprep.subr.mxu0 0.0
        %4865 = vmatpush1.msra.mxu0 %v4804
        %4866 = vmatprep.subr.mxu0 0.0
        %4867 = vmatpush1.msra.mxu0 %v4805
        %4868 = vmatprep.subr.mxu0 0.0
        %4869 = vmatpush1.msra.mxu0 0.0
        %4870 = vmatprep.subr.mxu0 0.0
        %4871 = vmatpush1.msra.mxu0 0.0
        %4872 = vmatprep.subr.mxu0 0.0
        %4873 = vmatpush1.msra.mxu0 0.0
        %4874 = vmatprep.subr.mxu0 0.0
        %4875 = vmatpush1.msra.mxu0 0.0
        %4876 = vmatprep.subr.mxu0 0.0
        %4877 = vmatpush1.msra.mxu0 0.0
        %4878 = vmatprep.subr.mxu0 0.0
        %4879 = vmatpush1.msra.mxu0 0.0
        %4880 = vmatprep.subr.mxu0 0.0
        %4881 = vmatpush1.msra.mxu0 0.0
        %4882 = vmatprep.subr.mxu0 0.0
        %4883 = vmatpush1.msra.mxu0 0.0
        %4884 = vmatprep.subr.mxu0 0.0
        %4885 = vmatpush1.msra.mxu0 0.0
        %4886 = vmatprep.subr.mxu0 0.0
        %4887 = vmatpush1.msra.mxu0 0.0
        %4888 = vmatprep.subr.mxu0 0.0
        %4889 = vmatpush1.msra.mxu0 0.0
        %4890 = vmatprep.subr.mxu0 0.0
        %4891 = vmatpush1.msra.mxu0 0.0
        %4892 = vmatprep.subr.mxu0 0.0
        %4893 = vmatpush1.msra.mxu0 0.0
        %4894 = vmatprep.subr.mxu0 0.0
        %4895 = vmatpush1.msra.mxu0 0.0
        %4896 = vmatprep.subr.mxu0 0.0
        %4897 = vmatpush1.msra.mxu0 0.0
        %4898 = vmatprep.subr.mxu0 0.0
        %4899 = vmatpush1.msra.mxu0 0.0
        %4900 = vmatprep.subr.mxu0 0.0
        %4901 = vmatpush1.msra.mxu0 0.0
        %4902 = vmatprep.subr.mxu0 0.0
        %4903 = vmatpush1.msra.mxu0 0.0
        %4904 = vmatprep.subr.mxu0 0.0
        %4905 = vmatpush1.msra.mxu0 0.0
        %4906 = vmatprep.subr.mxu0 0.0
        %4907 = vmatpush1.msra.mxu0 0.0
        %4908 = vmatprep.subr.mxu0 0.0
        %4909 = vmatpush1.msra.mxu0 0.0
        %4910 = vmatprep.subr.mxu0 0.0
        %4911 = vmatpush1.msra.mxu0 0.0
        %4912 = vmatprep.subr.mxu0 0.0
        %4913 = vmatpush1.msra.mxu0 0.0
        %4914 = vmatprep.subr.mxu0 0.0
        %4915 = vmatpush1.msra.mxu0 0.0
        %4916 = vmatprep.subr.mxu0 0.0
        %4917 = vmatpush1.msra.mxu0 0.0
        %4918 = vmatprep.subr.mxu0 0.0
        %4919 = vmatpush1.msra.mxu0 0.0
        %4920 = vmatprep.subr.mxu0 0.0
        %4921 = vmatpush1.msra.mxu0 0.0
        %4922 = vmatprep.subr.mxu0 0.0
        %4923 = vmatpush1.msra.mxu0 0.0
        %4924 = vmatprep.mubr.f32.mxu0 0.0
        %4925 = vmatmul.mubr.f32.gmra.mrb[0].mxu0 %v4807
        %v4926 = vpop.f32.mrb[0].mxu0
        %v4927 = vadd.f32 0.0, %v4926
        %v4928 = vpop.f32.mrb[0].mxu0
        %4929 = vmatprep.mubr.f32.mxu0 0.0
        %4930 = vmatmul.mubr.f32.gmra.mrb[0].mxu0 %v4810
        %v4931 = vpop.f32.mrb[0].mxu0
        %v4932 = vpop.f32.mrb[0].mxu0
        %4933 = vmatprep.mubr.f32.mxu0 0.0
        %4934 = vmatmul.mubr.f32.gmra.mrb[0].mxu0 %v4813
        %v4935 = vpop.f32.mrb[0].mxu0
        %v4936 = vadd.f32 0.0, %v4935
        %v4937 = vpop.f32.mrb[0].mxu0
        %4938 = vmatprep.mubr.f32.mxu0 0.0
        %4939 = vmatmul.mubr.f32.gmra.mrb[0].mxu0 %v4816
        %v4940 = vpop.f32.mrb[0].mxu0
        %v4941 = vadd.f32 0.0, %v4940
        %v4942 = vpop.f32.mrb[0].mxu0
        %4943 = vmatprep.mubr.f32.mxu0 0.0
        %4944 = vmatmul.mubr.f32.gmra.mrb[0].mxu0 %v4819
        %v4945 = vpop.f32.mrb[0].mxu0
        %v4946 = vadd.f32 0.0, %v4945
        %v4947 = vpop.f32.mrb[0].mxu0
        %4948 = vmatprep.mubr.f32.mxu0 0.0
        %4949 = vmatmul.mubr.f32.gmra.mrb[0].mxu0 %v4822
        %v4950 = vpop.f32.mrb[0].mxu0
        %v4951 = vadd.f32 0.0, %v4950
        %v4952 = vpop.f32.mrb[0].mxu0
        %4953 = vmatprep.mubr.f32.mxu0 0.0
        %4954 = vmatmul.mubr.f32.gmra.mrb[0].mxu0 %v4825
        %v4955 = vpop.f32.mrb[0].mxu0
        %v4956 = vadd.f32 0.0, %v4955
        %v4957 = vpop.f32.mrb[0].mxu0
        %4958 = vmatprep.mubr.f32.mxu0 0.0
        %4959 = vmatmul.mubr.f32.gmra.mrb[0].mxu0 %v4828
        %v4960 = vpop.f32.mrb[0].mxu0
        %v4961 = vadd.f32 0.0, %v4960
        %v4962 = vpop.f32.mrb[0].mxu0
        %4963 = vmatprep.mubr.f32.mxu0 0.0
        %4964 = vmatmul.mubr.f32.gmra.mrb[0].mxu0 %v4831
        %v4965 = vpop.f32.mrb[0].mxu0
        %v4966 = vpop.f32.mrb[0].mxu0
        %4967 = vmatprep.mubr.f32.mxu0 0.0
        %4968 = vmatmul.mubr.f32.gmra.mrb[0].mxu0 %v4834
        %v4969 = vpop.f32.mrb[0].mxu0
        %v4970 = vadd.f32 0.0, %v4969
        %v4971 = vpop.f32.mrb[0].mxu0
        %4972 = vmatprep.mubr.f32.mxu0 0.0
        %4973 = vmatmul.mubr.f32.gmra.mrb[0].mxu0 %v4837
        %v4974 = vpop.f32.mrb[0].mxu0
        %v4975 = vpop.f32.mrb[0].mxu0
        %4976 = vmatprep.mubr.f32.mxu0 0.0
        %4977 = vmatmul.mubr.f32.gmra.mrb[0].mxu0 %v4840
        %v4978 = vpop.f32.mrb[0].mxu0
        %v4979 = vadd.f32 0.0, %v4978
        %v4980 = vpop.f32.mrb[0].mxu0
        %4981 = vmatprep.mubr.f32.mxu0 0.0
        %4982 = vmatmul.mubr.f32.gmra.mrb[0].mxu0 %v4843
        %v4983 = vpop.f32.mrb[0].mxu0
        %v4984 = vadd.f32 0.0, %v4983
        %v4985 = vpop.f32.mrb[0].mxu0
        %4986 = vmatprep.mubr.f32.mxu0 0.0
        %4987 = vmatmul.mubr.f32.gmra.mrb[0].mxu0 %v4846
        %v4988 = vpop.f32.mrb[0].mxu0
        %v4989 = vadd.f32 0.0, %v4988
        %v4990 = vpop.f32.mrb[0].mxu0
        %4991 = vmatprep.mubr.f32.mxu0 0.0
        %4992 = vmatmul.mubr.f32.gmra.mrb[0].mxu0 %v4849
        %v4993 = vpop.f32.mrb[0].mxu0
        %v4994 = vadd.f32 0.0, %v4993
        %v4995 = vpop.f32.mrb[0].mxu0
        %4996 = vmatprep.mubr.f32.mxu0 0.0
        %4997 = vmatmul.mubr.f32.gmra.mrb[0].mxu0 %v4852
        %v4998 = vpop.f32.mrb[0].mxu0
        %v4999 = vadd.f32 0.0, %v4998
        %v5000 = vpop.f32.mrb[0].mxu0
        %5001 = vmatprep.mubr.f32.mxu0 0.0
        %5002 = vmatmul.mubr.f32.gmra.mrb[0].mxu0 %v4855
        %v5003 = vpop.f32.mrb[0].mxu0
        %v5004 = vadd.f32 0.0, %v5003
        %v5005 = vpop.f32.mrb[0].mxu0
        %5006 = vmatprep.mubr.f32.mxu0 0.0
        %5007 = vmatmul.mubr.f32.gmra.mrb[0].mxu0 %v4858
        %v5008 = vpop.f32.mrb[0].mxu0
        %v5009 = vpop.f32.mrb[0].mxu0
        %5010 = vdwg.mxu0
        %v5011 = vadd.f32 %v4751, %v4927
        %v5012 = vadd.f32 %v4752, %v4936
        %v5013 = vadd.f32 %v4753, %v4941
        %v5014 = vadd.f32 %v4754, %v4946
        %v5015 = vadd.f32 %v4755, %v4951
        %v5016 = vadd.f32 %v4756, %v4956
        %v5017 = vadd.f32 %v4757, %v4961
        %v5018 = vadd.f32 %v4758, %v4970
        %v5019 = vadd.f32 %v4759, %v4979
        %v5020 = vadd.f32 %v4760, %v4984
        %v5021 = vadd.f32 %v4761, %v4989
        %v5022 = vadd.f32 %v4762, %v4994
        %v5023 = vadd.f32 %v4763, %v4999
        %v5024 = vadd.f32 %v4764, %v5004
        %v5025 = vld [vmem:[%s4767] ss:$2 sm:$0xff]
        %v5026 = vld [vmem:[%s4769] ss:$2 sm:$0xff]
        %v5027 = vld [vmem:[%s4771] ss:$2 sm:$0xff]
        %v5028 = vld [vmem:[%s4773] ss:$2 sm:$0xff]
        %v5029 = vld [vmem:[%s4775] ss:$2 sm:$0xff]
        %v5030 = vld [vmem:[%s4777] ss:$2 sm:$0xff]
        %v5031 = vld [vmem:[%s4779] ss:$2 sm:$0xff]
        %v5032 = vld [vmem:[%s4781] ss:$2 sm:$0xff]
        %v5033 = vld [vmem:[%s4783] ss:$2 sm:$0xff]
        %v5034 = vld [vmem:[%s4785] ss:$2 sm:$0xff]
        %v5035 = vld [vmem:[%s4787] ss:$2 sm:$0xff]
        %v5036 = vld [vmem:[%s4789] ss:$2 sm:$0xff]
        %v5037 = vld [vmem:[%s4791] ss:$2 sm:$0xff]
        %v5038 = vld [vmem:[%s4793] ss:$2 sm:$0xff]
        %v5039 = vld [vmem:[%s4795] ss:$2 sm:$0xff]
        %v5040 = vld [vmem:[%s4797] ss:$2 sm:$0xff]
        %v5041 = vld [vmem:[%s4799] ss:$2 sm:$0xff]
        %s5042 = scalar_lea.vmem [#allocation2], 308
        %v5043 = vld [vmem:[%s5042] ss:$2 sm:$0xff]
        %s5044 = scalar_lea.vmem %s4, 192
        %v5045 = vld [vmem:[%s5044] sm:$0xff]
        %v5046 = vld [vmem:[%s5044 + $0x8] sm:$0xff]
        %v5047 = vld [vmem:[%s5044 + $0x10] sm:$0xff]
        %v5048 = vld [vmem:[%s5044 + $0x18] sm:$0xff]
        %v5050 = vsel %vm3419, %v5025, 0
        %v5053 = vsel %vm3419, %v5026, 0
        %v5056 = vsel %vm3419, %v5027, 0
        %v5059 = vsel %vm3419, %v5028, 0
        %v5062 = vsel %vm3419, %v5029, 0
        %v5065 = vsel %vm3419, %v5030, 0
        %v5068 = vsel %vm3419, %v5031, 0
        %v5071 = vsel %vm3419, %v5032, 0
        %v5074 = vsel %vm3419, %v5033, 0
        %v5077 = vsel %vm3419, %v5034, 0
        %v5080 = vsel %vm3419, %v5035, 0
        %v5083 = vsel %vm3419, %v5036, 0
        %v5086 = vsel %vm3419, %v5037, 0
        %v5089 = vsel %vm3419, %v5038, 0
        %v5092 = vsel %vm3419, %v5039, 0
        %v5095 = vsel %vm3419, %v5040, 0
        %v5098 = vsel %vm3419, %v5041, 0
        %v5101 = vsel %vm3419, %v5043, 0
        %5103 = vmatprep.subr.mxu0 0.0
        %5104 = vmatpush1.msra.mxu0 %v5045
        %5105 = vmatprep.subr.mxu0 0.0
        %5106 = vmatpush1.msra.mxu0 %v5046
        %5107 = vmatprep.subr.mxu0 0.0
        %5108 = vmatpush1.msra.mxu0 %v5047
        %5109 = vmatprep.subr.mxu0 0.0
        %5110 = vmatpush1.msra.mxu0 %v5048
        %5111 = vmatprep.subr.mxu0 0.0
        %5112 = vmatpush1.msra.mxu0 0.0
        %5113 = vmatprep.subr.mxu0 0.0
        %5114 = vmatpush1.msra.mxu0 0.0
        %5115 = vmatprep.subr.mxu0 0.0
        %5116 = vmatpush1.msra.mxu0 0.0
        %5117 = vmatprep.subr.mxu0 0.0
        %5118 = vmatpush1.msra.mxu0 0.0
        %5119 = vmatprep.subr.mxu0 0.0
        %5120 = vmatpush1.msra.mxu0 0.0
        %5121 = vmatprep.subr.mxu0 0.0
        %5122 = vmatpush1.msra.mxu0 0.0
        %5123 = vmatprep.subr.mxu0 0.0
        %5124 = vmatpush1.msra.mxu0 0.0
        %5125 = vmatprep.subr.mxu0 0.0
        %5126 = vmatpush1.msra.mxu0 0.0
        %5127 = vmatprep.subr.mxu0 0.0
        %5128 = vmatpush1.msra.mxu0 0.0
        %5129 = vmatprep.subr.mxu0 0.0
        %5130 = vmatpush1.msra.mxu0 0.0
        %5131 = vmatprep.subr.mxu0 0.0
        %5132 = vmatpush1.msra.mxu0 0.0
        %5133 = vmatprep.subr.mxu0 0.0
        %5134 = vmatpush1.msra.mxu0 0.0
        %5135 = vmatprep.subr.mxu0 0.0
        %5136 = vmatpush1.msra.mxu0 0.0
        %5137 = vmatprep.subr.mxu0 0.0
        %5138 = vmatpush1.msra.mxu0 0.0
        %5139 = vmatprep.subr.mxu0 0.0
        %5140 = vmatpush1.msra.mxu0 0.0
        %5141 = vmatprep.subr.mxu0 0.0
        %5142 = vmatpush1.msra.mxu0 0.0
        %5143 = vmatprep.subr.mxu0 0.0
        %5144 = vmatpush1.msra.mxu0 0.0
        %5145 = vmatprep.subr.mxu0 0.0
        %5146 = vmatpush1.msra.mxu0 0.0
        %5147 = vmatprep.subr.mxu0 0.0
        %5148 = vmatpush1.msra.mxu0 0.0
        %5149 = vmatprep.subr.mxu0 0.0
        %5150 = vmatpush1.msra.mxu0 0.0
        %5151 = vmatprep.subr.mxu0 0.0
        %5152 = vmatpush1.msra.mxu0 0.0
        %5153 = vmatprep.subr.mxu0 0.0
        %5154 = vmatpush1.msra.mxu0 0.0
        %5155 = vmatprep.subr.mxu0 0.0
        %5156 = vmatpush1.msra.mxu0 0.0
        %5157 = vmatprep.subr.mxu0 0.0
        %5158 = vmatpush1.msra.mxu0 0.0
        %5159 = vmatprep.subr.mxu0 0.0
        %5160 = vmatpush1.msra.mxu0 0.0
        %5161 = vmatprep.subr.mxu0 0.0
        %5162 = vmatpush1.msra.mxu0 0.0
        %5163 = vmatprep.subr.mxu0 0.0
        %5164 = vmatpush1.msra.mxu0 0.0
        %5165 = vmatprep.subr.mxu0 0.0
        %5166 = vmatpush1.msra.mxu0 0.0
        %5167 = vmatprep.mubr.f32.mxu0 0.0
        %5168 = vmatmul.mubr.f32.gmra.mrb[0].mxu0 %v5050
        %v5169 = vpop.f32.mrb[0].mxu0
        %v5170 = vadd.f32 0.0, %v5169
        %v5171 = vpop.f32.mrb[0].mxu0
        %5172 = vmatprep.mubr.f32.mxu0 0.0
        %5173 = vmatmul.mubr.f32.gmra.mrb[0].mxu0 %v5053
        %v5174 = vpop.f32.mrb[0].mxu0
        %v5175 = vpop.f32.mrb[0].mxu0
        %5176 = vmatprep.mubr.f32.mxu0 0.0
        %5177 = vmatmul.mubr.f32.gmra.mrb[0].mxu0 %v5056
        %v5178 = vpop.f32.mrb[0].mxu0
        %v5179 = vadd.f32 0.0, %v5178
        %v5180 = vpop.f32.mrb[0].mxu0
        %5181 = vmatprep.mubr.f32.mxu0 0.0
        %5182 = vmatmul.mubr.f32.gmra.mrb[0].mxu0 %v5059
        %v5183 = vpop.f32.mrb[0].mxu0
        %v5184 = vadd.f32 0.0, %v5183
        %v5185 = vpop.f32.mrb[0].mxu0
        %5186 = vmatprep.mubr.f32.mxu0 0.0
        %5187 = vmatmul.mubr.f32.gmra.mrb[0].mxu0 %v5062
        %v5188 = vpop.f32.mrb[0].mxu0
        %v5189 = vadd.f32 0.0, %v5188
        %v5190 = vpop.f32.mrb[0].mxu0
        %5191 = vmatprep.mubr.f32.mxu0 0.0
        %5192 = vmatmul.mubr.f32.gmra.mrb[0].mxu0 %v5065
        %v5193 = vpop.f32.mrb[0].mxu0
        %v5194 = vadd.f32 0.0, %v5193
        %v5195 = vpop.f32.mrb[0].mxu0
        %5196 = vmatprep.mubr.f32.mxu0 0.0
        %5197 = vmatmul.mubr.f32.gmra.mrb[0].mxu0 %v5068
        %v5198 = vpop.f32.mrb[0].mxu0
        %v5199 = vadd.f32 0.0, %v5198
        %v5200 = vpop.f32.mrb[0].mxu0
        %5201 = vmatprep.mubr.f32.mxu0 0.0
        %5202 = vmatmul.mubr.f32.gmra.mrb[0].mxu0 %v5071
        %v5203 = vpop.f32.mrb[0].mxu0
        %v5204 = vadd.f32 0.0, %v5203
        %v5205 = vpop.f32.mrb[0].mxu0
        %5206 = vmatprep.mubr.f32.mxu0 0.0
        %5207 = vmatmul.mubr.f32.gmra.mrb[0].mxu0 %v5074
        %v5208 = vpop.f32.mrb[0].mxu0
        %v5209 = vpop.f32.mrb[0].mxu0
        %5210 = vmatprep.mubr.f32.mxu0 0.0
        %5211 = vmatmul.mubr.f32.gmra.mrb[0].mxu0 %v5077
        %v5212 = vpop.f32.mrb[0].mxu0
        %v5213 = vadd.f32 0.0, %v5212
        %v5214 = vpop.f32.mrb[0].mxu0
        %5215 = vmatprep.mubr.f32.mxu0 0.0
        %5216 = vmatmul.mubr.f32.gmra.mrb[0].mxu0 %v5080
        %v5217 = vpop.f32.mrb[0].mxu0
        %v5218 = vpop.f32.mrb[0].mxu0
        %5219 = vmatprep.mubr.f32.mxu0 0.0
        %5220 = vmatmul.mubr.f32.gmra.mrb[0].mxu0 %v5083
        %v5221 = vpop.f32.mrb[0].mxu0
        %v5222 = vadd.f32 0.0, %v5221
        %v5223 = vpop.f32.mrb[0].mxu0
        %5224 = vmatprep.mubr.f32.mxu0 0.0
        %5225 = vmatmul.mubr.f32.gmra.mrb[0].mxu0 %v5086
        %v5226 = vpop.f32.mrb[0].mxu0
        %v5227 = vadd.f32 0.0, %v5226
        %v5228 = vpop.f32.mrb[0].mxu0
        %5229 = vmatprep.mubr.f32.mxu0 0.0
        %5230 = vmatmul.mubr.f32.gmra.mrb[0].mxu0 %v5089
        %v5231 = vpop.f32.mrb[0].mxu0
        %v5232 = vadd.f32 0.0, %v5231
        %v5233 = vpop.f32.mrb[0].mxu0
        %5234 = vmatprep.mubr.f32.mxu0 0.0
        %5235 = vmatmul.mubr.f32.gmra.mrb[0].mxu0 %v5092
        %v5236 = vpop.f32.mrb[0].mxu0
        %v5237 = vadd.f32 0.0, %v5236
        %v5238 = vpop.f32.mrb[0].mxu0
        %5239 = vmatprep.mubr.f32.mxu0 0.0
        %5240 = vmatmul.mubr.f32.gmra.mrb[0].mxu0 %v5095
        %v5241 = vpop.f32.mrb[0].mxu0
        %v5242 = vadd.f32 0.0, %v5241
        %v5243 = vpop.f32.mrb[0].mxu0
        %5244 = vmatprep.mubr.f32.mxu0 0.0
        %5245 = vmatmul.mubr.f32.gmra.mrb[0].mxu0 %v5098
        %v5246 = vpop.f32.mrb[0].mxu0
        %v5247 = vadd.f32 0.0, %v5246
        %v5248 = vpop.f32.mrb[0].mxu0
        %5249 = vmatprep.mubr.f32.mxu0 0.0
        %5250 = vmatmul.mubr.f32.gmra.mrb[0].mxu0 %v5101
        %v5251 = vpop.f32.mrb[0].mxu0
        %v5252 = vpop.f32.mrb[0].mxu0
        %5253 = vdwg.mxu0
        %v5254 = vadd.f32 %v5011, %v5170
        %v5255 = vadd.f32 %v5012, %v5179
        %v5256 = vadd.f32 %v5013, %v5184
        %v5257 = vadd.f32 %v5014, %v5189
        %v5258 = vadd.f32 %v5015, %v5194
        %v5259 = vadd.f32 %v5016, %v5199
        %v5260 = vadd.f32 %v5017, %v5204
        %v5261 = vadd.f32 %v5018, %v5213
        %v5262 = vadd.f32 %v5019, %v5222
        %v5263 = vadd.f32 %v5020, %v5227
        %v5264 = vadd.f32 %v5021, %v5232
        %v5265 = vadd.f32 %v5022, %v5237
        %v5266 = vadd.f32 %v5023, %v5242
        %v5267 = vadd.f32 %v5024, %v5247
        %s5268 = scalar_lea.vmem [#allocation2], 37
        %v5269 = vld [vmem:[%s5268] ss:$2 sm:$0xff]
        %s5270 = scalar_lea.vmem [#allocation2], 53
        %v5271 = vld [vmem:[%s5270] ss:$2 sm:$0xff]
        %s5272 = scalar_lea.vmem [#allocation2], 69
        %v5273 = vld [vmem:[%s5272] ss:$2 sm:$0xff]
        %s5274 = scalar_lea.vmem [#allocation2], 85
        %v5275 = vld [vmem:[%s5274] ss:$2 sm:$0xff]
        %s5276 = scalar_lea.vmem [#allocation2], 101
        %v5277 = vld [vmem:[%s5276] ss:$2 sm:$0xff]
        %s5278 = scalar_lea.vmem [#allocation2], 117
        %v5279 = vld [vmem:[%s5278] ss:$2 sm:$0xff]
        %s5280 = scalar_lea.vmem [#allocation2], 133
        %v5281 = vld [vmem:[%s5280] ss:$2 sm:$0xff]
        %s5282 = scalar_lea.vmem [#allocation2], 149
        %v5283 = vld [vmem:[%s5282] ss:$2 sm:$0xff]
        %s5284 = scalar_lea.vmem [#allocation2], 165
        %v5285 = vld [vmem:[%s5284] ss:$2 sm:$0xff]
        %s5286 = scalar_lea.vmem [#allocation2], 181
        %v5287 = vld [vmem:[%s5286] ss:$2 sm:$0xff]
        %s5288 = scalar_lea.vmem [#allocation2], 197
        %v5289 = vld [vmem:[%s5288] ss:$2 sm:$0xff]
        %s5290 = scalar_lea.vmem [#allocation2], 213
        %v5291 = vld [vmem:[%s5290] ss:$2 sm:$0xff]
        %s5292 = scalar_lea.vmem [#allocation2], 229
        %v5293 = vld [vmem:[%s5292] ss:$2 sm:$0xff]
        %s5294 = scalar_lea.vmem [#allocation2], 245
        %v5295 = vld [vmem:[%s5294] ss:$2 sm:$0xff]
        %s5296 = scalar_lea.vmem [#allocation2], 261
        %v5297 = vld [vmem:[%s5296] ss:$2 sm:$0xff]
        %s5298 = scalar_lea.vmem [#allocation2], 277
        %v5299 = vld [vmem:[%s5298] ss:$2 sm:$0xff]
        %s5300 = scalar_lea.vmem [#allocation2], 293
        %v5301 = vld [vmem:[%s5300] ss:$2 sm:$0xff]
        %s5302 = scalar_lea.vmem [#allocation2], 309
        %v5303 = vld [vmem:[%s5302] ss:$2 sm:$0xff]
        %s5304 = scalar_lea.vmem %s4, 224
        %v5305 = vld [vmem:[%s5304] sm:$0xff]
        %v5306 = vld [vmem:[%s5304 + $0x8] sm:$0xff]
        %v5307 = vld [vmem:[%s5304 + $0x10] sm:$0xff]
        %v5308 = vld [vmem:[%s5304 + $0x18] sm:$0xff]
        %v5310 = vsel %vm3419, %v5269, 0
        %v5313 = vsel %vm3419, %v5271, 0
        %v5316 = vsel %vm3419, %v5273, 0
        %v5319 = vsel %vm3419, %v5275, 0
        %v5322 = vsel %vm3419, %v5277, 0
        %v5325 = vsel %vm3419, %v5279, 0
        %v5328 = vsel %vm3419, %v5281, 0
        %v5331 = vsel %vm3419, %v5283, 0
        %v5334 = vsel %vm3419, %v5285, 0
        %v5337 = vsel %vm3419, %v5287, 0
        %v5340 = vsel %vm3419, %v5289, 0
        %v5343 = vsel %vm3419, %v5291, 0
        %v5346 = vsel %vm3419, %v5293, 0
        %v5349 = vsel %vm3419, %v5295, 0
        %v5352 = vsel %vm3419, %v5297, 0
        %v5355 = vsel %vm3419, %v5299, 0
        %v5358 = vsel %vm3419, %v5301, 0
        %v5361 = vsel %vm3419, %v5303, 0
        %5363 = vmatprep.subr.mxu0 0.0
        %5364 = vmatpush1.msra.mxu0 %v5305
        %5365 = vmatprep.subr.mxu0 0.0
        %5366 = vmatpush1.msra.mxu0 %v5306
        %5367 = vmatprep.subr.mxu0 0.0
        %5368 = vmatpush1.msra.mxu0 %v5307
        %5369 = vmatprep.subr.mxu0 0.0
        %5370 = vmatpush1.msra.mxu0 %v5308
        %5371 = vmatprep.subr.mxu0 0.0
        %5372 = vmatpush1.msra.mxu0 0.0
        %5373 = vmatprep.subr.mxu0 0.0
        %5374 = vmatpush1.msra.mxu0 0.0
        %5375 = vmatprep.subr.mxu0 0.0
        %5376 = vmatpush1.msra.mxu0 0.0
        %5377 = vmatprep.subr.mxu0 0.0
        %5378 = vmatpush1.msra.mxu0 0.0
        %5379 = vmatprep.subr.mxu0 0.0
        %5380 = vmatpush1.msra.mxu0 0.0
        %5381 = vmatprep.subr.mxu0 0.0
        %5382 = vmatpush1.msra.mxu0 0.0
        %5383 = vmatprep.subr.mxu0 0.0
        %5384 = vmatpush1.msra.mxu0 0.0
        %5385 = vmatprep.subr.mxu0 0.0
        %5386 = vmatpush1.msra.mxu0 0.0
        %5387 = vmatprep.subr.mxu0 0.0
        %5388 = vmatpush1.msra.mxu0 0.0
        %5389 = vmatprep.subr.mxu0 0.0
        %5390 = vmatpush1.msra.mxu0 0.0
        %5391 = vmatprep.subr.mxu0 0.0
        %5392 = vmatpush1.msra.mxu0 0.0
        %5393 = vmatprep.subr.mxu0 0.0
        %5394 = vmatpush1.msra.mxu0 0.0
        %5395 = vmatprep.subr.mxu0 0.0
        %5396 = vmatpush1.msra.mxu0 0.0
        %5397 = vmatprep.subr.mxu0 0.0
        %5398 = vmatpush1.msra.mxu0 0.0
        %5399 = vmatprep.subr.mxu0 0.0
        %5400 = vmatpush1.msra.mxu0 0.0
        %5401 = vmatprep.subr.mxu0 0.0
        %5402 = vmatpush1.msra.mxu0 0.0
        %5403 = vmatprep.subr.mxu0 0.0
        %5404 = vmatpush1.msra.mxu0 0.0
        %5405 = vmatprep.subr.mxu0 0.0
        %5406 = vmatpush1.msra.mxu0 0.0
        %5407 = vmatprep.subr.mxu0 0.0
        %5408 = vmatpush1.msra.mxu0 0.0
        %5409 = vmatprep.subr.mxu0 0.0
        %5410 = vmatpush1.msra.mxu0 0.0
        %5411 = vmatprep.subr.mxu0 0.0
        %5412 = vmatpush1.msra.mxu0 0.0
        %5413 = vmatprep.subr.mxu0 0.0
        %5414 = vmatpush1.msra.mxu0 0.0
        %5415 = vmatprep.subr.mxu0 0.0
        %5416 = vmatpush1.msra.mxu0 0.0
        %5417 = vmatprep.subr.mxu0 0.0
        %5418 = vmatpush1.msra.mxu0 0.0
        %5419 = vmatprep.subr.mxu0 0.0
        %5420 = vmatpush1.msra.mxu0 0.0
        %5421 = vmatprep.subr.mxu0 0.0
        %5422 = vmatpush1.msra.mxu0 0.0
        %5423 = vmatprep.subr.mxu0 0.0
        %5424 = vmatpush1.msra.mxu0 0.0
        %5425 = vmatprep.subr.mxu0 0.0
        %5426 = vmatpush1.msra.mxu0 0.0
        %5427 = vmatprep.mubr.f32.mxu0 0.0
        %5428 = vmatmul.mubr.f32.gmra.mrb[0].mxu0 %v5310
        %v5429 = vpop.f32.mrb[0].mxu0
        %v5430 = vadd.f32 0.0, %v5429
        %v5431 = vpop.f32.mrb[0].mxu0
        %5432 = vmatprep.mubr.f32.mxu0 0.0
        %5433 = vmatmul.mubr.f32.gmra.mrb[0].mxu0 %v5313
        %v5434 = vpop.f32.mrb[0].mxu0
        %v5435 = vpop.f32.mrb[0].mxu0
        %5436 = vmatprep.mubr.f32.mxu0 0.0
        %5437 = vmatmul.mubr.f32.gmra.mrb[0].mxu0 %v5316
        %v5438 = vpop.f32.mrb[0].mxu0
        %v5439 = vadd.f32 0.0, %v5438
        %v5440 = vpop.f32.mrb[0].mxu0
        %5441 = vmatprep.mubr.f32.mxu0 0.0
        %5442 = vmatmul.mubr.f32.gmra.mrb[0].mxu0 %v5319
        %v5443 = vpop.f32.mrb[0].mxu0
        %v5444 = vadd.f32 0.0, %v5443
        %v5445 = vpop.f32.mrb[0].mxu0
        %5446 = vmatprep.mubr.f32.mxu0 0.0
        %5447 = vmatmul.mubr.f32.gmra.mrb[0].mxu0 %v5322
        %v5448 = vpop.f32.mrb[0].mxu0
        %v5449 = vadd.f32 0.0, %v5448
        %v5450 = vpop.f32.mrb[0].mxu0
        %5451 = vmatprep.mubr.f32.mxu0 0.0
        %5452 = vmatmul.mubr.f32.gmra.mrb[0].mxu0 %v5325
        %v5453 = vpop.f32.mrb[0].mxu0
        %v5454 = vadd.f32 0.0, %v5453
        %v5455 = vpop.f32.mrb[0].mxu0
        %5456 = vmatprep.mubr.f32.mxu0 0.0
        %5457 = vmatmul.mubr.f32.gmra.mrb[0].mxu0 %v5328
        %v5458 = vpop.f32.mrb[0].mxu0
        %v5459 = vadd.f32 0.0, %v5458
        %v5460 = vpop.f32.mrb[0].mxu0
        %5461 = vmatprep.mubr.f32.mxu0 0.0
        %5462 = vmatmul.mubr.f32.gmra.mrb[0].mxu0 %v5331
        %v5463 = vpop.f32.mrb[0].mxu0
        %v5464 = vadd.f32 0.0, %v5463
        %v5465 = vpop.f32.mrb[0].mxu0
        %5466 = vmatprep.mubr.f32.mxu0 0.0
        %5467 = vmatmul.mubr.f32.gmra.mrb[0].mxu0 %v5334
        %v5468 = vpop.f32.mrb[0].mxu0
        %v5469 = vpop.f32.mrb[0].mxu0
        %5470 = vmatprep.mubr.f32.mxu0 0.0
        %5471 = vmatmul.mubr.f32.gmra.mrb[0].mxu0 %v5337
        %v5472 = vpop.f32.mrb[0].mxu0
        %v5473 = vadd.f32 0.0, %v5472
        %v5474 = vpop.f32.mrb[0].mxu0
        %5475 = vmatprep.mubr.f32.mxu0 0.0
        %5476 = vmatmul.mubr.f32.gmra.mrb[0].mxu0 %v5340
        %v5477 = vpop.f32.mrb[0].mxu0
        %v5478 = vpop.f32.mrb[0].mxu0
        %5479 = vmatprep.mubr.f32.mxu0 0.0
        %5480 = vmatmul.mubr.f32.gmra.mrb[0].mxu0 %v5343
        %v5481 = vpop.f32.mrb[0].mxu0
        %v5482 = vadd.f32 0.0, %v5481
        %v5483 = vpop.f32.mrb[0].mxu0
        %5484 = vmatprep.mubr.f32.mxu0 0.0
        %5485 = vmatmul.mubr.f32.gmra.mrb[0].mxu0 %v5346
        %v5486 = vpop.f32.mrb[0].mxu0
        %v5487 = vadd.f32 0.0, %v5486
        %v5488 = vpop.f32.mrb[0].mxu0
        %5489 = vmatprep.mubr.f32.mxu0 0.0
        %5490 = vmatmul.mubr.f32.gmra.mrb[0].mxu0 %v5349
        %v5491 = vpop.f32.mrb[0].mxu0
        %v5492 = vadd.f32 0.0, %v5491
        %v5493 = vpop.f32.mrb[0].mxu0
        %5494 = vmatprep.mubr.f32.mxu0 0.0
        %5495 = vmatmul.mubr.f32.gmra.mrb[0].mxu0 %v5352
        %v5496 = vpop.f32.mrb[0].mxu0
        %v5497 = vadd.f32 0.0, %v5496
        %v5498 = vpop.f32.mrb[0].mxu0
        %5499 = vmatprep.mubr.f32.mxu0 0.0
        %5500 = vmatmul.mubr.f32.gmra.mrb[0].mxu0 %v5355
        %v5501 = vpop.f32.mrb[0].mxu0
        %v5502 = vadd.f32 0.0, %v5501
        %v5503 = vpop.f32.mrb[0].mxu0
        %5504 = vmatprep.mubr.f32.mxu0 0.0
        %5505 = vmatmul.mubr.f32.gmra.mrb[0].mxu0 %v5358
        %v5506 = vpop.f32.mrb[0].mxu0
        %v5507 = vadd.f32 0.0, %v5506
        %v5508 = vpop.f32.mrb[0].mxu0
        %5509 = vmatprep.mubr.f32.mxu0 0.0
        %5510 = vmatmul.mubr.f32.gmra.mrb[0].mxu0 %v5361
        %v5511 = vpop.f32.mrb[0].mxu0
        %v5512 = vpop.f32.mrb[0].mxu0
        %5513 = vdwg.mxu0
        %v5514 = vadd.f32 %v5254, %v5430
        %v5515 = vadd.f32 %v5255, %v5439
        %v5516 = vadd.f32 %v5256, %v5444
        %v5517 = vadd.f32 %v5257, %v5449
        %v5518 = vadd.f32 %v5258, %v5454
        %v5519 = vadd.f32 %v5259, %v5459
        %v5520 = vadd.f32 %v5260, %v5464
        %v5521 = vadd.f32 %v5261, %v5473
        %v5522 = vadd.f32 %v5262, %v5482
        %v5523 = vadd.f32 %v5263, %v5487
        %v5524 = vadd.f32 %v5264, %v5492
        %v5525 = vadd.f32 %v5265, %v5497
        %v5526 = vadd.f32 %v5266, %v5502
        %v5527 = vadd.f32 %v5267, %v5507
        %s5528 = scalar_lea.vmem [#allocation2], 38
        %v5529 = vld [vmem:[%s5528] ss:$2 sm:$0xff]
        %s5530 = scalar_lea.vmem [#allocation2], 54
        %v5531 = vld [vmem:[%s5530] ss:$2 sm:$0xff]
        %s5532 = scalar_lea.vmem [#allocation2], 70
        %v5533 = vld [vmem:[%s5532] ss:$2 sm:$0xff]
        %s5534 = scalar_lea.vmem [#allocation2], 86
        %v5535 = vld [vmem:[%s5534] ss:$2 sm:$0xff]
        %s5536 = scalar_lea.vmem [#allocation2], 102
        %v5537 = vld [vmem:[%s5536] ss:$2 sm:$0xff]
        %s5538 = scalar_lea.vmem [#allocation2], 118
        %v5539 = vld [vmem:[%s5538] ss:$2 sm:$0xff]
        %s5540 = scalar_lea.vmem [#allocation2], 134
        %v5541 = vld [vmem:[%s5540] ss:$2 sm:$0xff]
        %s5542 = scalar_lea.vmem [#allocation2], 150
        %v5543 = vld [vmem:[%s5542] ss:$2 sm:$0xff]
        %s5544 = scalar_lea.vmem [#allocation2], 166
        %v5545 = vld [vmem:[%s5544] ss:$2 sm:$0xff]
        %s5546 = scalar_lea.vmem [#allocation2], 182
        %v5547 = vld [vmem:[%s5546] ss:$2 sm:$0xff]
        %s5548 = scalar_lea.vmem [#allocation2], 198
        %v5549 = vld [vmem:[%s5548] ss:$2 sm:$0xff]
        %s5550 = scalar_lea.vmem [#allocation2], 214
        %v5551 = vld [vmem:[%s5550] ss:$2 sm:$0xff]
        %s5552 = scalar_lea.vmem [#allocation2], 230
        %v5553 = vld [vmem:[%s5552] ss:$2 sm:$0xff]
        %s5554 = scalar_lea.vmem [#allocation2], 246
        %v5555 = vld [vmem:[%s5554] ss:$2 sm:$0xff]
        %s5556 = scalar_lea.vmem [#allocation2], 262
        %v5557 = vld [vmem:[%s5556] ss:$2 sm:$0xff]
        %s5558 = scalar_lea.vmem [#allocation2], 278
        %v5559 = vld [vmem:[%s5558] ss:$2 sm:$0xff]
        %s5560 = scalar_lea.vmem [#allocation2], 294
        %v5561 = vld [vmem:[%s5560] ss:$2 sm:$0xff]
        %s5562 = scalar_lea.vmem [#allocation2], 310
        %v5563 = vld [vmem:[%s5562] ss:$2 sm:$0xff]
        %s5564 = scalar_lea.vmem %s4, 256
        %v5565 = vld [vmem:[%s5564] sm:$0xff]
        %v5566 = vld [vmem:[%s5564 + $0x8] sm:$0xff]
        %v5567 = vld [vmem:[%s5564 + $0x10] sm:$0xff]
        %v5568 = vld [vmem:[%s5564 + $0x18] sm:$0xff]
        %v5570 = vsel %vm3419, %v5529, 0
        %v5573 = vsel %vm3419, %v5531, 0
        %v5576 = vsel %vm3419, %v5533, 0
        %v5579 = vsel %vm3419, %v5535, 0
        %v5582 = vsel %vm3419, %v5537, 0
        %v5585 = vsel %vm3419, %v5539, 0
        %v5588 = vsel %vm3419, %v5541, 0
        %v5591 = vsel %vm3419, %v5543, 0
        %v5594 = vsel %vm3419, %v5545, 0
        %v5597 = vsel %vm3419, %v5547, 0
        %v5600 = vsel %vm3419, %v5549, 0
        %v5603 = vsel %vm3419, %v5551, 0
        %v5606 = vsel %vm3419, %v5553, 0
        %v5609 = vsel %vm3419, %v5555, 0
        %v5612 = vsel %vm3419, %v5557, 0
        %v5615 = vsel %vm3419, %v5559, 0
        %v5618 = vsel %vm3419, %v5561, 0
        %v5621 = vsel %vm3419, %v5563, 0
        %5623 = vmatprep.subr.mxu0 0.0
        %5624 = vmatpush1.msra.mxu0 %v5565
        %5625 = vmatprep.subr.mxu0 0.0
        %5626 = vmatpush1.msra.mxu0 %v5566
        %5627 = vmatprep.subr.mxu0 0.0
        %5628 = vmatpush1.msra.mxu0 %v5567
        %5629 = vmatprep.subr.mxu0 0.0
        %5630 = vmatpush1.msra.mxu0 %v5568
        %5631 = vmatprep.subr.mxu0 0.0
        %5632 = vmatpush1.msra.mxu0 0.0
        %5633 = vmatprep.subr.mxu0 0.0
        %5634 = vmatpush1.msra.mxu0 0.0
        %5635 = vmatprep.subr.mxu0 0.0
        %5636 = vmatpush1.msra.mxu0 0.0
        %5637 = vmatprep.subr.mxu0 0.0
        %5638 = vmatpush1.msra.mxu0 0.0
        %5639 = vmatprep.subr.mxu0 0.0
        %5640 = vmatpush1.msra.mxu0 0.0
        %5641 = vmatprep.subr.mxu0 0.0
        %5642 = vmatpush1.msra.mxu0 0.0
        %5643 = vmatprep.subr.mxu0 0.0
        %5644 = vmatpush1.msra.mxu0 0.0
        %5645 = vmatprep.subr.mxu0 0.0
        %5646 = vmatpush1.msra.mxu0 0.0
        %5647 = vmatprep.subr.mxu0 0.0
        %5648 = vmatpush1.msra.mxu0 0.0
        %5649 = vmatprep.subr.mxu0 0.0
        %5650 = vmatpush1.msra.mxu0 0.0
        %5651 = vmatprep.subr.mxu0 0.0
        %5652 = vmatpush1.msra.mxu0 0.0
        %5653 = vmatprep.subr.mxu0 0.0
        %5654 = vmatpush1.msra.mxu0 0.0
        %5655 = vmatprep.subr.mxu0 0.0
        %5656 = vmatpush1.msra.mxu0 0.0
        %5657 = vmatprep.subr.mxu0 0.0
        %5658 = vmatpush1.msra.mxu0 0.0
        %5659 = vmatprep.subr.mxu0 0.0
        %5660 = vmatpush1.msra.mxu0 0.0
        %5661 = vmatprep.subr.mxu0 0.0
        %5662 = vmatpush1.msra.mxu0 0.0
        %5663 = vmatprep.subr.mxu0 0.0
        %5664 = vmatpush1.msra.mxu0 0.0
        %5665 = vmatprep.subr.mxu0 0.0
        %5666 = vmatpush1.msra.mxu0 0.0
        %5667 = vmatprep.subr.mxu0 0.0
        %5668 = vmatpush1.msra.mxu0 0.0
        %5669 = vmatprep.subr.mxu0 0.0
        %5670 = vmatpush1.msra.mxu0 0.0
        %5671 = vmatprep.subr.mxu0 0.0
        %5672 = vmatpush1.msra.mxu0 0.0
        %5673 = vmatprep.subr.mxu0 0.0
        %5674 = vmatpush1.msra.mxu0 0.0
        %5675 = vmatprep.subr.mxu0 0.0
        %5676 = vmatpush1.msra.mxu0 0.0
        %5677 = vmatprep.subr.mxu0 0.0
        %5678 = vmatpush1.msra.mxu0 0.0
        %5679 = vmatprep.subr.mxu0 0.0
        %5680 = vmatpush1.msra.mxu0 0.0
        %5681 = vmatprep.subr.mxu0 0.0
        %5682 = vmatpush1.msra.mxu0 0.0
        %5683 = vmatprep.subr.mxu0 0.0
        %5684 = vmatpush1.msra.mxu0 0.0
        %5685 = vmatprep.subr.mxu0 0.0
        %5686 = vmatpush1.msra.mxu0 0.0
        %5687 = vmatprep.mubr.f32.mxu0 0.0
        %5688 = vmatmul.mubr.f32.gmra.mrb[0].mxu0 %v5570
        %v5689 = vpop.f32.mrb[0].mxu0
        %v5690 = vadd.f32 0.0, %v5689
        %v5691 = vpop.f32.mrb[0].mxu0
        %5692 = vmatprep.mubr.f32.mxu0 0.0
        %5693 = vmatmul.mubr.f32.gmra.mrb[0].mxu0 %v5573
        %v5694 = vpop.f32.mrb[0].mxu0
        %v5695 = vpop.f32.mrb[0].mxu0
        %5696 = vmatprep.mubr.f32.mxu0 0.0
        %5697 = vmatmul.mubr.f32.gmra.mrb[0].mxu0 %v5576
        %v5698 = vpop.f32.mrb[0].mxu0
        %v5699 = vadd.f32 0.0, %v5698
        %v5700 = vpop.f32.mrb[0].mxu0
        %5701 = vmatprep.mubr.f32.mxu0 0.0
        %5702 = vmatmul.mubr.f32.gmra.mrb[0].mxu0 %v5579
        %v5703 = vpop.f32.mrb[0].mxu0
        %v5704 = vadd.f32 0.0, %v5703
        %v5705 = vpop.f32.mrb[0].mxu0
        %5706 = vmatprep.mubr.f32.mxu0 0.0
        %5707 = vmatmul.mubr.f32.gmra.mrb[0].mxu0 %v5582
        %v5708 = vpop.f32.mrb[0].mxu0
        %v5709 = vadd.f32 0.0, %v5708
        %v5710 = vpop.f32.mrb[0].mxu0
        %5711 = vmatprep.mubr.f32.mxu0 0.0
        %5712 = vmatmul.mubr.f32.gmra.mrb[0].mxu0 %v5585
        %v5713 = vpop.f32.mrb[0].mxu0
        %v5714 = vadd.f32 0.0, %v5713
        %v5715 = vpop.f32.mrb[0].mxu0
        %5716 = vmatprep.mubr.f32.mxu0 0.0
        %5717 = vmatmul.mubr.f32.gmra.mrb[0].mxu0 %v5588
        %v5718 = vpop.f32.mrb[0].mxu0
        %v5719 = vadd.f32 0.0, %v5718
        %v5720 = vpop.f32.mrb[0].mxu0
        %5721 = vmatprep.mubr.f32.mxu0 0.0
        %5722 = vmatmul.mubr.f32.gmra.mrb[0].mxu0 %v5591
        %v5723 = vpop.f32.mrb[0].mxu0
        %v5724 = vadd.f32 0.0, %v5723
        %v5725 = vpop.f32.mrb[0].mxu0
        %5726 = vmatprep.mubr.f32.mxu0 0.0
        %5727 = vmatmul.mubr.f32.gmra.mrb[0].mxu0 %v5594
        %v5728 = vpop.f32.mrb[0].mxu0
        %v5729 = vpop.f32.mrb[0].mxu0
        %5730 = vmatprep.mubr.f32.mxu0 0.0
        %5731 = vmatmul.mubr.f32.gmra.mrb[0].mxu0 %v5597
        %v5732 = vpop.f32.mrb[0].mxu0
        %v5733 = vadd.f32 0.0, %v5732
        %v5734 = vpop.f32.mrb[0].mxu0
        %5735 = vmatprep.mubr.f32.mxu0 0.0
        %5736 = vmatmul.mubr.f32.gmra.mrb[0].mxu0 %v5600
        %v5737 = vpop.f32.mrb[0].mxu0
        %v5738 = vpop.f32.mrb[0].mxu0
        %5739 = vmatprep.mubr.f32.mxu0 0.0
        %5740 = vmatmul.mubr.f32.gmra.mrb[0].mxu0 %v5603
        %v5741 = vpop.f32.mrb[0].mxu0
        %v5742 = vadd.f32 0.0, %v5741
        %v5743 = vpop.f32.mrb[0].mxu0
        %5744 = vmatprep.mubr.f32.mxu0 0.0
        %5745 = vmatmul.mubr.f32.gmra.mrb[0].mxu0 %v5606
        %v5746 = vpop.f32.mrb[0].mxu0
        %v5747 = vadd.f32 0.0, %v5746
        %v5748 = vpop.f32.mrb[0].mxu0
        %5749 = vmatprep.mubr.f32.mxu0 0.0
        %5750 = vmatmul.mubr.f32.gmra.mrb[0].mxu0 %v5609
        %v5751 = vpop.f32.mrb[0].mxu0
        %v5752 = vadd.f32 0.0, %v5751
        %v5753 = vpop.f32.mrb[0].mxu0
        %5754 = vmatprep.mubr.f32.mxu0 0.0
        %5755 = vmatmul.mubr.f32.gmra.mrb[0].mxu0 %v5612
        %v5756 = vpop.f32.mrb[0].mxu0
        %v5757 = vadd.f32 0.0, %v5756
        %v5758 = vpop.f32.mrb[0].mxu0
        %5759 = vmatprep.mubr.f32.mxu0 0.0
        %5760 = vmatmul.mubr.f32.gmra.mrb[0].mxu0 %v5615
        %v5761 = vpop.f32.mrb[0].mxu0
        %v5762 = vadd.f32 0.0, %v5761
        %v5763 = vpop.f32.mrb[0].mxu0
        %5764 = vmatprep.mubr.f32.mxu0 0.0
        %5765 = vmatmul.mubr.f32.gmra.mrb[0].mxu0 %v5618
        %v5766 = vpop.f32.mrb[0].mxu0
        %v5767 = vadd.f32 0.0, %v5766
        %v5768 = vpop.f32.mrb[0].mxu0
        %5769 = vmatprep.mubr.f32.mxu0 0.0
        %5770 = vmatmul.mubr.f32.gmra.mrb[0].mxu0 %v5621
        %v5771 = vpop.f32.mrb[0].mxu0
        %v5772 = vpop.f32.mrb[0].mxu0
        %5773 = vdwg.mxu0
        %v5774 = vadd.f32 %v5514, %v5690
        %v5775 = vadd.f32 %v5515, %v5699
        %v5776 = vadd.f32 %v5516, %v5704
        %v5777 = vadd.f32 %v5517, %v5709
        %v5778 = vadd.f32 %v5518, %v5714
        %v5779 = vadd.f32 %v5519, %v5719
        %v5780 = vadd.f32 %v5520, %v5724
        %v5781 = vadd.f32 %v5521, %v5733
        %v5782 = vadd.f32 %v5522, %v5742
        %v5783 = vadd.f32 %v5523, %v5747
        %v5784 = vadd.f32 %v5524, %v5752
        %v5785 = vadd.f32 %v5525, %v5757
        %v5786 = vadd.f32 %v5526, %v5762
        %v5787 = vadd.f32 %v5527, %v5767
        %v5788 = vld [vmem:[#allocation11] sm:$0x1]
        %v5790 = vlaneseq
        %v5791 = vshrl.u32 %v5790, 7
        %v5792 = vsub.s32 0, %v5791
        %v5793 = vrot.slane %v5788, %v5792
        %v5795 = vadd.f32 %v5774, %v5793
        %v5796 = vadd.f32 %v5775, %v5793
        %v5797 = vadd.f32 %v5776, %v5793
        %v5798 = vadd.f32 %v5777, %v5793
        %v5799 = vadd.f32 %v5778, %v5793
        %v5800 = vadd.f32 %v5779, %v5793
        %v5801 = vadd.f32 %v5780, %v5793
        %v5802 = vadd.f32 %v5781, %v5793
        %v5803 = vadd.f32 %v5782, %v5793
        %v5804 = vadd.f32 %v5783, %v5793
        %v5805 = vadd.f32 %v5784, %v5793
        %v5806 = vadd.f32 %v5785, %v5793
        %v5807 = vadd.f32 %v5786, %v5793
        %v5808 = vadd.f32 %v5787, %v5793
        %vm5809 = vcmp.gt.f32.partialorder %v5795, 0.0
        %vm5810 = vcmp.gt.f32.partialorder %v5796, 0.0
        %vm5811 = vcmp.gt.f32.partialorder %v5797, 0.0
        %vm5812 = vcmp.gt.f32.partialorder %v5798, 0.0
        %vm5813 = vcmp.gt.f32.partialorder %v5799, 0.0
        %vm5814 = vcmp.gt.f32.partialorder %v5800, 0.0
        %vm5815 = vcmp.gt.f32.partialorder %v5801, 0.0
        %vm5816 = vcmp.gt.f32.partialorder %v5802, 0.0
        %vm5817 = vcmp.gt.f32.partialorder %v5803, 0.0
        %vm5818 = vcmp.gt.f32.partialorder %v5804, 0.0
        %vm5819 = vcmp.gt.f32.partialorder %v5805, 0.0
        %vm5820 = vcmp.gt.f32.partialorder %v5806, 0.0
        %vm5821 = vcmp.gt.f32.partialorder %v5807, 0.0
        %vm5822 = vcmp.gt.f32.partialorder %v5808, 0.0
        %v5823 = vld [vmem:[#allocation13] sm:$0x1]
        %v5825 = vlaneseq
        %v5826 = vshrl.u32 %v5825, 7
        %v5827 = vsub.s32 0, %v5826
        %v5828 = vrot.slane %v5823, %v5827
        %v5830 = vmul.f32 %v5828, %v5795
        %v5831 = vmul.f32 %v5828, %v5796
        %v5832 = vmul.f32 %v5828, %v5797
        %v5833 = vmul.f32 %v5828, %v5798
        %v5834 = vmul.f32 %v5828, %v5799
        %v5835 = vmul.f32 %v5828, %v5800
        %v5836 = vmul.f32 %v5828, %v5801
        %v5837 = vmul.f32 %v5828, %v5802
        %v5838 = vmul.f32 %v5828, %v5803
        %v5839 = vmul.f32 %v5828, %v5804
        %v5840 = vmul.f32 %v5828, %v5805
        %v5841 = vmul.f32 %v5828, %v5806
        %v5842 = vmul.f32 %v5828, %v5807
        %v5843 = vmul.f32 %v5828, %v5808
        %v5844 = vsel %vm5809, %v5795, %v5830
        %v5845 = vsel %vm5810, %v5796, %v5831
        %v5846 = vsel %vm5811, %v5797, %v5832
        %v5847 = vsel %vm5812, %v5798, %v5833
        %v5848 = vsel %vm5813, %v5799, %v5834
        %v5849 = vsel %vm5814, %v5800, %v5835
        %v5850 = vsel %vm5815, %v5801, %v5836
        %v5851 = vsel %vm5816, %v5802, %v5837
        %v5852 = vsel %vm5817, %v5803, %v5838
        %v5853 = vsel %vm5818, %v5804, %v5839
        %v5854 = vsel %vm5819, %v5805, %v5840
        %v5855 = vsel %vm5820, %v5806, %v5841
        %v5856 = vsel %vm5821, %v5807, %v5842
        %v5857 = vsel %vm5822, %v5808, %v5843
        %vm5858 = vcmask 523264
        %5859 = vst.msk [vmem:[#allocation3] sm:$0xff] %vm5858, 0.0
        %5860 = vst.msk [vmem:[#allocation3 + $0x8] sm:$0xff] %vm5858, 0.0
        %5861 = vst.msk [vmem:[#allocation3 + $0x10] sm:$0xff] %vm5858, 0.0
        %5862 = vst.msk [vmem:[#allocation3 + $0x18] sm:$0xff] %vm5858, 0.0
        %5863 = vst.msk [vmem:[#allocation3 + $0x20] sm:$0xff] %vm5858, 0.0
        %5864 = vst.msk [vmem:[#allocation3 + $0x28] sm:$0xff] %vm5858, 0.0
        %5865 = vst.msk [vmem:[#allocation3 + $0x30] sm:$0xff] %vm5858, 0.0
        %5866 = vst.msk [vmem:[#allocation3 + $0x38] sm:$0xff] %vm5858, 0.0
        %5867 = vst.msk [vmem:[#allocation3 + $0x40] sm:$0xff] %vm5858, 0.0
        %5868 = vst.msk [vmem:[#allocation3 + $0x48] sm:$0xff] %vm5858, 0.0
        %5869 = vst.msk [vmem:[#allocation3 + $0x50] sm:$0xff] %vm5858, 0.0
        %5870 = vst.msk [vmem:[#allocation3 + $0x58] sm:$0xff] %vm5858, 0.0
        %5871 = vst.msk [vmem:[#allocation3 + $0x60] sm:$0xff] %vm5858, 0.0
        %5872 = vst.msk [vmem:[#allocation3 + $0x68] sm:$0xff] %vm5858, 0.0
        %5873 = vst.msk [vmem:[#allocation3 + $0xb] sm:$0xff] %vm5858, %v5844
        %vm5874 = vcmask 523266
        %5875 = vst.msk [vmem:[#allocation3 + $0x13] sm:$0xfc] %vm5874, %v5845
        %vm5876 = vcmask 517120
        %5877 = vst.msk [vmem:[#allocation3 + $0x1b] sm:$0x3] %vm5876, %v5846
        %vm5878 = vcmask 523268
        %5879 = vst.msk [vmem:[#allocation3 + $0x1b] sm:$0xf0] %vm5878, %v5847
        %vm5880 = vcmask 519168
        %5881 = vst.msk [vmem:[#allocation3 + $0x23] sm:$0xf] %vm5880, %v5848
        %vm5882 = vcmask 523270
        %5883 = vst.msk [vmem:[#allocation3 + $0x23] sm:$0xc0] %vm5882, %v5849
        %vm5884 = vcmask 521216
        %5885 = vst.msk [vmem:[#allocation3 + $0x2b] sm:$0x3f] %vm5884, %v5850
        %5886 = vst.msk [vmem:[#allocation3 + $0x33] sm:$0xff] %vm5858, %v5851
        %5887 = vst.msk [vmem:[#allocation3 + $0x3b] sm:$0xfc] %vm5874, %v5852
        %5888 = vst.msk [vmem:[#allocation3 + $0x43] sm:$0x3] %vm5876, %v5853
        %5889 = vst.msk [vmem:[#allocation3 + $0x43] sm:$0xf0] %vm5878, %v5854
        %5890 = vst.msk [vmem:[#allocation3 + $0x4b] sm:$0xf] %vm5880, %v5855
        %5891 = vst.msk [vmem:[#allocation3 + $0x4b] sm:$0xc0] %vm5882, %v5856
        %5892 = vst.msk [vmem:[#allocation3 + $0x53] sm:$0x3f] %vm5884, %v5857
        %v5893 = vld [vmem:[#allocation3] sm:$0xff]
        %v5894 = vld [vmem:[#allocation3 + $0x8] sm:$0xff]
        %v5895 = vld [vmem:[#allocation3 + $0x10] sm:$0xff]
        %v5896 = vld [vmem:[#allocation3 + $0x18] sm:$0xff]
        %v5897 = vld [vmem:[#allocation3 + $0x20] sm:$0xff]
        %v5898 = vld [vmem:[#allocation3 + $0x28] sm:$0xff]
        %v5899 = vld [vmem:[#allocation3 + $0x30] sm:$0xff]
        %v5900 = vld [vmem:[#allocation3 + $0x38] sm:$0xff]
        %v5901 = vld [vmem:[#allocation3 + $0x40] sm:$0xff]
        %v5902 = vld [vmem:[#allocation3 + $0x48] sm:$0xff]
        %v5903 = vld [vmem:[%s7] sm:$0xff]
        %v5904 = vld [vmem:[%s7 + $0x8] sm:$0xff]
        %v5905 = vld [vmem:[%s7 + $0x10] sm:$0xff]
        %v5906 = vld [vmem:[%s7 + $0x18] sm:$0xff]
        %v5907 = vld [vmem:[%s7 + $0x20] sm:$0xff]
        %v5908 = vld [vmem:[%s7 + $0x28] sm:$0xff]
        %v5909 = vld [vmem:[%s7 + $0x30] sm:$0xff]
        %v5910 = vld [vmem:[%s7 + $0x38] sm:$0xff]
        %v5911 = vld [vmem:[#allocation3 + $0x1] sm:$0xff]
        %v5912 = vld [vmem:[#allocation3 + $0x9] sm:$0xff]
        %v5913 = vld [vmem:[#allocation3 + $0x11] sm:$0xff]
        %v5914 = vld [vmem:[#allocation3 + $0x19] sm:$0xff]
        %v5915 = vld [vmem:[#allocation3 + $0x21] sm:$0xff]
        %v5916 = vld [vmem:[#allocation3 + $0x29] sm:$0xff]
        %v5917 = vld [vmem:[#allocation3 + $0x31] sm:$0xff]
        %v5918 = vld [vmem:[#allocation3 + $0x39] sm:$0xff]
        %v5919 = vld [vmem:[#allocation3 + $0x41] sm:$0xff]
        %v5920 = vld [vmem:[#allocation3 + $0x49] sm:$0xff]
        %s5921 = scalar_lea.vmem %s7, 64
        %v5922 = vld [vmem:[%s5921] sm:$0xff]
        %v5923 = vld [vmem:[%s5921 + $0x8] sm:$0xff]
        %v5924 = vld [vmem:[%s5921 + $0x10] sm:$0xff]
        %v5925 = vld [vmem:[%s5921 + $0x18] sm:$0xff]
        %v5926 = vld [vmem:[%s5921 + $0x20] sm:$0xff]
        %v5927 = vld [vmem:[%s5921 + $0x28] sm:$0xff]
        %v5928 = vld [vmem:[%s5921 + $0x30] sm:$0xff]
        %v5929 = vld [vmem:[%s5921 + $0x38] sm:$0xff]
        %v5931 = vsel %vm5858, %v5911, 0
        %v5934 = vsel %vm5858, %v5912, 0
        %v5937 = vsel %vm5858, %v5913, 0
        %v5940 = vsel %vm5858, %v5914, 0
        %v5943 = vsel %vm5858, %v5915, 0
        %v5946 = vsel %vm5858, %v5916, 0
        %v5949 = vsel %vm5858, %v5917, 0
        %v5952 = vsel %vm5858, %v5918, 0
        %v5955 = vsel %vm5858, %v5919, 0
        %v5958 = vsel %vm5858, %v5920, 0
        %5960 = vmatprep.subr.mxu0 0.0
        %5961 = vmatpush1.msra.mxu0 %v5922
        %5962 = vmatprep.subr.mxu0 0.0
        %5963 = vmatpush1.msra.mxu0 %v5923
        %5964 = vmatprep.subr.mxu0 0.0
        %5965 = vmatpush1.msra.mxu0 %v5924
        %5966 = vmatprep.subr.mxu0 0.0
        %5967 = vmatpush1.msra.mxu0 %v5925
        %5968 = vmatprep.subr.mxu0 0.0
        %5969 = vmatpush1.msra.mxu0 %v5926
        %5970 = vmatprep.subr.mxu0 0.0
        %5971 = vmatpush1.msra.mxu0 %v5927
        %5972 = vmatprep.subr.mxu0 0.0
        %5973 = vmatpush1.msra.mxu0 %v5928
        %5974 = vmatprep.subr.mxu0 0.0
        %5975 = vmatpush1.msra.mxu0 %v5929
        %5976 = vmatprep.subr.mxu0 0.0
        %5977 = vmatpush1.msra.mxu0 0.0
        %5978 = vmatprep.subr.mxu0 0.0
        %5979 = vmatpush1.msra.mxu0 0.0
        %5980 = vmatprep.subr.mxu0 0.0
        %5981 = vmatpush1.msra.mxu0 0.0
        %5982 = vmatprep.subr.mxu0 0.0
        %5983 = vmatpush1.msra.mxu0 0.0
        %5984 = vmatprep.subr.mxu0 0.0
        %5985 = vmatpush1.msra.mxu0 0.0
        %5986 = vmatprep.subr.mxu0 0.0
        %5987 = vmatpush1.msra.mxu0 0.0
        %5988 = vmatprep.subr.mxu0 0.0
        %5989 = vmatpush1.msra.mxu0 0.0
        %5990 = vmatprep.subr.mxu0 0.0
        %5991 = vmatpush1.msra.mxu0 0.0
        %5992 = vmatprep.subr.mxu0 0.0
        %5993 = vmatpush1.msra.mxu0 0.0
        %5994 = vmatprep.subr.mxu0 0.0
        %5995 = vmatpush1.msra.mxu0 0.0
        %5996 = vmatprep.subr.mxu0 0.0
        %5997 = vmatpush1.msra.mxu0 0.0
        %5998 = vmatprep.subr.mxu0 0.0
        %5999 = vmatpush1.msra.mxu0 0.0
        %6000 = vmatprep.subr.mxu0 0.0
        %6001 = vmatpush1.msra.mxu0 0.0
        %6002 = vmatprep.subr.mxu0 0.0
        %6003 = vmatpush1.msra.mxu0 0.0
        %6004 = vmatprep.subr.mxu0 0.0
        %6005 = vmatpush1.msra.mxu0 0.0
        %6006 = vmatprep.subr.mxu0 0.0
        %6007 = vmatpush1.msra.mxu0 0.0
        %6008 = vmatprep.subr.mxu0 0.0
        %6009 = vmatpush1.msra.mxu0 0.0
        %6010 = vmatprep.subr.mxu0 0.0
        %6011 = vmatpush1.msra.mxu0 0.0
        %6012 = vmatprep.subr.mxu0 0.0
        %6013 = vmatpush1.msra.mxu0 0.0
        %6014 = vmatprep.subr.mxu0 0.0
        %6015 = vmatpush1.msra.mxu0 0.0
        %6016 = vmatprep.subr.mxu0 0.0
        %6017 = vmatpush1.msra.mxu0 0.0
        %6018 = vmatprep.subr.mxu0 0.0
        %6019 = vmatpush1.msra.mxu0 0.0
        %6020 = vmatprep.subr.mxu0 0.0
        %6021 = vmatpush1.msra.mxu0 0.0
        %6022 = vmatprep.subr.mxu0 0.0
        %6023 = vmatpush1.msra.mxu0 0.0
        %6024 = vmatprep.mubr.f32.mxu0 0.0
        %6025 = vmatmul.mubr.f32.gmra.mrb[0].mxu0 %v5931
        %v6026 = vpop.f32.mrb[0].mxu0
        %v6027 = vadd.f32 0.0, %v6026
        %v6028 = vpop.f32.mrb[0].mxu0
        %6029 = vmatprep.mubr.f32.mxu0 0.0
        %6030 = vmatmul.mubr.f32.gmra.mrb[0].mxu0 %v5934
        %v6031 = vpop.f32.mrb[0].mxu0
        %v6032 = vadd.f32 0.0, %v6031
        %v6033 = vpop.f32.mrb[0].mxu0
        %6034 = vmatprep.mubr.f32.mxu0 0.0
        %6035 = vmatmul.mubr.f32.gmra.mrb[0].mxu0 %v5937
        %v6036 = vpop.f32.mrb[0].mxu0
        %v6037 = vadd.f32 0.0, %v6036
        %v6038 = vpop.f32.mrb[0].mxu0
        %6039 = vmatprep.mubr.f32.mxu0 0.0
        %6040 = vmatmul.mubr.f32.gmra.mrb[0].mxu0 %v5940
        %v6041 = vpop.f32.mrb[0].mxu0
        %v6042 = vadd.f32 0.0, %v6041
        %v6043 = vpop.f32.mrb[0].mxu0
        %6044 = vmatprep.mubr.f32.mxu0 0.0
        %6045 = vmatmul.mubr.f32.gmra.mrb[0].mxu0 %v5943
        %v6046 = vpop.f32.mrb[0].mxu0
        %v6047 = vadd.f32 0.0, %v6046
        %v6048 = vpop.f32.mrb[0].mxu0
        %6049 = vmatprep.mubr.f32.mxu0 0.0
        %6050 = vmatmul.mubr.f32.gmra.mrb[0].mxu0 %v5946
        %v6051 = vpop.f32.mrb[0].mxu0
        %v6052 = vadd.f32 0.0, %v6051
        %v6053 = vpop.f32.mrb[0].mxu0
        %6054 = vmatprep.mubr.f32.mxu0 0.0
        %6055 = vmatmul.mubr.f32.gmra.mrb[0].mxu0 %v5949
        %v6056 = vpop.f32.mrb[0].mxu0
        %v6057 = vadd.f32 0.0, %v6056
        %v6058 = vpop.f32.mrb[0].mxu0
        %6059 = vmatprep.mubr.f32.mxu0 0.0
        %6060 = vmatmul.mubr.f32.gmra.mrb[0].mxu0 %v5952
        %v6061 = vpop.f32.mrb[0].mxu0
        %v6062 = vadd.f32 0.0, %v6061
        %v6063 = vpop.f32.mrb[0].mxu0
        %6064 = vmatprep.mubr.f32.mxu0 0.0
        %6065 = vmatmul.mubr.f32.gmra.mrb[0].mxu0 %v5955
        %v6066 = vpop.f32.mrb[0].mxu0
        %v6067 = vadd.f32 0.0, %v6066
        %v6068 = vpop.f32.mrb[0].mxu0
        %6069 = vmatprep.mubr.f32.mxu0 0.0
        %6070 = vmatmul.mubr.f32.gmra.mrb[0].mxu0 %v5958
        %v6071 = vpop.f32.mrb[0].mxu0
        %v6072 = vadd.f32 0.0, %v6071
        %v6073 = vpop.f32.mrb[0].mxu0
        %6074 = vdwg.mxu0
        %v6076 = vsel %vm5858, %v5893, 0
        %v6079 = vsel %vm5858, %v5894, 0
        %v6082 = vsel %vm5858, %v5895, 0
        %v6085 = vsel %vm5858, %v5896, 0
        %v6088 = vsel %vm5858, %v5897, 0
        %v6091 = vsel %vm5858, %v5898, 0
        %v6094 = vsel %vm5858, %v5899, 0
        %v6097 = vsel %vm5858, %v5900, 0
        %v6100 = vsel %vm5858, %v5901, 0
        %v6103 = vsel %vm5858, %v5902, 0
        %6105 = vmatprep.subr.mxu0 0.0
        %6106 = vmatpush1.msra.mxu0 %v5903
        %6107 = vmatprep.subr.mxu0 0.0
        %6108 = vmatpush1.msra.mxu0 %v5904
        %6109 = vmatprep.subr.mxu0 0.0
        %6110 = vmatpush1.msra.mxu0 %v5905
        %6111 = vmatprep.subr.mxu0 0.0
        %6112 = vmatpush1.msra.mxu0 %v5906
        %6113 = vmatprep.subr.mxu0 0.0
        %6114 = vmatpush1.msra.mxu0 %v5907
        %6115 = vmatprep.subr.mxu0 0.0
        %6116 = vmatpush1.msra.mxu0 %v5908
        %6117 = vmatprep.subr.mxu0 0.0
        %6118 = vmatpush1.msra.mxu0 %v5909
        %6119 = vmatprep.subr.mxu0 0.0
        %6120 = vmatpush1.msra.mxu0 %v5910
        %6121 = vmatprep.subr.mxu0 0.0
        %6122 = vmatpush1.msra.mxu0 0.0
        %6123 = vmatprep.subr.mxu0 0.0
        %6124 = vmatpush1.msra.mxu0 0.0
        %6125 = vmatprep.subr.mxu0 0.0
        %6126 = vmatpush1.msra.mxu0 0.0
        %6127 = vmatprep.subr.mxu0 0.0
        %6128 = vmatpush1.msra.mxu0 0.0
        %6129 = vmatprep.subr.mxu0 0.0
        %6130 = vmatpush1.msra.mxu0 0.0
        %6131 = vmatprep.subr.mxu0 0.0
        %6132 = vmatpush1.msra.mxu0 0.0
        %6133 = vmatprep.subr.mxu0 0.0
        %6134 = vmatpush1.msra.mxu0 0.0
        %6135 = vmatprep.subr.mxu0 0.0
        %6136 = vmatpush1.msra.mxu0 0.0
        %6137 = vmatprep.subr.mxu0 0.0
        %6138 = vmatpush1.msra.mxu0 0.0
        %6139 = vmatprep.subr.mxu0 0.0
        %6140 = vmatpush1.msra.mxu0 0.0
        %6141 = vmatprep.subr.mxu0 0.0
        %6142 = vmatpush1.msra.mxu0 0.0
        %6143 = vmatprep.subr.mxu0 0.0
        %6144 = vmatpush1.msra.mxu0 0.0
        %6145 = vmatprep.subr.mxu0 0.0
        %6146 = vmatpush1.msra.mxu0 0.0
        %6147 = vmatprep.subr.mxu0 0.0
        %6148 = vmatpush1.msra.mxu0 0.0
        %6149 = vmatprep.subr.mxu0 0.0
        %6150 = vmatpush1.msra.mxu0 0.0
        %6151 = vmatprep.subr.mxu0 0.0
        %6152 = vmatpush1.msra.mxu0 0.0
        %6153 = vmatprep.subr.mxu0 0.0
        %6154 = vmatpush1.msra.mxu0 0.0
        %6155 = vmatprep.subr.mxu0 0.0
        %6156 = vmatpush1.msra.mxu0 0.0
        %6157 = vmatprep.subr.mxu0 0.0
        %6158 = vmatpush1.msra.mxu0 0.0
        %6159 = vmatprep.subr.mxu0 0.0
        %6160 = vmatpush1.msra.mxu0 0.0
        %6161 = vmatprep.subr.mxu0 0.0
        %6162 = vmatpush1.msra.mxu0 0.0
        %6163 = vmatprep.subr.mxu0 0.0
        %6164 = vmatpush1.msra.mxu0 0.0
        %6165 = vmatprep.subr.mxu0 0.0
        %6166 = vmatpush1.msra.mxu0 0.0
        %6167 = vmatprep.subr.mxu0 0.0
        %6168 = vmatpush1.msra.mxu0 0.0
        %6169 = vmatprep.mubr.f32.mxu0 0.0
        %6170 = vmatmul.mubr.f32.gmra.mrb[0].mxu0 %v6076
        %v6171 = vpop.f32.mrb[0].mxu0
        %v6172 = vadd.f32 %v6027, %v6171
        %v6173 = vpop.f32.mrb[0].mxu0
        %6174 = vmatprep.mubr.f32.mxu0 0.0
        %6175 = vmatmul.mubr.f32.gmra.mrb[0].mxu0 %v6079
        %v6176 = vpop.f32.mrb[0].mxu0
        %v6177 = vadd.f32 %v6032, %v6176
        %v6178 = vpop.f32.mrb[0].mxu0
        %6179 = vmatprep.mubr.f32.mxu0 0.0
        %6180 = vmatmul.mubr.f32.gmra.mrb[0].mxu0 %v6082
        %v6181 = vpop.f32.mrb[0].mxu0
        %v6182 = vadd.f32 %v6037, %v6181
        %v6183 = vpop.f32.mrb[0].mxu0
        %6184 = vmatprep.mubr.f32.mxu0 0.0
        %6185 = vmatmul.mubr.f32.gmra.mrb[0].mxu0 %v6085
        %v6186 = vpop.f32.mrb[0].mxu0
        %v6187 = vadd.f32 %v6042, %v6186
        %v6188 = vpop.f32.mrb[0].mxu0
        %6189 = vmatprep.mubr.f32.mxu0 0.0
        %6190 = vmatmul.mubr.f32.gmra.mrb[0].mxu0 %v6088
        %v6191 = vpop.f32.mrb[0].mxu0
        %v6192 = vadd.f32 %v6047, %v6191
        %v6193 = vpop.f32.mrb[0].mxu0
        %6194 = vmatprep.mubr.f32.mxu0 0.0
        %6195 = vmatmul.mubr.f32.gmra.mrb[0].mxu0 %v6091
        %v6196 = vpop.f32.mrb[0].mxu0
        %v6197 = vadd.f32 %v6052, %v6196
        %v6198 = vpop.f32.mrb[0].mxu0
        %6199 = vmatprep.mubr.f32.mxu0 0.0
        %6200 = vmatmul.mubr.f32.gmra.mrb[0].mxu0 %v6094
        %v6201 = vpop.f32.mrb[0].mxu0
        %v6202 = vadd.f32 %v6057, %v6201
        %v6203 = vpop.f32.mrb[0].mxu0
        %6204 = vmatprep.mubr.f32.mxu0 0.0
        %6205 = vmatmul.mubr.f32.gmra.mrb[0].mxu0 %v6097
        %v6206 = vpop.f32.mrb[0].mxu0
        %v6207 = vadd.f32 %v6062, %v6206
        %v6208 = vpop.f32.mrb[0].mxu0
        %6209 = vmatprep.mubr.f32.mxu0 0.0
        %6210 = vmatmul.mubr.f32.gmra.mrb[0].mxu0 %v6100
        %v6211 = vpop.f32.mrb[0].mxu0
        %v6212 = vadd.f32 %v6067, %v6211
        %v6213 = vpop.f32.mrb[0].mxu0
        %6214 = vmatprep.mubr.f32.mxu0 0.0
        %6215 = vmatmul.mubr.f32.gmra.mrb[0].mxu0 %v6103
        %v6216 = vpop.f32.mrb[0].mxu0
        %v6217 = vadd.f32 %v6072, %v6216
        %v6218 = vpop.f32.mrb[0].mxu0
        %6219 = vdwg.mxu0
        %v6220 = vld [vmem:[#allocation3 + $0x2] sm:$0xff]
        %v6221 = vld [vmem:[#allocation3 + $0xa] sm:$0xff]
        %v6222 = vld [vmem:[#allocation3 + $0x12] sm:$0xff]
        %v6223 = vld [vmem:[#allocation3 + $0x1a] sm:$0xff]
        %v6224 = vld [vmem:[#allocation3 + $0x22] sm:$0xff]
        %v6225 = vld [vmem:[#allocation3 + $0x2a] sm:$0xff]
        %v6226 = vld [vmem:[#allocation3 + $0x32] sm:$0xff]
        %v6227 = vld [vmem:[#allocation3 + $0x3a] sm:$0xff]
        %v6228 = vld [vmem:[#allocation3 + $0x42] sm:$0xff]
        %v6229 = vld [vmem:[#allocation3 + $0x4a] sm:$0xff]
        %s6230 = scalar_lea.vmem %s7, 128
        %v6231 = vld [vmem:[%s6230] sm:$0xff]
        %v6232 = vld [vmem:[%s6230 + $0x8] sm:$0xff]
        %v6233 = vld [vmem:[%s6230 + $0x10] sm:$0xff]
        %v6234 = vld [vmem:[%s6230 + $0x18] sm:$0xff]
        %v6235 = vld [vmem:[%s6230 + $0x20] sm:$0xff]
        %v6236 = vld [vmem:[%s6230 + $0x28] sm:$0xff]
        %v6237 = vld [vmem:[%s6230 + $0x30] sm:$0xff]
        %v6238 = vld [vmem:[%s6230 + $0x38] sm:$0xff]
        %v6240 = vsel %vm5858, %v6220, 0
        %v6243 = vsel %vm5858, %v6221, 0
        %v6246 = vsel %vm5858, %v6222, 0
        %v6249 = vsel %vm5858, %v6223, 0
        %v6252 = vsel %vm5858, %v6224, 0
        %v6255 = vsel %vm5858, %v6225, 0
        %v6258 = vsel %vm5858, %v6226, 0
        %v6261 = vsel %vm5858, %v6227, 0
        %v6264 = vsel %vm5858, %v6228, 0
        %v6267 = vsel %vm5858, %v6229, 0
        %6269 = vmatprep.subr.mxu0 0.0
        %6270 = vmatpush1.msra.mxu0 %v6231
        %6271 = vmatprep.subr.mxu0 0.0
        %6272 = vmatpush1.msra.mxu0 %v6232
        %6273 = vmatprep.subr.mxu0 0.0
        %6274 = vmatpush1.msra.mxu0 %v6233
        %6275 = vmatprep.subr.mxu0 0.0
        %6276 = vmatpush1.msra.mxu0 %v6234
        %6277 = vmatprep.subr.mxu0 0.0
        %6278 = vmatpush1.msra.mxu0 %v6235
        %6279 = vmatprep.subr.mxu0 0.0
        %6280 = vmatpush1.msra.mxu0 %v6236
        %6281 = vmatprep.subr.mxu0 0.0
        %6282 = vmatpush1.msra.mxu0 %v6237
        %6283 = vmatprep.subr.mxu0 0.0
        %6284 = vmatpush1.msra.mxu0 %v6238
        %6285 = vmatprep.subr.mxu0 0.0
        %6286 = vmatpush1.msra.mxu0 0.0
        %6287 = vmatprep.subr.mxu0 0.0
        %6288 = vmatpush1.msra.mxu0 0.0
        %6289 = vmatprep.subr.mxu0 0.0
        %6290 = vmatpush1.msra.mxu0 0.0
        %6291 = vmatprep.subr.mxu0 0.0
        %6292 = vmatpush1.msra.mxu0 0.0
        %6293 = vmatprep.subr.mxu0 0.0
        %6294 = vmatpush1.msra.mxu0 0.0
        %6295 = vmatprep.subr.mxu0 0.0
        %6296 = vmatpush1.msra.mxu0 0.0
        %6297 = vmatprep.subr.mxu0 0.0
        %6298 = vmatpush1.msra.mxu0 0.0
        %6299 = vmatprep.subr.mxu0 0.0
        %6300 = vmatpush1.msra.mxu0 0.0
        %6301 = vmatprep.subr.mxu0 0.0
        %6302 = vmatpush1.msra.mxu0 0.0
        %6303 = vmatprep.subr.mxu0 0.0
        %6304 = vmatpush1.msra.mxu0 0.0
        %6305 = vmatprep.subr.mxu0 0.0
        %6306 = vmatpush1.msra.mxu0 0.0
        %6307 = vmatprep.subr.mxu0 0.0
        %6308 = vmatpush1.msra.mxu0 0.0
        %6309 = vmatprep.subr.mxu0 0.0
        %6310 = vmatpush1.msra.mxu0 0.0
        %6311 = vmatprep.subr.mxu0 0.0
        %6312 = vmatpush1.msra.mxu0 0.0
        %6313 = vmatprep.subr.mxu0 0.0
        %6314 = vmatpush1.msra.mxu0 0.0
        %6315 = vmatprep.subr.mxu0 0.0
        %6316 = vmatpush1.msra.mxu0 0.0
        %6317 = vmatprep.subr.mxu0 0.0
        %6318 = vmatpush1.msra.mxu0 0.0
        %6319 = vmatprep.subr.mxu0 0.0
        %6320 = vmatpush1.msra.mxu0 0.0
        %6321 = vmatprep.subr.mxu0 0.0
        %6322 = vmatpush1.msra.mxu0 0.0
        %6323 = vmatprep.subr.mxu0 0.0
        %6324 = vmatpush1.msra.mxu0 0.0
        %6325 = vmatprep.subr.mxu0 0.0
        %6326 = vmatpush1.msra.mxu0 0.0
        %6327 = vmatprep.subr.mxu0 0.0
        %6328 = vmatpush1.msra.mxu0 0.0
        %6329 = vmatprep.subr.mxu0 0.0
        %6330 = vmatpush1.msra.mxu0 0.0
        %6331 = vmatprep.subr.mxu0 0.0
        %6332 = vmatpush1.msra.mxu0 0.0
        %6333 = vmatprep.mubr.f32.mxu0 0.0
        %6334 = vmatmul.mubr.f32.gmra.mrb[0].mxu0 %v6240
        %v6335 = vpop.f32.mrb[0].mxu0
        %v6336 = vadd.f32 0.0, %v6335
        %v6337 = vpop.f32.mrb[0].mxu0
        %6338 = vmatprep.mubr.f32.mxu0 0.0
        %6339 = vmatmul.mubr.f32.gmra.mrb[0].mxu0 %v6243
        %v6340 = vpop.f32.mrb[0].mxu0
        %v6341 = vadd.f32 0.0, %v6340
        %v6342 = vpop.f32.mrb[0].mxu0
        %6343 = vmatprep.mubr.f32.mxu0 0.0
        %6344 = vmatmul.mubr.f32.gmra.mrb[0].mxu0 %v6246
        %v6345 = vpop.f32.mrb[0].mxu0
        %v6346 = vadd.f32 0.0, %v6345
        %v6347 = vpop.f32.mrb[0].mxu0
        %6348 = vmatprep.mubr.f32.mxu0 0.0
        %6349 = vmatmul.mubr.f32.gmra.mrb[0].mxu0 %v6249
        %v6350 = vpop.f32.mrb[0].mxu0
        %v6351 = vadd.f32 0.0, %v6350
        %v6352 = vpop.f32.mrb[0].mxu0
        %6353 = vmatprep.mubr.f32.mxu0 0.0
        %6354 = vmatmul.mubr.f32.gmra.mrb[0].mxu0 %v6252
        %v6355 = vpop.f32.mrb[0].mxu0
        %v6356 = vadd.f32 0.0, %v6355
        %v6357 = vpop.f32.mrb[0].mxu0
        %6358 = vmatprep.mubr.f32.mxu0 0.0
        %6359 = vmatmul.mubr.f32.gmra.mrb[0].mxu0 %v6255
        %v6360 = vpop.f32.mrb[0].mxu0
        %v6361 = vadd.f32 0.0, %v6360
        %v6362 = vpop.f32.mrb[0].mxu0
        %6363 = vmatprep.mubr.f32.mxu0 0.0
        %6364 = vmatmul.mubr.f32.gmra.mrb[0].mxu0 %v6258
        %v6365 = vpop.f32.mrb[0].mxu0
        %v6366 = vadd.f32 0.0, %v6365
        %v6367 = vpop.f32.mrb[0].mxu0
        %6368 = vmatprep.mubr.f32.mxu0 0.0
        %6369 = vmatmul.mubr.f32.gmra.mrb[0].mxu0 %v6261
        %v6370 = vpop.f32.mrb[0].mxu0
        %v6371 = vadd.f32 0.0, %v6370
        %v6372 = vpop.f32.mrb[0].mxu0
        %6373 = vmatprep.mubr.f32.mxu0 0.0
        %6374 = vmatmul.mubr.f32.gmra.mrb[0].mxu0 %v6264
        %v6375 = vpop.f32.mrb[0].mxu0
        %v6376 = vadd.f32 0.0, %v6375
        %v6377 = vpop.f32.mrb[0].mxu0
        %6378 = vmatprep.mubr.f32.mxu0 0.0
        %6379 = vmatmul.mubr.f32.gmra.mrb[0].mxu0 %v6267
        %v6380 = vpop.f32.mrb[0].mxu0
        %v6381 = vadd.f32 0.0, %v6380
        %v6382 = vpop.f32.mrb[0].mxu0
        %6383 = vdwg.mxu0
        %v6384 = vadd.f32 %v6172, %v6336
        %v6385 = vadd.f32 %v6177, %v6341
        %v6386 = vadd.f32 %v6182, %v6346
        %v6387 = vadd.f32 %v6187, %v6351
        %v6388 = vadd.f32 %v6192, %v6356
        %v6389 = vadd.f32 %v6197, %v6361
        %v6390 = vadd.f32 %v6202, %v6366
        %v6391 = vadd.f32 %v6207, %v6371
        %v6392 = vadd.f32 %v6212, %v6376
        %v6393 = vadd.f32 %v6217, %v6381
        %v6394 = vld [vmem:[#allocation3 + $0xa] sm:$0xff]
        %v6395 = vld [vmem:[#allocation3 + $0x12] sm:$0xff]
        %v6396 = vld [vmem:[#allocation3 + $0x1a] sm:$0xff]
        %v6397 = vld [vmem:[#allocation3 + $0x22] sm:$0xff]
        %v6398 = vld [vmem:[#allocation3 + $0x2a] sm:$0xff]
        %v6399 = vld [vmem:[#allocation3 + $0x32] sm:$0xff]
        %v6400 = vld [vmem:[#allocation3 + $0x3a] sm:$0xff]
        %v6401 = vld [vmem:[#allocation3 + $0x42] sm:$0xff]
        %v6402 = vld [vmem:[#allocation3 + $0x4a] sm:$0xff]
        %v6403 = vld [vmem:[#allocation3 + $0x52] sm:$0xff]
        %s6404 = scalar_lea.vmem %s7, 192
        %v6405 = vld [vmem:[%s6404] sm:$0xff]
        %v6406 = vld [vmem:[%s6404 + $0x8] sm:$0xff]
        %v6407 = vld [vmem:[%s6404 + $0x10] sm:$0xff]
        %v6408 = vld [vmem:[%s6404 + $0x18] sm:$0xff]
        %v6409 = vld [vmem:[%s6404 + $0x20] sm:$0xff]
        %v6410 = vld [vmem:[%s6404 + $0x28] sm:$0xff]
        %v6411 = vld [vmem:[%s6404 + $0x30] sm:$0xff]
        %v6412 = vld [vmem:[%s6404 + $0x38] sm:$0xff]
        %v6414 = vsel %vm5858, %v6394, 0
        %v6417 = vsel %vm5858, %v6395, 0
        %v6420 = vsel %vm5858, %v6396, 0
        %v6423 = vsel %vm5858, %v6397, 0
        %v6426 = vsel %vm5858, %v6398, 0
        %v6429 = vsel %vm5858, %v6399, 0
        %v6432 = vsel %vm5858, %v6400, 0
        %v6435 = vsel %vm5858, %v6401, 0
        %v6438 = vsel %vm5858, %v6402, 0
        %v6441 = vsel %vm5858, %v6403, 0
        %6443 = vmatprep.subr.mxu0 0.0
        %6444 = vmatpush1.msra.mxu0 %v6405
        %6445 = vmatprep.subr.mxu0 0.0
        %6446 = vmatpush1.msra.mxu0 %v6406
        %6447 = vmatprep.subr.mxu0 0.0
        %6448 = vmatpush1.msra.mxu0 %v6407
        %6449 = vmatprep.subr.mxu0 0.0
        %6450 = vmatpush1.msra.mxu0 %v6408
        %6451 = vmatprep.subr.mxu0 0.0
        %6452 = vmatpush1.msra.mxu0 %v6409
        %6453 = vmatprep.subr.mxu0 0.0
        %6454 = vmatpush1.msra.mxu0 %v6410
        %6455 = vmatprep.subr.mxu0 0.0
        %6456 = vmatpush1.msra.mxu0 %v6411
        %6457 = vmatprep.subr.mxu0 0.0
        %6458 = vmatpush1.msra.mxu0 %v6412
        %6459 = vmatprep.subr.mxu0 0.0
        %6460 = vmatpush1.msra.mxu0 0.0
        %6461 = vmatprep.subr.mxu0 0.0
        %6462 = vmatpush1.msra.mxu0 0.0
        %6463 = vmatprep.subr.mxu0 0.0
        %6464 = vmatpush1.msra.mxu0 0.0
        %6465 = vmatprep.subr.mxu0 0.0
        %6466 = vmatpush1.msra.mxu0 0.0
        %6467 = vmatprep.subr.mxu0 0.0
        %6468 = vmatpush1.msra.mxu0 0.0
        %6469 = vmatprep.subr.mxu0 0.0
        %6470 = vmatpush1.msra.mxu0 0.0
        %6471 = vmatprep.subr.mxu0 0.0
        %6472 = vmatpush1.msra.mxu0 0.0
        %6473 = vmatprep.subr.mxu0 0.0
        %6474 = vmatpush1.msra.mxu0 0.0
        %6475 = vmatprep.subr.mxu0 0.0
        %6476 = vmatpush1.msra.mxu0 0.0
        %6477 = vmatprep.subr.mxu0 0.0
        %6478 = vmatpush1.msra.mxu0 0.0
        %6479 = vmatprep.subr.mxu0 0.0
        %6480 = vmatpush1.msra.mxu0 0.0
        %6481 = vmatprep.subr.mxu0 0.0
        %6482 = vmatpush1.msra.mxu0 0.0
        %6483 = vmatprep.subr.mxu0 0.0
        %6484 = vmatpush1.msra.mxu0 0.0
        %6485 = vmatprep.subr.mxu0 0.0
        %6486 = vmatpush1.msra.mxu0 0.0
        %6487 = vmatprep.subr.mxu0 0.0
        %6488 = vmatpush1.msra.mxu0 0.0
        %6489 = vmatprep.subr.mxu0 0.0
        %6490 = vmatpush1.msra.mxu0 0.0
        %6491 = vmatprep.subr.mxu0 0.0
        %6492 = vmatpush1.msra.mxu0 0.0
        %6493 = vmatprep.subr.mxu0 0.0
        %6494 = vmatpush1.msra.mxu0 0.0
        %6495 = vmatprep.subr.mxu0 0.0
        %6496 = vmatpush1.msra.mxu0 0.0
        %6497 = vmatprep.subr.mxu0 0.0
        %6498 = vmatpush1.msra.mxu0 0.0
        %6499 = vmatprep.subr.mxu0 0.0
        %6500 = vmatpush1.msra.mxu0 0.0
        %6501 = vmatprep.subr.mxu0 0.0
        %6502 = vmatpush1.msra.mxu0 0.0
        %6503 = vmatprep.subr.mxu0 0.0
        %6504 = vmatpush1.msra.mxu0 0.0
        %6505 = vmatprep.subr.mxu0 0.0
        %6506 = vmatpush1.msra.mxu0 0.0
        %6507 = vmatprep.mubr.f32.mxu0 0.0
        %6508 = vmatmul.mubr.f32.gmra.mrb[0].mxu0 %v6414
        %v6509 = vpop.f32.mrb[0].mxu0
        %v6510 = vadd.f32 0.0, %v6509
        %v6511 = vpop.f32.mrb[0].mxu0
        %6512 = vmatprep.mubr.f32.mxu0 0.0
        %6513 = vmatmul.mubr.f32.gmra.mrb[0].mxu0 %v6417
        %v6514 = vpop.f32.mrb[0].mxu0
        %v6515 = vadd.f32 0.0, %v6514
        %v6516 = vpop.f32.mrb[0].mxu0
        %6517 = vmatprep.mubr.f32.mxu0 0.0
        %6518 = vmatmul.mubr.f32.gmra.mrb[0].mxu0 %v6420
        %v6519 = vpop.f32.mrb[0].mxu0
        %v6520 = vadd.f32 0.0, %v6519
        %v6521 = vpop.f32.mrb[0].mxu0
        %6522 = vmatprep.mubr.f32.mxu0 0.0
        %6523 = vmatmul.mubr.f32.gmra.mrb[0].mxu0 %v6423
        %v6524 = vpop.f32.mrb[0].mxu0
        %v6525 = vadd.f32 0.0, %v6524
        %v6526 = vpop.f32.mrb[0].mxu0
        %6527 = vmatprep.mubr.f32.mxu0 0.0
        %6528 = vmatmul.mubr.f32.gmra.mrb[0].mxu0 %v6426
        %v6529 = vpop.f32.mrb[0].mxu0
        %v6530 = vadd.f32 0.0, %v6529
        %v6531 = vpop.f32.mrb[0].mxu0
        %6532 = vmatprep.mubr.f32.mxu0 0.0
        %6533 = vmatmul.mubr.f32.gmra.mrb[0].mxu0 %v6429
        %v6534 = vpop.f32.mrb[0].mxu0
        %v6535 = vadd.f32 0.0, %v6534
        %v6536 = vpop.f32.mrb[0].mxu0
        %6537 = vmatprep.mubr.f32.mxu0 0.0
        %6538 = vmatmul.mubr.f32.gmra.mrb[0].mxu0 %v6432
        %v6539 = vpop.f32.mrb[0].mxu0
        %v6540 = vadd.f32 0.0, %v6539
        %v6541 = vpop.f32.mrb[0].mxu0
        %6542 = vmatprep.mubr.f32.mxu0 0.0
        %6543 = vmatmul.mubr.f32.gmra.mrb[0].mxu0 %v6435
        %v6544 = vpop.f32.mrb[0].mxu0
        %v6545 = vadd.f32 0.0, %v6544
        %v6546 = vpop.f32.mrb[0].mxu0
        %6547 = vmatprep.mubr.f32.mxu0 0.0
        %6548 = vmatmul.mubr.f32.gmra.mrb[0].mxu0 %v6438
        %v6549 = vpop.f32.mrb[0].mxu0
        %v6550 = vadd.f32 0.0, %v6549
        %v6551 = vpop.f32.mrb[0].mxu0
        %6552 = vmatprep.mubr.f32.mxu0 0.0
        %6553 = vmatmul.mubr.f32.gmra.mrb[0].mxu0 %v6441
        %v6554 = vpop.f32.mrb[0].mxu0
        %v6555 = vadd.f32 0.0, %v6554
        %v6556 = vpop.f32.mrb[0].mxu0
        %6557 = vdwg.mxu0
        %v6558 = vadd.f32 %v6384, %v6510
        %v6559 = vadd.f32 %v6385, %v6515
        %v6560 = vadd.f32 %v6386, %v6520
        %v6561 = vadd.f32 %v6387, %v6525
        %v6562 = vadd.f32 %v6388, %v6530
        %v6563 = vadd.f32 %v6389, %v6535
        %v6564 = vadd.f32 %v6390, %v6540
        %v6565 = vadd.f32 %v6391, %v6545
        %v6566 = vadd.f32 %v6392, %v6550
        %v6567 = vadd.f32 %v6393, %v6555
        %v6568 = vld [vmem:[#allocation3 + $0xb] sm:$0xff]
        %v6569 = vld [vmem:[#allocation3 + $0x13] sm:$0xff]
        %v6570 = vld [vmem:[#allocation3 + $0x1b] sm:$0xff]
        %v6571 = vld [vmem:[#allocation3 + $0x23] sm:$0xff]
        %v6572 = vld [vmem:[#allocation3 + $0x2b] sm:$0xff]
        %v6573 = vld [vmem:[#allocation3 + $0x33] sm:$0xff]
        %v6574 = vld [vmem:[#allocation3 + $0x3b] sm:$0xff]
        %v6575 = vld [vmem:[#allocation3 + $0x43] sm:$0xff]
        %v6576 = vld [vmem:[#allocation3 + $0x4b] sm:$0xff]
        %v6577 = vld [vmem:[#allocation3 + $0x53] sm:$0xff]
        %s6578 = scalar_lea.vmem %s7, 256
        %v6579 = vld [vmem:[%s6578] sm:$0xff]
        %v6580 = vld [vmem:[%s6578 + $0x8] sm:$0xff]
        %v6581 = vld [vmem:[%s6578 + $0x10] sm:$0xff]
        %v6582 = vld [vmem:[%s6578 + $0x18] sm:$0xff]
        %v6583 = vld [vmem:[%s6578 + $0x20] sm:$0xff]
        %v6584 = vld [vmem:[%s6578 + $0x28] sm:$0xff]
        %v6585 = vld [vmem:[%s6578 + $0x30] sm:$0xff]
        %v6586 = vld [vmem:[%s6578 + $0x38] sm:$0xff]
        %v6588 = vsel %vm5858, %v6568, 0
        %v6591 = vsel %vm5858, %v6569, 0
        %v6594 = vsel %vm5858, %v6570, 0
        %v6597 = vsel %vm5858, %v6571, 0
        %v6600 = vsel %vm5858, %v6572, 0
        %v6603 = vsel %vm5858, %v6573, 0
        %v6606 = vsel %vm5858, %v6574, 0
        %v6609 = vsel %vm5858, %v6575, 0
        %v6612 = vsel %vm5858, %v6576, 0
        %v6615 = vsel %vm5858, %v6577, 0
        %6617 = vmatprep.subr.mxu0 0.0
        %6618 = vmatpush1.msra.mxu0 %v6579
        %6619 = vmatprep.subr.mxu0 0.0
        %6620 = vmatpush1.msra.mxu0 %v6580
        %6621 = vmatprep.subr.mxu0 0.0
        %6622 = vmatpush1.msra.mxu0 %v6581
        %6623 = vmatprep.subr.mxu0 0.0
        %6624 = vmatpush1.msra.mxu0 %v6582
        %6625 = vmatprep.subr.mxu0 0.0
        %6626 = vmatpush1.msra.mxu0 %v6583
        %6627 = vmatprep.subr.mxu0 0.0
        %6628 = vmatpush1.msra.mxu0 %v6584
        %6629 = vmatprep.subr.mxu0 0.0
        %6630 = vmatpush1.msra.mxu0 %v6585
        %6631 = vmatprep.subr.mxu0 0.0
        %6632 = vmatpush1.msra.mxu0 %v6586
        %6633 = vmatprep.subr.mxu0 0.0
        %6634 = vmatpush1.msra.mxu0 0.0
        %6635 = vmatprep.subr.mxu0 0.0
        %6636 = vmatpush1.msra.mxu0 0.0
        %6637 = vmatprep.subr.mxu0 0.0
        %6638 = vmatpush1.msra.mxu0 0.0
        %6639 = vmatprep.subr.mxu0 0.0
        %6640 = vmatpush1.msra.mxu0 0.0
        %6641 = vmatprep.subr.mxu0 0.0
        %6642 = vmatpush1.msra.mxu0 0.0
        %6643 = vmatprep.subr.mxu0 0.0
        %6644 = vmatpush1.msra.mxu0 0.0
        %6645 = vmatprep.subr.mxu0 0.0
        %6646 = vmatpush1.msra.mxu0 0.0
        %6647 = vmatprep.subr.mxu0 0.0
        %6648 = vmatpush1.msra.mxu0 0.0
        %6649 = vmatprep.subr.mxu0 0.0
        %6650 = vmatpush1.msra.mxu0 0.0
        %6651 = vmatprep.subr.mxu0 0.0
        %6652 = vmatpush1.msra.mxu0 0.0
        %6653 = vmatprep.subr.mxu0 0.0
        %6654 = vmatpush1.msra.mxu0 0.0
        %6655 = vmatprep.subr.mxu0 0.0
        %6656 = vmatpush1.msra.mxu0 0.0
        %6657 = vmatprep.subr.mxu0 0.0
        %6658 = vmatpush1.msra.mxu0 0.0
        %6659 = vmatprep.subr.mxu0 0.0
        %6660 = vmatpush1.msra.mxu0 0.0
        %6661 = vmatprep.subr.mxu0 0.0
        %6662 = vmatpush1.msra.mxu0 0.0
        %6663 = vmatprep.subr.mxu0 0.0
        %6664 = vmatpush1.msra.mxu0 0.0
        %6665 = vmatprep.subr.mxu0 0.0
        %6666 = vmatpush1.msra.mxu0 0.0
        %6667 = vmatprep.subr.mxu0 0.0
        %6668 = vmatpush1.msra.mxu0 0.0
        %6669 = vmatprep.subr.mxu0 0.0
        %6670 = vmatpush1.msra.mxu0 0.0
        %6671 = vmatprep.subr.mxu0 0.0
        %6672 = vmatpush1.msra.mxu0 0.0
        %6673 = vmatprep.subr.mxu0 0.0
        %6674 = vmatpush1.msra.mxu0 0.0
        %6675 = vmatprep.subr.mxu0 0.0
        %6676 = vmatpush1.msra.mxu0 0.0
        %6677 = vmatprep.subr.mxu0 0.0
        %6678 = vmatpush1.msra.mxu0 0.0
        %6679 = vmatprep.subr.mxu0 0.0
        %6680 = vmatpush1.msra.mxu0 0.0
        %6681 = vmatprep.mubr.f32.mxu0 0.0
        %6682 = vmatmul.mubr.f32.gmra.mrb[0].mxu0 %v6588
        %v6683 = vpop.f32.mrb[0].mxu0
        %v6684 = vadd.f32 0.0, %v6683
        %v6685 = vpop.f32.mrb[0].mxu0
        %6686 = vmatprep.mubr.f32.mxu0 0.0
        %6687 = vmatmul.mubr.f32.gmra.mrb[0].mxu0 %v6591
        %v6688 = vpop.f32.mrb[0].mxu0
        %v6689 = vadd.f32 0.0, %v6688
        %v6690 = vpop.f32.mrb[0].mxu0
        %6691 = vmatprep.mubr.f32.mxu0 0.0
        %6692 = vmatmul.mubr.f32.gmra.mrb[0].mxu0 %v6594
        %v6693 = vpop.f32.mrb[0].mxu0
        %v6694 = vadd.f32 0.0, %v6693
        %v6695 = vpop.f32.mrb[0].mxu0
        %6696 = vmatprep.mubr.f32.mxu0 0.0
        %6697 = vmatmul.mubr.f32.gmra.mrb[0].mxu0 %v6597
        %v6698 = vpop.f32.mrb[0].mxu0
        %v6699 = vadd.f32 0.0, %v6698
        %v6700 = vpop.f32.mrb[0].mxu0
        %6701 = vmatprep.mubr.f32.mxu0 0.0
        %6702 = vmatmul.mubr.f32.gmra.mrb[0].mxu0 %v6600
        %v6703 = vpop.f32.mrb[0].mxu0
        %v6704 = vadd.f32 0.0, %v6703
        %v6705 = vpop.f32.mrb[0].mxu0
        %6706 = vmatprep.mubr.f32.mxu0 0.0
        %6707 = vmatmul.mubr.f32.gmra.mrb[0].mxu0 %v6603
        %v6708 = vpop.f32.mrb[0].mxu0
        %v6709 = vadd.f32 0.0, %v6708
        %v6710 = vpop.f32.mrb[0].mxu0
        %6711 = vmatprep.mubr.f32.mxu0 0.0
        %6712 = vmatmul.mubr.f32.gmra.mrb[0].mxu0 %v6606
        %v6713 = vpop.f32.mrb[0].mxu0
        %v6714 = vadd.f32 0.0, %v6713
        %v6715 = vpop.f32.mrb[0].mxu0
        %6716 = vmatprep.mubr.f32.mxu0 0.0
        %6717 = vmatmul.mubr.f32.gmra.mrb[0].mxu0 %v6609
        %v6718 = vpop.f32.mrb[0].mxu0
        %v6719 = vadd.f32 0.0, %v6718
        %v6720 = vpop.f32.mrb[0].mxu0
        %6721 = vmatprep.mubr.f32.mxu0 0.0
        %6722 = vmatmul.mubr.f32.gmra.mrb[0].mxu0 %v6612
        %v6723 = vpop.f32.mrb[0].mxu0
        %v6724 = vadd.f32 0.0, %v6723
        %v6725 = vpop.f32.mrb[0].mxu0
        %6726 = vmatprep.mubr.f32.mxu0 0.0
        %6727 = vmatmul.mubr.f32.gmra.mrb[0].mxu0 %v6615
        %v6728 = vpop.f32.mrb[0].mxu0
        %v6729 = vadd.f32 0.0, %v6728
        %v6730 = vpop.f32.mrb[0].mxu0
        %6731 = vdwg.mxu0
        %v6732 = vadd.f32 %v6558, %v6684
        %v6733 = vadd.f32 %v6559, %v6689
        %v6734 = vadd.f32 %v6560, %v6694
        %v6735 = vadd.f32 %v6561, %v6699
        %v6736 = vadd.f32 %v6562, %v6704
        %v6737 = vadd.f32 %v6563, %v6709
        %v6738 = vadd.f32 %v6564, %v6714
        %v6739 = vadd.f32 %v6565, %v6719
        %v6740 = vadd.f32 %v6566, %v6724
        %v6741 = vadd.f32 %v6567, %v6729
        %v6742 = vld [vmem:[#allocation3 + $0xc] sm:$0xff]
        %v6743 = vld [vmem:[#allocation3 + $0x14] sm:$0xff]
        %v6744 = vld [vmem:[#allocation3 + $0x1c] sm:$0xff]
        %v6745 = vld [vmem:[#allocation3 + $0x24] sm:$0xff]
        %v6746 = vld [vmem:[#allocation3 + $0x2c] sm:$0xff]
        %v6747 = vld [vmem:[#allocation3 + $0x34] sm:$0xff]
        %v6748 = vld [vmem:[#allocation3 + $0x3c] sm:$0xff]
        %v6749 = vld [vmem:[#allocation3 + $0x44] sm:$0xff]
        %v6750 = vld [vmem:[#allocation3 + $0x4c] sm:$0xff]
        %v6751 = vld [vmem:[#allocation3 + $0x54] sm:$0xff]
        %s6752 = scalar_lea.vmem %s7, 320
        %v6753 = vld [vmem:[%s6752] sm:$0xff]
        %v6754 = vld [vmem:[%s6752 + $0x8] sm:$0xff]
        %v6755 = vld [vmem:[%s6752 + $0x10] sm:$0xff]
        %v6756 = vld [vmem:[%s6752 + $0x18] sm:$0xff]
        %v6757 = vld [vmem:[%s6752 + $0x20] sm:$0xff]
        %v6758 = vld [vmem:[%s6752 + $0x28] sm:$0xff]
        %v6759 = vld [vmem:[%s6752 + $0x30] sm:$0xff]
        %v6760 = vld [vmem:[%s6752 + $0x38] sm:$0xff]
        %v6762 = vsel %vm5858, %v6742, 0
        %v6765 = vsel %vm5858, %v6743, 0
        %v6768 = vsel %vm5858, %v6744, 0
        %v6771 = vsel %vm5858, %v6745, 0
        %v6774 = vsel %vm5858, %v6746, 0
        %v6777 = vsel %vm5858, %v6747, 0
        %v6780 = vsel %vm5858, %v6748, 0
        %v6783 = vsel %vm5858, %v6749, 0
        %v6786 = vsel %vm5858, %v6750, 0
        %v6789 = vsel %vm5858, %v6751, 0
        %6791 = vmatprep.subr.mxu0 0.0
        %6792 = vmatpush1.msra.mxu0 %v6753
        %6793 = vmatprep.subr.mxu0 0.0
        %6794 = vmatpush1.msra.mxu0 %v6754
        %6795 = vmatprep.subr.mxu0 0.0
        %6796 = vmatpush1.msra.mxu0 %v6755
        %6797 = vmatprep.subr.mxu0 0.0
        %6798 = vmatpush1.msra.mxu0 %v6756
        %6799 = vmatprep.subr.mxu0 0.0
        %6800 = vmatpush1.msra.mxu0 %v6757
        %6801 = vmatprep.subr.mxu0 0.0
        %6802 = vmatpush1.msra.mxu0 %v6758
        %6803 = vmatprep.subr.mxu0 0.0
        %6804 = vmatpush1.msra.mxu0 %v6759
        %6805 = vmatprep.subr.mxu0 0.0
        %6806 = vmatpush1.msra.mxu0 %v6760
        %6807 = vmatprep.subr.mxu0 0.0
        %6808 = vmatpush1.msra.mxu0 0.0
        %6809 = vmatprep.subr.mxu0 0.0
        %6810 = vmatpush1.msra.mxu0 0.0
        %6811 = vmatprep.subr.mxu0 0.0
        %6812 = vmatpush1.msra.mxu0 0.0
        %6813 = vmatprep.subr.mxu0 0.0
        %6814 = vmatpush1.msra.mxu0 0.0
        %6815 = vmatprep.subr.mxu0 0.0
        %6816 = vmatpush1.msra.mxu0 0.0
        %6817 = vmatprep.subr.mxu0 0.0
        %6818 = vmatpush1.msra.mxu0 0.0
        %6819 = vmatprep.subr.mxu0 0.0
        %6820 = vmatpush1.msra.mxu0 0.0
        %6821 = vmatprep.subr.mxu0 0.0
        %6822 = vmatpush1.msra.mxu0 0.0
        %6823 = vmatprep.subr.mxu0 0.0
        %6824 = vmatpush1.msra.mxu0 0.0
        %6825 = vmatprep.subr.mxu0 0.0
        %6826 = vmatpush1.msra.mxu0 0.0
        %6827 = vmatprep.subr.mxu0 0.0
        %6828 = vmatpush1.msra.mxu0 0.0
        %6829 = vmatprep.subr.mxu0 0.0
        %6830 = vmatpush1.msra.mxu0 0.0
        %6831 = vmatprep.subr.mxu0 0.0
        %6832 = vmatpush1.msra.mxu0 0.0
        %6833 = vmatprep.subr.mxu0 0.0
        %6834 = vmatpush1.msra.mxu0 0.0
        %6835 = vmatprep.subr.mxu0 0.0
        %6836 = vmatpush1.msra.mxu0 0.0
        %6837 = vmatprep.subr.mxu0 0.0
        %6838 = vmatpush1.msra.mxu0 0.0
        %6839 = vmatprep.subr.mxu0 0.0
        %6840 = vmatpush1.msra.mxu0 0.0
        %6841 = vmatprep.subr.mxu0 0.0
        %6842 = vmatpush1.msra.mxu0 0.0
        %6843 = vmatprep.subr.mxu0 0.0
        %6844 = vmatpush1.msra.mxu0 0.0
        %6845 = vmatprep.subr.mxu0 0.0
        %6846 = vmatpush1.msra.mxu0 0.0
        %6847 = vmatprep.subr.mxu0 0.0
        %6848 = vmatpush1.msra.mxu0 0.0
        %6849 = vmatprep.subr.mxu0 0.0
        %6850 = vmatpush1.msra.mxu0 0.0
        %6851 = vmatprep.subr.mxu0 0.0
        %6852 = vmatpush1.msra.mxu0 0.0
        %6853 = vmatprep.subr.mxu0 0.0
        %6854 = vmatpush1.msra.mxu0 0.0
        %6855 = vmatprep.mubr.f32.mxu0 0.0
        %6856 = vmatmul.mubr.f32.gmra.mrb[0].mxu0 %v6762
        %v6857 = vpop.f32.mrb[0].mxu0
        %v6858 = vadd.f32 0.0, %v6857
        %v6859 = vpop.f32.mrb[0].mxu0
        %6860 = vmatprep.mubr.f32.mxu0 0.0
        %6861 = vmatmul.mubr.f32.gmra.mrb[0].mxu0 %v6765
        %v6862 = vpop.f32.mrb[0].mxu0
        %v6863 = vadd.f32 0.0, %v6862
        %v6864 = vpop.f32.mrb[0].mxu0
        %6865 = vmatprep.mubr.f32.mxu0 0.0
        %6866 = vmatmul.mubr.f32.gmra.mrb[0].mxu0 %v6768
        %v6867 = vpop.f32.mrb[0].mxu0
        %v6868 = vadd.f32 0.0, %v6867
        %v6869 = vpop.f32.mrb[0].mxu0
        %6870 = vmatprep.mubr.f32.mxu0 0.0
        %6871 = vmatmul.mubr.f32.gmra.mrb[0].mxu0 %v6771
        %v6872 = vpop.f32.mrb[0].mxu0
        %v6873 = vadd.f32 0.0, %v6872
        %v6874 = vpop.f32.mrb[0].mxu0
        %6875 = vmatprep.mubr.f32.mxu0 0.0
        %6876 = vmatmul.mubr.f32.gmra.mrb[0].mxu0 %v6774
        %v6877 = vpop.f32.mrb[0].mxu0
        %v6878 = vadd.f32 0.0, %v6877
        %v6879 = vpop.f32.mrb[0].mxu0
        %6880 = vmatprep.mubr.f32.mxu0 0.0
        %6881 = vmatmul.mubr.f32.gmra.mrb[0].mxu0 %v6777
        %v6882 = vpop.f32.mrb[0].mxu0
        %v6883 = vadd.f32 0.0, %v6882
        %v6884 = vpop.f32.mrb[0].mxu0
        %6885 = vmatprep.mubr.f32.mxu0 0.0
        %6886 = vmatmul.mubr.f32.gmra.mrb[0].mxu0 %v6780
        %v6887 = vpop.f32.mrb[0].mxu0
        %v6888 = vadd.f32 0.0, %v6887
        %v6889 = vpop.f32.mrb[0].mxu0
        %6890 = vmatprep.mubr.f32.mxu0 0.0
        %6891 = vmatmul.mubr.f32.gmra.mrb[0].mxu0 %v6783
        %v6892 = vpop.f32.mrb[0].mxu0
        %v6893 = vadd.f32 0.0, %v6892
        %v6894 = vpop.f32.mrb[0].mxu0
        %6895 = vmatprep.mubr.f32.mxu0 0.0
        %6896 = vmatmul.mubr.f32.gmra.mrb[0].mxu0 %v6786
        %v6897 = vpop.f32.mrb[0].mxu0
        %v6898 = vadd.f32 0.0, %v6897
        %v6899 = vpop.f32.mrb[0].mxu0
        %6900 = vmatprep.mubr.f32.mxu0 0.0
        %6901 = vmatmul.mubr.f32.gmra.mrb[0].mxu0 %v6789
        %v6902 = vpop.f32.mrb[0].mxu0
        %v6903 = vadd.f32 0.0, %v6902
        %v6904 = vpop.f32.mrb[0].mxu0
        %6905 = vdwg.mxu0
        %v6906 = vadd.f32 %v6732, %v6858
        %v6907 = vadd.f32 %v6733, %v6863
        %v6908 = vadd.f32 %v6734, %v6868
        %v6909 = vadd.f32 %v6735, %v6873
        %v6910 = vadd.f32 %v6736, %v6878
        %v6911 = vadd.f32 %v6737, %v6883
        %v6912 = vadd.f32 %v6738, %v6888
        %v6913 = vadd.f32 %v6739, %v6893
        %v6914 = vadd.f32 %v6740, %v6898
        %v6915 = vadd.f32 %v6741, %v6903
        %v6916 = vld [vmem:[#allocation3 + $0x14] sm:$0xff]
        %v6917 = vld [vmem:[#allocation3 + $0x1c] sm:$0xff]
        %v6918 = vld [vmem:[#allocation3 + $0x24] sm:$0xff]
        %v6919 = vld [vmem:[#allocation3 + $0x2c] sm:$0xff]
        %v6920 = vld [vmem:[#allocation3 + $0x34] sm:$0xff]
        %v6921 = vld [vmem:[#allocation3 + $0x3c] sm:$0xff]
        %v6922 = vld [vmem:[#allocation3 + $0x44] sm:$0xff]
        %v6923 = vld [vmem:[#allocation3 + $0x4c] sm:$0xff]
        %v6924 = vld [vmem:[#allocation3 + $0x54] sm:$0xff]
        %v6925 = vld [vmem:[#allocation3 + $0x5c] sm:$0xff]
        %s6926 = scalar_lea.vmem %s7, 384
        %v6927 = vld [vmem:[%s6926] sm:$0xff]
        %v6928 = vld [vmem:[%s6926 + $0x8] sm:$0xff]
        %v6929 = vld [vmem:[%s6926 + $0x10] sm:$0xff]
        %v6930 = vld [vmem:[%s6926 + $0x18] sm:$0xff]
        %v6931 = vld [vmem:[%s6926 + $0x20] sm:$0xff]
        %v6932 = vld [vmem:[%s6926 + $0x28] sm:$0xff]
        %v6933 = vld [vmem:[%s6926 + $0x30] sm:$0xff]
        %v6934 = vld [vmem:[%s6926 + $0x38] sm:$0xff]
        %v6936 = vsel %vm5858, %v6916, 0
        %v6939 = vsel %vm5858, %v6917, 0
        %v6942 = vsel %vm5858, %v6918, 0
        %v6945 = vsel %vm5858, %v6919, 0
        %v6948 = vsel %vm5858, %v6920, 0
        %v6951 = vsel %vm5858, %v6921, 0
        %v6954 = vsel %vm5858, %v6922, 0
        %v6957 = vsel %vm5858, %v6923, 0
        %v6960 = vsel %vm5858, %v6924, 0
        %v6963 = vsel %vm5858, %v6925, 0
        %6965 = vmatprep.subr.mxu0 0.0
        %6966 = vmatpush1.msra.mxu0 %v6927
        %6967 = vmatprep.subr.mxu0 0.0
        %6968 = vmatpush1.msra.mxu0 %v6928
        %6969 = vmatprep.subr.mxu0 0.0
        %6970 = vmatpush1.msra.mxu0 %v6929
        %6971 = vmatprep.subr.mxu0 0.0
        %6972 = vmatpush1.msra.mxu0 %v6930
        %6973 = vmatprep.subr.mxu0 0.0
        %6974 = vmatpush1.msra.mxu0 %v6931
        %6975 = vmatprep.subr.mxu0 0.0
        %6976 = vmatpush1.msra.mxu0 %v6932
        %6977 = vmatprep.subr.mxu0 0.0
        %6978 = vmatpush1.msra.mxu0 %v6933
        %6979 = vmatprep.subr.mxu0 0.0
        %6980 = vmatpush1.msra.mxu0 %v6934
        %6981 = vmatprep.subr.mxu0 0.0
        %6982 = vmatpush1.msra.mxu0 0.0
        %6983 = vmatprep.subr.mxu0 0.0
        %6984 = vmatpush1.msra.mxu0 0.0
        %6985 = vmatprep.subr.mxu0 0.0
        %6986 = vmatpush1.msra.mxu0 0.0
        %6987 = vmatprep.subr.mxu0 0.0
        %6988 = vmatpush1.msra.mxu0 0.0
        %6989 = vmatprep.subr.mxu0 0.0
        %6990 = vmatpush1.msra.mxu0 0.0
        %6991 = vmatprep.subr.mxu0 0.0
        %6992 = vmatpush1.msra.mxu0 0.0
        %6993 = vmatprep.subr.mxu0 0.0
        %6994 = vmatpush1.msra.mxu0 0.0
        %6995 = vmatprep.subr.mxu0 0.0
        %6996 = vmatpush1.msra.mxu0 0.0
        %6997 = vmatprep.subr.mxu0 0.0
        %6998 = vmatpush1.msra.mxu0 0.0
        %6999 = vmatprep.subr.mxu0 0.0
        %7000 = vmatpush1.msra.mxu0 0.0
        %7001 = vmatprep.subr.mxu0 0.0
        %7002 = vmatpush1.msra.mxu0 0.0
        %7003 = vmatprep.subr.mxu0 0.0
        %7004 = vmatpush1.msra.mxu0 0.0
        %7005 = vmatprep.subr.mxu0 0.0
        %7006 = vmatpush1.msra.mxu0 0.0
        %7007 = vmatprep.subr.mxu0 0.0
        %7008 = vmatpush1.msra.mxu0 0.0
        %7009 = vmatprep.subr.mxu0 0.0
        %7010 = vmatpush1.msra.mxu0 0.0
        %7011 = vmatprep.subr.mxu0 0.0
        %7012 = vmatpush1.msra.mxu0 0.0
        %7013 = vmatprep.subr.mxu0 0.0
        %7014 = vmatpush1.msra.mxu0 0.0
        %7015 = vmatprep.subr.mxu0 0.0
        %7016 = vmatpush1.msra.mxu0 0.0
        %7017 = vmatprep.subr.mxu0 0.0
        %7018 = vmatpush1.msra.mxu0 0.0
        %7019 = vmatprep.subr.mxu0 0.0
        %7020 = vmatpush1.msra.mxu0 0.0
        %7021 = vmatprep.subr.mxu0 0.0
        %7022 = vmatpush1.msra.mxu0 0.0
        %7023 = vmatprep.subr.mxu0 0.0
        %7024 = vmatpush1.msra.mxu0 0.0
        %7025 = vmatprep.subr.mxu0 0.0
        %7026 = vmatpush1.msra.mxu0 0.0
        %7027 = vmatprep.subr.mxu0 0.0
        %7028 = vmatpush1.msra.mxu0 0.0
        %7029 = vmatprep.mubr.f32.mxu0 0.0
        %7030 = vmatmul.mubr.f32.gmra.mrb[0].mxu0 %v6936
        %v7031 = vpop.f32.mrb[0].mxu0
        %v7032 = vadd.f32 0.0, %v7031
        %v7033 = vpop.f32.mrb[0].mxu0
        %7034 = vmatprep.mubr.f32.mxu0 0.0
        %7035 = vmatmul.mubr.f32.gmra.mrb[0].mxu0 %v6939
        %v7036 = vpop.f32.mrb[0].mxu0
        %v7037 = vadd.f32 0.0, %v7036
        %v7038 = vpop.f32.mrb[0].mxu0
        %7039 = vmatprep.mubr.f32.mxu0 0.0
        %7040 = vmatmul.mubr.f32.gmra.mrb[0].mxu0 %v6942
        %v7041 = vpop.f32.mrb[0].mxu0
        %v7042 = vadd.f32 0.0, %v7041
        %v7043 = vpop.f32.mrb[0].mxu0
        %7044 = vmatprep.mubr.f32.mxu0 0.0
        %7045 = vmatmul.mubr.f32.gmra.mrb[0].mxu0 %v6945
        %v7046 = vpop.f32.mrb[0].mxu0
        %v7047 = vadd.f32 0.0, %v7046
        %v7048 = vpop.f32.mrb[0].mxu0
        %7049 = vmatprep.mubr.f32.mxu0 0.0
        %7050 = vmatmul.mubr.f32.gmra.mrb[0].mxu0 %v6948
        %v7051 = vpop.f32.mrb[0].mxu0
        %v7052 = vadd.f32 0.0, %v7051
        %v7053 = vpop.f32.mrb[0].mxu0
        %7054 = vmatprep.mubr.f32.mxu0 0.0
        %7055 = vmatmul.mubr.f32.gmra.mrb[0].mxu0 %v6951
        %v7056 = vpop.f32.mrb[0].mxu0
        %v7057 = vadd.f32 0.0, %v7056
        %v7058 = vpop.f32.mrb[0].mxu0
        %7059 = vmatprep.mubr.f32.mxu0 0.0
        %7060 = vmatmul.mubr.f32.gmra.mrb[0].mxu0 %v6954
        %v7061 = vpop.f32.mrb[0].mxu0
        %v7062 = vadd.f32 0.0, %v7061
        %v7063 = vpop.f32.mrb[0].mxu0
        %7064 = vmatprep.mubr.f32.mxu0 0.0
        %7065 = vmatmul.mubr.f32.gmra.mrb[0].mxu0 %v6957
        %v7066 = vpop.f32.mrb[0].mxu0
        %v7067 = vadd.f32 0.0, %v7066
        %v7068 = vpop.f32.mrb[0].mxu0
        %7069 = vmatprep.mubr.f32.mxu0 0.0
        %7070 = vmatmul.mubr.f32.gmra.mrb[0].mxu0 %v6960
        %v7071 = vpop.f32.mrb[0].mxu0
        %v7072 = vadd.f32 0.0, %v7071
        %v7073 = vpop.f32.mrb[0].mxu0
        %7074 = vmatprep.mubr.f32.mxu0 0.0
        %7075 = vmatmul.mubr.f32.gmra.mrb[0].mxu0 %v6963
        %v7076 = vpop.f32.mrb[0].mxu0
        %v7077 = vadd.f32 0.0, %v7076
        %v7078 = vpop.f32.mrb[0].mxu0
        %7079 = vdwg.mxu0
        %v7080 = vadd.f32 %v6906, %v7032
        %v7081 = vadd.f32 %v6907, %v7037
        %v7082 = vadd.f32 %v6908, %v7042
        %v7083 = vadd.f32 %v6909, %v7047
        %v7084 = vadd.f32 %v6910, %v7052
        %v7085 = vadd.f32 %v6911, %v7057
        %v7086 = vadd.f32 %v6912, %v7062
        %v7087 = vadd.f32 %v6913, %v7067
        %v7088 = vadd.f32 %v6914, %v7072
        %v7089 = vadd.f32 %v6915, %v7077
        %v7090 = vld [vmem:[#allocation3 + $0x15] sm:$0xff]
        %v7091 = vld [vmem:[#allocation3 + $0x1d] sm:$0xff]
        %v7092 = vld [vmem:[#allocation3 + $0x25] sm:$0xff]
        %v7093 = vld [vmem:[#allocation3 + $0x2d] sm:$0xff]
        %v7094 = vld [vmem:[#allocation3 + $0x35] sm:$0xff]
        %v7095 = vld [vmem:[#allocation3 + $0x3d] sm:$0xff]
        %v7096 = vld [vmem:[#allocation3 + $0x45] sm:$0xff]
        %v7097 = vld [vmem:[#allocation3 + $0x4d] sm:$0xff]
        %v7098 = vld [vmem:[#allocation3 + $0x55] sm:$0xff]
        %v7099 = vld [vmem:[#allocation3 + $0x5d] sm:$0xff]
        %s7100 = scalar_lea.vmem %s7, 448
        %v7101 = vld [vmem:[%s7100] sm:$0xff]
        %v7102 = vld [vmem:[%s7100 + $0x8] sm:$0xff]
        %v7103 = vld [vmem:[%s7100 + $0x10] sm:$0xff]
        %v7104 = vld [vmem:[%s7100 + $0x18] sm:$0xff]
        %v7105 = vld [vmem:[%s7100 + $0x20] sm:$0xff]
        %v7106 = vld [vmem:[%s7100 + $0x28] sm:$0xff]
        %v7107 = vld [vmem:[%s7100 + $0x30] sm:$0xff]
        %v7108 = vld [vmem:[%s7100 + $0x38] sm:$0xff]
        %v7110 = vsel %vm5858, %v7090, 0
        %v7113 = vsel %vm5858, %v7091, 0
        %v7116 = vsel %vm5858, %v7092, 0
        %v7119 = vsel %vm5858, %v7093, 0
        %v7122 = vsel %vm5858, %v7094, 0
        %v7125 = vsel %vm5858, %v7095, 0
        %v7128 = vsel %vm5858, %v7096, 0
        %v7131 = vsel %vm5858, %v7097, 0
        %v7134 = vsel %vm5858, %v7098, 0
        %v7137 = vsel %vm5858, %v7099, 0
        %7139 = vmatprep.subr.mxu0 0.0
        %7140 = vmatpush1.msra.mxu0 %v7101
        %7141 = vmatprep.subr.mxu0 0.0
        %7142 = vmatpush1.msra.mxu0 %v7102
        %7143 = vmatprep.subr.mxu0 0.0
        %7144 = vmatpush1.msra.mxu0 %v7103
        %7145 = vmatprep.subr.mxu0 0.0
        %7146 = vmatpush1.msra.mxu0 %v7104
        %7147 = vmatprep.subr.mxu0 0.0
        %7148 = vmatpush1.msra.mxu0 %v7105
        %7149 = vmatprep.subr.mxu0 0.0
        %7150 = vmatpush1.msra.mxu0 %v7106
        %7151 = vmatprep.subr.mxu0 0.0
        %7152 = vmatpush1.msra.mxu0 %v7107
        %7153 = vmatprep.subr.mxu0 0.0
        %7154 = vmatpush1.msra.mxu0 %v7108
        %7155 = vmatprep.subr.mxu0 0.0
        %7156 = vmatpush1.msra.mxu0 0.0
        %7157 = vmatprep.subr.mxu0 0.0
        %7158 = vmatpush1.msra.mxu0 0.0
        %7159 = vmatprep.subr.mxu0 0.0
        %7160 = vmatpush1.msra.mxu0 0.0
        %7161 = vmatprep.subr.mxu0 0.0
        %7162 = vmatpush1.msra.mxu0 0.0
        %7163 = vmatprep.subr.mxu0 0.0
        %7164 = vmatpush1.msra.mxu0 0.0
        %7165 = vmatprep.subr.mxu0 0.0
        %7166 = vmatpush1.msra.mxu0 0.0
        %7167 = vmatprep.subr.mxu0 0.0
        %7168 = vmatpush1.msra.mxu0 0.0
        %7169 = vmatprep.subr.mxu0 0.0
        %7170 = vmatpush1.msra.mxu0 0.0
        %7171 = vmatprep.subr.mxu0 0.0
        %7172 = vmatpush1.msra.mxu0 0.0
        %7173 = vmatprep.subr.mxu0 0.0
        %7174 = vmatpush1.msra.mxu0 0.0
        %7175 = vmatprep.subr.mxu0 0.0
        %7176 = vmatpush1.msra.mxu0 0.0
        %7177 = vmatprep.subr.mxu0 0.0
        %7178 = vmatpush1.msra.mxu0 0.0
        %7179 = vmatprep.subr.mxu0 0.0
        %7180 = vmatpush1.msra.mxu0 0.0
        %7181 = vmatprep.subr.mxu0 0.0
        %7182 = vmatpush1.msra.mxu0 0.0
        %7183 = vmatprep.subr.mxu0 0.0
        %7184 = vmatpush1.msra.mxu0 0.0
        %7185 = vmatprep.subr.mxu0 0.0
        %7186 = vmatpush1.msra.mxu0 0.0
        %7187 = vmatprep.subr.mxu0 0.0
        %7188 = vmatpush1.msra.mxu0 0.0
        %7189 = vmatprep.subr.mxu0 0.0
        %7190 = vmatpush1.msra.mxu0 0.0
        %7191 = vmatprep.subr.mxu0 0.0
        %7192 = vmatpush1.msra.mxu0 0.0
        %7193 = vmatprep.subr.mxu0 0.0
        %7194 = vmatpush1.msra.mxu0 0.0
        %7195 = vmatprep.subr.mxu0 0.0
        %7196 = vmatpush1.msra.mxu0 0.0
        %7197 = vmatprep.subr.mxu0 0.0
        %7198 = vmatpush1.msra.mxu0 0.0
        %7199 = vmatprep.subr.mxu0 0.0
        %7200 = vmatpush1.msra.mxu0 0.0
        %7201 = vmatprep.subr.mxu0 0.0
        %7202 = vmatpush1.msra.mxu0 0.0
        %7203 = vmatprep.mubr.f32.mxu0 0.0
        %7204 = vmatmul.mubr.f32.gmra.mrb[0].mxu0 %v7110
        %v7205 = vpop.f32.mrb[0].mxu0
        %v7206 = vadd.f32 0.0, %v7205
        %v7207 = vpop.f32.mrb[0].mxu0
        %7208 = vmatprep.mubr.f32.mxu0 0.0
        %7209 = vmatmul.mubr.f32.gmra.mrb[0].mxu0 %v7113
        %v7210 = vpop.f32.mrb[0].mxu0
        %v7211 = vadd.f32 0.0, %v7210
        %v7212 = vpop.f32.mrb[0].mxu0
        %7213 = vmatprep.mubr.f32.mxu0 0.0
        %7214 = vmatmul.mubr.f32.gmra.mrb[0].mxu0 %v7116
        %v7215 = vpop.f32.mrb[0].mxu0
        %v7216 = vadd.f32 0.0, %v7215
        %v7217 = vpop.f32.mrb[0].mxu0
        %7218 = vmatprep.mubr.f32.mxu0 0.0
        %7219 = vmatmul.mubr.f32.gmra.mrb[0].mxu0 %v7119
        %v7220 = vpop.f32.mrb[0].mxu0
        %v7221 = vadd.f32 0.0, %v7220
        %v7222 = vpop.f32.mrb[0].mxu0
        %7223 = vmatprep.mubr.f32.mxu0 0.0
        %7224 = vmatmul.mubr.f32.gmra.mrb[0].mxu0 %v7122
        %v7225 = vpop.f32.mrb[0].mxu0
        %v7226 = vadd.f32 0.0, %v7225
        %v7227 = vpop.f32.mrb[0].mxu0
        %7228 = vmatprep.mubr.f32.mxu0 0.0
        %7229 = vmatmul.mubr.f32.gmra.mrb[0].mxu0 %v7125
        %v7230 = vpop.f32.mrb[0].mxu0
        %v7231 = vadd.f32 0.0, %v7230
        %v7232 = vpop.f32.mrb[0].mxu0
        %7233 = vmatprep.mubr.f32.mxu0 0.0
        %7234 = vmatmul.mubr.f32.gmra.mrb[0].mxu0 %v7128
        %v7235 = vpop.f32.mrb[0].mxu0
        %v7236 = vadd.f32 0.0, %v7235
        %v7237 = vpop.f32.mrb[0].mxu0
        %7238 = vmatprep.mubr.f32.mxu0 0.0
        %7239 = vmatmul.mubr.f32.gmra.mrb[0].mxu0 %v7131
        %v7240 = vpop.f32.mrb[0].mxu0
        %v7241 = vadd.f32 0.0, %v7240
        %v7242 = vpop.f32.mrb[0].mxu0
        %7243 = vmatprep.mubr.f32.mxu0 0.0
        %7244 = vmatmul.mubr.f32.gmra.mrb[0].mxu0 %v7134
        %v7245 = vpop.f32.mrb[0].mxu0
        %v7246 = vadd.f32 0.0, %v7245
        %v7247 = vpop.f32.mrb[0].mxu0
        %7248 = vmatprep.mubr.f32.mxu0 0.0
        %7249 = vmatmul.mubr.f32.gmra.mrb[0].mxu0 %v7137
        %v7250 = vpop.f32.mrb[0].mxu0
        %v7251 = vadd.f32 0.0, %v7250
        %v7252 = vpop.f32.mrb[0].mxu0
        %7253 = vdwg.mxu0
        %v7254 = vadd.f32 %v7080, %v7206
        %v7255 = vadd.f32 %v7081, %v7211
        %v7256 = vadd.f32 %v7082, %v7216
        %v7257 = vadd.f32 %v7083, %v7221
        %v7258 = vadd.f32 %v7084, %v7226
        %v7259 = vadd.f32 %v7085, %v7231
        %v7260 = vadd.f32 %v7086, %v7236
        %v7261 = vadd.f32 %v7087, %v7241
        %v7262 = vadd.f32 %v7088, %v7246
        %v7263 = vadd.f32 %v7089, %v7251
        %v7264 = vld [vmem:[#allocation3 + $0x16] sm:$0xff]
        %v7265 = vld [vmem:[#allocation3 + $0x1e] sm:$0xff]
        %v7266 = vld [vmem:[#allocation3 + $0x26] sm:$0xff]
        %v7267 = vld [vmem:[#allocation3 + $0x2e] sm:$0xff]
        %v7268 = vld [vmem:[#allocation3 + $0x36] sm:$0xff]
        %v7269 = vld [vmem:[#allocation3 + $0x3e] sm:$0xff]
        %v7270 = vld [vmem:[#allocation3 + $0x46] sm:$0xff]
        %v7271 = vld [vmem:[#allocation3 + $0x4e] sm:$0xff]
        %v7272 = vld [vmem:[#allocation3 + $0x56] sm:$0xff]
        %v7273 = vld [vmem:[#allocation3 + $0x5e] sm:$0xff]
        %s7274 = scalar_lea.vmem %s7, 512
        %v7275 = vld [vmem:[%s7274] sm:$0xff]
        %v7276 = vld [vmem:[%s7274 + $0x8] sm:$0xff]
        %v7277 = vld [vmem:[%s7274 + $0x10] sm:$0xff]
        %v7278 = vld [vmem:[%s7274 + $0x18] sm:$0xff]
        %v7279 = vld [vmem:[%s7274 + $0x20] sm:$0xff]
        %v7280 = vld [vmem:[%s7274 + $0x28] sm:$0xff]
        %v7281 = vld [vmem:[%s7274 + $0x30] sm:$0xff]
        %v7282 = vld [vmem:[%s7274 + $0x38] sm:$0xff]
        %v7284 = vsel %vm5858, %v7264, 0
        %v7287 = vsel %vm5858, %v7265, 0
        %v7290 = vsel %vm5858, %v7266, 0
        %v7293 = vsel %vm5858, %v7267, 0
        %v7296 = vsel %vm5858, %v7268, 0
        %v7299 = vsel %vm5858, %v7269, 0
        %v7302 = vsel %vm5858, %v7270, 0
        %v7305 = vsel %vm5858, %v7271, 0
        %v7308 = vsel %vm5858, %v7272, 0
        %v7311 = vsel %vm5858, %v7273, 0
        %7313 = vmatprep.subr.mxu0 0.0
        %7314 = vmatpush1.msra.mxu0 %v7275
        %7315 = vmatprep.subr.mxu0 0.0
        %7316 = vmatpush1.msra.mxu0 %v7276
        %7317 = vmatprep.subr.mxu0 0.0
        %7318 = vmatpush1.msra.mxu0 %v7277
        %7319 = vmatprep.subr.mxu0 0.0
        %7320 = vmatpush1.msra.mxu0 %v7278
        %7321 = vmatprep.subr.mxu0 0.0
        %7322 = vmatpush1.msra.mxu0 %v7279
        %7323 = vmatprep.subr.mxu0 0.0
        %7324 = vmatpush1.msra.mxu0 %v7280
        %7325 = vmatprep.subr.mxu0 0.0
        %7326 = vmatpush1.msra.mxu0 %v7281
        %7327 = vmatprep.subr.mxu0 0.0
        %7328 = vmatpush1.msra.mxu0 %v7282
        %7329 = vmatprep.subr.mxu0 0.0
        %7330 = vmatpush1.msra.mxu0 0.0
        %7331 = vmatprep.subr.mxu0 0.0
        %7332 = vmatpush1.msra.mxu0 0.0
        %7333 = vmatprep.subr.mxu0 0.0
        %7334 = vmatpush1.msra.mxu0 0.0
        %7335 = vmatprep.subr.mxu0 0.0
        %7336 = vmatpush1.msra.mxu0 0.0
        %7337 = vmatprep.subr.mxu0 0.0
        %7338 = vmatpush1.msra.mxu0 0.0
        %7339 = vmatprep.subr.mxu0 0.0
        %7340 = vmatpush1.msra.mxu0 0.0
        %7341 = vmatprep.subr.mxu0 0.0
        %7342 = vmatpush1.msra.mxu0 0.0
        %7343 = vmatprep.subr.mxu0 0.0
        %7344 = vmatpush1.msra.mxu0 0.0
        %7345 = vmatprep.subr.mxu0 0.0
        %7346 = vmatpush1.msra.mxu0 0.0
        %7347 = vmatprep.subr.mxu0 0.0
        %7348 = vmatpush1.msra.mxu0 0.0
        %7349 = vmatprep.subr.mxu0 0.0
        %7350 = vmatpush1.msra.mxu0 0.0
        %7351 = vmatprep.subr.mxu0 0.0
        %7352 = vmatpush1.msra.mxu0 0.0
        %7353 = vmatprep.subr.mxu0 0.0
        %7354 = vmatpush1.msra.mxu0 0.0
        %7355 = vmatprep.subr.mxu0 0.0
        %7356 = vmatpush1.msra.mxu0 0.0
        %7357 = vmatprep.subr.mxu0 0.0
        %7358 = vmatpush1.msra.mxu0 0.0
        %7359 = vmatprep.subr.mxu0 0.0
        %7360 = vmatpush1.msra.mxu0 0.0
        %7361 = vmatprep.subr.mxu0 0.0
        %7362 = vmatpush1.msra.mxu0 0.0
        %7363 = vmatprep.subr.mxu0 0.0
        %7364 = vmatpush1.msra.mxu0 0.0
        %7365 = vmatprep.subr.mxu0 0.0
        %7366 = vmatpush1.msra.mxu0 0.0
        %7367 = vmatprep.subr.mxu0 0.0
        %7368 = vmatpush1.msra.mxu0 0.0
        %7369 = vmatprep.subr.mxu0 0.0
        %7370 = vmatpush1.msra.mxu0 0.0
        %7371 = vmatprep.subr.mxu0 0.0
        %7372 = vmatpush1.msra.mxu0 0.0
        %7373 = vmatprep.subr.mxu0 0.0
        %7374 = vmatpush1.msra.mxu0 0.0
        %7375 = vmatprep.subr.mxu0 0.0
        %7376 = vmatpush1.msra.mxu0 0.0
        %7377 = vmatprep.mubr.f32.mxu0 0.0
        %7378 = vmatmul.mubr.f32.gmra.mrb[0].mxu0 %v7284
        %v7379 = vpop.f32.mrb[0].mxu0
        %v7380 = vadd.f32 0.0, %v7379
        %v7381 = vpop.f32.mrb[0].mxu0
        %7382 = vmatprep.mubr.f32.mxu0 0.0
        %7383 = vmatmul.mubr.f32.gmra.mrb[0].mxu0 %v7287
        %v7384 = vpop.f32.mrb[0].mxu0
        %v7385 = vadd.f32 0.0, %v7384
        %v7386 = vpop.f32.mrb[0].mxu0
        %7387 = vmatprep.mubr.f32.mxu0 0.0
        %7388 = vmatmul.mubr.f32.gmra.mrb[0].mxu0 %v7290
        %v7389 = vpop.f32.mrb[0].mxu0
        %v7390 = vadd.f32 0.0, %v7389
        %v7391 = vpop.f32.mrb[0].mxu0
        %7392 = vmatprep.mubr.f32.mxu0 0.0
        %7393 = vmatmul.mubr.f32.gmra.mrb[0].mxu0 %v7293
        %v7394 = vpop.f32.mrb[0].mxu0
        %v7395 = vadd.f32 0.0, %v7394
        %v7396 = vpop.f32.mrb[0].mxu0
        %7397 = vmatprep.mubr.f32.mxu0 0.0
        %7398 = vmatmul.mubr.f32.gmra.mrb[0].mxu0 %v7296
        %v7399 = vpop.f32.mrb[0].mxu0
        %v7400 = vadd.f32 0.0, %v7399
        %v7401 = vpop.f32.mrb[0].mxu0
        %7402 = vmatprep.mubr.f32.mxu0 0.0
        %7403 = vmatmul.mubr.f32.gmra.mrb[0].mxu0 %v7299
        %v7404 = vpop.f32.mrb[0].mxu0
        %v7405 = vadd.f32 0.0, %v7404
        %v7406 = vpop.f32.mrb[0].mxu0
        %7407 = vmatprep.mubr.f32.mxu0 0.0
        %7408 = vmatmul.mubr.f32.gmra.mrb[0].mxu0 %v7302
        %v7409 = vpop.f32.mrb[0].mxu0
        %v7410 = vadd.f32 0.0, %v7409
        %v7411 = vpop.f32.mrb[0].mxu0
        %7412 = vmatprep.mubr.f32.mxu0 0.0
        %7413 = vmatmul.mubr.f32.gmra.mrb[0].mxu0 %v7305
        %v7414 = vpop.f32.mrb[0].mxu0
        %v7415 = vadd.f32 0.0, %v7414
        %v7416 = vpop.f32.mrb[0].mxu0
        %7417 = vmatprep.mubr.f32.mxu0 0.0
        %7418 = vmatmul.mubr.f32.gmra.mrb[0].mxu0 %v7308
        %v7419 = vpop.f32.mrb[0].mxu0
        %v7420 = vadd.f32 0.0, %v7419
        %v7421 = vpop.f32.mrb[0].mxu0
        %7422 = vmatprep.mubr.f32.mxu0 0.0
        %7423 = vmatmul.mubr.f32.gmra.mrb[0].mxu0 %v7311
        %v7424 = vpop.f32.mrb[0].mxu0
        %v7425 = vadd.f32 0.0, %v7424
        %v7426 = vpop.f32.mrb[0].mxu0
        %7427 = vdwg.mxu0
        %v7428 = vadd.f32 %v7254, %v7380
        %v7429 = vadd.f32 %v7255, %v7385
        %v7430 = vadd.f32 %v7256, %v7390
        %v7431 = vadd.f32 %v7257, %v7395
        %v7432 = vadd.f32 %v7258, %v7400
        %v7433 = vadd.f32 %v7259, %v7405
        %v7434 = vadd.f32 %v7260, %v7410
        %v7435 = vadd.f32 %v7261, %v7415
        %v7436 = vadd.f32 %v7262, %v7420
        %v7437 = vadd.f32 %v7263, %v7425
        %v7438 = vld [vmem:[#allocation14] sm:$0x1]
        %v7440 = vlaneseq
        %v7441 = vshrl.u32 %v7440, 7
        %v7442 = vsub.s32 0, %v7441
        %v7443 = vrot.slane %v7438, %v7442
        %v7445 = vadd.f32 %v7428, %v7443
        %v7446 = vadd.f32 %v7429, %v7443
        %v7447 = vadd.f32 %v7430, %v7443
        %v7448 = vadd.f32 %v7431, %v7443
        %v7449 = vadd.f32 %v7432, %v7443
        %v7450 = vadd.f32 %v7433, %v7443
        %v7451 = vadd.f32 %v7434, %v7443
        %v7452 = vadd.f32 %v7435, %v7443
        %v7453 = vadd.f32 %v7436, %v7443
        %v7454 = vadd.f32 %v7437, %v7443
        %vm7455 = vcmp.gt.f32.partialorder %v7445, 0.0
        %vm7456 = vcmp.gt.f32.partialorder %v7446, 0.0
        %vm7457 = vcmp.gt.f32.partialorder %v7447, 0.0
        %vm7458 = vcmp.gt.f32.partialorder %v7448, 0.0
        %vm7459 = vcmp.gt.f32.partialorder %v7449, 0.0
        %vm7460 = vcmp.gt.f32.partialorder %v7450, 0.0
        %vm7461 = vcmp.gt.f32.partialorder %v7451, 0.0
        %vm7462 = vcmp.gt.f32.partialorder %v7452, 0.0
        %vm7463 = vcmp.gt.f32.partialorder %v7453, 0.0
        %vm7464 = vcmp.gt.f32.partialorder %v7454, 0.0
        %v7465 = vld [vmem:[#allocation16] sm:$0x1]
        %v7467 = vlaneseq
        %v7468 = vshrl.u32 %v7467, 7
        %v7469 = vsub.s32 0, %v7468
        %v7470 = vrot.slane %v7465, %v7469
        %v7472 = vmul.f32 %v7470, %v7445
        %v7473 = vmul.f32 %v7470, %v7446
        %v7474 = vmul.f32 %v7470, %v7447
        %v7475 = vmul.f32 %v7470, %v7448
        %v7476 = vmul.f32 %v7470, %v7449
        %v7477 = vmul.f32 %v7470, %v7450
        %v7478 = vmul.f32 %v7470, %v7451
        %v7479 = vmul.f32 %v7470, %v7452
        %v7480 = vmul.f32 %v7470, %v7453
        %v7481 = vmul.f32 %v7470, %v7454
        %v7482 = vsel %vm7455, %v7445, %v7472
        %v7483 = vsel %vm7456, %v7446, %v7473
        %v7484 = vsel %vm7457, %v7447, %v7474
        %v7485 = vsel %vm7458, %v7448, %v7475
        %v7486 = vsel %vm7459, %v7449, %v7476
        %v7487 = vsel %vm7460, %v7450, %v7477
        %v7488 = vsel %vm7461, %v7451, %v7478
        %v7489 = vsel %vm7462, %v7452, %v7479
        %v7490 = vsel %vm7463, %v7453, %v7480
        %v7491 = vsel %vm7464, %v7454, %v7481
        %7492 = vst [vmem:[#allocation4] sm:$0xff] 0.0
        %7493 = vst [vmem:[#allocation4 + $0x8] sm:$0xff] 0.0
        %7494 = vst [vmem:[#allocation4 + $0x10] sm:$0xff] 0.0
        %7495 = vst [vmem:[#allocation4 + $0x18] sm:$0xff] 0.0
        %7496 = vst [vmem:[#allocation4 + $0x20] sm:$0xff] 0.0
        %7497 = vst [vmem:[#allocation4 + $0x28] sm:$0xff] 0.0
        %7498 = vst [vmem:[#allocation4 + $0x30] sm:$0xff] 0.0
        %7499 = vst [vmem:[#allocation4 + $0x38] sm:$0xff] 0.0
        %7500 = vst [vmem:[#allocation4 + $0x40] sm:$0xff] 0.0
        %7501 = vst [vmem:[#allocation4 + $0x48] sm:$0xff] 0.0
        %7502 = vst [vmem:[#allocation4 + $0x50] sm:$0xff] 0.0
        %7503 = vst [vmem:[#allocation4 + $0x58] sm:$0xff] 0.0
        %7504 = vst [vmem:[#allocation4 + $0x60] sm:$0xff] 0.0
        %7505 = vst [vmem:[#allocation4 + $0x68] sm:$0xff] 0.0
        %7506 = vst [vmem:[#allocation4 + $0xb] sm:$0xff] %v7482
        %7507 = vst [vmem:[#allocation4 + $0x13] sm:$0xfc] %v7483
        %7508 = vst [vmem:[#allocation4 + $0x1b] sm:$0x3] %v7484
        %7509 = vst [vmem:[#allocation4 + $0x1b] sm:$0xf0] %v7484
        %7510 = vst [vmem:[#allocation4 + $0x23] sm:$0xf] %v7485
        %7511 = vst [vmem:[#allocation4 + $0x23] sm:$0xc0] %v7485
        %7512 = vst [vmem:[#allocation4 + $0x2b] sm:$0x3f] %v7486
        %7513 = vst [vmem:[#allocation4 + $0x33] sm:$0xff] %v7487
        %7514 = vst [vmem:[#allocation4 + $0x3b] sm:$0xfc] %v7488
        %7515 = vst [vmem:[#allocation4 + $0x43] sm:$0x3] %v7489
        %7516 = vst [vmem:[#allocation4 + $0x43] sm:$0xf0] %v7489
        %7517 = vst [vmem:[#allocation4 + $0x4b] sm:$0xf] %v7490
        %7518 = vst [vmem:[#allocation4 + $0x4b] sm:$0xc0] %v7490
        %7519 = vst [vmem:[#allocation4 + $0x53] sm:$0x3f] %v7491
        %v7520 = vld [vmem:[#allocation4] ss:$2 sm:$0xff]
        %s7521 = scalar_lea.vmem [#allocation4], 16
        %v7522 = vld [vmem:[%s7521] ss:$2 sm:$0xff]
        %s7523 = scalar_lea.vmem [#allocation4], 32
        %v7524 = vld [vmem:[%s7523] ss:$2 sm:$0xff]
        %s7525 = scalar_lea.vmem [#allocation4], 48
        %v7526 = vld [vmem:[%s7525] ss:$2 sm:$0xff]
        %s7527 = scalar_lea.vmem [#allocation4], 64
        %v7528 = vld [vmem:[%s7527] ss:$2 sm:$0xff]
        %v7529 = vld [vmem:[#allocation17] sm:$0xff]
        %v7530 = vld [vmem:[#allocation17 + $0x8] sm:$0xff]
        %v7531 = vld [vmem:[#allocation17 + $0x10] sm:$0xff]
        %v7532 = vld [vmem:[#allocation17 + $0x18] sm:$0xff]
        %v7533 = vld [vmem:[#allocation17 + $0x20] sm:$0xff]
        %v7534 = vld [vmem:[#allocation17 + $0x28] sm:$0xff]
        %v7535 = vld [vmem:[#allocation17 + $0x30] sm:$0xff]
        %v7536 = vld [vmem:[#allocation17 + $0x38] sm:$0xff]
        %v7537 = vld [vmem:[#allocation17 + $0x40] sm:$0xff]
        %v7538 = vld [vmem:[#allocation17 + $0x48] sm:$0xff]
        %v7539 = vld [vmem:[#allocation17 + $0x50] sm:$0xff]
        %v7540 = vld [vmem:[#allocation17 + $0x58] sm:$0xff]
        %v7541 = vld [vmem:[#allocation17 + $0x60] sm:$0xff]
        %v7542 = vld [vmem:[#allocation17 + $0x68] sm:$0xff]
        %v7543 = vld [vmem:[#allocation17 + $0x70] sm:$0xff]
        %v7544 = vld [vmem:[#allocation17 + $0x78] sm:$0xff]
        %v7545 = vld [vmem:[#allocation17 + $0x80] sm:$0xff]
        %v7546 = vld [vmem:[#allocation17 + $0x88] sm:$0xff]
        %v7547 = vld [vmem:[#allocation17 + $0x90] sm:$0xff]
        %v7548 = vld [vmem:[#allocation17 + $0x98] sm:$0xff]
        %v7549 = vld [vmem:[#allocation17 + $0xa0] sm:$0xff]
        %v7550 = vld [vmem:[#allocation17 + $0xa8] sm:$0xff]
        %v7551 = vld [vmem:[#allocation17 + $0xb0] sm:$0xff]
        %v7552 = vld [vmem:[#allocation17 + $0xb8] sm:$0xff]
        %v7553 = vld [vmem:[#allocation17 + $0xc0] sm:$0xff]
        %v7554 = vld [vmem:[#allocation17 + $0xc8] sm:$0xff]
        %v7555 = vld [vmem:[#allocation17 + $0xd0] sm:$0xff]
        %v7556 = vld [vmem:[#allocation17 + $0xd8] sm:$0xff]
        %v7557 = vld [vmem:[#allocation17 + $0xe0] sm:$0xff]
        %v7558 = vld [vmem:[#allocation17 + $0xe8] sm:$0xff]
        %v7559 = vld [vmem:[#allocation17 + $0xf0] sm:$0xff]
        %v7560 = vld [vmem:[#allocation17 + $0xf8] sm:$0xff]
        %s7561 = scalar_lea.vmem [#allocation4], 1
        %v7562 = vld [vmem:[%s7561] ss:$2 sm:$0xff]
        %s7563 = scalar_lea.vmem [#allocation4], 17
        %v7564 = vld [vmem:[%s7563] ss:$2 sm:$0xff]
        %s7565 = scalar_lea.vmem [#allocation4], 33
        %v7566 = vld [vmem:[%s7565] ss:$2 sm:$0xff]
        %s7567 = scalar_lea.vmem [#allocation4], 49
        %v7568 = vld [vmem:[%s7567] ss:$2 sm:$0xff]
        %s7569 = scalar_lea.vmem [#allocation4], 65
        %v7570 = vld [vmem:[%s7569] ss:$2 sm:$0xff]
        %s7571 = scalar_lea.vmem [#allocation17], 256
        %v7572 = vld [vmem:[%s7571] sm:$0xff]
        %v7573 = vld [vmem:[%s7571 + $0x8] sm:$0xff]
        %v7574 = vld [vmem:[%s7571 + $0x10] sm:$0xff]
        %v7575 = vld [vmem:[%s7571 + $0x18] sm:$0xff]
        %v7576 = vld [vmem:[%s7571 + $0x20] sm:$0xff]
        %v7577 = vld [vmem:[%s7571 + $0x28] sm:$0xff]
        %v7578 = vld [vmem:[%s7571 + $0x30] sm:$0xff]
        %v7579 = vld [vmem:[%s7571 + $0x38] sm:$0xff]
        %v7580 = vld [vmem:[%s7571 + $0x40] sm:$0xff]
        %v7581 = vld [vmem:[%s7571 + $0x48] sm:$0xff]
        %v7582 = vld [vmem:[%s7571 + $0x50] sm:$0xff]
        %v7583 = vld [vmem:[%s7571 + $0x58] sm:$0xff]
        %v7584 = vld [vmem:[%s7571 + $0x60] sm:$0xff]
        %v7585 = vld [vmem:[%s7571 + $0x68] sm:$0xff]
        %v7586 = vld [vmem:[%s7571 + $0x70] sm:$0xff]
        %v7587 = vld [vmem:[%s7571 + $0x78] sm:$0xff]
        %v7588 = vld [vmem:[%s7571 + $0x80] sm:$0xff]
        %v7589 = vld [vmem:[%s7571 + $0x88] sm:$0xff]
        %v7590 = vld [vmem:[%s7571 + $0x90] sm:$0xff]
        %v7591 = vld [vmem:[%s7571 + $0x98] sm:$0xff]
        %v7592 = vld [vmem:[%s7571 + $0xa0] sm:$0xff]
        %v7593 = vld [vmem:[%s7571 + $0xa8] sm:$0xff]
        %v7594 = vld [vmem:[%s7571 + $0xb0] sm:$0xff]
        %v7595 = vld [vmem:[%s7571 + $0xb8] sm:$0xff]
        %v7596 = vld [vmem:[%s7571 + $0xc0] sm:$0xff]
        %v7597 = vld [vmem:[%s7571 + $0xc8] sm:$0xff]
        %v7598 = vld [vmem:[%s7571 + $0xd0] sm:$0xff]
        %v7599 = vld [vmem:[%s7571 + $0xd8] sm:$0xff]
        %v7600 = vld [vmem:[%s7571 + $0xe0] sm:$0xff]
        %v7601 = vld [vmem:[%s7571 + $0xe8] sm:$0xff]
        %v7602 = vld [vmem:[%s7571 + $0xf0] sm:$0xff]
        %v7603 = vld [vmem:[%s7571 + $0xf8] sm:$0xff]
        %7604 = vmatprep.subr.mxu0 %v7573
        %7605 = vmatpush1.msra.mxu0 %v7572
        %7606 = vmatprep.subr.mxu0 %v7575
        %7607 = vmatpush1.msra.mxu0 %v7574
        %7608 = vmatprep.subr.mxu0 %v7577
        %7609 = vmatpush1.msra.mxu0 %v7576
        %7610 = vmatprep.subr.mxu0 %v7579
        %7611 = vmatpush1.msra.mxu0 %v7578
        %7612 = vmatprep.subr.mxu0 %v7581
        %7613 = vmatpush1.msra.mxu0 %v7580
        %7614 = vmatprep.subr.mxu0 %v7583
        %7615 = vmatpush1.msra.mxu0 %v7582
        %7616 = vmatprep.subr.mxu0 %v7585
        %7617 = vmatpush1.msra.mxu0 %v7584
        %7618 = vmatprep.subr.mxu0 %v7587
        %7619 = vmatpush1.msra.mxu0 %v7586
        %7620 = vmatprep.subr.mxu0 %v7589
        %7621 = vmatpush1.msra.mxu0 %v7588
        %7622 = vmatprep.subr.mxu0 %v7591
        %7623 = vmatpush1.msra.mxu0 %v7590
        %7624 = vmatprep.subr.mxu0 %v7593
        %7625 = vmatpush1.msra.mxu0 %v7592
        %7626 = vmatprep.subr.mxu0 %v7595
        %7627 = vmatpush1.msra.mxu0 %v7594
        %7628 = vmatprep.subr.mxu0 %v7597
        %7629 = vmatpush1.msra.mxu0 %v7596
        %7630 = vmatprep.subr.mxu0 %v7599
        %7631 = vmatpush1.msra.mxu0 %v7598
        %7632 = vmatprep.subr.mxu0 %v7601
        %7633 = vmatpush1.msra.mxu0 %v7600
        %7634 = vmatprep.subr.mxu0 %v7603
        %7635 = vmatpush1.msra.mxu0 %v7602
        %7636 = vmatprep.subr.mxu0 0.0
        %7637 = vmatpush1.msra.mxu0 0.0
        %7638 = vmatprep.subr.mxu0 0.0
        %7639 = vmatpush1.msra.mxu0 0.0
        %7640 = vmatprep.subr.mxu0 0.0
        %7641 = vmatpush1.msra.mxu0 0.0
        %7642 = vmatprep.subr.mxu0 0.0
        %7643 = vmatpush1.msra.mxu0 0.0
        %7644 = vmatprep.subr.mxu0 0.0
        %7645 = vmatpush1.msra.mxu0 0.0
        %7646 = vmatprep.subr.mxu0 0.0
        %7647 = vmatpush1.msra.mxu0 0.0
        %7648 = vmatprep.subr.mxu0 0.0
        %7649 = vmatpush1.msra.mxu0 0.0
        %7650 = vmatprep.subr.mxu0 0.0
        %7651 = vmatpush1.msra.mxu0 0.0
        %7652 = vmatprep.subr.mxu0 0.0
        %7653 = vmatpush1.msra.mxu0 0.0
        %7654 = vmatprep.subr.mxu0 0.0
        %7655 = vmatpush1.msra.mxu0 0.0
        %7656 = vmatprep.subr.mxu0 0.0
        %7657 = vmatpush1.msra.mxu0 0.0
        %7658 = vmatprep.subr.mxu0 0.0
        %7659 = vmatpush1.msra.mxu0 0.0
        %7660 = vmatprep.subr.mxu0 0.0
        %7661 = vmatpush1.msra.mxu0 0.0
        %7662 = vmatprep.subr.mxu0 0.0
        %7663 = vmatpush1.msra.mxu0 0.0
        %7664 = vmatprep.subr.mxu0 0.0
        %7665 = vmatpush1.msra.mxu0 0.0
        %7666 = vmatprep.subr.mxu0 0.0
        %7667 = vmatpush1.msra.mxu0 0.0
        %7668 = vmatprep.mubr.f32.mxu0 0.0
        %7669 = vmatmul.mubr.f32.gmra.mrb[0].mxu0 %v7562
        %v7670 = vpop.f32.mrb[0].mxu0
        %v7671 = vadd.f32 0.0, %v7670
        %v7672 = vpop.f32.mrb[0].mxu0
        %v7673 = vadd.f32 0.0, %v7672
        %7674 = vmatprep.mubr.f32.mxu0 0.0
        %7675 = vmatmul.mubr.f32.gmra.mrb[0].mxu0 %v7564
        %v7676 = vpop.f32.mrb[0].mxu0
        %v7677 = vadd.f32 0.0, %v7676
        %v7678 = vpop.f32.mrb[0].mxu0
        %v7679 = vadd.f32 0.0, %v7678
        %7680 = vmatprep.mubr.f32.mxu0 0.0
        %7681 = vmatmul.mubr.f32.gmra.mrb[0].mxu0 %v7566
        %v7682 = vpop.f32.mrb[0].mxu0
        %v7683 = vadd.f32 0.0, %v7682
        %v7684 = vpop.f32.mrb[0].mxu0
        %v7685 = vadd.f32 0.0, %v7684
        %7686 = vmatprep.mubr.f32.mxu0 0.0
        %7687 = vmatmul.mubr.f32.gmra.mrb[0].mxu0 %v7568
        %v7688 = vpop.f32.mrb[0].mxu0
        %v7689 = vadd.f32 0.0, %v7688
        %v7690 = vpop.f32.mrb[0].mxu0
        %v7691 = vadd.f32 0.0, %v7690
        %7692 = vmatprep.mubr.f32.mxu0 0.0
        %7693 = vmatmul.mubr.f32.gmra.mrb[0].mxu0 %v7570
        %v7694 = vpop.f32.mrb[0].mxu0
        %v7695 = vadd.f32 0.0, %v7694
        %v7696 = vpop.f32.mrb[0].mxu0
        %v7697 = vadd.f32 0.0, %v7696
        %7698 = vdwg.mxu0
        %7699 = vmatprep.subr.mxu0 %v7530
        %7700 = vmatpush1.msra.mxu0 %v7529
        %7701 = vmatprep.subr.mxu0 %v7532
        %7702 = vmatpush1.msra.mxu0 %v7531
        %7703 = vmatprep.subr.mxu0 %v7534
        %7704 = vmatpush1.msra.mxu0 %v7533
        %7705 = vmatprep.subr.mxu0 %v7536
        %7706 = vmatpush1.msra.mxu0 %v7535
        %7707 = vmatprep.subr.mxu0 %v7538
        %7708 = vmatpush1.msra.mxu0 %v7537
        %7709 = vmatprep.subr.mxu0 %v7540
        %7710 = vmatpush1.msra.mxu0 %v7539
        %7711 = vmatprep.subr.mxu0 %v7542
        %7712 = vmatpush1.msra.mxu0 %v7541
        %7713 = vmatprep.subr.mxu0 %v7544
        %7714 = vmatpush1.msra.mxu0 %v7543
        %7715 = vmatprep.subr.mxu0 %v7546
        %7716 = vmatpush1.msra.mxu0 %v7545
        %7717 = vmatprep.subr.mxu0 %v7548
        %7718 = vmatpush1.msra.mxu0 %v7547
        %7719 = vmatprep.subr.mxu0 %v7550
        %7720 = vmatpush1.msra.mxu0 %v7549
        %7721 = vmatprep.subr.mxu0 %v7552
        %7722 = vmatpush1.msra.mxu0 %v7551
        %7723 = vmatprep.subr.mxu0 %v7554
        %7724 = vmatpush1.msra.mxu0 %v7553
        %7725 = vmatprep.subr.mxu0 %v7556
        %7726 = vmatpush1.msra.mxu0 %v7555
        %7727 = vmatprep.subr.mxu0 %v7558
        %7728 = vmatpush1.msra.mxu0 %v7557
        %7729 = vmatprep.subr.mxu0 %v7560
        %7730 = vmatpush1.msra.mxu0 %v7559
        %7731 = vmatprep.subr.mxu0 0.0
        %7732 = vmatpush1.msra.mxu0 0.0
        %7733 = vmatprep.subr.mxu0 0.0
        %7734 = vmatpush1.msra.mxu0 0.0
        %7735 = vmatprep.subr.mxu0 0.0
        %7736 = vmatpush1.msra.mxu0 0.0
        %7737 = vmatprep.subr.mxu0 0.0
        %7738 = vmatpush1.msra.mxu0 0.0
        %7739 = vmatprep.subr.mxu0 0.0
        %7740 = vmatpush1.msra.mxu0 0.0
        %7741 = vmatprep.subr.mxu0 0.0
        %7742 = vmatpush1.msra.mxu0 0.0
        %7743 = vmatprep.subr.mxu0 0.0
        %7744 = vmatpush1.msra.mxu0 0.0
        %7745 = vmatprep.subr.mxu0 0.0
        %7746 = vmatpush1.msra.mxu0 0.0
        %7747 = vmatprep.subr.mxu0 0.0
        %7748 = vmatpush1.msra.mxu0 0.0
        %7749 = vmatprep.subr.mxu0 0.0
        %7750 = vmatpush1.msra.mxu0 0.0
        %7751 = vmatprep.subr.mxu0 0.0
        %7752 = vmatpush1.msra.mxu0 0.0
        %7753 = vmatprep.subr.mxu0 0.0
        %7754 = vmatpush1.msra.mxu0 0.0
        %7755 = vmatprep.subr.mxu0 0.0
        %7756 = vmatpush1.msra.mxu0 0.0
        %7757 = vmatprep.subr.mxu0 0.0
        %7758 = vmatpush1.msra.mxu0 0.0
        %7759 = vmatprep.subr.mxu0 0.0
        %7760 = vmatpush1.msra.mxu0 0.0
        %7761 = vmatprep.subr.mxu0 0.0
        %7762 = vmatpush1.msra.mxu0 0.0
        %7763 = vmatprep.mubr.f32.mxu0 0.0
        %7764 = vmatmul.mubr.f32.gmra.mrb[0].mxu0 %v7520
        %v7765 = vpop.f32.mrb[0].mxu0
        %v7766 = vadd.f32 %v7671, %v7765
        %v7767 = vpop.f32.mrb[0].mxu0
        %v7768 = vadd.f32 %v7673, %v7767
        %7769 = vmatprep.mubr.f32.mxu0 0.0
        %7770 = vmatmul.mubr.f32.gmra.mrb[0].mxu0 %v7522
        %v7771 = vpop.f32.mrb[0].mxu0
        %v7772 = vadd.f32 %v7677, %v7771
        %v7773 = vpop.f32.mrb[0].mxu0
        %v7774 = vadd.f32 %v7679, %v7773
        %7775 = vmatprep.mubr.f32.mxu0 0.0
        %7776 = vmatmul.mubr.f32.gmra.mrb[0].mxu0 %v7524
        %v7777 = vpop.f32.mrb[0].mxu0
        %v7778 = vadd.f32 %v7683, %v7777
        %v7779 = vpop.f32.mrb[0].mxu0
        %v7780 = vadd.f32 %v7685, %v7779
        %7781 = vmatprep.mubr.f32.mxu0 0.0
        %7782 = vmatmul.mubr.f32.gmra.mrb[0].mxu0 %v7526
        %v7783 = vpop.f32.mrb[0].mxu0
        %v7784 = vadd.f32 %v7689, %v7783
        %v7785 = vpop.f32.mrb[0].mxu0
        %v7786 = vadd.f32 %v7691, %v7785
        %7787 = vmatprep.mubr.f32.mxu0 0.0
        %7788 = vmatmul.mubr.f32.gmra.mrb[0].mxu0 %v7528
        %v7789 = vpop.f32.mrb[0].mxu0
        %v7790 = vadd.f32 %v7695, %v7789
        %v7791 = vpop.f32.mrb[0].mxu0
        %v7792 = vadd.f32 %v7697, %v7791
        %7793 = vdwg.mxu0
        %s7794 = scalar_lea.vmem [#allocation4], 2
        %v7795 = vld [vmem:[%s7794] ss:$2 sm:$0xff]
        %s7796 = scalar_lea.vmem [#allocation4], 18
        %v7797 = vld [vmem:[%s7796] ss:$2 sm:$0xff]
        %s7798 = scalar_lea.vmem [#allocation4], 34
        %v7799 = vld [vmem:[%s7798] ss:$2 sm:$0xff]
        %s7800 = scalar_lea.vmem [#allocation4], 50
        %v7801 = vld [vmem:[%s7800] ss:$2 sm:$0xff]
        %s7802 = scalar_lea.vmem [#allocation4], 66
        %v7803 = vld [vmem:[%s7802] ss:$2 sm:$0xff]
        %s7804 = scalar_lea.vmem [#allocation17], 512
        %v7805 = vld [vmem:[%s7804] sm:$0xff]
        %v7806 = vld [vmem:[%s7804 + $0x8] sm:$0xff]
        %v7807 = vld [vmem:[%s7804 + $0x10] sm:$0xff]
        %v7808 = vld [vmem:[%s7804 + $0x18] sm:$0xff]
        %v7809 = vld [vmem:[%s7804 + $0x20] sm:$0xff]
        %v7810 = vld [vmem:[%s7804 + $0x28] sm:$0xff]
        %v7811 = vld [vmem:[%s7804 + $0x30] sm:$0xff]
        %v7812 = vld [vmem:[%s7804 + $0x38] sm:$0xff]
        %v7813 = vld [vmem:[%s7804 + $0x40] sm:$0xff]
        %v7814 = vld [vmem:[%s7804 + $0x48] sm:$0xff]
        %v7815 = vld [vmem:[%s7804 + $0x50] sm:$0xff]
        %v7816 = vld [vmem:[%s7804 + $0x58] sm:$0xff]
        %v7817 = vld [vmem:[%s7804 + $0x60] sm:$0xff]
        %v7818 = vld [vmem:[%s7804 + $0x68] sm:$0xff]
        %v7819 = vld [vmem:[%s7804 + $0x70] sm:$0xff]
        %v7820 = vld [vmem:[%s7804 + $0x78] sm:$0xff]
        %v7821 = vld [vmem:[%s7804 + $0x80] sm:$0xff]
        %v7822 = vld [vmem:[%s7804 + $0x88] sm:$0xff]
        %v7823 = vld [vmem:[%s7804 + $0x90] sm:$0xff]
        %v7824 = vld [vmem:[%s7804 + $0x98] sm:$0xff]
        %v7825 = vld [vmem:[%s7804 + $0xa0] sm:$0xff]
        %v7826 = vld [vmem:[%s7804 + $0xa8] sm:$0xff]
        %v7827 = vld [vmem:[%s7804 + $0xb0] sm:$0xff]
        %v7828 = vld [vmem:[%s7804 + $0xb8] sm:$0xff]
        %v7829 = vld [vmem:[%s7804 + $0xc0] sm:$0xff]
        %v7830 = vld [vmem:[%s7804 + $0xc8] sm:$0xff]
        %v7831 = vld [vmem:[%s7804 + $0xd0] sm:$0xff]
        %v7832 = vld [vmem:[%s7804 + $0xd8] sm:$0xff]
        %v7833 = vld [vmem:[%s7804 + $0xe0] sm:$0xff]
        %v7834 = vld [vmem:[%s7804 + $0xe8] sm:$0xff]
        %v7835 = vld [vmem:[%s7804 + $0xf0] sm:$0xff]
        %v7836 = vld [vmem:[%s7804 + $0xf8] sm:$0xff]
        %7837 = vmatprep.subr.mxu0 %v7806
        %7838 = vmatpush1.msra.mxu0 %v7805
        %7839 = vmatprep.subr.mxu0 %v7808
        %7840 = vmatpush1.msra.mxu0 %v7807
        %7841 = vmatprep.subr.mxu0 %v7810
        %7842 = vmatpush1.msra.mxu0 %v7809
        %7843 = vmatprep.subr.mxu0 %v7812
        %7844 = vmatpush1.msra.mxu0 %v7811
        %7845 = vmatprep.subr.mxu0 %v7814
        %7846 = vmatpush1.msra.mxu0 %v7813
        %7847 = vmatprep.subr.mxu0 %v7816
        %7848 = vmatpush1.msra.mxu0 %v7815
        %7849 = vmatprep.subr.mxu0 %v7818
        %7850 = vmatpush1.msra.mxu0 %v7817
        %7851 = vmatprep.subr.mxu0 %v7820
        %7852 = vmatpush1.msra.mxu0 %v7819
        %7853 = vmatprep.subr.mxu0 %v7822
        %7854 = vmatpush1.msra.mxu0 %v7821
        %7855 = vmatprep.subr.mxu0 %v7824
        %7856 = vmatpush1.msra.mxu0 %v7823
        %7857 = vmatprep.subr.mxu0 %v7826
        %7858 = vmatpush1.msra.mxu0 %v7825
        %7859 = vmatprep.subr.mxu0 %v7828
        %7860 = vmatpush1.msra.mxu0 %v7827
        %7861 = vmatprep.subr.mxu0 %v7830
        %7862 = vmatpush1.msra.mxu0 %v7829
        %7863 = vmatprep.subr.mxu0 %v7832
        %7864 = vmatpush1.msra.mxu0 %v7831
        %7865 = vmatprep.subr.mxu0 %v7834
        %7866 = vmatpush1.msra.mxu0 %v7833
        %7867 = vmatprep.subr.mxu0 %v7836
        %7868 = vmatpush1.msra.mxu0 %v7835
        %7869 = vmatprep.subr.mxu0 0.0
        %7870 = vmatpush1.msra.mxu0 0.0
        %7871 = vmatprep.subr.mxu0 0.0
        %7872 = vmatpush1.msra.mxu0 0.0
        %7873 = vmatprep.subr.mxu0 0.0
        %7874 = vmatpush1.msra.mxu0 0.0
        %7875 = vmatprep.subr.mxu0 0.0
        %7876 = vmatpush1.msra.mxu0 0.0
        %7877 = vmatprep.subr.mxu0 0.0
        %7878 = vmatpush1.msra.mxu0 0.0
        %7879 = vmatprep.subr.mxu0 0.0
        %7880 = vmatpush1.msra.mxu0 0.0
        %7881 = vmatprep.subr.mxu0 0.0
        %7882 = vmatpush1.msra.mxu0 0.0
        %7883 = vmatprep.subr.mxu0 0.0
        %7884 = vmatpush1.msra.mxu0 0.0
        %7885 = vmatprep.subr.mxu0 0.0
        %7886 = vmatpush1.msra.mxu0 0.0
        %7887 = vmatprep.subr.mxu0 0.0
        %7888 = vmatpush1.msra.mxu0 0.0
        %7889 = vmatprep.subr.mxu0 0.0
        %7890 = vmatpush1.msra.mxu0 0.0
        %7891 = vmatprep.subr.mxu0 0.0
        %7892 = vmatpush1.msra.mxu0 0.0
        %7893 = vmatprep.subr.mxu0 0.0
        %7894 = vmatpush1.msra.mxu0 0.0
        %7895 = vmatprep.subr.mxu0 0.0
        %7896 = vmatpush1.msra.mxu0 0.0
        %7897 = vmatprep.subr.mxu0 0.0
        %7898 = vmatpush1.msra.mxu0 0.0
        %7899 = vmatprep.subr.mxu0 0.0
        %7900 = vmatpush1.msra.mxu0 0.0
        %7901 = vmatprep.mubr.f32.mxu0 0.0
        %7902 = vmatmul.mubr.f32.gmra.mrb[0].mxu0 %v7795
        %v7903 = vpop.f32.mrb[0].mxu0
        %v7904 = vadd.f32 0.0, %v7903
        %v7905 = vpop.f32.mrb[0].mxu0
        %v7906 = vadd.f32 0.0, %v7905
        %7907 = vmatprep.mubr.f32.mxu0 0.0
        %7908 = vmatmul.mubr.f32.gmra.mrb[0].mxu0 %v7797
        %v7909 = vpop.f32.mrb[0].mxu0
        %v7910 = vadd.f32 0.0, %v7909
        %v7911 = vpop.f32.mrb[0].mxu0
        %v7912 = vadd.f32 0.0, %v7911
        %7913 = vmatprep.mubr.f32.mxu0 0.0
        %7914 = vmatmul.mubr.f32.gmra.mrb[0].mxu0 %v7799
        %v7915 = vpop.f32.mrb[0].mxu0
        %v7916 = vadd.f32 0.0, %v7915
        %v7917 = vpop.f32.mrb[0].mxu0
        %v7918 = vadd.f32 0.0, %v7917
        %7919 = vmatprep.mubr.f32.mxu0 0.0
        %7920 = vmatmul.mubr.f32.gmra.mrb[0].mxu0 %v7801
        %v7921 = vpop.f32.mrb[0].mxu0
        %v7922 = vadd.f32 0.0, %v7921
        %v7923 = vpop.f32.mrb[0].mxu0
        %v7924 = vadd.f32 0.0, %v7923
        %7925 = vmatprep.mubr.f32.mxu0 0.0
        %7926 = vmatmul.mubr.f32.gmra.mrb[0].mxu0 %v7803
        %v7927 = vpop.f32.mrb[0].mxu0
        %v7928 = vadd.f32 0.0, %v7927
        %v7929 = vpop.f32.mrb[0].mxu0
        %v7930 = vadd.f32 0.0, %v7929
        %7931 = vdwg.mxu0
        %v7932 = vadd.f32 %v7766, %v7904
        %v7933 = vadd.f32 %v7768, %v7906
        %v7934 = vadd.f32 %v7772, %v7910
        %v7935 = vadd.f32 %v7774, %v7912
        %v7936 = vadd.f32 %v7778, %v7916
        %v7937 = vadd.f32 %v7780, %v7918
        %v7938 = vadd.f32 %v7784, %v7922
        %v7939 = vadd.f32 %v7786, %v7924
        %v7940 = vadd.f32 %v7790, %v7928
        %v7941 = vadd.f32 %v7792, %v7930
        %s7942 = scalar_lea.vmem [#allocation4], 10
        %v7943 = vld [vmem:[%s7942] ss:$2 sm:$0xff]
        %s7944 = scalar_lea.vmem [#allocation4], 26
        %v7945 = vld [vmem:[%s7944] ss:$2 sm:$0xff]
        %s7946 = scalar_lea.vmem [#allocation4], 42
        %v7947 = vld [vmem:[%s7946] ss:$2 sm:$0xff]
        %s7948 = scalar_lea.vmem [#allocation4], 58
        %v7949 = vld [vmem:[%s7948] ss:$2 sm:$0xff]
        %s7950 = scalar_lea.vmem [#allocation4], 74
        %v7951 = vld [vmem:[%s7950] ss:$2 sm:$0xff]
        %s7952 = scalar_lea.vmem [#allocation17], 768
        %v7953 = vld [vmem:[%s7952] sm:$0xff]
        %v7954 = vld [vmem:[%s7952 + $0x8] sm:$0xff]
        %v7955 = vld [vmem:[%s7952 + $0x10] sm:$0xff]
        %v7956 = vld [vmem:[%s7952 + $0x18] sm:$0xff]
        %v7957 = vld [vmem:[%s7952 + $0x20] sm:$0xff]
        %v7958 = vld [vmem:[%s7952 + $0x28] sm:$0xff]
        %v7959 = vld [vmem:[%s7952 + $0x30] sm:$0xff]
        %v7960 = vld [vmem:[%s7952 + $0x38] sm:$0xff]
        %v7961 = vld [vmem:[%s7952 + $0x40] sm:$0xff]
        %v7962 = vld [vmem:[%s7952 + $0x48] sm:$0xff]
        %v7963 = vld [vmem:[%s7952 + $0x50] sm:$0xff]
        %v7964 = vld [vmem:[%s7952 + $0x58] sm:$0xff]
        %v7965 = vld [vmem:[%s7952 + $0x60] sm:$0xff]
        %v7966 = vld [vmem:[%s7952 + $0x68] sm:$0xff]
        %v7967 = vld [vmem:[%s7952 + $0x70] sm:$0xff]
        %v7968 = vld [vmem:[%s7952 + $0x78] sm:$0xff]
        %v7969 = vld [vmem:[%s7952 + $0x80] sm:$0xff]
        %v7970 = vld [vmem:[%s7952 + $0x88] sm:$0xff]
        %v7971 = vld [vmem:[%s7952 + $0x90] sm:$0xff]
        %v7972 = vld [vmem:[%s7952 + $0x98] sm:$0xff]
        %v7973 = vld [vmem:[%s7952 + $0xa0] sm:$0xff]
        %v7974 = vld [vmem:[%s7952 + $0xa8] sm:$0xff]
        %v7975 = vld [vmem:[%s7952 + $0xb0] sm:$0xff]
        %v7976 = vld [vmem:[%s7952 + $0xb8] sm:$0xff]
        %v7977 = vld [vmem:[%s7952 + $0xc0] sm:$0xff]
        %v7978 = vld [vmem:[%s7952 + $0xc8] sm:$0xff]
        %v7979 = vld [vmem:[%s7952 + $0xd0] sm:$0xff]
        %v7980 = vld [vmem:[%s7952 + $0xd8] sm:$0xff]
        %v7981 = vld [vmem:[%s7952 + $0xe0] sm:$0xff]
        %v7982 = vld [vmem:[%s7952 + $0xe8] sm:$0xff]
        %v7983 = vld [vmem:[%s7952 + $0xf0] sm:$0xff]
        %v7984 = vld [vmem:[%s7952 + $0xf8] sm:$0xff]
        %7985 = vmatprep.subr.mxu0 %v7954
        %7986 = vmatpush1.msra.mxu0 %v7953
        %7987 = vmatprep.subr.mxu0 %v7956
        %7988 = vmatpush1.msra.mxu0 %v7955
        %7989 = vmatprep.subr.mxu0 %v7958
        %7990 = vmatpush1.msra.mxu0 %v7957
        %7991 = vmatprep.subr.mxu0 %v7960
        %7992 = vmatpush1.msra.mxu0 %v7959
        %7993 = vmatprep.subr.mxu0 %v7962
        %7994 = vmatpush1.msra.mxu0 %v7961
        %7995 = vmatprep.subr.mxu0 %v7964
        %7996 = vmatpush1.msra.mxu0 %v7963
        %7997 = vmatprep.subr.mxu0 %v7966
        %7998 = vmatpush1.msra.mxu0 %v7965
        %7999 = vmatprep.subr.mxu0 %v7968
        %8000 = vmatpush1.msra.mxu0 %v7967
        %8001 = vmatprep.subr.mxu0 %v7970
        %8002 = vmatpush1.msra.mxu0 %v7969
        %8003 = vmatprep.subr.mxu0 %v7972
        %8004 = vmatpush1.msra.mxu0 %v7971
        %8005 = vmatprep.subr.mxu0 %v7974
        %8006 = vmatpush1.msra.mxu0 %v7973
        %8007 = vmatprep.subr.mxu0 %v7976
        %8008 = vmatpush1.msra.mxu0 %v7975
        %8009 = vmatprep.subr.mxu0 %v7978
        %8010 = vmatpush1.msra.mxu0 %v7977
        %8011 = vmatprep.subr.mxu0 %v7980
        %8012 = vmatpush1.msra.mxu0 %v7979
        %8013 = vmatprep.subr.mxu0 %v7982
        %8014 = vmatpush1.msra.mxu0 %v7981
        %8015 = vmatprep.subr.mxu0 %v7984
        %8016 = vmatpush1.msra.mxu0 %v7983
        %8017 = vmatprep.subr.mxu0 0.0
        %8018 = vmatpush1.msra.mxu0 0.0
        %8019 = vmatprep.subr.mxu0 0.0
        %8020 = vmatpush1.msra.mxu0 0.0
        %8021 = vmatprep.subr.mxu0 0.0
        %8022 = vmatpush1.msra.mxu0 0.0
        %8023 = vmatprep.subr.mxu0 0.0
        %8024 = vmatpush1.msra.mxu0 0.0
        %8025 = vmatprep.subr.mxu0 0.0
        %8026 = vmatpush1.msra.mxu0 0.0
        %8027 = vmatprep.subr.mxu0 0.0
        %8028 = vmatpush1.msra.mxu0 0.0
        %8029 = vmatprep.subr.mxu0 0.0
        %8030 = vmatpush1.msra.mxu0 0.0
        %8031 = vmatprep.subr.mxu0 0.0
        %8032 = vmatpush1.msra.mxu0 0.0
        %8033 = vmatprep.subr.mxu0 0.0
        %8034 = vmatpush1.msra.mxu0 0.0
        %8035 = vmatprep.subr.mxu0 0.0
        %8036 = vmatpush1.msra.mxu0 0.0
        %8037 = vmatprep.subr.mxu0 0.0
        %8038 = vmatpush1.msra.mxu0 0.0
        %8039 = vmatprep.subr.mxu0 0.0
        %8040 = vmatpush1.msra.mxu0 0.0
        %8041 = vmatprep.subr.mxu0 0.0
        %8042 = vmatpush1.msra.mxu0 0.0
        %8043 = vmatprep.subr.mxu0 0.0
        %8044 = vmatpush1.msra.mxu0 0.0
        %8045 = vmatprep.subr.mxu0 0.0
        %8046 = vmatpush1.msra.mxu0 0.0
        %8047 = vmatprep.subr.mxu0 0.0
        %8048 = vmatpush1.msra.mxu0 0.0
        %8049 = vmatprep.mubr.f32.mxu0 0.0
        %8050 = vmatmul.mubr.f32.gmra.mrb[0].mxu0 %v7943
        %v8051 = vpop.f32.mrb[0].mxu0
        %v8052 = vadd.f32 0.0, %v8051
        %v8053 = vpop.f32.mrb[0].mxu0
        %v8054 = vadd.f32 0.0, %v8053
        %8055 = vmatprep.mubr.f32.mxu0 0.0
        %8056 = vmatmul.mubr.f32.gmra.mrb[0].mxu0 %v7945
        %v8057 = vpop.f32.mrb[0].mxu0
        %v8058 = vadd.f32 0.0, %v8057
        %v8059 = vpop.f32.mrb[0].mxu0
        %v8060 = vadd.f32 0.0, %v8059
        %8061 = vmatprep.mubr.f32.mxu0 0.0
        %8062 = vmatmul.mubr.f32.gmra.mrb[0].mxu0 %v7947
        %v8063 = vpop.f32.mrb[0].mxu0
        %v8064 = vadd.f32 0.0, %v8063
        %v8065 = vpop.f32.mrb[0].mxu0
        %v8066 = vadd.f32 0.0, %v8065
        %8067 = vmatprep.mubr.f32.mxu0 0.0
        %8068 = vmatmul.mubr.f32.gmra.mrb[0].mxu0 %v7949
        %v8069 = vpop.f32.mrb[0].mxu0
        %v8070 = vadd.f32 0.0, %v8069
        %v8071 = vpop.f32.mrb[0].mxu0
        %v8072 = vadd.f32 0.0, %v8071
        %8073 = vmatprep.mubr.f32.mxu0 0.0
        %8074 = vmatmul.mubr.f32.gmra.mrb[0].mxu0 %v7951
        %v8075 = vpop.f32.mrb[0].mxu0
        %v8076 = vadd.f32 0.0, %v8075
        %v8077 = vpop.f32.mrb[0].mxu0
        %v8078 = vadd.f32 0.0, %v8077
        %8079 = vdwg.mxu0
        %v8080 = vadd.f32 %v7932, %v8052
        %v8081 = vadd.f32 %v7933, %v8054
        %v8082 = vadd.f32 %v7934, %v8058
        %v8083 = vadd.f32 %v7935, %v8060
        %v8084 = vadd.f32 %v7936, %v8064
        %v8085 = vadd.f32 %v7937, %v8066
        %v8086 = vadd.f32 %v7938, %v8070
        %v8087 = vadd.f32 %v7939, %v8072
        %v8088 = vadd.f32 %v7940, %v8076
        %v8089 = vadd.f32 %v7941, %v8078
        %s8090 = scalar_lea.vmem [#allocation4], 11
        %v8091 = vld [vmem:[%s8090] ss:$2 sm:$0xff]
        %s8092 = scalar_lea.vmem [#allocation4], 27
        %v8093 = vld [vmem:[%s8092] ss:$2 sm:$0xff]
        %s8094 = scalar_lea.vmem [#allocation4], 43
        %v8095 = vld [vmem:[%s8094] ss:$2 sm:$0xff]
        %s8096 = scalar_lea.vmem [#allocation4], 59
        %v8097 = vld [vmem:[%s8096] ss:$2 sm:$0xff]
        %s8098 = scalar_lea.vmem [#allocation4], 75
        %v8099 = vld [vmem:[%s8098] ss:$2 sm:$0xff]
        %s8100 = scalar_lea.vmem [#allocation17], 1024
        %v8101 = vld [vmem:[%s8100] sm:$0xff]
        %v8102 = vld [vmem:[%s8100 + $0x8] sm:$0xff]
        %v8103 = vld [vmem:[%s8100 + $0x10] sm:$0xff]
        %v8104 = vld [vmem:[%s8100 + $0x18] sm:$0xff]
        %v8105 = vld [vmem:[%s8100 + $0x20] sm:$0xff]
        %v8106 = vld [vmem:[%s8100 + $0x28] sm:$0xff]
        %v8107 = vld [vmem:[%s8100 + $0x30] sm:$0xff]
        %v8108 = vld [vmem:[%s8100 + $0x38] sm:$0xff]
        %v8109 = vld [vmem:[%s8100 + $0x40] sm:$0xff]
        %v8110 = vld [vmem:[%s8100 + $0x48] sm:$0xff]
        %v8111 = vld [vmem:[%s8100 + $0x50] sm:$0xff]
        %v8112 = vld [vmem:[%s8100 + $0x58] sm:$0xff]
        %v8113 = vld [vmem:[%s8100 + $0x60] sm:$0xff]
        %v8114 = vld [vmem:[%s8100 + $0x68] sm:$0xff]
        %v8115 = vld [vmem:[%s8100 + $0x70] sm:$0xff]
        %v8116 = vld [vmem:[%s8100 + $0x78] sm:$0xff]
        %v8117 = vld [vmem:[%s8100 + $0x80] sm:$0xff]
        %v8118 = vld [vmem:[%s8100 + $0x88] sm:$0xff]
        %v8119 = vld [vmem:[%s8100 + $0x90] sm:$0xff]
        %v8120 = vld [vmem:[%s8100 + $0x98] sm:$0xff]
        %v8121 = vld [vmem:[%s8100 + $0xa0] sm:$0xff]
        %v8122 = vld [vmem:[%s8100 + $0xa8] sm:$0xff]
        %v8123 = vld [vmem:[%s8100 + $0xb0] sm:$0xff]
        %v8124 = vld [vmem:[%s8100 + $0xb8] sm:$0xff]
        %v8125 = vld [vmem:[%s8100 + $0xc0] sm:$0xff]
        %v8126 = vld [vmem:[%s8100 + $0xc8] sm:$0xff]
        %v8127 = vld [vmem:[%s8100 + $0xd0] sm:$0xff]
        %v8128 = vld [vmem:[%s8100 + $0xd8] sm:$0xff]
        %v8129 = vld [vmem:[%s8100 + $0xe0] sm:$0xff]
        %v8130 = vld [vmem:[%s8100 + $0xe8] sm:$0xff]
        %v8131 = vld [vmem:[%s8100 + $0xf0] sm:$0xff]
        %v8132 = vld [vmem:[%s8100 + $0xf8] sm:$0xff]
        %8133 = vmatprep.subr.mxu0 %v8102
        %8134 = vmatpush1.msra.mxu0 %v8101
        %8135 = vmatprep.subr.mxu0 %v8104
        %8136 = vmatpush1.msra.mxu0 %v8103
        %8137 = vmatprep.subr.mxu0 %v8106
        %8138 = vmatpush1.msra.mxu0 %v8105
        %8139 = vmatprep.subr.mxu0 %v8108
        %8140 = vmatpush1.msra.mxu0 %v8107
        %8141 = vmatprep.subr.mxu0 %v8110
        %8142 = vmatpush1.msra.mxu0 %v8109
        %8143 = vmatprep.subr.mxu0 %v8112
        %8144 = vmatpush1.msra.mxu0 %v8111
        %8145 = vmatprep.subr.mxu0 %v8114
        %8146 = vmatpush1.msra.mxu0 %v8113
        %8147 = vmatprep.subr.mxu0 %v8116
        %8148 = vmatpush1.msra.mxu0 %v8115
        %8149 = vmatprep.subr.mxu0 %v8118
        %8150 = vmatpush1.msra.mxu0 %v8117
        %8151 = vmatprep.subr.mxu0 %v8120
        %8152 = vmatpush1.msra.mxu0 %v8119
        %8153 = vmatprep.subr.mxu0 %v8122
        %8154 = vmatpush1.msra.mxu0 %v8121
        %8155 = vmatprep.subr.mxu0 %v8124
        %8156 = vmatpush1.msra.mxu0 %v8123
        %8157 = vmatprep.subr.mxu0 %v8126
        %8158 = vmatpush1.msra.mxu0 %v8125
        %8159 = vmatprep.subr.mxu0 %v8128
        %8160 = vmatpush1.msra.mxu0 %v8127
        %8161 = vmatprep.subr.mxu0 %v8130
        %8162 = vmatpush1.msra.mxu0 %v8129
        %8163 = vmatprep.subr.mxu0 %v8132
        %8164 = vmatpush1.msra.mxu0 %v8131
        %8165 = vmatprep.subr.mxu0 0.0
        %8166 = vmatpush1.msra.mxu0 0.0
        %8167 = vmatprep.subr.mxu0 0.0
        %8168 = vmatpush1.msra.mxu0 0.0
        %8169 = vmatprep.subr.mxu0 0.0
        %8170 = vmatpush1.msra.mxu0 0.0
        %8171 = vmatprep.subr.mxu0 0.0
        %8172 = vmatpush1.msra.mxu0 0.0
        %8173 = vmatprep.subr.mxu0 0.0
        %8174 = vmatpush1.msra.mxu0 0.0
        %8175 = vmatprep.subr.mxu0 0.0
        %8176 = vmatpush1.msra.mxu0 0.0
        %8177 = vmatprep.subr.mxu0 0.0
        %8178 = vmatpush1.msra.mxu0 0.0
        %8179 = vmatprep.subr.mxu0 0.0
        %8180 = vmatpush1.msra.mxu0 0.0
        %8181 = vmatprep.subr.mxu0 0.0
        %8182 = vmatpush1.msra.mxu0 0.0
        %8183 = vmatprep.subr.mxu0 0.0
        %8184 = vmatpush1.msra.mxu0 0.0
        %8185 = vmatprep.subr.mxu0 0.0
        %8186 = vmatpush1.msra.mxu0 0.0
        %8187 = vmatprep.subr.mxu0 0.0
        %8188 = vmatpush1.msra.mxu0 0.0
        %8189 = vmatprep.subr.mxu0 0.0
        %8190 = vmatpush1.msra.mxu0 0.0
        %8191 = vmatprep.subr.mxu0 0.0
        %8192 = vmatpush1.msra.mxu0 0.0
        %8193 = vmatprep.subr.mxu0 0.0
        %8194 = vmatpush1.msra.mxu0 0.0
        %8195 = vmatprep.subr.mxu0 0.0
        %8196 = vmatpush1.msra.mxu0 0.0
        %8197 = vmatprep.mubr.f32.mxu0 0.0
        %8198 = vmatmul.mubr.f32.gmra.mrb[0].mxu0 %v8091
        %v8199 = vpop.f32.mrb[0].mxu0
        %v8200 = vadd.f32 0.0, %v8199
        %v8201 = vpop.f32.mrb[0].mxu0
        %v8202 = vadd.f32 0.0, %v8201
        %8203 = vmatprep.mubr.f32.mxu0 0.0
        %8204 = vmatmul.mubr.f32.gmra.mrb[0].mxu0 %v8093
        %v8205 = vpop.f32.mrb[0].mxu0
        %v8206 = vadd.f32 0.0, %v8205
        %v8207 = vpop.f32.mrb[0].mxu0
        %v8208 = vadd.f32 0.0, %v8207
        %8209 = vmatprep.mubr.f32.mxu0 0.0
        %8210 = vmatmul.mubr.f32.gmra.mrb[0].mxu0 %v8095
        %v8211 = vpop.f32.mrb[0].mxu0
        %v8212 = vadd.f32 0.0, %v8211
        %v8213 = vpop.f32.mrb[0].mxu0
        %v8214 = vadd.f32 0.0, %v8213
        %8215 = vmatprep.mubr.f32.mxu0 0.0
        %8216 = vmatmul.mubr.f32.gmra.mrb[0].mxu0 %v8097
        %v8217 = vpop.f32.mrb[0].mxu0
        %v8218 = vadd.f32 0.0, %v8217
        %v8219 = vpop.f32.mrb[0].mxu0
        %v8220 = vadd.f32 0.0, %v8219
        %8221 = vmatprep.mubr.f32.mxu0 0.0
        %8222 = vmatmul.mubr.f32.gmra.mrb[0].mxu0 %v8099
        %v8223 = vpop.f32.mrb[0].mxu0
        %v8224 = vadd.f32 0.0, %v8223
        %v8225 = vpop.f32.mrb[0].mxu0
        %v8226 = vadd.f32 0.0, %v8225
        %8227 = vdwg.mxu0
        %v8228 = vadd.f32 %v8080, %v8200
        %v8229 = vadd.f32 %v8081, %v8202
        %v8230 = vadd.f32 %v8082, %v8206
        %v8231 = vadd.f32 %v8083, %v8208
        %v8232 = vadd.f32 %v8084, %v8212
        %v8233 = vadd.f32 %v8085, %v8214
        %v8234 = vadd.f32 %v8086, %v8218
        %v8235 = vadd.f32 %v8087, %v8220
        %v8236 = vadd.f32 %v8088, %v8224
        %v8237 = vadd.f32 %v8089, %v8226
        %s8238 = scalar_lea.vmem [#allocation4], 12
        %v8239 = vld [vmem:[%s8238] ss:$2 sm:$0xff]
        %s8240 = scalar_lea.vmem [#allocation4], 28
        %v8241 = vld [vmem:[%s8240] ss:$2 sm:$0xff]
        %s8242 = scalar_lea.vmem [#allocation4], 44
        %v8243 = vld [vmem:[%s8242] ss:$2 sm:$0xff]
        %s8244 = scalar_lea.vmem [#allocation4], 60
        %v8245 = vld [vmem:[%s8244] ss:$2 sm:$0xff]
        %s8246 = scalar_lea.vmem [#allocation4], 76
        %v8247 = vld [vmem:[%s8246] ss:$2 sm:$0xff]
        %s8248 = scalar_lea.vmem [#allocation17], 1280
        %v8249 = vld [vmem:[%s8248] sm:$0xff]
        %v8250 = vld [vmem:[%s8248 + $0x8] sm:$0xff]
        %v8251 = vld [vmem:[%s8248 + $0x10] sm:$0xff]
        %v8252 = vld [vmem:[%s8248 + $0x18] sm:$0xff]
        %v8253 = vld [vmem:[%s8248 + $0x20] sm:$0xff]
        %v8254 = vld [vmem:[%s8248 + $0x28] sm:$0xff]
        %v8255 = vld [vmem:[%s8248 + $0x30] sm:$0xff]
        %v8256 = vld [vmem:[%s8248 + $0x38] sm:$0xff]
        %v8257 = vld [vmem:[%s8248 + $0x40] sm:$0xff]
        %v8258 = vld [vmem:[%s8248 + $0x48] sm:$0xff]
        %v8259 = vld [vmem:[%s8248 + $0x50] sm:$0xff]
        %v8260 = vld [vmem:[%s8248 + $0x58] sm:$0xff]
        %v8261 = vld [vmem:[%s8248 + $0x60] sm:$0xff]
        %v8262 = vld [vmem:[%s8248 + $0x68] sm:$0xff]
        %v8263 = vld [vmem:[%s8248 + $0x70] sm:$0xff]
        %v8264 = vld [vmem:[%s8248 + $0x78] sm:$0xff]
        %v8265 = vld [vmem:[%s8248 + $0x80] sm:$0xff]
        %v8266 = vld [vmem:[%s8248 + $0x88] sm:$0xff]
        %v8267 = vld [vmem:[%s8248 + $0x90] sm:$0xff]
        %v8268 = vld [vmem:[%s8248 + $0x98] sm:$0xff]
        %v8269 = vld [vmem:[%s8248 + $0xa0] sm:$0xff]
        %v8270 = vld [vmem:[%s8248 + $0xa8] sm:$0xff]
        %v8271 = vld [vmem:[%s8248 + $0xb0] sm:$0xff]
        %v8272 = vld [vmem:[%s8248 + $0xb8] sm:$0xff]
        %v8273 = vld [vmem:[%s8248 + $0xc0] sm:$0xff]
        %v8274 = vld [vmem:[%s8248 + $0xc8] sm:$0xff]
        %v8275 = vld [vmem:[%s8248 + $0xd0] sm:$0xff]
        %v8276 = vld [vmem:[%s8248 + $0xd8] sm:$0xff]
        %v8277 = vld [vmem:[%s8248 + $0xe0] sm:$0xff]
        %v8278 = vld [vmem:[%s8248 + $0xe8] sm:$0xff]
        %v8279 = vld [vmem:[%s8248 + $0xf0] sm:$0xff]
        %v8280 = vld [vmem:[%s8248 + $0xf8] sm:$0xff]
        %8281 = vmatprep.subr.mxu0 %v8250
        %8282 = vmatpush1.msra.mxu0 %v8249
        %8283 = vmatprep.subr.mxu0 %v8252
        %8284 = vmatpush1.msra.mxu0 %v8251
        %8285 = vmatprep.subr.mxu0 %v8254
        %8286 = vmatpush1.msra.mxu0 %v8253
        %8287 = vmatprep.subr.mxu0 %v8256
        %8288 = vmatpush1.msra.mxu0 %v8255
        %8289 = vmatprep.subr.mxu0 %v8258
        %8290 = vmatpush1.msra.mxu0 %v8257
        %8291 = vmatprep.subr.mxu0 %v8260
        %8292 = vmatpush1.msra.mxu0 %v8259
        %8293 = vmatprep.subr.mxu0 %v8262
        %8294 = vmatpush1.msra.mxu0 %v8261
        %8295 = vmatprep.subr.mxu0 %v8264
        %8296 = vmatpush1.msra.mxu0 %v8263
        %8297 = vmatprep.subr.mxu0 %v8266
        %8298 = vmatpush1.msra.mxu0 %v8265
        %8299 = vmatprep.subr.mxu0 %v8268
        %8300 = vmatpush1.msra.mxu0 %v8267
        %8301 = vmatprep.subr.mxu0 %v8270
        %8302 = vmatpush1.msra.mxu0 %v8269
        %8303 = vmatprep.subr.mxu0 %v8272
        %8304 = vmatpush1.msra.mxu0 %v8271
        %8305 = vmatprep.subr.mxu0 %v8274
        %8306 = vmatpush1.msra.mxu0 %v8273
        %8307 = vmatprep.subr.mxu0 %v8276
        %8308 = vmatpush1.msra.mxu0 %v8275
        %8309 = vmatprep.subr.mxu0 %v8278
        %8310 = vmatpush1.msra.mxu0 %v8277
        %8311 = vmatprep.subr.mxu0 %v8280
        %8312 = vmatpush1.msra.mxu0 %v8279
        %8313 = vmatprep.subr.mxu0 0.0
        %8314 = vmatpush1.msra.mxu0 0.0
        %8315 = vmatprep.subr.mxu0 0.0
        %8316 = vmatpush1.msra.mxu0 0.0
        %8317 = vmatprep.subr.mxu0 0.0
        %8318 = vmatpush1.msra.mxu0 0.0
        %8319 = vmatprep.subr.mxu0 0.0
        %8320 = vmatpush1.msra.mxu0 0.0
        %8321 = vmatprep.subr.mxu0 0.0
        %8322 = vmatpush1.msra.mxu0 0.0
        %8323 = vmatprep.subr.mxu0 0.0
        %8324 = vmatpush1.msra.mxu0 0.0
        %8325 = vmatprep.subr.mxu0 0.0
        %8326 = vmatpush1.msra.mxu0 0.0
        %8327 = vmatprep.subr.mxu0 0.0
        %8328 = vmatpush1.msra.mxu0 0.0
        %8329 = vmatprep.subr.mxu0 0.0
        %8330 = vmatpush1.msra.mxu0 0.0
        %8331 = vmatprep.subr.mxu0 0.0
        %8332 = vmatpush1.msra.mxu0 0.0
        %8333 = vmatprep.subr.mxu0 0.0
        %8334 = vmatpush1.msra.mxu0 0.0
        %8335 = vmatprep.subr.mxu0 0.0
        %8336 = vmatpush1.msra.mxu0 0.0
        %8337 = vmatprep.subr.mxu0 0.0
        %8338 = vmatpush1.msra.mxu0 0.0
        %8339 = vmatprep.subr.mxu0 0.0
        %8340 = vmatpush1.msra.mxu0 0.0
        %8341 = vmatprep.subr.mxu0 0.0
        %8342 = vmatpush1.msra.mxu0 0.0
        %8343 = vmatprep.subr.mxu0 0.0
        %8344 = vmatpush1.msra.mxu0 0.0
        %8345 = vmatprep.mubr.f32.mxu0 0.0
        %8346 = vmatmul.mubr.f32.gmra.mrb[0].mxu0 %v8239
        %v8347 = vpop.f32.mrb[0].mxu0
        %v8348 = vadd.f32 0.0, %v8347
        %v8349 = vpop.f32.mrb[0].mxu0
        %v8350 = vadd.f32 0.0, %v8349
        %8351 = vmatprep.mubr.f32.mxu0 0.0
        %8352 = vmatmul.mubr.f32.gmra.mrb[0].mxu0 %v8241
        %v8353 = vpop.f32.mrb[0].mxu0
        %v8354 = vadd.f32 0.0, %v8353
        %v8355 = vpop.f32.mrb[0].mxu0
        %v8356 = vadd.f32 0.0, %v8355
        %8357 = vmatprep.mubr.f32.mxu0 0.0
        %8358 = vmatmul.mubr.f32.gmra.mrb[0].mxu0 %v8243
        %v8359 = vpop.f32.mrb[0].mxu0
        %v8360 = vadd.f32 0.0, %v8359
        %v8361 = vpop.f32.mrb[0].mxu0
        %v8362 = vadd.f32 0.0, %v8361
        %8363 = vmatprep.mubr.f32.mxu0 0.0
        %8364 = vmatmul.mubr.f32.gmra.mrb[0].mxu0 %v8245
        %v8365 = vpop.f32.mrb[0].mxu0
        %v8366 = vadd.f32 0.0, %v8365
        %v8367 = vpop.f32.mrb[0].mxu0
        %v8368 = vadd.f32 0.0, %v8367
        %8369 = vmatprep.mubr.f32.mxu0 0.0
        %8370 = vmatmul.mubr.f32.gmra.mrb[0].mxu0 %v8247
        %v8371 = vpop.f32.mrb[0].mxu0
        %v8372 = vadd.f32 0.0, %v8371
        %v8373 = vpop.f32.mrb[0].mxu0
        %v8374 = vadd.f32 0.0, %v8373
        %8375 = vdwg.mxu0
        %v8376 = vadd.f32 %v8228, %v8348
        %v8377 = vadd.f32 %v8229, %v8350
        %v8378 = vadd.f32 %v8230, %v8354
        %v8379 = vadd.f32 %v8231, %v8356
        %v8380 = vadd.f32 %v8232, %v8360
        %v8381 = vadd.f32 %v8233, %v8362
        %v8382 = vadd.f32 %v8234, %v8366
        %v8383 = vadd.f32 %v8235, %v8368
        %v8384 = vadd.f32 %v8236, %v8372
        %v8385 = vadd.f32 %v8237, %v8374
        %s8386 = scalar_lea.vmem [#allocation4], 20
        %v8387 = vld [vmem:[%s8386] ss:$2 sm:$0xff]
        %s8388 = scalar_lea.vmem [#allocation4], 36
        %v8389 = vld [vmem:[%s8388] ss:$2 sm:$0xff]
        %s8390 = scalar_lea.vmem [#allocation4], 52
        %v8391 = vld [vmem:[%s8390] ss:$2 sm:$0xff]
        %s8392 = scalar_lea.vmem [#allocation4], 68
        %v8393 = vld [vmem:[%s8392] ss:$2 sm:$0xff]
        %s8394 = scalar_lea.vmem [#allocation4], 84
        %v8395 = vld [vmem:[%s8394] ss:$2 sm:$0xff]
        %s8396 = scalar_lea.vmem [#allocation17], 1536
        %v8397 = vld [vmem:[%s8396] sm:$0xff]
        %v8398 = vld [vmem:[%s8396 + $0x8] sm:$0xff]
        %v8399 = vld [vmem:[%s8396 + $0x10] sm:$0xff]
        %v8400 = vld [vmem:[%s8396 + $0x18] sm:$0xff]
        %v8401 = vld [vmem:[%s8396 + $0x20] sm:$0xff]
        %v8402 = vld [vmem:[%s8396 + $0x28] sm:$0xff]
        %v8403 = vld [vmem:[%s8396 + $0x30] sm:$0xff]
        %v8404 = vld [vmem:[%s8396 + $0x38] sm:$0xff]
        %v8405 = vld [vmem:[%s8396 + $0x40] sm:$0xff]
        %v8406 = vld [vmem:[%s8396 + $0x48] sm:$0xff]
        %v8407 = vld [vmem:[%s8396 + $0x50] sm:$0xff]
        %v8408 = vld [vmem:[%s8396 + $0x58] sm:$0xff]
        %v8409 = vld [vmem:[%s8396 + $0x60] sm:$0xff]
        %v8410 = vld [vmem:[%s8396 + $0x68] sm:$0xff]
        %v8411 = vld [vmem:[%s8396 + $0x70] sm:$0xff]
        %v8412 = vld [vmem:[%s8396 + $0x78] sm:$0xff]
        %v8413 = vld [vmem:[%s8396 + $0x80] sm:$0xff]
        %v8414 = vld [vmem:[%s8396 + $0x88] sm:$0xff]
        %v8415 = vld [vmem:[%s8396 + $0x90] sm:$0xff]
        %v8416 = vld [vmem:[%s8396 + $0x98] sm:$0xff]
        %v8417 = vld [vmem:[%s8396 + $0xa0] sm:$0xff]
        %v8418 = vld [vmem:[%s8396 + $0xa8] sm:$0xff]
        %v8419 = vld [vmem:[%s8396 + $0xb0] sm:$0xff]
        %v8420 = vld [vmem:[%s8396 + $0xb8] sm:$0xff]
        %v8421 = vld [vmem:[%s8396 + $0xc0] sm:$0xff]
        %v8422 = vld [vmem:[%s8396 + $0xc8] sm:$0xff]
        %v8423 = vld [vmem:[%s8396 + $0xd0] sm:$0xff]
        %v8424 = vld [vmem:[%s8396 + $0xd8] sm:$0xff]
        %v8425 = vld [vmem:[%s8396 + $0xe0] sm:$0xff]
        %v8426 = vld [vmem:[%s8396 + $0xe8] sm:$0xff]
        %v8427 = vld [vmem:[%s8396 + $0xf0] sm:$0xff]
        %v8428 = vld [vmem:[%s8396 + $0xf8] sm:$0xff]
        %8429 = vmatprep.subr.mxu0 %v8398
        %8430 = vmatpush1.msra.mxu0 %v8397
        %8431 = vmatprep.subr.mxu0 %v8400
        %8432 = vmatpush1.msra.mxu0 %v8399
        %8433 = vmatprep.subr.mxu0 %v8402
        %8434 = vmatpush1.msra.mxu0 %v8401
        %8435 = vmatprep.subr.mxu0 %v8404
        %8436 = vmatpush1.msra.mxu0 %v8403
        %8437 = vmatprep.subr.mxu0 %v8406
        %8438 = vmatpush1.msra.mxu0 %v8405
        %8439 = vmatprep.subr.mxu0 %v8408
        %8440 = vmatpush1.msra.mxu0 %v8407
        %8441 = vmatprep.subr.mxu0 %v8410
        %8442 = vmatpush1.msra.mxu0 %v8409
        %8443 = vmatprep.subr.mxu0 %v8412
        %8444 = vmatpush1.msra.mxu0 %v8411
        %8445 = vmatprep.subr.mxu0 %v8414
        %8446 = vmatpush1.msra.mxu0 %v8413
        %8447 = vmatprep.subr.mxu0 %v8416
        %8448 = vmatpush1.msra.mxu0 %v8415
        %8449 = vmatprep.subr.mxu0 %v8418
        %8450 = vmatpush1.msra.mxu0 %v8417
        %8451 = vmatprep.subr.mxu0 %v8420
        %8452 = vmatpush1.msra.mxu0 %v8419
        %8453 = vmatprep.subr.mxu0 %v8422
        %8454 = vmatpush1.msra.mxu0 %v8421
        %8455 = vmatprep.subr.mxu0 %v8424
        %8456 = vmatpush1.msra.mxu0 %v8423
        %8457 = vmatprep.subr.mxu0 %v8426
        %8458 = vmatpush1.msra.mxu0 %v8425
        %8459 = vmatprep.subr.mxu0 %v8428
        %8460 = vmatpush1.msra.mxu0 %v8427
        %8461 = vmatprep.subr.mxu0 0.0
        %8462 = vmatpush1.msra.mxu0 0.0
        %8463 = vmatprep.subr.mxu0 0.0
        %8464 = vmatpush1.msra.mxu0 0.0
        %8465 = vmatprep.subr.mxu0 0.0
        %8466 = vmatpush1.msra.mxu0 0.0
        %8467 = vmatprep.subr.mxu0 0.0
        %8468 = vmatpush1.msra.mxu0 0.0
        %8469 = vmatprep.subr.mxu0 0.0
        %8470 = vmatpush1.msra.mxu0 0.0
        %8471 = vmatprep.subr.mxu0 0.0
        %8472 = vmatpush1.msra.mxu0 0.0
        %8473 = vmatprep.subr.mxu0 0.0
        %8474 = vmatpush1.msra.mxu0 0.0
        %8475 = vmatprep.subr.mxu0 0.0
        %8476 = vmatpush1.msra.mxu0 0.0
        %8477 = vmatprep.subr.mxu0 0.0
        %8478 = vmatpush1.msra.mxu0 0.0
        %8479 = vmatprep.subr.mxu0 0.0
        %8480 = vmatpush1.msra.mxu0 0.0
        %8481 = vmatprep.subr.mxu0 0.0
        %8482 = vmatpush1.msra.mxu0 0.0
        %8483 = vmatprep.subr.mxu0 0.0
        %8484 = vmatpush1.msra.mxu0 0.0
        %8485 = vmatprep.subr.mxu0 0.0
        %8486 = vmatpush1.msra.mxu0 0.0
        %8487 = vmatprep.subr.mxu0 0.0
        %8488 = vmatpush1.msra.mxu0 0.0
        %8489 = vmatprep.subr.mxu0 0.0
        %8490 = vmatpush1.msra.mxu0 0.0
        %8491 = vmatprep.subr.mxu0 0.0
        %8492 = vmatpush1.msra.mxu0 0.0
        %8493 = vmatprep.mubr.f32.mxu0 0.0
        %8494 = vmatmul.mubr.f32.gmra.mrb[0].mxu0 %v8387
        %v8495 = vpop.f32.mrb[0].mxu0
        %v8496 = vadd.f32 0.0, %v8495
        %v8497 = vpop.f32.mrb[0].mxu0
        %v8498 = vadd.f32 0.0, %v8497
        %8499 = vmatprep.mubr.f32.mxu0 0.0
        %8500 = vmatmul.mubr.f32.gmra.mrb[0].mxu0 %v8389
        %v8501 = vpop.f32.mrb[0].mxu0
        %v8502 = vadd.f32 0.0, %v8501
        %v8503 = vpop.f32.mrb[0].mxu0
        %v8504 = vadd.f32 0.0, %v8503
        %8505 = vmatprep.mubr.f32.mxu0 0.0
        %8506 = vmatmul.mubr.f32.gmra.mrb[0].mxu0 %v8391
        %v8507 = vpop.f32.mrb[0].mxu0
        %v8508 = vadd.f32 0.0, %v8507
        %v8509 = vpop.f32.mrb[0].mxu0
        %v8510 = vadd.f32 0.0, %v8509
        %8511 = vmatprep.mubr.f32.mxu0 0.0
        %8512 = vmatmul.mubr.f32.gmra.mrb[0].mxu0 %v8393
        %v8513 = vpop.f32.mrb[0].mxu0
        %v8514 = vadd.f32 0.0, %v8513
        %v8515 = vpop.f32.mrb[0].mxu0
        %v8516 = vadd.f32 0.0, %v8515
        %8517 = vmatprep.mubr.f32.mxu0 0.0
        %8518 = vmatmul.mubr.f32.gmra.mrb[0].mxu0 %v8395
        %v8519 = vpop.f32.mrb[0].mxu0
        %v8520 = vadd.f32 0.0, %v8519
        %v8521 = vpop.f32.mrb[0].mxu0
        %v8522 = vadd.f32 0.0, %v8521
        %8523 = vdwg.mxu0
        %v8524 = vadd.f32 %v8376, %v8496
        %v8525 = vadd.f32 %v8377, %v8498
        %v8526 = vadd.f32 %v8378, %v8502
        %v8527 = vadd.f32 %v8379, %v8504
        %v8528 = vadd.f32 %v8380, %v8508
        %v8529 = vadd.f32 %v8381, %v8510
        %v8530 = vadd.f32 %v8382, %v8514
        %v8531 = vadd.f32 %v8383, %v8516
        %v8532 = vadd.f32 %v8384, %v8520
        %v8533 = vadd.f32 %v8385, %v8522
        %s8534 = scalar_lea.vmem [#allocation4], 21
        %v8535 = vld [vmem:[%s8534] ss:$2 sm:$0xff]
        %s8536 = scalar_lea.vmem [#allocation4], 37
        %v8537 = vld [vmem:[%s8536] ss:$2 sm:$0xff]
        %s8538 = scalar_lea.vmem [#allocation4], 53
        %v8539 = vld [vmem:[%s8538] ss:$2 sm:$0xff]
        %s8540 = scalar_lea.vmem [#allocation4], 69
        %v8541 = vld [vmem:[%s8540] ss:$2 sm:$0xff]
        %s8542 = scalar_lea.vmem [#allocation4], 85
        %v8543 = vld [vmem:[%s8542] ss:$2 sm:$0xff]
        %s8544 = scalar_lea.vmem [#allocation17], 1792
        %v8545 = vld [vmem:[%s8544] sm:$0xff]
        %v8546 = vld [vmem:[%s8544 + $0x8] sm:$0xff]
        %v8547 = vld [vmem:[%s8544 + $0x10] sm:$0xff]
        %v8548 = vld [vmem:[%s8544 + $0x18] sm:$0xff]
        %v8549 = vld [vmem:[%s8544 + $0x20] sm:$0xff]
        %v8550 = vld [vmem:[%s8544 + $0x28] sm:$0xff]
        %v8551 = vld [vmem:[%s8544 + $0x30] sm:$0xff]
        %v8552 = vld [vmem:[%s8544 + $0x38] sm:$0xff]
        %v8553 = vld [vmem:[%s8544 + $0x40] sm:$0xff]
        %v8554 = vld [vmem:[%s8544 + $0x48] sm:$0xff]
        %v8555 = vld [vmem:[%s8544 + $0x50] sm:$0xff]
        %v8556 = vld [vmem:[%s8544 + $0x58] sm:$0xff]
        %v8557 = vld [vmem:[%s8544 + $0x60] sm:$0xff]
        %v8558 = vld [vmem:[%s8544 + $0x68] sm:$0xff]
        %v8559 = vld [vmem:[%s8544 + $0x70] sm:$0xff]
        %v8560 = vld [vmem:[%s8544 + $0x78] sm:$0xff]
        %v8561 = vld [vmem:[%s8544 + $0x80] sm:$0xff]
        %v8562 = vld [vmem:[%s8544 + $0x88] sm:$0xff]
        %v8563 = vld [vmem:[%s8544 + $0x90] sm:$0xff]
        %v8564 = vld [vmem:[%s8544 + $0x98] sm:$0xff]
        %v8565 = vld [vmem:[%s8544 + $0xa0] sm:$0xff]
        %v8566 = vld [vmem:[%s8544 + $0xa8] sm:$0xff]
        %v8567 = vld [vmem:[%s8544 + $0xb0] sm:$0xff]
        %v8568 = vld [vmem:[%s8544 + $0xb8] sm:$0xff]
        %v8569 = vld [vmem:[%s8544 + $0xc0] sm:$0xff]
        %v8570 = vld [vmem:[%s8544 + $0xc8] sm:$0xff]
        %v8571 = vld [vmem:[%s8544 + $0xd0] sm:$0xff]
        %v8572 = vld [vmem:[%s8544 + $0xd8] sm:$0xff]
        %v8573 = vld [vmem:[%s8544 + $0xe0] sm:$0xff]
        %v8574 = vld [vmem:[%s8544 + $0xe8] sm:$0xff]
        %v8575 = vld [vmem:[%s8544 + $0xf0] sm:$0xff]
        %v8576 = vld [vmem:[%s8544 + $0xf8] sm:$0xff]
        %8577 = vmatprep.subr.mxu0 %v8546
        %8578 = vmatpush1.msra.mxu0 %v8545
        %8579 = vmatprep.subr.mxu0 %v8548
        %8580 = vmatpush1.msra.mxu0 %v8547
        %8581 = vmatprep.subr.mxu0 %v8550
        %8582 = vmatpush1.msra.mxu0 %v8549
        %8583 = vmatprep.subr.mxu0 %v8552
        %8584 = vmatpush1.msra.mxu0 %v8551
        %8585 = vmatprep.subr.mxu0 %v8554
        %8586 = vmatpush1.msra.mxu0 %v8553
        %8587 = vmatprep.subr.mxu0 %v8556
        %8588 = vmatpush1.msra.mxu0 %v8555
        %8589 = vmatprep.subr.mxu0 %v8558
        %8590 = vmatpush1.msra.mxu0 %v8557
        %8591 = vmatprep.subr.mxu0 %v8560
        %8592 = vmatpush1.msra.mxu0 %v8559
        %8593 = vmatprep.subr.mxu0 %v8562
        %8594 = vmatpush1.msra.mxu0 %v8561
        %8595 = vmatprep.subr.mxu0 %v8564
        %8596 = vmatpush1.msra.mxu0 %v8563
        %8597 = vmatprep.subr.mxu0 %v8566
        %8598 = vmatpush1.msra.mxu0 %v8565
        %8599 = vmatprep.subr.mxu0 %v8568
        %8600 = vmatpush1.msra.mxu0 %v8567
        %8601 = vmatprep.subr.mxu0 %v8570
        %8602 = vmatpush1.msra.mxu0 %v8569
        %8603 = vmatprep.subr.mxu0 %v8572
        %8604 = vmatpush1.msra.mxu0 %v8571
        %8605 = vmatprep.subr.mxu0 %v8574
        %8606 = vmatpush1.msra.mxu0 %v8573
        %8607 = vmatprep.subr.mxu0 %v8576
        %8608 = vmatpush1.msra.mxu0 %v8575
        %8609 = vmatprep.subr.mxu0 0.0
        %8610 = vmatpush1.msra.mxu0 0.0
        %8611 = vmatprep.subr.mxu0 0.0
        %8612 = vmatpush1.msra.mxu0 0.0
        %8613 = vmatprep.subr.mxu0 0.0
        %8614 = vmatpush1.msra.mxu0 0.0
        %8615 = vmatprep.subr.mxu0 0.0
        %8616 = vmatpush1.msra.mxu0 0.0
        %8617 = vmatprep.subr.mxu0 0.0
        %8618 = vmatpush1.msra.mxu0 0.0
        %8619 = vmatprep.subr.mxu0 0.0
        %8620 = vmatpush1.msra.mxu0 0.0
        %8621 = vmatprep.subr.mxu0 0.0
        %8622 = vmatpush1.msra.mxu0 0.0
        %8623 = vmatprep.subr.mxu0 0.0
        %8624 = vmatpush1.msra.mxu0 0.0
        %8625 = vmatprep.subr.mxu0 0.0
        %8626 = vmatpush1.msra.mxu0 0.0
        %8627 = vmatprep.subr.mxu0 0.0
        %8628 = vmatpush1.msra.mxu0 0.0
        %8629 = vmatprep.subr.mxu0 0.0
        %8630 = vmatpush1.msra.mxu0 0.0
        %8631 = vmatprep.subr.mxu0 0.0
        %8632 = vmatpush1.msra.mxu0 0.0
        %8633 = vmatprep.subr.mxu0 0.0
        %8634 = vmatpush1.msra.mxu0 0.0
        %8635 = vmatprep.subr.mxu0 0.0
        %8636 = vmatpush1.msra.mxu0 0.0
        %8637 = vmatprep.subr.mxu0 0.0
        %8638 = vmatpush1.msra.mxu0 0.0
        %8639 = vmatprep.subr.mxu0 0.0
        %8640 = vmatpush1.msra.mxu0 0.0
        %8641 = vmatprep.mubr.f32.mxu0 0.0
        %8642 = vmatmul.mubr.f32.gmra.mrb[0].mxu0 %v8535
        %v8643 = vpop.f32.mrb[0].mxu0
        %v8644 = vadd.f32 0.0, %v8643
        %v8645 = vpop.f32.mrb[0].mxu0
        %v8646 = vadd.f32 0.0, %v8645
        %8647 = vmatprep.mubr.f32.mxu0 0.0
        %8648 = vmatmul.mubr.f32.gmra.mrb[0].mxu0 %v8537
        %v8649 = vpop.f32.mrb[0].mxu0
        %v8650 = vadd.f32 0.0, %v8649
        %v8651 = vpop.f32.mrb[0].mxu0
        %v8652 = vadd.f32 0.0, %v8651
        %8653 = vmatprep.mubr.f32.mxu0 0.0
        %8654 = vmatmul.mubr.f32.gmra.mrb[0].mxu0 %v8539
        %v8655 = vpop.f32.mrb[0].mxu0
        %v8656 = vadd.f32 0.0, %v8655
        %v8657 = vpop.f32.mrb[0].mxu0
        %v8658 = vadd.f32 0.0, %v8657
        %8659 = vmatprep.mubr.f32.mxu0 0.0
        %8660 = vmatmul.mubr.f32.gmra.mrb[0].mxu0 %v8541
        %v8661 = vpop.f32.mrb[0].mxu0
        %v8662 = vadd.f32 0.0, %v8661
        %v8663 = vpop.f32.mrb[0].mxu0
        %v8664 = vadd.f32 0.0, %v8663
        %8665 = vmatprep.mubr.f32.mxu0 0.0
        %8666 = vmatmul.mubr.f32.gmra.mrb[0].mxu0 %v8543
        %v8667 = vpop.f32.mrb[0].mxu0
        %v8668 = vadd.f32 0.0, %v8667
        %v8669 = vpop.f32.mrb[0].mxu0
        %v8670 = vadd.f32 0.0, %v8669
        %8671 = vdwg.mxu0
        %v8672 = vadd.f32 %v8524, %v8644
        %v8673 = vadd.f32 %v8525, %v8646
        %v8674 = vadd.f32 %v8526, %v8650
        %v8675 = vadd.f32 %v8527, %v8652
        %v8676 = vadd.f32 %v8528, %v8656
        %v8677 = vadd.f32 %v8529, %v8658
        %v8678 = vadd.f32 %v8530, %v8662
        %v8679 = vadd.f32 %v8531, %v8664
        %v8680 = vadd.f32 %v8532, %v8668
        %v8681 = vadd.f32 %v8533, %v8670
        %s8682 = scalar_lea.vmem [#allocation4], 22
        %v8683 = vld [vmem:[%s8682] ss:$2 sm:$0xff]
        %s8684 = scalar_lea.vmem [#allocation4], 38
        %v8685 = vld [vmem:[%s8684] ss:$2 sm:$0xff]
        %s8686 = scalar_lea.vmem [#allocation4], 54
        %v8687 = vld [vmem:[%s8686] ss:$2 sm:$0xff]
        %s8688 = scalar_lea.vmem [#allocation4], 70
        %v8689 = vld [vmem:[%s8688] ss:$2 sm:$0xff]
        %s8690 = scalar_lea.vmem [#allocation4], 86
        %v8691 = vld [vmem:[%s8690] ss:$2 sm:$0xff]
        %s8692 = scalar_lea.vmem [#allocation17], 2048
        %v8693 = vld [vmem:[%s8692] sm:$0xff]
        %v8694 = vld [vmem:[%s8692 + $0x8] sm:$0xff]
        %v8695 = vld [vmem:[%s8692 + $0x10] sm:$0xff]
        %v8696 = vld [vmem:[%s8692 + $0x18] sm:$0xff]
        %v8697 = vld [vmem:[%s8692 + $0x20] sm:$0xff]
        %v8698 = vld [vmem:[%s8692 + $0x28] sm:$0xff]
        %v8699 = vld [vmem:[%s8692 + $0x30] sm:$0xff]
        %v8700 = vld [vmem:[%s8692 + $0x38] sm:$0xff]
        %v8701 = vld [vmem:[%s8692 + $0x40] sm:$0xff]
        %v8702 = vld [vmem:[%s8692 + $0x48] sm:$0xff]
        %v8703 = vld [vmem:[%s8692 + $0x50] sm:$0xff]
        %v8704 = vld [vmem:[%s8692 + $0x58] sm:$0xff]
        %v8705 = vld [vmem:[%s8692 + $0x60] sm:$0xff]
        %v8706 = vld [vmem:[%s8692 + $0x68] sm:$0xff]
        %v8707 = vld [vmem:[%s8692 + $0x70] sm:$0xff]
        %v8708 = vld [vmem:[%s8692 + $0x78] sm:$0xff]
        %v8709 = vld [vmem:[%s8692 + $0x80] sm:$0xff]
        %v8710 = vld [vmem:[%s8692 + $0x88] sm:$0xff]
        %v8711 = vld [vmem:[%s8692 + $0x90] sm:$0xff]
        %v8712 = vld [vmem:[%s8692 + $0x98] sm:$0xff]
        %v8713 = vld [vmem:[%s8692 + $0xa0] sm:$0xff]
        %v8714 = vld [vmem:[%s8692 + $0xa8] sm:$0xff]
        %v8715 = vld [vmem:[%s8692 + $0xb0] sm:$0xff]
        %v8716 = vld [vmem:[%s8692 + $0xb8] sm:$0xff]
        %v8717 = vld [vmem:[%s8692 + $0xc0] sm:$0xff]
        %v8718 = vld [vmem:[%s8692 + $0xc8] sm:$0xff]
        %v8719 = vld [vmem:[%s8692 + $0xd0] sm:$0xff]
        %v8720 = vld [vmem:[%s8692 + $0xd8] sm:$0xff]
        %v8721 = vld [vmem:[%s8692 + $0xe0] sm:$0xff]
        %v8722 = vld [vmem:[%s8692 + $0xe8] sm:$0xff]
        %v8723 = vld [vmem:[%s8692 + $0xf0] sm:$0xff]
        %v8724 = vld [vmem:[%s8692 + $0xf8] sm:$0xff]
        %8725 = vmatprep.subr.mxu0 %v8694
        %8726 = vmatpush1.msra.mxu0 %v8693
        %8727 = vmatprep.subr.mxu0 %v8696
        %8728 = vmatpush1.msra.mxu0 %v8695
        %8729 = vmatprep.subr.mxu0 %v8698
        %8730 = vmatpush1.msra.mxu0 %v8697
        %8731 = vmatprep.subr.mxu0 %v8700
        %8732 = vmatpush1.msra.mxu0 %v8699
        %8733 = vmatprep.subr.mxu0 %v8702
        %8734 = vmatpush1.msra.mxu0 %v8701
        %8735 = vmatprep.subr.mxu0 %v8704
        %8736 = vmatpush1.msra.mxu0 %v8703
        %8737 = vmatprep.subr.mxu0 %v8706
        %8738 = vmatpush1.msra.mxu0 %v8705
        %8739 = vmatprep.subr.mxu0 %v8708
        %8740 = vmatpush1.msra.mxu0 %v8707
        %8741 = vmatprep.subr.mxu0 %v8710
        %8742 = vmatpush1.msra.mxu0 %v8709
        %8743 = vmatprep.subr.mxu0 %v8712
        %8744 = vmatpush1.msra.mxu0 %v8711
        %8745 = vmatprep.subr.mxu0 %v8714
        %8746 = vmatpush1.msra.mxu0 %v8713
        %8747 = vmatprep.subr.mxu0 %v8716
        %8748 = vmatpush1.msra.mxu0 %v8715
        %8749 = vmatprep.subr.mxu0 %v8718
        %8750 = vmatpush1.msra.mxu0 %v8717
        %8751 = vmatprep.subr.mxu0 %v8720
        %8752 = vmatpush1.msra.mxu0 %v8719
        %8753 = vmatprep.subr.mxu0 %v8722
        %8754 = vmatpush1.msra.mxu0 %v8721
        %8755 = vmatprep.subr.mxu0 %v8724
        %8756 = vmatpush1.msra.mxu0 %v8723
        %8757 = vmatprep.subr.mxu0 0.0
        %8758 = vmatpush1.msra.mxu0 0.0
        %8759 = vmatprep.subr.mxu0 0.0
        %8760 = vmatpush1.msra.mxu0 0.0
        %8761 = vmatprep.subr.mxu0 0.0
        %8762 = vmatpush1.msra.mxu0 0.0
        %8763 = vmatprep.subr.mxu0 0.0
        %8764 = vmatpush1.msra.mxu0 0.0
        %8765 = vmatprep.subr.mxu0 0.0
        %8766 = vmatpush1.msra.mxu0 0.0
        %8767 = vmatprep.subr.mxu0 0.0
        %8768 = vmatpush1.msra.mxu0 0.0
        %8769 = vmatprep.subr.mxu0 0.0
        %8770 = vmatpush1.msra.mxu0 0.0
        %8771 = vmatprep.subr.mxu0 0.0
        %8772 = vmatpush1.msra.mxu0 0.0
        %8773 = vmatprep.subr.mxu0 0.0
        %8774 = vmatpush1.msra.mxu0 0.0
        %8775 = vmatprep.subr.mxu0 0.0
        %8776 = vmatpush1.msra.mxu0 0.0
        %8777 = vmatprep.subr.mxu0 0.0
        %8778 = vmatpush1.msra.mxu0 0.0
        %8779 = vmatprep.subr.mxu0 0.0
        %8780 = vmatpush1.msra.mxu0 0.0
        %8781 = vmatprep.subr.mxu0 0.0
        %8782 = vmatpush1.msra.mxu0 0.0
        %8783 = vmatprep.subr.mxu0 0.0
        %8784 = vmatpush1.msra.mxu0 0.0
        %8785 = vmatprep.subr.mxu0 0.0
        %8786 = vmatpush1.msra.mxu0 0.0
        %8787 = vmatprep.subr.mxu0 0.0
        %8788 = vmatpush1.msra.mxu0 0.0
        %8789 = vmatprep.mubr.f32.mxu0 0.0
        %8790 = vmatmul.mubr.f32.gmra.mrb[0].mxu0 %v8683
        %v8791 = vpop.f32.mrb[0].mxu0
        %v8792 = vadd.f32 0.0, %v8791
        %v8793 = vpop.f32.mrb[0].mxu0
        %v8794 = vadd.f32 0.0, %v8793
        %8795 = vmatprep.mubr.f32.mxu0 0.0
        %8796 = vmatmul.mubr.f32.gmra.mrb[0].mxu0 %v8685
        %v8797 = vpop.f32.mrb[0].mxu0
        %v8798 = vadd.f32 0.0, %v8797
        %v8799 = vpop.f32.mrb[0].mxu0
        %v8800 = vadd.f32 0.0, %v8799
        %8801 = vmatprep.mubr.f32.mxu0 0.0
        %8802 = vmatmul.mubr.f32.gmra.mrb[0].mxu0 %v8687
        %v8803 = vpop.f32.mrb[0].mxu0
        %v8804 = vadd.f32 0.0, %v8803
        %v8805 = vpop.f32.mrb[0].mxu0
        %v8806 = vadd.f32 0.0, %v8805
        %8807 = vmatprep.mubr.f32.mxu0 0.0
        %8808 = vmatmul.mubr.f32.gmra.mrb[0].mxu0 %v8689
        %v8809 = vpop.f32.mrb[0].mxu0
        %v8810 = vadd.f32 0.0, %v8809
        %v8811 = vpop.f32.mrb[0].mxu0
        %v8812 = vadd.f32 0.0, %v8811
        %8813 = vmatprep.mubr.f32.mxu0 0.0
        %8814 = vmatmul.mubr.f32.gmra.mrb[0].mxu0 %v8691
        %v8815 = vpop.f32.mrb[0].mxu0
        %v8816 = vadd.f32 0.0, %v8815
        %v8817 = vpop.f32.mrb[0].mxu0
        %v8818 = vadd.f32 0.0, %v8817
        %8819 = vdwg.mxu0
        %v8820 = vadd.f32 %v8672, %v8792
        %v8821 = vadd.f32 %v8673, %v8794
        %v8822 = vadd.f32 %v8674, %v8798
        %v8823 = vadd.f32 %v8675, %v8800
        %v8824 = vadd.f32 %v8676, %v8804
        %v8825 = vadd.f32 %v8677, %v8806
        %v8826 = vadd.f32 %v8678, %v8810
        %v8827 = vadd.f32 %v8679, %v8812
        %v8828 = vadd.f32 %v8680, %v8816
        %v8829 = vadd.f32 %v8681, %v8818
        %v8830 = vld [vmem:[#allocation19] sm:$0x3]
        %v8832 = vlaneseq
        %v8833 = vshrl.u32 %v8832, 7
        %v8834 = vsub.s32 0, %v8833
        %v8835 = vrot.slane %v8830, %v8834
        %v8836 = vlaneseq
        %v8837 = vshrl.u32 %v8836, 7
        %v8838 = vsub.s32 1, %v8837
        %v8839 = vrot.slane %v8830, %v8838
        %v8842 = vadd.f32 %v8820, %v8835
        %v8843 = vadd.f32 %v8821, %v8839
        %v8844 = vadd.f32 %v8822, %v8835
        %v8845 = vadd.f32 %v8823, %v8839
        %v8846 = vadd.f32 %v8824, %v8835
        %v8847 = vadd.f32 %v8825, %v8839
        %v8848 = vadd.f32 %v8826, %v8835
        %v8849 = vadd.f32 %v8827, %v8839
        %v8850 = vadd.f32 %v8828, %v8835
        %v8851 = vadd.f32 %v8829, %v8839
        %vm8852 = vcmp.gt.f32.partialorder %v8842, 0.0
        %vm8853 = vcmp.gt.f32.partialorder %v8843, 0.0
        %vm8854 = vcmp.gt.f32.partialorder %v8844, 0.0
        %vm8855 = vcmp.gt.f32.partialorder %v8845, 0.0
        %vm8856 = vcmp.gt.f32.partialorder %v8846, 0.0
        %vm8857 = vcmp.gt.f32.partialorder %v8847, 0.0
        %vm8858 = vcmp.gt.f32.partialorder %v8848, 0.0
        %vm8859 = vcmp.gt.f32.partialorder %v8849, 0.0
        %vm8860 = vcmp.gt.f32.partialorder %v8850, 0.0
        %vm8861 = vcmp.gt.f32.partialorder %v8851, 0.0
        %v8862 = vld [vmem:[#allocation20] sm:$0x3]
        %v8864 = vlaneseq
        %v8865 = vshrl.u32 %v8864, 7
        %v8866 = vsub.s32 0, %v8865
        %v8867 = vrot.slane %v8862, %v8866
        %v8868 = vlaneseq
        %v8869 = vshrl.u32 %v8868, 7
        %v8870 = vsub.s32 1, %v8869
        %v8871 = vrot.slane %v8862, %v8870
        %v8874 = vmul.f32 %v8867, %v8842
        %v8875 = vmul.f32 %v8871, %v8843
        %v8876 = vmul.f32 %v8867, %v8844
        %v8877 = vmul.f32 %v8871, %v8845
        %v8878 = vmul.f32 %v8867, %v8846
        %v8879 = vmul.f32 %v8871, %v8847
        %v8880 = vmul.f32 %v8867, %v8848
        %v8881 = vmul.f32 %v8871, %v8849
        %v8882 = vmul.f32 %v8867, %v8850
        %v8883 = vmul.f32 %v8871, %v8851
        %v8884 = vsel %vm8852, %v8842, %v8874
        %v8885 = vsel %vm8853, %v8843, %v8875
        %v8886 = vsel %vm8854, %v8844, %v8876
        %v8887 = vsel %vm8855, %v8845, %v8877
        %v8888 = vsel %vm8856, %v8846, %v8878
        %v8889 = vsel %vm8857, %v8847, %v8879
        %v8890 = vsel %vm8858, %v8848, %v8880
        %v8891 = vsel %vm8859, %v8849, %v8881
        %v8892 = vsel %vm8860, %v8850, %v8882
        %v8893 = vsel %vm8861, %v8851, %v8883
        %v8894 = vld [vmem:[%s13] sm:$0xff]
        %v8895 = vld [vmem:[%s13 + $0x8] sm:$0xff]
        %v8896 = vld [vmem:[%s13 + $0x10] sm:$0xff]
        %v8897 = vld [vmem:[%s13 + $0x18] sm:$0xff]
        %v8898 = vld [vmem:[%s13 + $0x20] sm:$0xff]
        %v8899 = vld [vmem:[%s13 + $0x28] sm:$0xff]
        %v8900 = vld [vmem:[%s13 + $0x30] sm:$0xff]
        %v8901 = vld [vmem:[%s13 + $0x38] sm:$0xff]
        %v8902 = vld [vmem:[%s13 + $0x40] sm:$0xff]
        %v8903 = vld [vmem:[%s13 + $0x48] sm:$0xff]
        %v8904 = vld [vmem:[%s13 + $0x50] sm:$0xff]
        %v8905 = vld [vmem:[%s13 + $0x58] sm:$0xff]
        %v8906 = vld [vmem:[%s13 + $0x60] sm:$0xff]
        %v8907 = vld [vmem:[%s13 + $0x68] sm:$0xff]
        %v8908 = vld [vmem:[%s13 + $0x70] sm:$0xff]
        %v8909 = vld [vmem:[%s13 + $0x78] sm:$0xff]
        %v8910 = vld [vmem:[%s13 + $0x80] sm:$0xff]
        %v8911 = vld [vmem:[%s13 + $0x88] sm:$0xff]
        %v8912 = vld [vmem:[%s13 + $0x90] sm:$0xff]
        %v8913 = vld [vmem:[%s13 + $0x98] sm:$0xff]
        %v8914 = vld [vmem:[%s13 + $0xa0] sm:$0xff]
        %v8915 = vld [vmem:[%s13 + $0xa8] sm:$0xff]
        %v8916 = vld [vmem:[%s13 + $0xb0] sm:$0xff]
        %v8917 = vld [vmem:[%s13 + $0xb8] sm:$0xff]
        %v8918 = vld [vmem:[%s13 + $0xc0] sm:$0xff]
        %v8919 = vld [vmem:[%s13 + $0xc8] sm:$0xff]
        %v8920 = vld [vmem:[%s13 + $0xd0] sm:$0xff]
        %v8921 = vld [vmem:[%s13 + $0xd8] sm:$0xff]
        %v8922 = vld [vmem:[%s13 + $0xe0] sm:$0xff]
        %v8923 = vld [vmem:[%s13 + $0xe8] sm:$0xff]
        %v8924 = vld [vmem:[%s13 + $0xf0] sm:$0xff]
        %v8925 = vld [vmem:[%s13 + $0xf8] sm:$0xff]
        %8926 = vmatprep.subr.mxu0 0.0
        %8927 = vmatpush1.msra.mxu0 %v8894
        %8928 = vmatprep.subr.mxu0 0.0
        %8929 = vmatpush1.msra.mxu0 %v8895
        %8930 = vmatprep.subr.mxu0 0.0
        %8931 = vmatpush1.msra.mxu0 %v8896
        %8932 = vmatprep.subr.mxu0 0.0
        %8933 = vmatpush1.msra.mxu0 %v8897
        %8934 = vmatprep.subr.mxu0 0.0
        %8935 = vmatpush1.msra.mxu0 %v8898
        %8936 = vmatprep.subr.mxu0 0.0
        %8937 = vmatpush1.msra.mxu0 %v8899
        %8938 = vmatprep.subr.mxu0 0.0
        %8939 = vmatpush1.msra.mxu0 %v8900
        %8940 = vmatprep.subr.mxu0 0.0
        %8941 = vmatpush1.msra.mxu0 %v8901
        %8942 = vmatprep.subr.mxu0 0.0
        %8943 = vmatpush1.msra.mxu0 %v8902
        %8944 = vmatprep.subr.mxu0 0.0
        %8945 = vmatpush1.msra.mxu0 %v8903
        %8946 = vmatprep.subr.mxu0 0.0
        %8947 = vmatpush1.msra.mxu0 %v8904
        %8948 = vmatprep.subr.mxu0 0.0
        %8949 = vmatpush1.msra.mxu0 %v8905
        %8950 = vmatprep.subr.mxu0 0.0
        %8951 = vmatpush1.msra.mxu0 %v8906
        %8952 = vmatprep.subr.mxu0 0.0
        %8953 = vmatpush1.msra.mxu0 %v8907
        %8954 = vmatprep.subr.mxu0 0.0
        %8955 = vmatpush1.msra.mxu0 %v8908
        %8956 = vmatprep.subr.mxu0 0.0
        %8957 = vmatpush1.msra.mxu0 %v8909
        %8958 = vmatprep.subr.mxu0 0.0
        %8959 = vmatpush1.msra.mxu0 %v8910
        %8960 = vmatprep.subr.mxu0 0.0
        %8961 = vmatpush1.msra.mxu0 %v8911
        %8962 = vmatprep.subr.mxu0 0.0
        %8963 = vmatpush1.msra.mxu0 %v8912
        %8964 = vmatprep.subr.mxu0 0.0
        %8965 = vmatpush1.msra.mxu0 %v8913
        %8966 = vmatprep.subr.mxu0 0.0
        %8967 = vmatpush1.msra.mxu0 %v8914
        %8968 = vmatprep.subr.mxu0 0.0
        %8969 = vmatpush1.msra.mxu0 %v8915
        %8970 = vmatprep.subr.mxu0 0.0
        %8971 = vmatpush1.msra.mxu0 %v8916
        %8972 = vmatprep.subr.mxu0 0.0
        %8973 = vmatpush1.msra.mxu0 %v8917
        %8974 = vmatprep.subr.mxu0 0.0
        %8975 = vmatpush1.msra.mxu0 %v8918
        %8976 = vmatprep.subr.mxu0 0.0
        %8977 = vmatpush1.msra.mxu0 %v8919
        %8978 = vmatprep.subr.mxu0 0.0
        %8979 = vmatpush1.msra.mxu0 %v8920
        %8980 = vmatprep.subr.mxu0 0.0
        %8981 = vmatpush1.msra.mxu0 %v8921
        %8982 = vmatprep.subr.mxu0 0.0
        %8983 = vmatpush1.msra.mxu0 %v8922
        %8984 = vmatprep.subr.mxu0 0.0
        %8985 = vmatpush1.msra.mxu0 %v8923
        %8986 = vmatprep.subr.mxu0 0.0
        %8987 = vmatpush1.msra.mxu0 %v8924
        %8988 = vmatprep.subr.mxu0 0.0
        %8989 = vmatpush1.msra.mxu0 %v8925
        %8990 = vmatprep.mubr.f32.mxu0 %v8885
        %8991 = vmatmul.mubr.f32.gmra.mrb[0].mxu0 %v8884
        %v8992 = vpop.f32.mrb[0].mxu0
        %v8993 = vadd.f32 0.0, %v8992
        %v8994 = vpop.f32.mrb[0].mxu0
        %8995 = vmatprep.mubr.f32.mxu0 %v8887
        %8996 = vmatmul.mubr.f32.gmra.mrb[0].mxu0 %v8886
        %v8997 = vpop.f32.mrb[0].mxu0
        %v8998 = vadd.f32 0.0, %v8997
        %v8999 = vpop.f32.mrb[0].mxu0
        %9000 = vmatprep.mubr.f32.mxu0 %v8889
        %9001 = vmatmul.mubr.f32.gmra.mrb[0].mxu0 %v8888
        %v9002 = vpop.f32.mrb[0].mxu0
        %v9003 = vadd.f32 0.0, %v9002
        %v9004 = vpop.f32.mrb[0].mxu0
        %9005 = vmatprep.mubr.f32.mxu0 %v8891
        %9006 = vmatmul.mubr.f32.gmra.mrb[0].mxu0 %v8890
        %v9007 = vpop.f32.mrb[0].mxu0
        %v9008 = vadd.f32 0.0, %v9007
        %v9009 = vpop.f32.mrb[0].mxu0
        %9010 = vmatprep.mubr.f32.mxu0 %v8893
        %9011 = vmatmul.mubr.f32.gmra.mrb[0].mxu0 %v8892
        %v9012 = vpop.f32.mrb[0].mxu0
        %v9013 = vadd.f32 0.0, %v9012
        %v9014 = vpop.f32.mrb[0].mxu0
        %9015 = vdwg.mxu0
        %v9016 = vld [vmem:[#allocation22] sm:$0x1]
        %v9017 = vadd.f32 %v9016, %v8993
        %v9020 = vunpack.c.l.s4 1966171168
        %v9021 = vunpack.c.0.s8 %v9020
        %v9022 = vlaneseq
        %v9023 = vshrl.u32 %v9022, 7
        %v9024 = vsub.s32 %v9021, %v9023
        %v9025 = vrot.slane %v8993, %v9024
        %v9026 = vcombine.high %v9025, %v9025
        %v9028 = vunpack.c.l.s4 1966171168
        %v9029 = vunpack.c.0.s8 %v9028
        %v9030 = vlaneseq
        %v9031 = vshrl.u32 %v9030, 7
        %v9032 = vsub.s32 %v9029, %v9031
        %v9033 = vrot.slane %v9025, %v9032
        %v9035 = vunpack.c.l.s4 1966171168
        %v9036 = vunpack.c.0.s8 %v9035
        %v9037 = vlaneseq
        %v9038 = vshrl.u32 %v9037, 7
        %v9039 = vsub.s32 %v9036, %v9038
        %v9040 = vrot.slane %v9026, %v9039
        %9041 = vrot.lane.b32.xlu0 %v9040, 120
        %v9042 = vpop.permute.xlu0 %9041
        %v9044 = vadd.f32 %v9017, %v9042
        %v9045 = vcombine.high %v9033, %v9033
        %9046 = vrot.lane.b32.xlu0 %v9045, 112
        %v9047 = vpop.permute.xlu0 %9046
        %v9049 = vadd.f32 %v9044, %v9047
        %v9050 = vcombine.high %v9040, %v9040
        %9051 = vrot.lane.b32.xlu0 %v9050, 104
        %v9052 = vpop.permute.xlu0 %9051
        %v9054 = vadd.f32 %v9049, %v9052
        %v9057 = vunpack.c.l.s4 1966171168
        %v9058 = vunpack.c.0.s8 %v9057
        %v9059 = vlaneseq
        %v9060 = vshrl.u32 %v9059, 7
        %v9061 = vsub.s32 %v9058, %v9060
        %v9062 = vrot.slane %v8998, %v9061
        %v9064 = vunpack.c.l.s4 1966171168
        %v9065 = vunpack.c.0.s8 %v9064
        %v9066 = vlaneseq
        %v9067 = vshrl.u32 %v9066, 7
        %v9068 = vsub.s32 %v9065, %v9067
        %v9069 = vrot.slane %v9062, %v9068
        %v9070 = vcombine.high %v9069, %v9069
        %9071 = vrot.lane.b32.xlu0 %v9070, 96
        %v9072 = vpop.permute.xlu0 %9071
        %v9074 = vadd.f32 %v9054, %v9072
        %v9075 = vcombine.high %v9062, %v9062
        %v9077 = vunpack.c.l.s4 1966171168
        %v9078 = vunpack.c.0.s8 %v9077
        %v9079 = vlaneseq
        %v9080 = vshrl.u32 %v9079, 7
        %v9081 = vsub.s32 %v9078, %v9080
        %v9082 = vrot.slane %v9075, %v9081
        %v9083 = vcombine.high %v9082, %v9082
        %9084 = vrot.lane.b32.xlu0 %v9083, 88
        %v9085 = vpop.permute.xlu0 %9084
        %v9087 = vadd.f32 %v9074, %v9085
        %v9088 = vcombine.high %v8998, %v8998
        %v9090 = vunpack.c.l.s4 1966171168
        %v9091 = vunpack.c.0.s8 %v9090
        %v9092 = vlaneseq
        %v9093 = vshrl.u32 %v9092, 7
        %v9094 = vsub.s32 %v9091, %v9093
        %v9095 = vrot.slane %v9088, %v9094
        %v9097 = vunpack.c.l.s4 1966171168
        %v9098 = vunpack.c.0.s8 %v9097
        %v9099 = vlaneseq
        %v9100 = vshrl.u32 %v9099, 7
        %v9101 = vsub.s32 %v9098, %v9100
        %v9102 = vrot.slane %v9095, %v9101
        %9103 = vrot.lane.b32.xlu0 %v9102, 80
        %v9104 = vpop.permute.xlu0 %9103
        %v9106 = vadd.f32 %v9087, %v9104
        %v9107 = vcombine.high %v9095, %v9095
        %v9109 = vunpack.c.l.s4 1966171168
        %v9110 = vunpack.c.0.s8 %v9109
        %v9111 = vlaneseq
        %v9112 = vshrl.u32 %v9111, 7
        %v9113 = vsub.s32 %v9110, %v9112
        %v9114 = vrot.slane %v9107, %v9113
        %9115 = vrot.lane.b32.xlu0 %v9114, 72
        %v9116 = vpop.permute.xlu0 %9115
        %v9118 = vadd.f32 %v9106, %v9116
        %v9120 = vcombine.high %v9003, %v9003
        %v9122 = vunpack.c.l.s4 1966171168
        %v9123 = vunpack.c.0.s8 %v9122
        %v9124 = vlaneseq
        %v9125 = vshrl.u32 %v9124, 7
        %v9126 = vsub.s32 %v9123, %v9125
        %v9127 = vrot.slane %v9120, %v9126
        %v9129 = vunpack.c.l.s4 1966171168
        %v9130 = vunpack.c.0.s8 %v9129
        %v9131 = vlaneseq
        %v9132 = vshrl.u32 %v9131, 7
        %v9133 = vsub.s32 %v9130, %v9132
        %v9134 = vrot.slane %v9127, %v9133
        %9135 = vrot.lane.b32.xlu0 %v9134, 64
        %v9136 = vpop.permute.xlu0 %9135
        %v9138 = vadd.f32 %v9118, %v9136
        %v9139 = vcombine.high %v9127, %v9127
        %v9141 = vunpack.c.l.s4 1966171168
        %v9142 = vunpack.c.0.s8 %v9141
        %v9143 = vlaneseq
        %v9144 = vshrl.u32 %v9143, 7
        %v9145 = vsub.s32 %v9142, %v9144
        %v9146 = vrot.slane %v9139, %v9145
        %9147 = vrot.lane.b32.xlu0 %v9146, 56
        %v9148 = vpop.permute.xlu0 %9147
        %v9150 = vadd.f32 %v9138, %v9148
        %v9151 = vcombine.high %v9134, %v9134
        %9152 = vrot.lane.b32.xlu0 %v9151, 48
        %v9153 = vpop.permute.xlu0 %9152
        %v9155 = vadd.f32 %v9150, %v9153
        %v9156 = vcombine.high %v9146, %v9146
        %9157 = vrot.lane.b32.xlu0 %v9156, 40
        %v9158 = vpop.permute.xlu0 %9157
        %v9160 = vadd.f32 %v9155, %v9158
        %v9162 = vcombine.high %v9008, %v9008
        %v9164 = vunpack.c.l.s4 1966171168
        %v9165 = vunpack.c.0.s8 %v9164
        %v9166 = vlaneseq
        %v9167 = vshrl.u32 %v9166, 7
        %v9168 = vsub.s32 %v9165, %v9167
        %v9169 = vrot.slane %v9162, %v9168
        %v9171 = vunpack.c.l.s4 1966171168
        %v9172 = vunpack.c.0.s8 %v9171
        %v9173 = vlaneseq
        %v9174 = vshrl.u32 %v9173, 7
        %v9175 = vsub.s32 %v9172, %v9174
        %v9176 = vrot.slane %v9169, %v9175
        %v9177 = vcombine.high %v9176, %v9176
        %9178 = vrot.lane.b32.xlu0 %v9177, 32
        %v9179 = vpop.permute.xlu0 %9178
        %v9181 = vadd.f32 %v9160, %v9179
        %v9182 = vcombine.high %v9169, %v9169
        %v9184 = vunpack.c.l.s4 1966171168
        %v9185 = vunpack.c.0.s8 %v9184
        %v9186 = vlaneseq
        %v9187 = vshrl.u32 %v9186, 7
        %v9188 = vsub.s32 %v9185, %v9187
        %v9189 = vrot.slane %v9182, %v9188
        %v9190 = vcombine.high %v9189, %v9189
        %9191 = vrot.lane.b32.xlu0 %v9190, 24
        %v9192 = vpop.permute.xlu0 %9191
        %v9194 = vadd.f32 %v9181, %v9192
        %v9197 = vunpack.c.l.s4 1966171168
        %v9198 = vunpack.c.0.s8 %v9197
        %v9199 = vlaneseq
        %v9200 = vshrl.u32 %v9199, 7
        %v9201 = vsub.s32 %v9198, %v9200
        %v9202 = vrot.slane %v9013, %v9201
        %v9204 = vunpack.c.l.s4 1966171168
        %v9205 = vunpack.c.0.s8 %v9204
        %v9206 = vlaneseq
        %v9207 = vshrl.u32 %v9206, 7
        %v9208 = vsub.s32 %v9205, %v9207
        %v9209 = vrot.slane %v9202, %v9208
        %9210 = vrot.lane.b32.xlu0 %v9209, 16
        %v9211 = vpop.permute.xlu0 %9210
        %v9213 = vadd.f32 %v9194, %v9211
        %v9214 = vcombine.high %v9202, %v9202
        %v9216 = vunpack.c.l.s4 1966171168
        %v9217 = vunpack.c.0.s8 %v9216
        %v9218 = vlaneseq
        %v9219 = vshrl.u32 %v9218, 7
        %v9220 = vsub.s32 %v9217, %v9219
        %v9221 = vrot.slane %v9214, %v9220
        %9222 = vrot.lane.b32.xlu0 %v9221, 8
        %v9223 = vpop.permute.xlu0 %9222
        %v9225 = vadd.f32 %v9213, %v9223
        %vm9226 = vcmask 57344
        %9227 = vst.msk [vmem:[%s628] sm:$0x1] %vm9226, %v9225
        %s9228 = sand.u32 %s363, 1
        %s9229 = scalar_lea.sflag [#allocation7], %s9228
        %s9230 = sand.u32 %s363, 1
        %s9231 = scalar_lea.vmem [#allocation23], %s9230
        // Predicated region
        $region125: #{cnn_nomam_forward.1} parent=79 // pred_check
          %p9232 = pneg %p373
        $region126: #{cnn_nomam_forward.1} parent=79 // pred_check_branch
          %9234 = sbr.rel (%p9232) target = $region128
        $region127: #{cnn_nomam_forward.1} parent=79 // pred_region
          %s9236 = ssub.s32 16, 16
          %9237 = vsyncadd %s9229, %s9236
          %s9238 = smul.addr %s35, 16
          %s9239 = scalar_lea.hbm %s15, %s9238
          %s9241 = sshll.u32 %s9231, 4
          %s9242 = int_to_ptr.vmem [resolvable:$true] %s9241
          %9244 = dma.vmem_to_hbm [thread:$0]  %s9242, 16, %s9239, %s9229
        $region128: #{cnn_nomam_forward.1} parent=79 // pred_fallthru
          _
      $region80: #{cnn_nomam_forward.1} parent=5 // pred_fallthru
        _
      %p9245 = scmp.le.s32.totalorder 2, %s30
      // Predicated region
      $region129: #{cnn_nomam_forward.1} parent=5 // pred_check
        %p9246 = pneg %p9245
      $region130: #{cnn_nomam_forward.1} parent=5 // pred_check_branch
        %9248 = sbr.rel (%p9246) target = $region132
      $region131: #{cnn_nomam_forward.1} parent=5 // pred_region
        %s9249 = ssub.s32 %s30, 2
        // Predicated region
        $region133: #{cnn_nomam_forward.1} parent=131 // pred_check
          %p9250 = pneg %p379
        $region134: #{cnn_nomam_forward.1} parent=131 // pred_check_branch
          %9252 = sbr.rel (%p9250) target = $region136
        $region135: #{cnn_nomam_forward.1} parent=131 // pred_region
          %s9253 = sand.u32 %s364, 1
          %s9254 = scalar_lea.sflag [#allocation7], %s9253
          %s9255 = sand.u32 %s364, 1
          %s9256 = scalar_lea.vmem [#allocation23], %s9255
          %9257 = dma.done %s9254, 16
        $region136: #{cnn_nomam_forward.1} parent=131 // pred_fallthru
          _
      $region132: #{cnn_nomam_forward.1} parent=5 // pred_fallthru
        _
    $region6: #{cnn_nomam_forward.1} parent=1 // loop_footer
      %s34 = sadd.s32 1, %s30
    $region7: #{cnn_nomam_forward.1} parent=1 // loop_footer_branch
      %29 = sbr.rel target = $region3
    $region8: #{cnn_nomam_forward.1} parent=1 // loop_exit
      _
    %9258 = vsyncpa [#allocation6], 1
    %s9259 = scalar_lea.sflag [#allocation6], 1
    %9260 = vsyncpa %s9259, 1
    %9261 = vsyncpa [#allocation9], 1
    %9262 = vsyncpa [#allocation12], 1
    %9263 = vsyncpa [#allocation15], 1
    %9264 = vsyncpa [#allocation18], 1
    %9265 = vsyncpa [#allocation21], 1
    %9266 = vsyncpa [#allocation7], 1
    %s9267 = scalar_lea.sflag [#allocation7], 1
    %9268 = vsyncpa %s9267, 1

</llo_original>
